<compile_context>
chip_gen: v6e
topology: v6e:2x2x1
jax: 0.10.0
libtpu: 0.0.40
codegen_flags: <defaults>
</compile_context>

<pallas_src>
import jax
import jax.numpy as jnp
from jax import lax
from jax.experimental import pallas as pl
from jax.experimental.pallas import tpu as pltpu

LRELU_SLOPE = 0.2
BN_EPS = 1e-5
LANE = 128            # pad channel dims to a multiple of the TPU lane width
SUBLANE = 8
MAX_TILE_ROWS = 512   # row-tile size; comfortably inside the 32 MiB default
                      # scoped VMEM even on v7x (64 MiB physical) at these K's
CIN0_PAD = 8          # pad RGB (3) -> 8 channels so layer-1 K = 8*16 = 128


def _round_up(x, m):
    return (x + m - 1) // m * m


# ------------------------- Pallas kernels (hot path) -------------------------

def _matmul_lrelu_kernel(p_ref, w_ref, o_ref):
    # bf16 x bf16 -> f32 accumulate on the MXU, LeakyReLU(0.2), store bf16.
    y = jnp.dot(p_ref[...], w_ref[...], preferred_element_type=jnp.float32)
    o_ref[...] = jnp.where(y > 0, y, LRELU_SLOPE * y).astype(o_ref.dtype)


def _matmul_stats_kernel(p_ref, w_ref, y_ref, stats_ref):
    # Conv-as-matmul + per-tile partial BN statistics (sum, sum of squares),
    # both computed from the f32 accumulator.
    y = jnp.dot(p_ref[...], w_ref[...], preferred_element_type=jnp.float32)
    y_ref[...] = y
    s1 = jnp.sum(y, axis=0, keepdims=True)
    s2 = jnp.sum(y * y, axis=0, keepdims=True)
    stats_ref[...] = jnp.concatenate([s1, s2], axis=0).reshape(1, 2, -1)


def _bn_lrelu_kernel(y_ref, aff_ref, o_ref):
    # Normalize with precomputed (scale, shift) + LeakyReLU(0.2), store bf16.
    y = y_ref[...]
    scale = aff_ref[0:1, :]
    shift = aff_ref[1:2, :]
    z = y * scale + shift
    o_ref[...] = jnp.where(z > 0, z, LRELU_SLOPE * z).astype(o_ref.dtype)


def _matmul_sigmoid_kernel(p_ref, w_ref, o_ref):
    y = jnp.dot(p_ref[...], w_ref[...], preferred_element_type=jnp.float32)
    o_ref[...] = jax.nn.sigmoid(y)


# ------------------------------ pallas_call glue ------------------------------

def _compiler_params():
    # Row-tile axis is fully independent per tile -> "parallel" (v7x megacore).
    return pltpu.CompilerParams(dimension_semantics=("parallel",))


def _row_tiling(rows):
    tile = min(MAX_TILE_ROWS, _round_up(rows, SUBLANE))
    return tile, _round_up(rows, tile)


def _conv_matmul_call(kernel, patches, w_flat, out_shape, out_specs, tile_r):
    rows_p, k = patches.shape
    grid = rows_p // tile_r
    return pl.pallas_call(
        kernel,
        out_shape=out_shape,
        grid=(grid,),
        in_specs=[
            pl.BlockSpec((tile_r, k), lambda i: (i, 0)),
            # Constant block index -> weight DMA'd once, VMEM-resident for the
            # whole row grid (no per-tile re-fetch).
            pl.BlockSpec((k, w_flat.shape[1]), lambda i: (0, 0)),
        ],
        out_specs=out_specs,
        compiler_params=_compiler_params(),
    )(patches, w_flat)


# ------------------------------- XLA-side glue --------------------------------

def _im2col_nhwc(x, stride, pad):
    """NHWC (channels already lane-padded, bf16) -> (rows_padded, 16*C) patches."""
    n, h, w, c = x.shape
    if pad:
        x = jnp.pad(x, ((0, 0), (pad, pad), (pad, pad), (0, 0)))
    hp, wp = h + 2 * pad, w + 2 * pad
    ho = (hp - 4) // stride + 1
    wo = (wp - 4) // stride + 1
    cols = [
        x[:, ki:ki + stride * (ho - 1) + 1:stride,
             kj:kj + stride * (wo - 1) + 1:stride, :]
        for ki in range(4) for kj in range(4)
    ]
    p = jnp.concatenate(cols, axis=-1).reshape(n * ho * wo, 16 * c)
    rows = n * ho * wo
    tile_r, rows_p = _row_tiling(rows)
    if rows_p > rows:
        # zero rows: contribute nothing to BN partial sums, sliced off afterwards
        p = jnp.pad(p, ((0, rows_p - rows), (0, 0)))
    return p, rows, tile_r, ho, wo


def _flatten_weight(w, c_in_pad, c_out_pad):
    c_out, c_in, kh, kw = w.shape
    w = jnp.pad(w, ((0, c_out_pad - c_out), (0, c_in_pad - c_in), (0, 0), (0, 0)))
    # (ki, kj, c_in) flatten order matches the patch concatenation order above.
    return (w.transpose(2, 3, 1, 0)
             .reshape(kh * kw * c_in_pad, c_out_pad)
             .astype(jnp.bfloat16))


def _conv_block(x_nhwc, w, stride, pad, gamma=None, beta=None, final=False):
    n = x_nhwc.shape[0]
    c_in_pad = x_nhwc.shape[-1]
    c_out = w.shape[0]
    c_out_pad = _round_up(c_out, LANE)

    p, rows, tile_r, ho, wo = _im2col_nhwc(x_nhwc, stride, pad)
    rows_p = p.shape[0]
    grid = rows_p // tile_r
    wf = _flatten_weight(w, c_in_pad, c_out_pad)

    if final:
        y = _conv_matmul_call(
            _matmul_sigmoid_kernel, p, wf,
            jax.ShapeDtypeStruct((rows_p, c_out_pad), jnp.float32),
            pl.BlockSpec((tile_r, c_out_pad), lambda i: (i, 0)),
            tile_r)
        return y[:rows, :c_out].reshape(n, ho, wo, c_out)

    if gamma is None:
        act = _conv_matmul_call(
            _matmul_lrelu_kernel, p, wf,
            jax.ShapeDtypeStruct((rows_p, c_out_pad), jnp.bfloat16),
            pl.BlockSpec((tile_r, c_out_pad), lambda i: (i, 0)),
            tile_r)
        return act[:rows].reshape(n, ho, wo, c_out_pad)

    # Conv + BatchNorm2d (train-mode batch stats) + LeakyReLU: two tiled passes.
    y, part = _conv_matmul_call(
        _matmul_stats_kernel, p, wf,
        (jax.ShapeDtypeStruct((rows_p, c_out_pad), jnp.float32),
         jax.ShapeDtypeStruct((grid, 2, c_out_pad), jnp.float32)),
        (pl.BlockSpec((tile_r, c_out_pad), lambda i: (i, 0)),
         pl.BlockSpec((1, 2, c_out_pad), lambda i: (i, 0, 0))),
        tile_r)

    # Tiny reduction of per-tile partial sums; stats over *valid* rows only
    # (zero-padded rows contribute 0 to both sums).
    sums = jnp.sum(part, axis=0)                                 # (2, c_out_pad)
    count = jnp.float32(rows)
    mean = sums[0] / count
    var = jnp.maximum(sums[1] / count - mean * mean, 0.0)        # biased var
    g = jnp.pad(gamma.astype(jnp.float32), (0, c_out_pad - c_out))
    b = jnp.pad(beta.astype(jnp.float32), (0, c_out_pad - c_out))
    scale = g * lax.rsqrt(var + BN_EPS)
    shift = b - mean * scale
    affine = jnp.stack([scale, shift], axis=0)                   # (2, c_out_pad)

    act = pl.pallas_call(
        _bn_lrelu_kernel,
        out_shape=jax.ShapeDtypeStruct((rows_p, c_out_pad), jnp.bfloat16),
        grid=(grid,),
        in_specs=[pl.BlockSpec((tile_r, c_out_pad), lambda i: (i, 0)),
                  pl.BlockSpec((2, c_out_pad), lambda i: (0, 0))],
        out_specs=pl.BlockSpec((tile_r, c_out_pad), lambda i: (i, 0)),
        compiler_params=_compiler_params(),
    )(y, affine)
    return act[:rows].reshape(n, ho, wo, c_out_pad)


# ------------------------------- forward pass --------------------------------

def discriminator_forward(x, params):
    # NCHW -> NHWC once at the model boundary; pad RGB 3 -> 8 channels and cast
    # to bf16 so the layer-1 K is 128 (lane dense) and matmuls run at MXU rate.
    x = jnp.transpose(x, (0, 2, 3, 1)).astype(jnp.bfloat16)
    x = jnp.pad(x, ((0, 0), (0, 0), (0, 0), (0, CIN0_PAD - x.shape[-1])))

    h = _conv_block(x, params["w1"], 2, 1)                                  # (N, 32, 32, pad(ndf))
    h = _conv_block(h, params["w2"], 2, 1, params["g2"], params["b2"])      # (N, 16, 16, pad(2ndf))
    h = _conv_block(h, params["w3"], 2, 1, params["g3"], params["b3"])      # (N,  8,  8, pad(4ndf))
    h = _conv_block(h, params["w4"], 2, 1, params["g4"], params["b4"])      # (N,  4,  4, pad(8ndf))
    h = _conv_block(h, params["w5"], 1, 0, final=True)                      # (N,  1,  1, 1) f32
    return h.reshape(-1)  # matches .view(-1)


# -------------------------- deterministic parameters --------------------------

def init_params(key, ndf):
    ks = jax.random.split(key, 5)

    def conv_w(k, cout, cin):
        return 0.02 * jax.random.normal(k, (cout, cin, 4, 4), jnp.float32)

    return {
        "w1": conv_w(ks[0], ndf, 3),
        "w2": conv_w(ks[1], ndf * 2, ndf),
        "w3": conv_w(ks[2], ndf * 4, ndf * 2),
        "w4": conv_w(ks[3], ndf * 8, ndf * 4),
        "w5": conv_w(ks[4], 1, ndf * 8),
        "g2": jnp.ones((ndf * 2,), jnp.float32), "b2": jnp.zeros((ndf * 2,), jnp.float32),
        "g3": jnp.ones((ndf * 4,), jnp.float32), "b3": jnp.zeros((ndf * 4,), jnp.float32),
        "g4": jnp.ones((ndf * 8,), jnp.float32), "b4": jnp.zeros((ndf * 8,), jnp.float32),
    }


if __name__ == "__main__":
    batch, ndf, image_size = 2, 16, 64   # image_size must be 64 for the 5-conv stack to reach 1x1
    key = jax.random.PRNGKey(0)
    kx, kp = jax.random.split(key)
    x = jax.random.normal(kx, (batch, 3, image_size, image_size), jnp.float32)
    params = init_params(kp, ndf)

    out = jax.jit(discriminator_forward)(x, params)
    out = jax.block_until_ready(out)

    assert out.shape == (batch,), out.shape
    assert bool(jnp.all(jnp.isfinite(out)))
    assert bool(jnp.all((out >= 0.0) & (out <= 1.0)))
    print("KERNEL_OK")
</pallas_src>

<mosaic_0001>
module attributes {stable_mosaic.version = 11 : i64} {
  func.func @_matmul_lrelu_kernel(%arg0: i32, %arg1: memref<512x128xbf16, #tpu.memory_space<vmem>>, %arg2: memref<128x128xbf16, #tpu.memory_space<vmem>>, %arg3: memref<512x128xbf16, #tpu.memory_space<vmem>>) attributes {dimension_semantics = [#tpu.dimension_semantics<parallel>], iteration_bounds = array<i64: 4>, scalar_prefetch = 0 : i64, scratch_operands = 0 : i64, tpu.core_type = #tpu.core_type<tc>, window_params = [{transform_indices = @transform_0, window_bounds = array<i64: 512, 128>}, {pipeline_mode = #tpu.pipeline_mode<synchronous>, transform_indices = @transform_1, window_bounds = array<i64: 128, 128>}, {transform_indices = @transform_2, window_bounds = array<i64: 512, 128>}]} {
    %c0 = arith.constant 0 : index
    %c0_0 = arith.constant 0 : index
    %0 = vector.load %arg1[%c0, %c0_0] : memref<512x128xbf16, #tpu.memory_space<vmem>>, vector<512x128xbf16>
    %c0_1 = arith.constant 0 : index
    %c0_2 = arith.constant 0 : index
    %1 = vector.load %arg2[%c0_1, %c0_2] : memref<128x128xbf16, #tpu.memory_space<vmem>>, vector<128x128xbf16>
    %cst = arith.constant dense<0.000000e+00> : vector<512x128xf32>
    %2 = tpu.matmul %0, %1, %cst {dimension_numbers = #tpu.dot_dimension_numbers<[1], [0], [0], [1], [0, 0, 1, 1], [], []>} : vector<512x128xbf16>, vector<128x128xbf16>, vector<512x128xf32> -> vector<512x128xf32>
    %cst_3 = arith.constant 0.000000e+00 : f32
    %3 = vector.broadcast %cst_3 : f32 to vector<512x128xf32>
    %4 = arith.cmpf ogt, %2, %3 : vector<512x128xf32>
    %cst_4 = arith.constant 2.000000e-01 : f32
    %5 = vector.broadcast %cst_4 : f32 to vector<512x128xf32>
    %6 = arith.mulf %5, %2 : vector<512x128xf32>
    %7 = arith.select %4, %2, %6 : vector<512x128xi1>, vector<512x128xf32>
    %8 = arith.truncf %7 : vector<512x128xf32> to vector<512x128xbf16>
    %c0_5 = arith.constant 0 : index
    %c0_6 = arith.constant 0 : index
    %9 = vector.load %arg3[%c0_5, %c0_6] : memref<512x128xbf16, #tpu.memory_space<vmem>>, vector<512x128xbf16>
    tpu.vector_store %arg3[%c0_5, %c0_6], %8 {strides = array<i32>} : memref<512x128xbf16, #tpu.memory_space<vmem>>, vector<512x128xbf16>,
    return
  }
  func.func @transform_0(%arg0: i32) -> (i32, i32) {
    %c0_i32 = arith.constant 0 : i32
    %c0_i32_0 = arith.constant 0 : i32
    return %arg0, %c0_i32 : i32, i32
  }
  func.func @transform_1(%arg0: i32) -> (i32, i32) {
    %c0_i32 = arith.constant 0 : i32
    %c0_i32_0 = arith.constant 0 : i32
    %c0_i32_1 = arith.constant 0 : i32
    return %c0_i32, %c0_i32_0 : i32, i32
  }
  func.func @transform_2(%arg0: i32) -> (i32, i32) {
    %c0_i32 = arith.constant 0 : i32
    %c0_i32_0 = arith.constant 0 : i32
    return %arg0, %c0_i32 : i32, i32
  }
}

module attributes {stable_mosaic.version = 11 : i64} {
  func.func @_matmul_stats_kernel(%arg0: i32, %arg1: memref<512x2048xbf16, #tpu.memory_space<vmem>>, %arg2: memref<2048x128xbf16, #tpu.memory_space<vmem>>, %arg3: memref<512x128xf32, #tpu.memory_space<vmem>>, %arg4: memref<1x2x128xf32, #tpu.memory_space<vmem>>) attributes {dimension_semantics = [#tpu.dimension_semantics<parallel>], iteration_bounds = array<i64: 1>, scalar_prefetch = 0 : i64, scratch_operands = 0 : i64, tpu.core_type = #tpu.core_type<tc>, window_params = [{transform_indices = @transform_0, window_bounds = array<i64: 512, 2048>}, {pipeline_mode = #tpu.pipeline_mode<synchronous>, transform_indices = @transform_1, window_bounds = array<i64: 2048, 128>}, {transform_indices = @transform_2, window_bounds = array<i64: 512, 128>}, {transform_indices = @transform_3, window_bounds = array<i64: 1, 2, 128>}]} {
    %c0 = arith.constant 0 : index
    %c0_0 = arith.constant 0 : index
    %0 = vector.load %arg1[%c0, %c0_0] : memref<512x2048xbf16, #tpu.memory_space<vmem>>, vector<512x2048xbf16>
    %c0_1 = arith.constant 0 : index
    %c0_2 = arith.constant 0 : index
    %1 = vector.load %arg2[%c0_1, %c0_2] : memref<2048x128xbf16, #tpu.memory_space<vmem>>, vector<2048x128xbf16>
    %cst = arith.constant dense<0.000000e+00> : vector<512x128xf32>
    %2 = tpu.matmul %0, %1, %cst {dimension_numbers = #tpu.dot_dimension_numbers<[1], [0], [0], [1], [0, 0, 1, 1], [], []>} : vector<512x2048xbf16>, vector<2048x128xbf16>, vector<512x128xf32> -> vector<512x128xf32>
    %c0_3 = arith.constant 0 : index
    %c0_4 = arith.constant 0 : index
    %3 = vector.load %arg3[%c0_3, %c0_4] : memref<512x128xf32, #tpu.memory_space<vmem>>, vector<512x128xf32>
    tpu.vector_store %arg3[%c0_3, %c0_4], %2 {strides = array<i32>} : memref<512x128xf32, #tpu.memory_space<vmem>>, vector<512x128xf32>,
    %cst_5 = arith.constant dense<0.000000e+00> : vector<128xf32>
    %4 = vector.multi_reduction <add>, %2, %cst_5 [0] : vector<512x128xf32> to vector<128xf32>
    %5 = vector.shape_cast %4 : vector<128xf32> to vector<1x128xf32>
    %6 = arith.mulf %2, %2 : vector<512x128xf32>
    %cst_6 = arith.constant dense<0.000000e+00> : vector<128xf32>
    %7 = vector.multi_reduction <add>, %6, %cst_6 [0] : vector<512x128xf32> to vector<128xf32>
    %8 = vector.shape_cast %7 : vector<128xf32> to vector<1x128xf32>
    %9 = tpu.concatenate %5, %8 in 0 : vector<1x128xf32>, vector<1x128xf32> -> vector<2x128xf32>
    %10 = vector.shape_cast %9 : vector<2x128xf32> to vector<1x2x128xf32>
    %c0_7 = arith.constant 0 : index
    %c0_8 = arith.constant 0 : index
    %c0_9 = arith.constant 0 : index
    %11 = vector.load %arg4[%c0_7, %c0_8, %c0_9] : memref<1x2x128xf32, #tpu.memory_space<vmem>>, vector<1x2x128xf32>
    tpu.vector_store %arg4[%c0_7, %c0_8, %c0_9], %10 {strides = array<i32>} : memref<1x2x128xf32, #tpu.memory_space<vmem>>, vector<1x2x128xf32>,
    return
  }
  func.func @transform_0(%arg0: i32) -> (i32, i32) {
    %c0_i32 = arith.constant 0 : i32
    %c0_i32_0 = arith.constant 0 : i32
    return %arg0, %c0_i32 : i32, i32
  }
  func.func @transform_1(%arg0: i32) -> (i32, i32) {
    %c0_i32 = arith.constant 0 : i32
    %c0_i32_0 = arith.constant 0 : i32
    %c0_i32_1 = arith.constant 0 : i32
    return %c0_i32, %c0_i32_0 : i32, i32
  }
  func.func @transform_2(%arg0: i32) -> (i32, i32) {
    %c0_i32 = arith.constant 0 : i32
    %c0_i32_0 = arith.constant 0 : i32
    return %arg0, %c0_i32 : i32, i32
  }
  func.func @transform_3(%arg0: i32) -> (i32, i32, i32) {
    %c0_i32 = arith.constant 0 : i32
    %c0_i32_0 = arith.constant 0 : i32
    %c0_i32_1 = arith.constant 0 : i32
    return %arg0, %c0_i32, %c0_i32_0 : i32, i32, i32
  }
}

module attributes {stable_mosaic.version = 11 : i64} {
  func.func @_bn_lrelu_kernel(%arg0: i32, %arg1: memref<512x128xf32, #tpu.memory_space<vmem>>, %arg2: memref<2x128xf32, #tpu.memory_space<vmem>>, %arg3: memref<512x128xbf16, #tpu.memory_space<vmem>>) attributes {dimension_semantics = [#tpu.dimension_semantics<parallel>], iteration_bounds = array<i64: 1>, scalar_prefetch = 0 : i64, scratch_operands = 0 : i64, tpu.core_type = #tpu.core_type<tc>, window_params = [{transform_indices = @transform_0, window_bounds = array<i64: 512, 128>}, {pipeline_mode = #tpu.pipeline_mode<synchronous>, transform_indices = @transform_1, window_bounds = array<i64: 2, 128>}, {transform_indices = @transform_2, window_bounds = array<i64: 512, 128>}]} {
    %c0 = arith.constant 0 : index
    %c0_0 = arith.constant 0 : index
    %0 = vector.load %arg1[%c0, %c0_0] : memref<512x128xf32, #tpu.memory_space<vmem>>, vector<512x128xf32>
    %c0_1 = arith.constant 0 : index
    %c0_2 = arith.constant 0 : index
    %1 = vector.load %arg2[%c0_1, %c0_2] : memref<2x128xf32, #tpu.memory_space<vmem>>, vector<1x128xf32>
    %c1 = arith.constant 1 : index
    %c0_3 = arith.constant 0 : index
    %2 = vector.load %arg2[%c1, %c0_3] : memref<2x128xf32, #tpu.memory_space<vmem>>, vector<1x128xf32>
    %3 = vector.broadcast %1 : vector<1x128xf32> to vector<512x128xf32>
    %4 = arith.mulf %0, %3 : vector<512x128xf32>
    %5 = vector.broadcast %2 : vector<1x128xf32> to vector<512x128xf32>
    %6 = arith.addf %4, %5 : vector<512x128xf32>
    %cst = arith.constant 0.000000e+00 : f32
    %7 = vector.broadcast %cst : f32 to vector<512x128xf32>
    %8 = arith.cmpf ogt, %6, %7 : vector<512x128xf32>
    %cst_4 = arith.constant 2.000000e-01 : f32
    %9 = vector.broadcast %cst_4 : f32 to vector<512x128xf32>
    %10 = arith.mulf %9, %6 : vector<512x128xf32>
    %11 = arith.select %8, %6, %10 : vector<512x128xi1>, vector<512x128xf32>
    %12 = arith.truncf %11 : vector<512x128xf32> to vector<512x128xbf16>
    %c0_5 = arith.constant 0 : index
    %c0_6 = arith.constant 0 : index
    %13 = vector.load %arg3[%c0_5, %c0_6] : memref<512x128xbf16, #tpu.memory_space<vmem>>, vector<512x128xbf16>
    tpu.vector_store %arg3[%c0_5, %c0_6], %12 {strides = array<i32>} : memref<512x128xbf16, #tpu.memory_space<vmem>>, vector<512x128xbf16>,
    return
  }
  func.func @transform_0(%arg0: i32) -> (i32, i32) {
    %c0_i32 = arith.constant 0 : i32
    %c0_i32_0 = arith.constant 0 : i32
    return %arg0, %c0_i32 : i32, i32
  }
  func.func @transform_1(%arg0: i32) -> (i32, i32) {
    %c0_i32 = arith.constant 0 : i32
    %c0_i32_0 = arith.constant 0 : i32
    %c0_i32_1 = arith.constant 0 : i32
    return %c0_i32, %c0_i32_0 : i32, i32
  }
  func.func @transform_2(%arg0: i32) -> (i32, i32) {
    %c0_i32 = arith.constant 0 : i32
    %c0_i32_0 = arith.constant 0 : i32
    return %arg0, %c0_i32 : i32, i32
  }
}

module attributes {stable_mosaic.version = 11 : i64} {
  func.func @_matmul_stats_kernel(%arg0: i32, %arg1: memref<128x2048xbf16, #tpu.memory_space<vmem>>, %arg2: memref<2048x128xbf16, #tpu.memory_space<vmem>>, %arg3: memref<128x128xf32, #tpu.memory_space<vmem>>, %arg4: memref<1x2x128xf32, #tpu.memory_space<vmem>>) attributes {dimension_semantics = [#tpu.dimension_semantics<parallel>], iteration_bounds = array<i64: 1>, scalar_prefetch = 0 : i64, scratch_operands = 0 : i64, tpu.core_type = #tpu.core_type<tc>, window_params = [{transform_indices = @transform_0, window_bounds = array<i64: 128, 2048>}, {pipeline_mode = #tpu.pipeline_mode<synchronous>, transform_indices = @transform_1, window_bounds = array<i64: 2048, 128>}, {transform_indices = @transform_2, window_bounds = array<i64: 128, 128>}, {transform_indices = @transform_3, window_bounds = array<i64: 1, 2, 128>}]} {
    %c0 = arith.constant 0 : index
    %c0_0 = arith.constant 0 : index
    %0 = vector.load %arg1[%c0, %c0_0] : memref<128x2048xbf16, #tpu.memory_space<vmem>>, vector<128x2048xbf16>
    %c0_1 = arith.constant 0 : index
    %c0_2 = arith.constant 0 : index
    %1 = vector.load %arg2[%c0_1, %c0_2] : memref<2048x128xbf16, #tpu.memory_space<vmem>>, vector<2048x128xbf16>
    %cst = arith.constant dense<0.000000e+00> : vector<128x128xf32>
    %2 = tpu.matmul %0, %1, %cst {dimension_numbers = #tpu.dot_dimension_numbers<[1], [0], [0], [1], [0, 0, 1, 1], [], []>} : vector<128x2048xbf16>, vector<2048x128xbf16>, vector<128x128xf32> -> vector<128x128xf32>
    %c0_3 = arith.constant 0 : index
    %c0_4 = arith.constant 0 : index
    %3 = vector.load %arg3[%c0_3, %c0_4] : memref<128x128xf32, #tpu.memory_space<vmem>>, vector<128x128xf32>
    tpu.vector_store %arg3[%c0_3, %c0_4], %2 {strides = array<i32>} : memref<128x128xf32, #tpu.memory_space<vmem>>, vector<128x128xf32>,
    %cst_5 = arith.constant dense<0.000000e+00> : vector<128xf32>
    %4 = vector.multi_reduction <add>, %2, %cst_5 [0] : vector<128x128xf32> to vector<128xf32>
    %5 = vector.shape_cast %4 : vector<128xf32> to vector<1x128xf32>
    %6 = arith.mulf %2, %2 : vector<128x128xf32>
    %cst_6 = arith.constant dense<0.000000e+00> : vector<128xf32>
    %7 = vector.multi_reduction <add>, %6, %cst_6 [0] : vector<128x128xf32> to vector<128xf32>
    %8 = vector.shape_cast %7 : vector<128xf32> to vector<1x128xf32>
    %9 = tpu.concatenate %5, %8 in 0 : vector<1x128xf32>, vector<1x128xf32> -> vector<2x128xf32>
    %10 = vector.shape_cast %9 : vector<2x128xf32> to vector<1x2x128xf32>
    %c0_7 = arith.constant 0 : index
    %c0_8 = arith.constant 0 : index
    %c0_9 = arith.constant 0 : index
    %11 = vector.load %arg4[%c0_7, %c0_8, %c0_9] : memref<1x2x128xf32, #tpu.memory_space<vmem>>, vector<1x2x128xf32>
    tpu.vector_store %arg4[%c0_7, %c0_8, %c0_9], %10 {strides = array<i32>} : memref<1x2x128xf32, #tpu.memory_space<vmem>>, vector<1x2x128xf32>,
    return
  }
  func.func @transform_0(%arg0: i32) -> (i32, i32) {
    %c0_i32 = arith.constant 0 : i32
    %c0_i32_0 = arith.constant 0 : i32
    return %arg0, %c0_i32 : i32, i32
  }
  func.func @transform_1(%arg0: i32) -> (i32, i32) {
    %c0_i32 = arith.constant 0 : i32
    %c0_i32_0 = arith.constant 0 : i32
    %c0_i32_1 = arith.constant 0 : i32
    return %c0_i32, %c0_i32_0 : i32, i32
  }
  func.func @transform_2(%arg0: i32) -> (i32, i32) {
    %c0_i32 = arith.constant 0 : i32
    %c0_i32_0 = arith.constant 0 : i32
    return %arg0, %c0_i32 : i32, i32
  }
  func.func @transform_3(%arg0: i32) -> (i32, i32, i32) {
    %c0_i32 = arith.constant 0 : i32
    %c0_i32_0 = arith.constant 0 : i32
    %c0_i32_1 = arith.constant 0 : i32
    return %arg0, %c0_i32, %c0_i32_0 : i32, i32, i32
  }
}

module attributes {stable_mosaic.version = 11 : i64} {
  func.func @_bn_lrelu_kernel(%arg0: i32, %arg1: memref<128x128xf32, #tpu.memory_space<vmem>>, %arg2: memref<2x128xf32, #tpu.memory_space<vmem>>, %arg3: memref<128x128xbf16, #tpu.memory_space<vmem>>) attributes {dimension_semantics = [#tpu.dimension_semantics<parallel>], iteration_bounds = array<i64: 1>, scalar_prefetch = 0 : i64, scratch_operands = 0 : i64, tpu.core_type = #tpu.core_type<tc>, window_params = [{transform_indices = @transform_0, window_bounds = array<i64: 128, 128>}, {pipeline_mode = #tpu.pipeline_mode<synchronous>, transform_indices = @transform_1, window_bounds = array<i64: 2, 128>}, {transform_indices = @transform_2, window_bounds = array<i64: 128, 128>}]} {
    %c0 = arith.constant 0 : index
    %c0_0 = arith.constant 0 : index
    %0 = vector.load %arg1[%c0, %c0_0] : memref<128x128xf32, #tpu.memory_space<vmem>>, vector<128x128xf32>
    %c0_1 = arith.constant 0 : index
    %c0_2 = arith.constant 0 : index
    %1 = vector.load %arg2[%c0_1, %c0_2] : memref<2x128xf32, #tpu.memory_space<vmem>>, vector<1x128xf32>
    %c1 = arith.constant 1 : index
    %c0_3 = arith.constant 0 : index
    %2 = vector.load %arg2[%c1, %c0_3] : memref<2x128xf32, #tpu.memory_space<vmem>>, vector<1x128xf32>
    %3 = vector.broadcast %1 : vector<1x128xf32> to vector<128x128xf32>
    %4 = arith.mulf %0, %3 : vector<128x128xf32>
    %5 = vector.broadcast %2 : vector<1x128xf32> to vector<128x128xf32>
    %6 = arith.addf %4, %5 : vector<128x128xf32>
    %cst = arith.constant 0.000000e+00 : f32
    %7 = vector.broadcast %cst : f32 to vector<128x128xf32>
    %8 = arith.cmpf ogt, %6, %7 : vector<128x128xf32>
    %cst_4 = arith.constant 2.000000e-01 : f32
    %9 = vector.broadcast %cst_4 : f32 to vector<128x128xf32>
    %10 = arith.mulf %9, %6 : vector<128x128xf32>
    %11 = arith.select %8, %6, %10 : vector<128x128xi1>, vector<128x128xf32>
    %12 = arith.truncf %11 : vector<128x128xf32> to vector<128x128xbf16>
    %c0_5 = arith.constant 0 : index
    %c0_6 = arith.constant 0 : index
    %13 = vector.load %arg3[%c0_5, %c0_6] : memref<128x128xbf16, #tpu.memory_space<vmem>>, vector<128x128xbf16>
    tpu.vector_store %arg3[%c0_5, %c0_6], %12 {strides = array<i32>} : memref<128x128xbf16, #tpu.memory_space<vmem>>, vector<128x128xbf16>,
    return
  }
  func.func @transform_0(%arg0: i32) -> (i32, i32) {
    %c0_i32 = arith.constant 0 : i32
    %c0_i32_0 = arith.constant 0 : i32
    return %arg0, %c0_i32 : i32, i32
  }
  func.func @transform_1(%arg0: i32) -> (i32, i32) {
    %c0_i32 = arith.constant 0 : i32
    %c0_i32_0 = arith.constant 0 : i32
    %c0_i32_1 = arith.constant 0 : i32
    return %c0_i32, %c0_i32_0 : i32, i32
  }
  func.func @transform_2(%arg0: i32) -> (i32, i32) {
    %c0_i32 = arith.constant 0 : i32
    %c0_i32_0 = arith.constant 0 : i32
    return %arg0, %c0_i32 : i32, i32
  }
}

module attributes {stable_mosaic.version = 11 : i64} {
  func.func @_matmul_stats_kernel(%arg0: i32, %arg1: memref<32x2048xbf16, #tpu.memory_space<vmem>>, %arg2: memref<2048x128xbf16, #tpu.memory_space<vmem>>, %arg3: memref<32x128xf32, #tpu.memory_space<vmem>>, %arg4: memref<1x2x128xf32, #tpu.memory_space<vmem>>) attributes {dimension_semantics = [#tpu.dimension_semantics<parallel>], iteration_bounds = array<i64: 1>, scalar_prefetch = 0 : i64, scratch_operands = 0 : i64, tpu.core_type = #tpu.core_type<tc>, window_params = [{transform_indices = @transform_0, window_bounds = array<i64: 32, 2048>}, {pipeline_mode = #tpu.pipeline_mode<synchronous>, transform_indices = @transform_1, window_bounds = array<i64: 2048, 128>}, {transform_indices = @transform_2, window_bounds = array<i64: 32, 128>}, {transform_indices = @transform_3, window_bounds = array<i64: 1, 2, 128>}]} {
    %c0 = arith.constant 0 : index
    %c0_0 = arith.constant 0 : index
    %0 = vector.load %arg1[%c0, %c0_0] : memref<32x2048xbf16, #tpu.memory_space<vmem>>, vector<32x2048xbf16>
    %c0_1 = arith.constant 0 : index
    %c0_2 = arith.constant 0 : index
    %1 = vector.load %arg2[%c0_1, %c0_2] : memref<2048x128xbf16, #tpu.memory_space<vmem>>, vector<2048x128xbf16>
    %cst = arith.constant dense<0.000000e+00> : vector<32x128xf32>
    %2 = tpu.matmul %0, %1, %cst {dimension_numbers = #tpu.dot_dimension_numbers<[1], [0], [0], [1], [0, 0, 1, 1], [], []>} : vector<32x2048xbf16>, vector<2048x128xbf16>, vector<32x128xf32> -> vector<32x128xf32>
    %c0_3 = arith.constant 0 : index
    %c0_4 = arith.constant 0 : index
    %3 = vector.load %arg3[%c0_3, %c0_4] : memref<32x128xf32, #tpu.memory_space<vmem>>, vector<32x128xf32>
    tpu.vector_store %arg3[%c0_3, %c0_4], %2 {strides = array<i32>} : memref<32x128xf32, #tpu.memory_space<vmem>>, vector<32x128xf32>,
    %cst_5 = arith.constant dense<0.000000e+00> : vector<128xf32>
    %4 = vector.multi_reduction <add>, %2, %cst_5 [0] : vector<32x128xf32> to vector<128xf32>
    %5 = vector.shape_cast %4 : vector<128xf32> to vector<1x128xf32>
    %6 = arith.mulf %2, %2 : vector<32x128xf32>
    %cst_6 = arith.constant dense<0.000000e+00> : vector<128xf32>
    %7 = vector.multi_reduction <add>, %6, %cst_6 [0] : vector<32x128xf32> to vector<128xf32>
    %8 = vector.shape_cast %7 : vector<128xf32> to vector<1x128xf32>
    %9 = tpu.concatenate %5, %8 in 0 : vector<1x128xf32>, vector<1x128xf32> -> vector<2x128xf32>
    %10 = vector.shape_cast %9 : vector<2x128xf32> to vector<1x2x128xf32>
    %c0_7 = arith.constant 0 : index
    %c0_8 = arith.constant 0 : index
    %c0_9 = arith.constant 0 : index
    %11 = vector.load %arg4[%c0_7, %c0_8, %c0_9] : memref<1x2x128xf32, #tpu.memory_space<vmem>>, vector<1x2x128xf32>
    tpu.vector_store %arg4[%c0_7, %c0_8, %c0_9], %10 {strides = array<i32>} : memref<1x2x128xf32, #tpu.memory_space<vmem>>, vector<1x2x128xf32>,
    return
  }
  func.func @transform_0(%arg0: i32) -> (i32, i32) {
    %c0_i32 = arith.constant 0 : i32
    %c0_i32_0 = arith.constant 0 : i32
    return %arg0, %c0_i32 : i32, i32
  }
  func.func @transform_1(%arg0: i32) -> (i32, i32) {
    %c0_i32 = arith.constant 0 : i32
    %c0_i32_0 = arith.constant 0 : i32
    %c0_i32_1 = arith.constant 0 : i32
    return %c0_i32, %c0_i32_0 : i32, i32
  }
  func.func @transform_2(%arg0: i32) -> (i32, i32) {
    %c0_i32 = arith.constant 0 : i32
    %c0_i32_0 = arith.constant 0 : i32
    return %arg0, %c0_i32 : i32, i32
  }
  func.func @transform_3(%arg0: i32) -> (i32, i32, i32) {
    %c0_i32 = arith.constant 0 : i32
    %c0_i32_0 = arith.constant 0 : i32
    %c0_i32_1 = arith.constant 0 : i32
    return %arg0, %c0_i32, %c0_i32_0 : i32, i32, i32
  }
}

module attributes {stable_mosaic.version = 11 : i64} {
  func.func @_bn_lrelu_kernel(%arg0: i32, %arg1: memref<32x128xf32, #tpu.memory_space<vmem>>, %arg2: memref<2x128xf32, #tpu.memory_space<vmem>>, %arg3: memref<32x128xbf16, #tpu.memory_space<vmem>>) attributes {dimension_semantics = [#tpu.dimension_semantics<parallel>], iteration_bounds = array<i64: 1>, scalar_prefetch = 0 : i64, scratch_operands = 0 : i64, tpu.core_type = #tpu.core_type<tc>, window_params = [{transform_indices = @transform_0, window_bounds = array<i64: 32, 128>}, {pipeline_mode = #tpu.pipeline_mode<synchronous>, transform_indices = @transform_1, window_bounds = array<i64: 2, 128>}, {transform_indices = @transform_2, window_bounds = array<i64: 32, 128>}]} {
    %c0 = arith.constant 0 : index
    %c0_0 = arith.constant 0 : index
    %0 = vector.load %arg1[%c0, %c0_0] : memref<32x128xf32, #tpu.memory_space<vmem>>, vector<32x128xf32>
    %c0_1 = arith.constant 0 : index
    %c0_2 = arith.constant 0 : index
    %1 = vector.load %arg2[%c0_1, %c0_2] : memref<2x128xf32, #tpu.memory_space<vmem>>, vector<1x128xf32>
    %c1 = arith.constant 1 : index
    %c0_3 = arith.constant 0 : index
    %2 = vector.load %arg2[%c1, %c0_3] : memref<2x128xf32, #tpu.memory_space<vmem>>, vector<1x128xf32>
    %3 = vector.broadcast %1 : vector<1x128xf32> to vector<32x128xf32>
    %4 = arith.mulf %0, %3 : vector<32x128xf32>
    %5 = vector.broadcast %2 : vector<1x128xf32> to vector<32x128xf32>
    %6 = arith.addf %4, %5 : vector<32x128xf32>
    %cst = arith.constant 0.000000e+00 : f32
    %7 = vector.broadcast %cst : f32 to vector<32x128xf32>
    %8 = arith.cmpf ogt, %6, %7 : vector<32x128xf32>
    %cst_4 = arith.constant 2.000000e-01 : f32
    %9 = vector.broadcast %cst_4 : f32 to vector<32x128xf32>
    %10 = arith.mulf %9, %6 : vector<32x128xf32>
    %11 = arith.select %8, %6, %10 : vector<32x128xi1>, vector<32x128xf32>
    %12 = arith.truncf %11 : vector<32x128xf32> to vector<32x128xbf16>
    %c0_5 = arith.constant 0 : index
    %c0_6 = arith.constant 0 : index
    %13 = vector.load %arg3[%c0_5, %c0_6] : memref<32x128xbf16, #tpu.memory_space<vmem>>, vector<32x128xbf16>
    tpu.vector_store %arg3[%c0_5, %c0_6], %12 {strides = array<i32>} : memref<32x128xbf16, #tpu.memory_space<vmem>>, vector<32x128xbf16>,
    return
  }
  func.func @transform_0(%arg0: i32) -> (i32, i32) {
    %c0_i32 = arith.constant 0 : i32
    %c0_i32_0 = arith.constant 0 : i32
    return %arg0, %c0_i32 : i32, i32
  }
  func.func @transform_1(%arg0: i32) -> (i32, i32) {
    %c0_i32 = arith.constant 0 : i32
    %c0_i32_0 = arith.constant 0 : i32
    %c0_i32_1 = arith.constant 0 : i32
    return %c0_i32, %c0_i32_0 : i32, i32
  }
  func.func @transform_2(%arg0: i32) -> (i32, i32) {
    %c0_i32 = arith.constant 0 : i32
    %c0_i32_0 = arith.constant 0 : i32
    return %arg0, %c0_i32 : i32, i32
  }
}

module attributes {stable_mosaic.version = 11 : i64} {
  func.func @_matmul_sigmoid_kernel(%arg0: i32, %arg1: memref<8x2048xbf16, #tpu.memory_space<vmem>>, %arg2: memref<2048x128xbf16, #tpu.memory_space<vmem>>, %arg3: memref<8x128xf32, #tpu.memory_space<vmem>>) attributes {dimension_semantics = [#tpu.dimension_semantics<parallel>], iteration_bounds = array<i64: 1>, scalar_prefetch = 0 : i64, scratch_operands = 0 : i64, tpu.core_type = #tpu.core_type<tc>, window_params = [{transform_indices = @transform_0, window_bounds = array<i64: 8, 2048>}, {pipeline_mode = #tpu.pipeline_mode<synchronous>, transform_indices = @transform_1, window_bounds = array<i64: 2048, 128>}, {transform_indices = @transform_2, window_bounds = array<i64: 8, 128>}]} {
    %c0 = arith.constant 0 : index
    %c0_0 = arith.constant 0 : index
    %0 = vector.load %arg1[%c0, %c0_0] : memref<8x2048xbf16, #tpu.memory_space<vmem>>, vector<8x2048xbf16>
    %c0_1 = arith.constant 0 : index
    %c0_2 = arith.constant 0 : index
    %1 = vector.load %arg2[%c0_1, %c0_2] : memref<2048x128xbf16, #tpu.memory_space<vmem>>, vector<2048x128xbf16>
    %cst = arith.constant dense<0.000000e+00> : vector<8x128xf32>
    %2 = tpu.matmul %0, %1, %cst {dimension_numbers = #tpu.dot_dimension_numbers<[1], [0], [0], [1], [0, 0, 1, 1], [], []>} : vector<8x2048xbf16>, vector<2048x128xbf16>, vector<8x128xf32> -> vector<8x128xf32>
    %3 = arith.negf %2 : vector<8x128xf32>
    %4 = math.exp %3 : vector<8x128xf32>
    %cst_3 = arith.constant 1.000000e+00 : f32
    %5 = vector.broadcast %cst_3 : f32 to vector<8x128xf32>
    %6 = arith.addf %5, %4 : vector<8x128xf32>
    %7 = arith.divf %5, %6 : vector<8x128xf32>
    %c0_4 = arith.constant 0 : index
    %c0_5 = arith.constant 0 : index
    %8 = vector.load %arg3[%c0_4, %c0_5] : memref<8x128xf32, #tpu.memory_space<vmem>>, vector<8x128xf32>
    tpu.vector_store %arg3[%c0_4, %c0_5], %7 {strides = array<i32>} : memref<8x128xf32, #tpu.memory_space<vmem>>, vector<8x128xf32>,
    return
  }
  func.func @transform_0(%arg0: i32) -> (i32, i32) {
    %c0_i32 = arith.constant 0 : i32
    %c0_i32_0 = arith.constant 0 : i32
    return %arg0, %c0_i32 : i32, i32
  }
  func.func @transform_1(%arg0: i32) -> (i32, i32) {
    %c0_i32 = arith.constant 0 : i32
    %c0_i32_0 = arith.constant 0 : i32
    %c0_i32_1 = arith.constant 0 : i32
    return %c0_i32, %c0_i32_0 : i32, i32
  }
  func.func @transform_2(%arg0: i32) -> (i32, i32) {
    %c0_i32 = arith.constant 0 : i32
    %c0_i32_0 = arith.constant 0 : i32
    return %arg0, %c0_i32 : i32, i32
  }
}

</mosaic_0001>

<llo_original>
// kernel: discriminator_forward.8
$region0: #{discriminator_forward.8}
  #allocation0 [shape = 'u32[]', space=smem, size = 0x4, offset = 0x4, fixed_abs, tag = 'smem constant byte address 0x4 - core index']
  #allocation1 [shape = 'u32[144,128]{1,0:T(1,128)}', space=vmem, size = 0x12000, scoped, tag = 'internal scratch']
  %s0 = inlined_call_operand.vmem [shape: bf16[2048,128], index: 0, kind: input, shape index: {}]
  %s1 = inlined_call_operand.vmem [shape: bf16[128,128], index: 1, kind: input, shape index: {}]
  %s2 = inlined_call_operand.vmem [shape: bf16[2048,128], index: 2, kind: output, shape index: {}]
  %s3 = sld [smem:[#allocation0]]
  $region41: #{discriminator_forward.8} parent=0
    _
  %s5 = ssub.s32 1, %s3
  %s6 = scalar_select 0, %s5, %s3
  loop: start=0, step=1, limit=6
  $region2: #{discriminator_forward.8} parent=0 // loop_pre_header
    _
  $region3: #{discriminator_forward.8} parent=0 // loop_header
    %s8 = sphi 0, %s12
    %p9 = scmp.ge.s32.totalorder %s8, 6
    %s18 = sphi 0, %s20
    %s21 = sphi 0, %s18
    %s22 = sphi 0, %s21
    %s38 = sphi 0, %s22
    %s42 = sphi 0, %s42
    %s44 = sphi 0, %s42
    %s45 = sphi 0, %s44
    %s59 = sphi 0, %s45
    %s65 = sphi 0, %s67
    %s68 = sphi 0, %s65
    %s69 = sphi 0, %s68
    %s85 = sphi 0, %s69
  $region4: #{discriminator_forward.8} parent=0 // loop_header_branch
    %11 = sbr.rel (%p9) target = $region8
  $region5: #{discriminator_forward.8} parent=0 // loop_body
    %s13 = ssub.s32 %s8, 1
    %s14 = ssub.s32 %s8, 2
    %s15 = sadd.s32 %s8, 1
    %s16 = ssub.s32 %s8, %s15
    %p17 = scmp.eq.s32.totalorder %s16, 0
    %s19 = sadd.s32 %s18, 1
    %s20 = scalar_select %p17, %s18, %s19
    %p23 = pneg %p17
    %p24 = scmp.eq.s32.totalorder %s8, 3
    %p25 = por %p23, %p24
    %p26 = scmp.ne.s32.totalorder %s18, %s21
    %p27 = scmp.eq.s32.totalorder %s8, 0
    %p28 = por %p26, %p27
    %p29 = scmp.ne.s32.totalorder %s18, %s21
    %p30 = scmp.eq.s32.totalorder %s13, 3
    %p31 = por %p29, %p30
    %p32 = scmp.ne.s32.totalorder %s21, %s22
    %p33 = scmp.eq.s32.totalorder %s13, 0
    %p34 = por %p32, %p33
    %p35 = scmp.ne.s32.totalorder %s21, %s22
    %p36 = scmp.eq.s32.totalorder %s14, 3
    %p37 = por %p35, %p36
    %p39 = scmp.ne.s32.totalorder %s22, %s38
    %p40 = scmp.eq.s32.totalorder %s14, 0
    %p41 = por %p39, %p40
    %s43 = sadd.s32 %s42, 1
    %p46 = scmp.eq.s32.totalorder %s8, 3
    %p47 = scmp.ne.s32.totalorder %s42, %s44
    %p48 = scmp.eq.s32.totalorder %s8, 0
    %p49 = por %p47, %p48
    %p50 = scmp.ne.s32.totalorder %s42, %s44
    %p51 = scmp.eq.s32.totalorder %s13, 3
    %p52 = por %p50, %p51
    %p53 = scmp.ne.s32.totalorder %s44, %s45
    %p54 = scmp.eq.s32.totalorder %s13, 0
    %p55 = por %p53, %p54
    %p56 = scmp.ne.s32.totalorder %s44, %s45
    %p57 = scmp.eq.s32.totalorder %s14, 3
    %p58 = por %p56, %p57
    %p60 = scmp.ne.s32.totalorder %s45, %s59
    %p61 = scmp.eq.s32.totalorder %s14, 0
    %p62 = por %p60, %p61
    %s63 = ssub.s32 %s8, %s15
    %p64 = scmp.eq.s32.totalorder %s63, 0
    %s66 = sadd.s32 %s65, 1
    %s67 = scalar_select %p64, %s65, %s66
    %p70 = pneg %p64
    %p71 = scmp.eq.s32.totalorder %s8, 3
    %p72 = por %p70, %p71
    %p73 = scmp.ne.s32.totalorder %s65, %s68
    %p74 = scmp.eq.s32.totalorder %s8, 0
    %p75 = por %p73, %p74
    %p76 = scmp.ne.s32.totalorder %s65, %s68
    %p77 = scmp.eq.s32.totalorder %s13, 3
    %p78 = por %p76, %p77
    %p79 = scmp.ne.s32.totalorder %s68, %s69
    %p80 = scmp.eq.s32.totalorder %s13, 0
    %p81 = por %p79, %p80
    %p82 = scmp.ne.s32.totalorder %s68, %s69
    %p83 = scmp.eq.s32.totalorder %s14, 3
    %p84 = por %p82, %p83
    %p86 = scmp.ne.s32.totalorder %s69, %s85
    %p87 = scmp.eq.s32.totalorder %s14, 0
    %p88 = por %p86, %p87
    %p89 = scmp.le.s32.totalorder 1, %s8
    %p90 = scmp.lt.s32.totalorder %s8, 5
    %p91 = pnand %p89, %p90
    %p92 = pneg %p91
    // Predicated region
    $region9: #{discriminator_forward.8} parent=5 // pred_check
      _
    $region10: #{discriminator_forward.8} parent=5 // pred_check_branch
      %94 = sbr.rel (%p91) target = $region12
    $region11: #{discriminator_forward.8} parent=5 // pred_region
      %s95 = ssub.s32 %s8, 1
      // Predicated region
      $region13: #{discriminator_forward.8} parent=11 // pred_check
        %p96 = pneg %p55
      $region14: #{discriminator_forward.8} parent=11 // pred_check_branch
        %98 = sbr.rel (%p96) target = $region16
      $region15: #{discriminator_forward.8} parent=11 // pred_region
        _
      $region16: #{discriminator_forward.8} parent=11 // pred_fallthru
        _
    $region12: #{discriminator_forward.8} parent=5 // pred_fallthru
      _
    %p99 = scmp.lt.s32.totalorder %s8, 4
    // Predicated region
    $region17: #{discriminator_forward.8} parent=5 // pred_check
      %p100 = pneg %p99
    $region18: #{discriminator_forward.8} parent=5 // pred_check_branch
      %102 = sbr.rel (%p100) target = $region20
    $region19: #{discriminator_forward.8} parent=5 // pred_region
      // Predicated region
      $region21: #{discriminator_forward.8} parent=19 // pred_check
        %p103 = pneg %p28
      $region22: #{discriminator_forward.8} parent=19 // pred_check_branch
        %105 = sbr.rel (%p103) target = $region24
      $region23: #{discriminator_forward.8} parent=19 // pred_region
        %s106 = smul.u32 64, %s8
        %p107 = scmp.lt.s32.totalorder %s106, 255
        %s108 = scalar_select %p107, %s106, 255
        %s109 = smul.addr %s108, 4
        %s110 = scalar_lea.vmem %s0, %s109
        %s111 = smul.u32 64, %s8
      $region24: #{discriminator_forward.8} parent=19 // pred_fallthru
        _
    $region20: #{discriminator_forward.8} parent=5 // pred_fallthru
      _
    %p112 = scmp.le.s32.totalorder 1, %s8
    %p113 = scmp.lt.s32.totalorder %s8, 5
    %p114 = pnand %p112, %p113
    %p115 = pneg %p114
    // Predicated region
    $region25: #{discriminator_forward.8} parent=5 // pred_check
      _
    $region26: #{discriminator_forward.8} parent=5 // pred_check_branch
      %117 = sbr.rel (%p114) target = $region28
    $region27: #{discriminator_forward.8} parent=5 // pred_region
      %s118 = ssub.s32 %s8, 1
      %s119 = smul.u32 64, %s13
      %p120 = scmp.lt.s32.totalorder %s119, 255
      %s121 = scalar_select %p120, %s119, 255
      %s122 = smul.addr %s121, 4
      %s123 = scalar_lea.vmem %s0, %s122
      %p124 = pneg %p34
      %p125 = pneg %p31
      %p126 = pneg %p55
      %p127 = pneg %p52
      %p128 = pneg %p81
      %p129 = pneg %p78
      %s130 = smul.u32 64, %s13
      %p131 = scmp.lt.s32.totalorder %s130, 255
      %s132 = scalar_select %p131, %s130, 255
      %s133 = smul.addr %s132, 4
      %s134 = scalar_lea.vmem %s2, %s133
      %s135 = smul.u32 64, %s13
      %p136 = scmp.lt.s32.totalorder %s135, 255
      %s137 = scalar_select %p136, %s135, 255
      %s138 = smul.addr %s137, 4
      %s139 = scalar_lea.vmem %s0, %s138
      %s140 = smul.u32 64, %s13
      %s141 = smul.u32 64, %s13
      %p142 = scmp.lt.s32.totalorder %s141, 255
      %s143 = scalar_select %p142, %s141, 255
      %s144 = smul.addr %s143, 4
      %s145 = scalar_lea.vmem %s2, %s144
      %s146 = smul.u32 64, %s13
      %v148 = vld [vmem:[%s139] sm:$0xf]
      %v149 = vld [vmem:[%s139 + $0x4] sm:$0xf]
      %v150 = vld [vmem:[%s139 + $0x8] sm:$0xf]
      %v151 = vld [vmem:[%s139 + $0xc] sm:$0xf]
      %v152 = vld [vmem:[%s139 + $0x10] sm:$0xf]
      %v153 = vld [vmem:[%s139 + $0x14] sm:$0xf]
      %v154 = vld [vmem:[%s139 + $0x18] sm:$0xf]
      %v155 = vld [vmem:[%s139 + $0x1c] sm:$0xf]
      %v156 = vld [vmem:[%s139 + $0x20] sm:$0xf]
      %v157 = vld [vmem:[%s139 + $0x24] sm:$0xf]
      %v158 = vld [vmem:[%s139 + $0x28] sm:$0xf]
      %v159 = vld [vmem:[%s139 + $0x2c] sm:$0xf]
      %v160 = vld [vmem:[%s139 + $0x30] sm:$0xf]
      %v161 = vld [vmem:[%s139 + $0x34] sm:$0xf]
      %v162 = vld [vmem:[%s139 + $0x38] sm:$0xf]
      %v163 = vld [vmem:[%s139 + $0x3c] sm:$0xf]
      %v164 = vld [vmem:[%s139 + $0x40] sm:$0xf]
      %v165 = vld [vmem:[%s139 + $0x44] sm:$0xf]
      %v166 = vld [vmem:[%s139 + $0x48] sm:$0xf]
      %v167 = vld [vmem:[%s139 + $0x4c] sm:$0xf]
      %v168 = vld [vmem:[%s139 + $0x50] sm:$0xf]
      %v169 = vld [vmem:[%s139 + $0x54] sm:$0xf]
      %v170 = vld [vmem:[%s139 + $0x58] sm:$0xf]
      %v171 = vld [vmem:[%s139 + $0x5c] sm:$0xf]
      %v172 = vld [vmem:[%s139 + $0x60] sm:$0xf]
      %v173 = vld [vmem:[%s139 + $0x64] sm:$0xf]
      %v174 = vld [vmem:[%s139 + $0x68] sm:$0xf]
      %v175 = vld [vmem:[%s139 + $0x6c] sm:$0xf]
      %v176 = vld [vmem:[%s139 + $0x70] sm:$0xf]
      %v177 = vld [vmem:[%s139 + $0x74] sm:$0xf]
      %v178 = vld [vmem:[%s139 + $0x78] sm:$0xf]
      %v179 = vld [vmem:[%s139 + $0x7c] sm:$0xf]
      %v180 = vld [vmem:[%s139 + $0x80] sm:$0xf]
      %v181 = vld [vmem:[%s139 + $0x84] sm:$0xf]
      %v182 = vld [vmem:[%s139 + $0x88] sm:$0xf]
      %v183 = vld [vmem:[%s139 + $0x8c] sm:$0xf]
      %v184 = vld [vmem:[%s139 + $0x90] sm:$0xf]
      %v185 = vld [vmem:[%s139 + $0x94] sm:$0xf]
      %v186 = vld [vmem:[%s139 + $0x98] sm:$0xf]
      %v187 = vld [vmem:[%s139 + $0x9c] sm:$0xf]
      %v188 = vld [vmem:[%s139 + $0xa0] sm:$0xf]
      %v189 = vld [vmem:[%s139 + $0xa4] sm:$0xf]
      %v190 = vld [vmem:[%s139 + $0xa8] sm:$0xf]
      %v191 = vld [vmem:[%s139 + $0xac] sm:$0xf]
      %v192 = vld [vmem:[%s139 + $0xb0] sm:$0xf]
      %v193 = vld [vmem:[%s139 + $0xb4] sm:$0xf]
      %v194 = vld [vmem:[%s139 + $0xb8] sm:$0xf]
      %v195 = vld [vmem:[%s139 + $0xbc] sm:$0xf]
      %v196 = vld [vmem:[%s139 + $0xc0] sm:$0xf]
      %v197 = vld [vmem:[%s139 + $0xc4] sm:$0xf]
      %v198 = vld [vmem:[%s139 + $0xc8] sm:$0xf]
      %v199 = vld [vmem:[%s139 + $0xcc] sm:$0xf]
      %v200 = vld [vmem:[%s139 + $0xd0] sm:$0xf]
      %v201 = vld [vmem:[%s139 + $0xd4] sm:$0xf]
      %v202 = vld [vmem:[%s139 + $0xd8] sm:$0xf]
      %v203 = vld [vmem:[%s139 + $0xdc] sm:$0xf]
      %v204 = vld [vmem:[%s139 + $0xe0] sm:$0xf]
      %v205 = vld [vmem:[%s139 + $0xe4] sm:$0xf]
      %v206 = vld [vmem:[%s139 + $0xe8] sm:$0xf]
      %v207 = vld [vmem:[%s139 + $0xec] sm:$0xf]
      %v208 = vld [vmem:[%s139 + $0xf0] sm:$0xf]
      %v209 = vld [vmem:[%s139 + $0xf4] sm:$0xf]
      %v210 = vld [vmem:[%s139 + $0xf8] sm:$0xf]
      %v211 = vld [vmem:[%s139 + $0xfc] sm:$0xf]
      %v212 = vld [vmem:[%s1] sm:$0xf]
      %v213 = vld [vmem:[%s1 + $0x4] sm:$0xf]
      %v214 = vld [vmem:[%s1 + $0x8] sm:$0xf]
      %v215 = vld [vmem:[%s1 + $0xc] sm:$0xf]
      %v216 = vld [vmem:[%s1 + $0x10] sm:$0xf]
      %v217 = vld [vmem:[%s1 + $0x14] sm:$0xf]
      %v218 = vld [vmem:[%s1 + $0x18] sm:$0xf]
      %v219 = vld [vmem:[%s1 + $0x1c] sm:$0xf]
      %v220 = vld [vmem:[%s1 + $0x20] sm:$0xf]
      %v221 = vld [vmem:[%s1 + $0x24] sm:$0xf]
      %v222 = vld [vmem:[%s1 + $0x28] sm:$0xf]
      %v223 = vld [vmem:[%s1 + $0x2c] sm:$0xf]
      %v224 = vld [vmem:[%s1 + $0x30] sm:$0xf]
      %v225 = vld [vmem:[%s1 + $0x34] sm:$0xf]
      %v226 = vld [vmem:[%s1 + $0x38] sm:$0xf]
      %v227 = vld [vmem:[%s1 + $0x3c] sm:$0xf]
      %v292 = vunpack.c.l.b16 %v148
      %v293 = vunpack.c.l.b16 %v149
      %v294 = vunpack.c.l.b16 %v150
      %v295 = vunpack.c.l.b16 %v151
      %v296 = vunpack.c.l.b16 %v152
      %v297 = vunpack.c.l.b16 %v153
      %v298 = vunpack.c.l.b16 %v154
      %v299 = vunpack.c.l.b16 %v155
      %v300 = vunpack.c.l.b16 %v156
      %v301 = vunpack.c.l.b16 %v157
      %v302 = vunpack.c.l.b16 %v158
      %v303 = vunpack.c.l.b16 %v159
      %v304 = vunpack.c.l.b16 %v160
      %v305 = vunpack.c.l.b16 %v161
      %v306 = vunpack.c.l.b16 %v162
      %v307 = vunpack.c.l.b16 %v163
      %v308 = vunpack.c.l.b16 %v164
      %v309 = vunpack.c.l.b16 %v165
      %v310 = vunpack.c.l.b16 %v166
      %v311 = vunpack.c.l.b16 %v167
      %v312 = vunpack.c.l.b16 %v168
      %v313 = vunpack.c.l.b16 %v169
      %v314 = vunpack.c.l.b16 %v170
      %v315 = vunpack.c.l.b16 %v171
      %v316 = vunpack.c.l.b16 %v172
      %v317 = vunpack.c.l.b16 %v173
      %v318 = vunpack.c.l.b16 %v174
      %v319 = vunpack.c.l.b16 %v175
      %v320 = vunpack.c.l.b16 %v176
      %v321 = vunpack.c.l.b16 %v177
      %v322 = vunpack.c.l.b16 %v178
      %v323 = vunpack.c.l.b16 %v179
      %v324 = vunpack.c.l.b16 %v180
      %v325 = vunpack.c.l.b16 %v181
      %v326 = vunpack.c.l.b16 %v182
      %v327 = vunpack.c.l.b16 %v183
      %v328 = vunpack.c.l.b16 %v184
      %v329 = vunpack.c.l.b16 %v185
      %v330 = vunpack.c.l.b16 %v186
      %v331 = vunpack.c.l.b16 %v187
      %v332 = vunpack.c.l.b16 %v188
      %v333 = vunpack.c.l.b16 %v189
      %v334 = vunpack.c.l.b16 %v190
      %v335 = vunpack.c.l.b16 %v191
      %v336 = vunpack.c.l.b16 %v192
      %v337 = vunpack.c.l.b16 %v193
      %v338 = vunpack.c.l.b16 %v194
      %v339 = vunpack.c.l.b16 %v195
      %v340 = vunpack.c.l.b16 %v196
      %v341 = vunpack.c.l.b16 %v197
      %v342 = vunpack.c.l.b16 %v198
      %v343 = vunpack.c.l.b16 %v199
      %v344 = vunpack.c.l.b16 %v200
      %v345 = vunpack.c.l.b16 %v201
      %v346 = vunpack.c.l.b16 %v202
      %v347 = vunpack.c.l.b16 %v203
      %v348 = vunpack.c.l.b16 %v204
      %v349 = vunpack.c.l.b16 %v205
      %v350 = vunpack.c.l.b16 %v206
      %v351 = vunpack.c.l.b16 %v207
      %v352 = vunpack.c.l.b16 %v208
      %v353 = vunpack.c.l.b16 %v209
      %v354 = vunpack.c.l.b16 %v210
      %v355 = vunpack.c.l.b16 %v211
      %v356 = vpack.c.b16 %v293, %v292
      %v357 = vpack.c.b16 %v295, %v294
      %v358 = vpack.c.b16 %v297, %v296
      %v359 = vpack.c.b16 %v299, %v298
      %v360 = vpack.c.b16 %v301, %v300
      %v361 = vpack.c.b16 %v303, %v302
      %v362 = vpack.c.b16 %v305, %v304
      %v363 = vpack.c.b16 %v307, %v306
      %v364 = vpack.c.b16 %v309, %v308
      %v365 = vpack.c.b16 %v311, %v310
      %v366 = vpack.c.b16 %v313, %v312
      %v367 = vpack.c.b16 %v315, %v314
      %v368 = vpack.c.b16 %v317, %v316
      %v369 = vpack.c.b16 %v319, %v318
      %v370 = vpack.c.b16 %v321, %v320
      %v371 = vpack.c.b16 %v323, %v322
      %v372 = vpack.c.b16 %v325, %v324
      %v373 = vpack.c.b16 %v327, %v326
      %v374 = vpack.c.b16 %v329, %v328
      %v375 = vpack.c.b16 %v331, %v330
      %v376 = vpack.c.b16 %v333, %v332
      %v377 = vpack.c.b16 %v335, %v334
      %v378 = vpack.c.b16 %v337, %v336
      %v379 = vpack.c.b16 %v339, %v338
      %v380 = vpack.c.b16 %v341, %v340
      %v381 = vpack.c.b16 %v343, %v342
      %v382 = vpack.c.b16 %v345, %v344
      %v383 = vpack.c.b16 %v347, %v346
      %v384 = vpack.c.b16 %v349, %v348
      %v385 = vpack.c.b16 %v351, %v350
      %v386 = vpack.c.b16 %v353, %v352
      %v387 = vpack.c.b16 %v355, %v354
      %v436 = vunpack.c.l.b16 %v212
      %v437 = vunpack.c.l.b16 %v213
      %v438 = vunpack.c.l.b16 %v214
      %v439 = vunpack.c.l.b16 %v215
      %v440 = vunpack.c.l.b16 %v216
      %v441 = vunpack.c.l.b16 %v217
      %v442 = vunpack.c.l.b16 %v218
      %v443 = vunpack.c.l.b16 %v219
      %v444 = vunpack.c.l.b16 %v220
      %v445 = vunpack.c.l.b16 %v221
      %v446 = vunpack.c.l.b16 %v222
      %v447 = vunpack.c.l.b16 %v223
      %v448 = vunpack.c.l.b16 %v224
      %v449 = vunpack.c.l.b16 %v225
      %v450 = vunpack.c.l.b16 %v226
      %v451 = vunpack.c.l.b16 %v227
      %v452 = vpack.c.b16 %v437, %v436
      %v453 = vpack.c.b16 %v439, %v438
      %v454 = vpack.c.b16 %v441, %v440
      %v455 = vpack.c.b16 %v443, %v442
      %v456 = vpack.c.b16 %v445, %v444
      %v457 = vpack.c.b16 %v447, %v446
      %v458 = vpack.c.b16 %v449, %v448
      %v459 = vpack.c.b16 %v451, %v450
      %468 = vmatprep.subr.bf16.mxu0 0
      %469 = vmatpush1.bf16.msra.mxu0 %v459
      %470 = vmatprep.subr.bf16.mxu0 0
      %471 = vmatpush1.bf16.msra.mxu0 %v458
      %472 = vmatprep.subr.bf16.mxu0 0
      %473 = vmatpush1.bf16.msra.mxu0 %v457
      %474 = vmatprep.subr.bf16.mxu0 0
      %475 = vmatpush1.bf16.msra.mxu0 %v456
      %476 = vmatprep.subr.bf16.mxu0 0
      %477 = vmatpush1.bf16.msra.mxu0 %v455
      %478 = vmatprep.subr.bf16.mxu0 0
      %479 = vmatpush1.bf16.msra.mxu0 %v454
      %480 = vmatprep.subr.bf16.mxu0 0
      %481 = vmatpush1.bf16.msra.mxu0 %v453
      %482 = vmatprep.subr.bf16.mxu0 0
      %483 = vmatpush1.bf16.msra.mxu0 %v452
      %484 = vmatprep.subr.bf16.mxu0 0
      %485 = vmatpush2.bf16.msra.mxu0 0
      %486 = vmatprep.subr.bf16.mxu0 0
      %487 = vmatpush2.bf16.msra.mxu0 0
      %488 = vmatprep.subr.bf16.mxu0 0
      %489 = vmatpush2.bf16.msra.mxu0 0
      %490 = vmatprep.subr.bf16.mxu0 0
      %491 = vmatpush2.bf16.msra.mxu0 0
      %492 = vmatprep.subr.bf16.mxu0 0
      %493 = vmatpush2.bf16.msra.mxu0 0
      %494 = vmatprep.subr.bf16.mxu0 0
      %495 = vmatpush2.bf16.msra.mxu0 0
      %496 = vmatprep.subr.bf16.mxu0 0
      %497 = vmatpush2.bf16.msra.mxu0 0
      %498 = vmatprep.subr.bf16.mxu0 0
      %499 = vmatpush2.bf16.msra.mxu0 0
      %500 = vmatprep.mubr.bf16.mxu0 0
      %501 = vmatmul.mubr.bf16.gmra.mxu0 %v356
      %v502 = vpop.f32.mrf.mxu0
      %v503 = vadd.f32 0.0, %v502
      %v504 = vpop.f32.mrf.mxu0
      %v505 = vpop.f32.mrf.mxu0
      %v506 = vadd.f32 0.0, %v505
      %v507 = vpop.f32.mrf.mxu0
      %508 = vmatprep.mubr.bf16.mxu0 0
      %509 = vmatmul.mubr.bf16.gmra.mxu0 %v357
      %v510 = vpop.f32.mrf.mxu0
      %v511 = vadd.f32 0.0, %v510
      %v512 = vpop.f32.mrf.mxu0
      %v513 = vpop.f32.mrf.mxu0
      %v514 = vadd.f32 0.0, %v513
      %v515 = vpop.f32.mrf.mxu0
      %516 = vmatprep.mubr.bf16.mxu0 0
      %517 = vmatmul.mubr.bf16.gmra.mxu0 %v358
      %v518 = vpop.f32.mrf.mxu0
      %v519 = vadd.f32 0.0, %v518
      %v520 = vpop.f32.mrf.mxu0
      %v521 = vpop.f32.mrf.mxu0
      %v522 = vadd.f32 0.0, %v521
      %v523 = vpop.f32.mrf.mxu0
      %524 = vmatprep.mubr.bf16.mxu0 0
      %525 = vmatmul.mubr.bf16.gmra.mxu0 %v359
      %v526 = vpop.f32.mrf.mxu0
      %v527 = vadd.f32 0.0, %v526
      %v528 = vpop.f32.mrf.mxu0
      %v529 = vpop.f32.mrf.mxu0
      %v530 = vadd.f32 0.0, %v529
      %v531 = vpop.f32.mrf.mxu0
      %532 = vmatprep.mubr.bf16.mxu0 0
      %533 = vmatmul.mubr.bf16.gmra.mxu0 %v360
      %v534 = vpop.f32.mrf.mxu0
      %v535 = vadd.f32 0.0, %v534
      %v536 = vpop.f32.mrf.mxu0
      %v537 = vpop.f32.mrf.mxu0
      %v538 = vadd.f32 0.0, %v537
      %v539 = vpop.f32.mrf.mxu0
      %540 = vmatprep.mubr.bf16.mxu0 0
      %541 = vmatmul.mubr.bf16.gmra.mxu0 %v361
      %v542 = vpop.f32.mrf.mxu0
      %v543 = vadd.f32 0.0, %v542
      %v544 = vpop.f32.mrf.mxu0
      %v545 = vpop.f32.mrf.mxu0
      %v546 = vadd.f32 0.0, %v545
      %v547 = vpop.f32.mrf.mxu0
      %548 = vmatprep.mubr.bf16.mxu0 0
      %549 = vmatmul.mubr.bf16.gmra.mxu0 %v362
      %v550 = vpop.f32.mrf.mxu0
      %v551 = vadd.f32 0.0, %v550
      %v552 = vpop.f32.mrf.mxu0
      %v553 = vpop.f32.mrf.mxu0
      %v554 = vadd.f32 0.0, %v553
      %v555 = vpop.f32.mrf.mxu0
      %556 = vmatprep.mubr.bf16.mxu0 0
      %557 = vmatmul.mubr.bf16.gmra.mxu0 %v363
      %v558 = vpop.f32.mrf.mxu0
      %v559 = vadd.f32 0.0, %v558
      %v560 = vpop.f32.mrf.mxu0
      %v561 = vpop.f32.mrf.mxu0
      %v562 = vadd.f32 0.0, %v561
      %v563 = vpop.f32.mrf.mxu0
      %564 = vmatprep.mubr.bf16.mxu0 0
      %565 = vmatmul.mubr.bf16.gmra.mxu0 %v364
      %v566 = vpop.f32.mrf.mxu0
      %v567 = vadd.f32 0.0, %v566
      %v568 = vpop.f32.mrf.mxu0
      %v569 = vpop.f32.mrf.mxu0
      %v570 = vadd.f32 0.0, %v569
      %v571 = vpop.f32.mrf.mxu0
      %572 = vmatprep.mubr.bf16.mxu0 0
      %573 = vmatmul.mubr.bf16.gmra.mxu0 %v365
      %v574 = vpop.f32.mrf.mxu0
      %v575 = vadd.f32 0.0, %v574
      %v576 = vpop.f32.mrf.mxu0
      %v577 = vpop.f32.mrf.mxu0
      %v578 = vadd.f32 0.0, %v577
      %v579 = vpop.f32.mrf.mxu0
      %580 = vmatprep.mubr.bf16.mxu0 0
      %581 = vmatmul.mubr.bf16.gmra.mxu0 %v366
      %v582 = vpop.f32.mrf.mxu0
      %v583 = vadd.f32 0.0, %v582
      %v584 = vpop.f32.mrf.mxu0
      %v585 = vpop.f32.mrf.mxu0
      %v586 = vadd.f32 0.0, %v585
      %v587 = vpop.f32.mrf.mxu0
      %588 = vmatprep.mubr.bf16.mxu0 0
      %589 = vmatmul.mubr.bf16.gmra.mxu0 %v367
      %v590 = vpop.f32.mrf.mxu0
      %v591 = vadd.f32 0.0, %v590
      %v592 = vpop.f32.mrf.mxu0
      %v593 = vpop.f32.mrf.mxu0
      %v594 = vadd.f32 0.0, %v593
      %v595 = vpop.f32.mrf.mxu0
      %596 = vmatprep.mubr.bf16.mxu0 0
      %597 = vmatmul.mubr.bf16.gmra.mxu0 %v368
      %v598 = vpop.f32.mrf.mxu0
      %v599 = vadd.f32 0.0, %v598
      %v600 = vpop.f32.mrf.mxu0
      %v601 = vpop.f32.mrf.mxu0
      %v602 = vadd.f32 0.0, %v601
      %v603 = vpop.f32.mrf.mxu0
      %604 = vmatprep.mubr.bf16.mxu0 0
      %605 = vmatmul.mubr.bf16.gmra.mxu0 %v369
      %v606 = vpop.f32.mrf.mxu0
      %v607 = vadd.f32 0.0, %v606
      %v608 = vpop.f32.mrf.mxu0
      %v609 = vpop.f32.mrf.mxu0
      %v610 = vadd.f32 0.0, %v609
      %v611 = vpop.f32.mrf.mxu0
      %612 = vmatprep.mubr.bf16.mxu0 0
      %613 = vmatmul.mubr.bf16.gmra.mxu0 %v370
      %v614 = vpop.f32.mrf.mxu0
      %v615 = vadd.f32 0.0, %v614
      %v616 = vpop.f32.mrf.mxu0
      %v617 = vpop.f32.mrf.mxu0
      %v618 = vadd.f32 0.0, %v617
      %v619 = vpop.f32.mrf.mxu0
      %620 = vmatprep.mubr.bf16.mxu0 0
      %621 = vmatmul.mubr.bf16.gmra.mxu0 %v371
      %v622 = vpop.f32.mrf.mxu0
      %v623 = vadd.f32 0.0, %v622
      %v624 = vpop.f32.mrf.mxu0
      %v625 = vpop.f32.mrf.mxu0
      %v626 = vadd.f32 0.0, %v625
      %v627 = vpop.f32.mrf.mxu0
      %628 = vmatprep.mubr.bf16.mxu0 0
      %629 = vmatmul.mubr.bf16.gmra.mxu0 %v372
      %v630 = vpop.f32.mrf.mxu0
      %v631 = vadd.f32 0.0, %v630
      %v632 = vpop.f32.mrf.mxu0
      %v633 = vpop.f32.mrf.mxu0
      %v634 = vadd.f32 0.0, %v633
      %v635 = vpop.f32.mrf.mxu0
      %636 = vmatprep.mubr.bf16.mxu0 0
      %637 = vmatmul.mubr.bf16.gmra.mxu0 %v373
      %v638 = vpop.f32.mrf.mxu0
      %v639 = vadd.f32 0.0, %v638
      %v640 = vpop.f32.mrf.mxu0
      %v641 = vpop.f32.mrf.mxu0
      %v642 = vadd.f32 0.0, %v641
      %v643 = vpop.f32.mrf.mxu0
      %644 = vmatprep.mubr.bf16.mxu0 0
      %645 = vmatmul.mubr.bf16.gmra.mxu0 %v374
      %v646 = vpop.f32.mrf.mxu0
      %v647 = vadd.f32 0.0, %v646
      %v648 = vpop.f32.mrf.mxu0
      %v649 = vpop.f32.mrf.mxu0
      %v650 = vadd.f32 0.0, %v649
      %v651 = vpop.f32.mrf.mxu0
      %652 = vmatprep.mubr.bf16.mxu0 0
      %653 = vmatmul.mubr.bf16.gmra.mxu0 %v375
      %v654 = vpop.f32.mrf.mxu0
      %v655 = vadd.f32 0.0, %v654
      %v656 = vpop.f32.mrf.mxu0
      %v657 = vpop.f32.mrf.mxu0
      %v658 = vadd.f32 0.0, %v657
      %v659 = vpop.f32.mrf.mxu0
      %660 = vmatprep.mubr.bf16.mxu0 0
      %661 = vmatmul.mubr.bf16.gmra.mxu0 %v376
      %v662 = vpop.f32.mrf.mxu0
      %v663 = vadd.f32 0.0, %v662
      %v664 = vpop.f32.mrf.mxu0
      %v665 = vpop.f32.mrf.mxu0
      %v666 = vadd.f32 0.0, %v665
      %v667 = vpop.f32.mrf.mxu0
      %668 = vmatprep.mubr.bf16.mxu0 0
      %669 = vmatmul.mubr.bf16.gmra.mxu0 %v377
      %v670 = vpop.f32.mrf.mxu0
      %v671 = vadd.f32 0.0, %v670
      %v672 = vpop.f32.mrf.mxu0
      %v673 = vpop.f32.mrf.mxu0
      %v674 = vadd.f32 0.0, %v673
      %v675 = vpop.f32.mrf.mxu0
      %676 = vmatprep.mubr.bf16.mxu0 0
      %677 = vmatmul.mubr.bf16.gmra.mxu0 %v378
      %v678 = vpop.f32.mrf.mxu0
      %v679 = vadd.f32 0.0, %v678
      %v680 = vpop.f32.mrf.mxu0
      %v681 = vpop.f32.mrf.mxu0
      %v682 = vadd.f32 0.0, %v681
      %v683 = vpop.f32.mrf.mxu0
      %684 = vmatprep.mubr.bf16.mxu0 0
      %685 = vmatmul.mubr.bf16.gmra.mxu0 %v379
      %v686 = vpop.f32.mrf.mxu0
      %v687 = vadd.f32 0.0, %v686
      %v688 = vpop.f32.mrf.mxu0
      %v689 = vpop.f32.mrf.mxu0
      %v690 = vadd.f32 0.0, %v689
      %v691 = vpop.f32.mrf.mxu0
      %692 = vmatprep.mubr.bf16.mxu0 0
      %693 = vmatmul.mubr.bf16.gmra.mxu0 %v380
      %v694 = vpop.f32.mrf.mxu0
      %v695 = vadd.f32 0.0, %v694
      %v696 = vpop.f32.mrf.mxu0
      %v697 = vpop.f32.mrf.mxu0
      %v698 = vadd.f32 0.0, %v697
      %v699 = vpop.f32.mrf.mxu0
      %700 = vmatprep.mubr.bf16.mxu0 0
      %701 = vmatmul.mubr.bf16.gmra.mxu0 %v381
      %v702 = vpop.f32.mrf.mxu0
      %v703 = vadd.f32 0.0, %v702
      %v704 = vpop.f32.mrf.mxu0
      %v705 = vpop.f32.mrf.mxu0
      %v706 = vadd.f32 0.0, %v705
      %v707 = vpop.f32.mrf.mxu0
      %708 = vmatprep.mubr.bf16.mxu0 0
      %709 = vmatmul.mubr.bf16.gmra.mxu0 %v382
      %v710 = vpop.f32.mrf.mxu0
      %v711 = vadd.f32 0.0, %v710
      %v712 = vpop.f32.mrf.mxu0
      %v713 = vpop.f32.mrf.mxu0
      %v714 = vadd.f32 0.0, %v713
      %v715 = vpop.f32.mrf.mxu0
      %716 = vmatprep.mubr.bf16.mxu0 0
      %717 = vmatmul.mubr.bf16.gmra.mxu0 %v383
      %v718 = vpop.f32.mrf.mxu0
      %v719 = vadd.f32 0.0, %v718
      %v720 = vpop.f32.mrf.mxu0
      %v721 = vpop.f32.mrf.mxu0
      %v722 = vadd.f32 0.0, %v721
      %v723 = vpop.f32.mrf.mxu0
      %724 = vmatprep.mubr.bf16.mxu0 0
      %725 = vmatmul.mubr.bf16.gmra.mxu0 %v384
      %v726 = vpop.f32.mrf.mxu0
      %v727 = vadd.f32 0.0, %v726
      %v728 = vpop.f32.mrf.mxu0
      %v729 = vpop.f32.mrf.mxu0
      %v730 = vadd.f32 0.0, %v729
      %v731 = vpop.f32.mrf.mxu0
      %732 = vmatprep.mubr.bf16.mxu0 0
      %733 = vmatmul.mubr.bf16.gmra.mxu0 %v385
      %v734 = vpop.f32.mrf.mxu0
      %v735 = vadd.f32 0.0, %v734
      %v736 = vpop.f32.mrf.mxu0
      %v737 = vpop.f32.mrf.mxu0
      %v738 = vadd.f32 0.0, %v737
      %v739 = vpop.f32.mrf.mxu0
      %740 = vmatprep.mubr.bf16.mxu0 0
      %741 = vmatmul.mubr.bf16.gmra.mxu0 %v386
      %v742 = vpop.f32.mrf.mxu0
      %v743 = vadd.f32 0.0, %v742
      %v744 = vpop.f32.mrf.mxu0
      %v745 = vpop.f32.mrf.mxu0
      %v746 = vadd.f32 0.0, %v745
      %v747 = vpop.f32.mrf.mxu0
      %748 = vmatprep.mubr.bf16.mxu0 0
      %749 = vmatmul.mubr.bf16.gmra.mxu0 %v387
      %v750 = vpop.f32.mrf.mxu0
      %v751 = vadd.f32 0.0, %v750
      %v752 = vpop.f32.mrf.mxu0
      %v753 = vpop.f32.mrf.mxu0
      %v754 = vadd.f32 0.0, %v753
      %v755 = vpop.f32.mrf.mxu0
      %756 = vdwg.mxu0
      %vm757 = vcmp.gt.f32.partialorder %v503, 0.0
      %vm758 = vcmp.gt.f32.partialorder %v506, 0.0
      %vm759 = vcmp.gt.f32.partialorder %v511, 0.0
      %vm760 = vcmp.gt.f32.partialorder %v514, 0.0
      %vm761 = vcmp.gt.f32.partialorder %v519, 0.0
      %vm762 = vcmp.gt.f32.partialorder %v522, 0.0
      %vm763 = vcmp.gt.f32.partialorder %v527, 0.0
      %vm764 = vcmp.gt.f32.partialorder %v530, 0.0
      %vm765 = vcmp.gt.f32.partialorder %v535, 0.0
      %vm766 = vcmp.gt.f32.partialorder %v538, 0.0
      %vm767 = vcmp.gt.f32.partialorder %v543, 0.0
      %vm768 = vcmp.gt.f32.partialorder %v546, 0.0
      %vm769 = vcmp.gt.f32.partialorder %v551, 0.0
      %vm770 = vcmp.gt.f32.partialorder %v554, 0.0
      %vm771 = vcmp.gt.f32.partialorder %v559, 0.0
      %vm772 = vcmp.gt.f32.partialorder %v562, 0.0
      %vm773 = vcmp.gt.f32.partialorder %v567, 0.0
      %vm774 = vcmp.gt.f32.partialorder %v570, 0.0
      %vm775 = vcmp.gt.f32.partialorder %v575, 0.0
      %vm776 = vcmp.gt.f32.partialorder %v578, 0.0
      %vm777 = vcmp.gt.f32.partialorder %v583, 0.0
      %vm778 = vcmp.gt.f32.partialorder %v586, 0.0
      %vm779 = vcmp.gt.f32.partialorder %v591, 0.0
      %vm780 = vcmp.gt.f32.partialorder %v594, 0.0
      %vm781 = vcmp.gt.f32.partialorder %v599, 0.0
      %vm782 = vcmp.gt.f32.partialorder %v602, 0.0
      %vm783 = vcmp.gt.f32.partialorder %v607, 0.0
      %vm784 = vcmp.gt.f32.partialorder %v610, 0.0
      %vm785 = vcmp.gt.f32.partialorder %v615, 0.0
      %vm786 = vcmp.gt.f32.partialorder %v618, 0.0
      %vm787 = vcmp.gt.f32.partialorder %v623, 0.0
      %vm788 = vcmp.gt.f32.partialorder %v626, 0.0
      %vm789 = vcmp.gt.f32.partialorder %v631, 0.0
      %vm790 = vcmp.gt.f32.partialorder %v634, 0.0
      %vm791 = vcmp.gt.f32.partialorder %v639, 0.0
      %vm792 = vcmp.gt.f32.partialorder %v642, 0.0
      %vm793 = vcmp.gt.f32.partialorder %v647, 0.0
      %vm794 = vcmp.gt.f32.partialorder %v650, 0.0
      %vm795 = vcmp.gt.f32.partialorder %v655, 0.0
      %vm796 = vcmp.gt.f32.partialorder %v658, 0.0
      %vm797 = vcmp.gt.f32.partialorder %v663, 0.0
      %vm798 = vcmp.gt.f32.partialorder %v666, 0.0
      %vm799 = vcmp.gt.f32.partialorder %v671, 0.0
      %vm800 = vcmp.gt.f32.partialorder %v674, 0.0
      %vm801 = vcmp.gt.f32.partialorder %v679, 0.0
      %vm802 = vcmp.gt.f32.partialorder %v682, 0.0
      %vm803 = vcmp.gt.f32.partialorder %v687, 0.0
      %vm804 = vcmp.gt.f32.partialorder %v690, 0.0
      %vm805 = vcmp.gt.f32.partialorder %v695, 0.0
      %vm806 = vcmp.gt.f32.partialorder %v698, 0.0
      %vm807 = vcmp.gt.f32.partialorder %v703, 0.0
      %vm808 = vcmp.gt.f32.partialorder %v706, 0.0
      %vm809 = vcmp.gt.f32.partialorder %v711, 0.0
      %vm810 = vcmp.gt.f32.partialorder %v714, 0.0
      %vm811 = vcmp.gt.f32.partialorder %v719, 0.0
      %vm812 = vcmp.gt.f32.partialorder %v722, 0.0
      %vm813 = vcmp.gt.f32.partialorder %v727, 0.0
      %vm814 = vcmp.gt.f32.partialorder %v730, 0.0
      %vm815 = vcmp.gt.f32.partialorder %v735, 0.0
      %vm816 = vcmp.gt.f32.partialorder %v738, 0.0
      %vm817 = vcmp.gt.f32.partialorder %v743, 0.0
      %vm818 = vcmp.gt.f32.partialorder %v746, 0.0
      %vm819 = vcmp.gt.f32.partialorder %v751, 0.0
      %vm820 = vcmp.gt.f32.partialorder %v754, 0.0
      %v821 = vmul.f32 %v503, 0.2
      %v822 = vmul.f32 %v506, 0.2
      %v823 = vmul.f32 %v511, 0.2
      %v824 = vmul.f32 %v514, 0.2
      %v825 = vmul.f32 %v519, 0.2
      %v826 = vmul.f32 %v522, 0.2
      %v827 = vmul.f32 %v527, 0.2
      %v828 = vmul.f32 %v530, 0.2
      %v829 = vmul.f32 %v535, 0.2
      %v830 = vmul.f32 %v538, 0.2
      %v831 = vmul.f32 %v543, 0.2
      %v832 = vmul.f32 %v546, 0.2
      %v833 = vmul.f32 %v551, 0.2
      %v834 = vmul.f32 %v554, 0.2
      %v835 = vmul.f32 %v559, 0.2
      %v836 = vmul.f32 %v562, 0.2
      %v837 = vmul.f32 %v567, 0.2
      %v838 = vmul.f32 %v570, 0.2
      %v839 = vmul.f32 %v575, 0.2
      %v840 = vmul.f32 %v578, 0.2
      %v841 = vmul.f32 %v583, 0.2
      %v842 = vmul.f32 %v586, 0.2
      %v843 = vmul.f32 %v591, 0.2
      %v844 = vmul.f32 %v594, 0.2
      %v845 = vmul.f32 %v599, 0.2
      %v846 = vmul.f32 %v602, 0.2
      %v847 = vmul.f32 %v607, 0.2
      %v848 = vmul.f32 %v610, 0.2
      %v849 = vmul.f32 %v615, 0.2
      %v850 = vmul.f32 %v618, 0.2
      %v851 = vmul.f32 %v623, 0.2
      %v852 = vmul.f32 %v626, 0.2
      %v853 = vmul.f32 %v631, 0.2
      %v854 = vmul.f32 %v634, 0.2
      %v855 = vmul.f32 %v639, 0.2
      %v856 = vmul.f32 %v642, 0.2
      %v857 = vmul.f32 %v647, 0.2
      %v858 = vmul.f32 %v650, 0.2
      %v859 = vmul.f32 %v655, 0.2
      %v860 = vmul.f32 %v658, 0.2
      %v861 = vmul.f32 %v663, 0.2
      %v862 = vmul.f32 %v666, 0.2
      %v863 = vmul.f32 %v671, 0.2
      %v864 = vmul.f32 %v674, 0.2
      %v865 = vmul.f32 %v679, 0.2
      %v866 = vmul.f32 %v682, 0.2
      %v867 = vmul.f32 %v687, 0.2
      %v868 = vmul.f32 %v690, 0.2
      %v869 = vmul.f32 %v695, 0.2
      %v870 = vmul.f32 %v698, 0.2
      %v871 = vmul.f32 %v703, 0.2
      %v872 = vmul.f32 %v706, 0.2
      %v873 = vmul.f32 %v711, 0.2
      %v874 = vmul.f32 %v714, 0.2
      %v875 = vmul.f32 %v719, 0.2
      %v876 = vmul.f32 %v722, 0.2
      %v877 = vmul.f32 %v727, 0.2
      %v878 = vmul.f32 %v730, 0.2
      %v879 = vmul.f32 %v735, 0.2
      %v880 = vmul.f32 %v738, 0.2
      %v881 = vmul.f32 %v743, 0.2
      %v882 = vmul.f32 %v746, 0.2
      %v883 = vmul.f32 %v751, 0.2
      %v884 = vmul.f32 %v754, 0.2
      %v885 = vsel %vm757, %v503, %v821
      %v886 = vsel %vm758, %v506, %v822
      %v887 = vsel %vm759, %v511, %v823
      %v888 = vsel %vm760, %v514, %v824
      %v889 = vsel %vm761, %v519, %v825
      %v890 = vsel %vm762, %v522, %v826
      %v891 = vsel %vm763, %v527, %v827
      %v892 = vsel %vm764, %v530, %v828
      %v893 = vsel %vm765, %v535, %v829
      %v894 = vsel %vm766, %v538, %v830
      %v895 = vsel %vm767, %v543, %v831
      %v896 = vsel %vm768, %v546, %v832
      %v897 = vsel %vm769, %v551, %v833
      %v898 = vsel %vm770, %v554, %v834
      %v899 = vsel %vm771, %v559, %v835
      %v900 = vsel %vm772, %v562, %v836
      %v901 = vsel %vm773, %v567, %v837
      %v902 = vsel %vm774, %v570, %v838
      %v903 = vsel %vm775, %v575, %v839
      %v904 = vsel %vm776, %v578, %v840
      %v905 = vsel %vm777, %v583, %v841
      %v906 = vsel %vm778, %v586, %v842
      %v907 = vsel %vm779, %v591, %v843
      %v908 = vsel %vm780, %v594, %v844
      %v909 = vsel %vm781, %v599, %v845
      %v910 = vsel %vm782, %v602, %v846
      %v911 = vsel %vm783, %v607, %v847
      %v912 = vsel %vm784, %v610, %v848
      %v913 = vsel %vm785, %v615, %v849
      %v914 = vsel %vm786, %v618, %v850
      %v915 = vsel %vm787, %v623, %v851
      %v916 = vsel %vm788, %v626, %v852
      %v917 = vsel %vm789, %v631, %v853
      %v918 = vsel %vm790, %v634, %v854
      %v919 = vsel %vm791, %v639, %v855
      %v920 = vsel %vm792, %v642, %v856
      %v921 = vsel %vm793, %v647, %v857
      %v922 = vsel %vm794, %v650, %v858
      %v923 = vsel %vm795, %v655, %v859
      %v924 = vsel %vm796, %v658, %v860
      %v925 = vsel %vm797, %v663, %v861
      %v926 = vsel %vm798, %v666, %v862
      %v927 = vsel %vm799, %v671, %v863
      %v928 = vsel %vm800, %v674, %v864
      %v929 = vsel %vm801, %v679, %v865
      %v930 = vsel %vm802, %v682, %v866
      %v931 = vsel %vm803, %v687, %v867
      %v932 = vsel %vm804, %v690, %v868
      %v933 = vsel %vm805, %v695, %v869
      %v934 = vsel %vm806, %v698, %v870
      %v935 = vsel %vm807, %v703, %v871
      %v936 = vsel %vm808, %v706, %v872
      %v937 = vsel %vm809, %v711, %v873
      %v938 = vsel %vm810, %v714, %v874
      %v939 = vsel %vm811, %v719, %v875
      %v940 = vsel %vm812, %v722, %v876
      %v941 = vsel %vm813, %v727, %v877
      %v942 = vsel %vm814, %v730, %v878
      %v943 = vsel %vm815, %v735, %v879
      %v944 = vsel %vm816, %v738, %v880
      %v945 = vsel %vm817, %v743, %v881
      %v946 = vsel %vm818, %v746, %v882
      %v947 = vsel %vm819, %v751, %v883
      %v948 = vsel %vm820, %v754, %v884
      %v949 = vpack.c.bf16 %v886, %v885
      %v950 = vpack.c.bf16 %v888, %v887
      %v951 = vpack.c.bf16 %v890, %v889
      %v952 = vpack.c.bf16 %v892, %v891
      %v953 = vpack.c.bf16 %v894, %v893
      %v954 = vpack.c.bf16 %v896, %v895
      %v955 = vpack.c.bf16 %v898, %v897
      %v956 = vpack.c.bf16 %v900, %v899
      %v957 = vpack.c.bf16 %v902, %v901
      %v958 = vpack.c.bf16 %v904, %v903
      %v959 = vpack.c.bf16 %v906, %v905
      %v960 = vpack.c.bf16 %v908, %v907
      %v961 = vpack.c.bf16 %v910, %v909
      %v962 = vpack.c.bf16 %v912, %v911
      %v963 = vpack.c.bf16 %v914, %v913
      %v964 = vpack.c.bf16 %v916, %v915
      %v965 = vpack.c.bf16 %v918, %v917
      %v966 = vpack.c.bf16 %v920, %v919
      %v967 = vpack.c.bf16 %v922, %v921
      %v968 = vpack.c.bf16 %v924, %v923
      %v969 = vpack.c.bf16 %v926, %v925
      %v970 = vpack.c.bf16 %v928, %v927
      %v971 = vpack.c.bf16 %v930, %v929
      %v972 = vpack.c.bf16 %v932, %v931
      %v973 = vpack.c.bf16 %v934, %v933
      %v974 = vpack.c.bf16 %v936, %v935
      %v975 = vpack.c.bf16 %v938, %v937
      %v976 = vpack.c.bf16 %v940, %v939
      %v977 = vpack.c.bf16 %v942, %v941
      %v978 = vpack.c.bf16 %v944, %v943
      %v979 = vpack.c.bf16 %v946, %v945
      %v980 = vpack.c.bf16 %v948, %v947
      %v1013 = vunpack.c.l.b16 %v949
      %v1014 = vunpack.c.h.b16 %v949
      %v1015 = vunpack.c.l.b16 %v950
      %v1016 = vunpack.c.h.b16 %v950
      %v1017 = vunpack.c.l.b16 %v951
      %v1018 = vunpack.c.h.b16 %v951
      %v1019 = vunpack.c.l.b16 %v952
      %v1020 = vunpack.c.h.b16 %v952
      %v1021 = vunpack.c.l.b16 %v953
      %v1022 = vunpack.c.h.b16 %v953
      %v1023 = vunpack.c.l.b16 %v954
      %v1024 = vunpack.c.h.b16 %v954
      %v1025 = vunpack.c.l.b16 %v955
      %v1026 = vunpack.c.h.b16 %v955
      %v1027 = vunpack.c.l.b16 %v956
      %v1028 = vunpack.c.h.b16 %v956
      %v1029 = vunpack.c.l.b16 %v957
      %v1030 = vunpack.c.h.b16 %v957
      %v1031 = vunpack.c.l.b16 %v958
      %v1032 = vunpack.c.h.b16 %v958
      %v1033 = vunpack.c.l.b16 %v959
      %v1034 = vunpack.c.h.b16 %v959
      %v1035 = vunpack.c.l.b16 %v960
      %v1036 = vunpack.c.h.b16 %v960
      %v1037 = vunpack.c.l.b16 %v961
      %v1038 = vunpack.c.h.b16 %v961
      %v1039 = vunpack.c.l.b16 %v962
      %v1040 = vunpack.c.h.b16 %v962
      %v1041 = vunpack.c.l.b16 %v963
      %v1042 = vunpack.c.h.b16 %v963
      %v1043 = vunpack.c.l.b16 %v964
      %v1044 = vunpack.c.h.b16 %v964
      %v1045 = vunpack.c.l.b16 %v965
      %v1046 = vunpack.c.h.b16 %v965
      %v1047 = vunpack.c.l.b16 %v966
      %v1048 = vunpack.c.h.b16 %v966
      %v1049 = vunpack.c.l.b16 %v967
      %v1050 = vunpack.c.h.b16 %v967
      %v1051 = vunpack.c.l.b16 %v968
      %v1052 = vunpack.c.h.b16 %v968
      %v1053 = vunpack.c.l.b16 %v969
      %v1054 = vunpack.c.h.b16 %v969
      %v1055 = vunpack.c.l.b16 %v970
      %v1056 = vunpack.c.h.b16 %v970
      %v1057 = vunpack.c.l.b16 %v971
      %v1058 = vunpack.c.h.b16 %v971
      %v1059 = vunpack.c.l.b16 %v972
      %v1060 = vunpack.c.h.b16 %v972
      %v1061 = vunpack.c.l.b16 %v973
      %v1062 = vunpack.c.h.b16 %v973
      %v1063 = vunpack.c.l.b16 %v974
      %v1064 = vunpack.c.h.b16 %v974
      %v1065 = vunpack.c.l.b16 %v975
      %v1066 = vunpack.c.h.b16 %v975
      %v1067 = vunpack.c.l.b16 %v976
      %v1068 = vunpack.c.h.b16 %v976
      %v1069 = vunpack.c.l.b16 %v977
      %v1070 = vunpack.c.h.b16 %v977
      %v1071 = vunpack.c.l.b16 %v978
      %v1072 = vunpack.c.h.b16 %v978
      %v1073 = vunpack.c.l.b16 %v979
      %v1074 = vunpack.c.h.b16 %v979
      %v1075 = vunpack.c.l.b16 %v980
      %v1076 = vunpack.c.h.b16 %v980
      %v1077 = vpack.c.b16 %v1013, %v1013
      %v1078 = vpack.c.b16 %v1014, %v1014
      %v1079 = vpack.c.b16 %v1015, %v1015
      %v1080 = vpack.c.b16 %v1016, %v1016
      %v1081 = vpack.c.b16 %v1017, %v1017
      %v1082 = vpack.c.b16 %v1018, %v1018
      %v1083 = vpack.c.b16 %v1019, %v1019
      %v1084 = vpack.c.b16 %v1020, %v1020
      %v1085 = vpack.c.b16 %v1021, %v1021
      %v1086 = vpack.c.b16 %v1022, %v1022
      %v1087 = vpack.c.b16 %v1023, %v1023
      %v1088 = vpack.c.b16 %v1024, %v1024
      %v1089 = vpack.c.b16 %v1025, %v1025
      %v1090 = vpack.c.b16 %v1026, %v1026
      %v1091 = vpack.c.b16 %v1027, %v1027
      %v1092 = vpack.c.b16 %v1028, %v1028
      %v1093 = vpack.c.b16 %v1029, %v1029
      %v1094 = vpack.c.b16 %v1030, %v1030
      %v1095 = vpack.c.b16 %v1031, %v1031
      %v1096 = vpack.c.b16 %v1032, %v1032
      %v1097 = vpack.c.b16 %v1033, %v1033
      %v1098 = vpack.c.b16 %v1034, %v1034
      %v1099 = vpack.c.b16 %v1035, %v1035
      %v1100 = vpack.c.b16 %v1036, %v1036
      %v1101 = vpack.c.b16 %v1037, %v1037
      %v1102 = vpack.c.b16 %v1038, %v1038
      %v1103 = vpack.c.b16 %v1039, %v1039
      %v1104 = vpack.c.b16 %v1040, %v1040
      %v1105 = vpack.c.b16 %v1041, %v1041
      %v1106 = vpack.c.b16 %v1042, %v1042
      %v1107 = vpack.c.b16 %v1043, %v1043
      %v1108 = vpack.c.b16 %v1044, %v1044
      %v1109 = vpack.c.b16 %v1045, %v1045
      %v1110 = vpack.c.b16 %v1046, %v1046
      %v1111 = vpack.c.b16 %v1047, %v1047
      %v1112 = vpack.c.b16 %v1048, %v1048
      %v1113 = vpack.c.b16 %v1049, %v1049
      %v1114 = vpack.c.b16 %v1050, %v1050
      %v1115 = vpack.c.b16 %v1051, %v1051
      %v1116 = vpack.c.b16 %v1052, %v1052
      %v1117 = vpack.c.b16 %v1053, %v1053
      %v1118 = vpack.c.b16 %v1054, %v1054
      %v1119 = vpack.c.b16 %v1055, %v1055
      %v1120 = vpack.c.b16 %v1056, %v1056
      %v1121 = vpack.c.b16 %v1057, %v1057
      %v1122 = vpack.c.b16 %v1058, %v1058
      %v1123 = vpack.c.b16 %v1059, %v1059
      %v1124 = vpack.c.b16 %v1060, %v1060
      %v1125 = vpack.c.b16 %v1061, %v1061
      %v1126 = vpack.c.b16 %v1062, %v1062
      %v1127 = vpack.c.b16 %v1063, %v1063
      %v1128 = vpack.c.b16 %v1064, %v1064
      %v1129 = vpack.c.b16 %v1065, %v1065
      %v1130 = vpack.c.b16 %v1066, %v1066
      %v1131 = vpack.c.b16 %v1067, %v1067
      %v1132 = vpack.c.b16 %v1068, %v1068
      %v1133 = vpack.c.b16 %v1069, %v1069
      %v1134 = vpack.c.b16 %v1070, %v1070
      %v1135 = vpack.c.b16 %v1071, %v1071
      %v1136 = vpack.c.b16 %v1072, %v1072
      %v1137 = vpack.c.b16 %v1073, %v1073
      %v1138 = vpack.c.b16 %v1074, %v1074
      %v1139 = vpack.c.b16 %v1075, %v1075
      %v1140 = vpack.c.b16 %v1076, %v1076
      %1205 = vst [vmem:[%s145] sm:$0xf] %v1077
      %1206 = vst [vmem:[%s145 + $0x4] sm:$0xf] %v1078
      %1207 = vst [vmem:[%s145 + $0x8] sm:$0xf] %v1079
      %1208 = vst [vmem:[%s145 + $0xc] sm:$0xf] %v1080
      %1209 = vst [vmem:[%s145 + $0x10] sm:$0xf] %v1081
      %1210 = vst [vmem:[%s145 + $0x14] sm:$0xf] %v1082
      %1211 = vst [vmem:[%s145 + $0x18] sm:$0xf] %v1083
      %1212 = vst [vmem:[%s145 + $0x1c] sm:$0xf] %v1084
      %1213 = vst [vmem:[%s145 + $0x20] sm:$0xf] %v1085
      %1214 = vst [vmem:[%s145 + $0x24] sm:$0xf] %v1086
      %1215 = vst [vmem:[%s145 + $0x28] sm:$0xf] %v1087
      %1216 = vst [vmem:[%s145 + $0x2c] sm:$0xf] %v1088
      %1217 = vst [vmem:[%s145 + $0x30] sm:$0xf] %v1089
      %1218 = vst [vmem:[%s145 + $0x34] sm:$0xf] %v1090
      %1219 = vst [vmem:[%s145 + $0x38] sm:$0xf] %v1091
      %1220 = vst [vmem:[%s145 + $0x3c] sm:$0xf] %v1092
      %1221 = vst [vmem:[%s145 + $0x40] sm:$0xf] %v1093
      %1222 = vst [vmem:[%s145 + $0x44] sm:$0xf] %v1094
      %1223 = vst [vmem:[%s145 + $0x48] sm:$0xf] %v1095
      %1224 = vst [vmem:[%s145 + $0x4c] sm:$0xf] %v1096
      %1225 = vst [vmem:[%s145 + $0x50] sm:$0xf] %v1097
      %1226 = vst [vmem:[%s145 + $0x54] sm:$0xf] %v1098
      %1227 = vst [vmem:[%s145 + $0x58] sm:$0xf] %v1099
      %1228 = vst [vmem:[%s145 + $0x5c] sm:$0xf] %v1100
      %1229 = vst [vmem:[%s145 + $0x60] sm:$0xf] %v1101
      %1230 = vst [vmem:[%s145 + $0x64] sm:$0xf] %v1102
      %1231 = vst [vmem:[%s145 + $0x68] sm:$0xf] %v1103
      %1232 = vst [vmem:[%s145 + $0x6c] sm:$0xf] %v1104
      %1233 = vst [vmem:[%s145 + $0x70] sm:$0xf] %v1105
      %1234 = vst [vmem:[%s145 + $0x74] sm:$0xf] %v1106
      %1235 = vst [vmem:[%s145 + $0x78] sm:$0xf] %v1107
      %1236 = vst [vmem:[%s145 + $0x7c] sm:$0xf] %v1108
      %1237 = vst [vmem:[%s145 + $0x80] sm:$0xf] %v1109
      %1238 = vst [vmem:[%s145 + $0x84] sm:$0xf] %v1110
      %1239 = vst [vmem:[%s145 + $0x88] sm:$0xf] %v1111
      %1240 = vst [vmem:[%s145 + $0x8c] sm:$0xf] %v1112
      %1241 = vst [vmem:[%s145 + $0x90] sm:$0xf] %v1113
      %1242 = vst [vmem:[%s145 + $0x94] sm:$0xf] %v1114
      %1243 = vst [vmem:[%s145 + $0x98] sm:$0xf] %v1115
      %1244 = vst [vmem:[%s145 + $0x9c] sm:$0xf] %v1116
      %1245 = vst [vmem:[%s145 + $0xa0] sm:$0xf] %v1117
      %1246 = vst [vmem:[%s145 + $0xa4] sm:$0xf] %v1118
      %1247 = vst [vmem:[%s145 + $0xa8] sm:$0xf] %v1119
      %1248 = vst [vmem:[%s145 + $0xac] sm:$0xf] %v1120
      %1249 = vst [vmem:[%s145 + $0xb0] sm:$0xf] %v1121
      %1250 = vst [vmem:[%s145 + $0xb4] sm:$0xf] %v1122
      %1251 = vst [vmem:[%s145 + $0xb8] sm:$0xf] %v1123
      %1252 = vst [vmem:[%s145 + $0xbc] sm:$0xf] %v1124
      %1253 = vst [vmem:[%s145 + $0xc0] sm:$0xf] %v1125
      %1254 = vst [vmem:[%s145 + $0xc4] sm:$0xf] %v1126
      %1255 = vst [vmem:[%s145 + $0xc8] sm:$0xf] %v1127
      %1256 = vst [vmem:[%s145 + $0xcc] sm:$0xf] %v1128
      %1257 = vst [vmem:[%s145 + $0xd0] sm:$0xf] %v1129
      %1258 = vst [vmem:[%s145 + $0xd4] sm:$0xf] %v1130
      %1259 = vst [vmem:[%s145 + $0xd8] sm:$0xf] %v1131
      %1260 = vst [vmem:[%s145 + $0xdc] sm:$0xf] %v1132
      %1261 = vst [vmem:[%s145 + $0xe0] sm:$0xf] %v1133
      %1262 = vst [vmem:[%s145 + $0xe4] sm:$0xf] %v1134
      %1263 = vst [vmem:[%s145 + $0xe8] sm:$0xf] %v1135
      %1264 = vst [vmem:[%s145 + $0xec] sm:$0xf] %v1136
      %1265 = vst [vmem:[%s145 + $0xf0] sm:$0xf] %v1137
      %1266 = vst [vmem:[%s145 + $0xf4] sm:$0xf] %v1138
      %1267 = vst [vmem:[%s145 + $0xf8] sm:$0xf] %v1139
      %1268 = vst [vmem:[%s145 + $0xfc] sm:$0xf] %v1140
      %s1269 = smul.u32 64, %s13
      %p1270 = scmp.lt.s32.totalorder %s1269, 255
      %s1271 = scalar_select %p1270, %s1269, 255
      %s1272 = smul.addr %s1271, 4
      %s1273 = scalar_lea.vmem %s2, %s1272
      // Predicated region
      $region29: #{discriminator_forward.8} parent=27 // pred_check
        %p1274 = pneg %p78
      $region30: #{discriminator_forward.8} parent=27 // pred_check_branch
        %1276 = sbr.rel (%p1274) target = $region32
      $region31: #{discriminator_forward.8} parent=27 // pred_region
        %s1277 = smul.u32 64, %s13
      $region32: #{discriminator_forward.8} parent=27 // pred_fallthru
        _
    $region28: #{discriminator_forward.8} parent=5 // pred_fallthru
      _
    %p1278 = scmp.le.s32.totalorder 2, %s8
    // Predicated region
    $region33: #{discriminator_forward.8} parent=5 // pred_check
      %p1279 = pneg %p1278
    $region34: #{discriminator_forward.8} parent=5 // pred_check_branch
      %1281 = sbr.rel (%p1279) target = $region36
    $region35: #{discriminator_forward.8} parent=5 // pred_region
      %s1282 = ssub.s32 %s8, 2
      // Predicated region
      $region37: #{discriminator_forward.8} parent=35 // pred_check
        %p1283 = pneg %p84
      $region38: #{discriminator_forward.8} parent=35 // pred_check_branch
        %1285 = sbr.rel (%p1283) target = $region40
      $region39: #{discriminator_forward.8} parent=35 // pred_region
        %s1286 = smul.u32 64, %s14
        %p1287 = scmp.lt.s32.totalorder %s1286, 255
        %s1288 = scalar_select %p1287, %s1286, 255
        %s1289 = smul.addr %s1288, 4
        %s1290 = scalar_lea.vmem %s2, %s1289
      $region40: #{discriminator_forward.8} parent=35 // pred_fallthru
        _
    $region36: #{discriminator_forward.8} parent=5 // pred_fallthru
      _
  $region6: #{discriminator_forward.8} parent=0 // loop_footer
    %s12 = sadd.s32 1, %s8
  $region7: #{discriminator_forward.8} parent=0 // loop_footer_branch
    %7 = sbr.rel target = $region3
  $region8: #{discriminator_forward.8} parent=0 // loop_exit
    _

// kernel: discriminator_forward.10
$region0: #{discriminator_forward.10}
  #allocation0 [shape = 'u32[]', space=smem, size = 0x4, offset = 0x4, fixed_abs, tag = 'smem constant byte address 0x4 - core index']
  #allocation1 [shape = 'u32[144,128]{1,0:T(1,128)}', space=vmem, size = 0x12000, scoped, tag = 'internal scratch']
  %s0 = inlined_call_operand.vmem [shape: f32[512,128], index: 0, kind: input, shape index: {}]
  %s1 = inlined_call_operand.vmem [shape: f32[2,128], index: 1, kind: input, shape index: {}]
  %s2 = inlined_call_operand.vmem [shape: bf16[512,128], index: 2, kind: output, shape index: {}]
  %s3 = sld [smem:[#allocation0]]
  $region18: #{discriminator_forward.10} parent=0
    _
  %s5 = ssub.s32 1, %s3
  %s6 = scalar_select 0, %s5, %s3
  // Predicated region
  $region2: #{discriminator_forward.10} parent=0 // pred_check
    _
  $region3: #{discriminator_forward.10} parent=0 // pred_check_branch
    %8 = sbr.rel (0) target = $region5
  $region4: #{discriminator_forward.10} parent=0 // pred_region
    _
  $region5: #{discriminator_forward.10} parent=0 // pred_fallthru
    _
  // Predicated region
  $region6: #{discriminator_forward.10} parent=0 // pred_check
    _
  $region7: #{discriminator_forward.10} parent=0 // pred_check_branch
    %10 = sbr.rel (0) target = $region9
  $region8: #{discriminator_forward.10} parent=0 // pred_region
    _
  $region9: #{discriminator_forward.10} parent=0 // pred_fallthru
    _
  %v11 = vld [vmem:[%s0] sm:$0xff]
  %v12 = vld [vmem:[%s0 + $0x8] sm:$0xff]
  %v13 = vld [vmem:[%s0 + $0x10] sm:$0xff]
  %v14 = vld [vmem:[%s0 + $0x18] sm:$0xff]
  %v15 = vld [vmem:[%s0 + $0x20] sm:$0xff]
  %v16 = vld [vmem:[%s0 + $0x28] sm:$0xff]
  %v17 = vld [vmem:[%s0 + $0x30] sm:$0xff]
  %v18 = vld [vmem:[%s0 + $0x38] sm:$0xff]
  %v19 = vld [vmem:[%s0 + $0x40] sm:$0xff]
  %v20 = vld [vmem:[%s0 + $0x48] sm:$0xff]
  %v21 = vld [vmem:[%s0 + $0x50] sm:$0xff]
  %v22 = vld [vmem:[%s0 + $0x58] sm:$0xff]
  %v23 = vld [vmem:[%s0 + $0x60] sm:$0xff]
  %v24 = vld [vmem:[%s0 + $0x68] sm:$0xff]
  %v25 = vld [vmem:[%s0 + $0x70] sm:$0xff]
  %v26 = vld [vmem:[%s0 + $0x78] sm:$0xff]
  %v27 = vld [vmem:[%s0 + $0x80] sm:$0xff]
  %v28 = vld [vmem:[%s0 + $0x88] sm:$0xff]
  %v29 = vld [vmem:[%s0 + $0x90] sm:$0xff]
  %v30 = vld [vmem:[%s0 + $0x98] sm:$0xff]
  %v31 = vld [vmem:[%s0 + $0xa0] sm:$0xff]
  %v32 = vld [vmem:[%s0 + $0xa8] sm:$0xff]
  %v33 = vld [vmem:[%s0 + $0xb0] sm:$0xff]
  %v34 = vld [vmem:[%s0 + $0xb8] sm:$0xff]
  %v35 = vld [vmem:[%s0 + $0xc0] sm:$0xff]
  %v36 = vld [vmem:[%s0 + $0xc8] sm:$0xff]
  %v37 = vld [vmem:[%s0 + $0xd0] sm:$0xff]
  %v38 = vld [vmem:[%s0 + $0xd8] sm:$0xff]
  %v39 = vld [vmem:[%s0 + $0xe0] sm:$0xff]
  %v40 = vld [vmem:[%s0 + $0xe8] sm:$0xff]
  %v41 = vld [vmem:[%s0 + $0xf0] sm:$0xff]
  %v42 = vld [vmem:[%s0 + $0xf8] sm:$0xff]
  %v43 = vld [vmem:[%s0 + $0x100] sm:$0xff]
  %v44 = vld [vmem:[%s0 + $0x108] sm:$0xff]
  %v45 = vld [vmem:[%s0 + $0x110] sm:$0xff]
  %v46 = vld [vmem:[%s0 + $0x118] sm:$0xff]
  %v47 = vld [vmem:[%s0 + $0x120] sm:$0xff]
  %v48 = vld [vmem:[%s0 + $0x128] sm:$0xff]
  %v49 = vld [vmem:[%s0 + $0x130] sm:$0xff]
  %v50 = vld [vmem:[%s0 + $0x138] sm:$0xff]
  %v51 = vld [vmem:[%s0 + $0x140] sm:$0xff]
  %v52 = vld [vmem:[%s0 + $0x148] sm:$0xff]
  %v53 = vld [vmem:[%s0 + $0x150] sm:$0xff]
  %v54 = vld [vmem:[%s0 + $0x158] sm:$0xff]
  %v55 = vld [vmem:[%s0 + $0x160] sm:$0xff]
  %v56 = vld [vmem:[%s0 + $0x168] sm:$0xff]
  %v57 = vld [vmem:[%s0 + $0x170] sm:$0xff]
  %v58 = vld [vmem:[%s0 + $0x178] sm:$0xff]
  %v59 = vld [vmem:[%s0 + $0x180] sm:$0xff]
  %v60 = vld [vmem:[%s0 + $0x188] sm:$0xff]
  %v61 = vld [vmem:[%s0 + $0x190] sm:$0xff]
  %v62 = vld [vmem:[%s0 + $0x198] sm:$0xff]
  %v63 = vld [vmem:[%s0 + $0x1a0] sm:$0xff]
  %v64 = vld [vmem:[%s0 + $0x1a8] sm:$0xff]
  %v65 = vld [vmem:[%s0 + $0x1b0] sm:$0xff]
  %v66 = vld [vmem:[%s0 + $0x1b8] sm:$0xff]
  %v67 = vld [vmem:[%s0 + $0x1c0] sm:$0xff]
  %v68 = vld [vmem:[%s0 + $0x1c8] sm:$0xff]
  %v69 = vld [vmem:[%s0 + $0x1d0] sm:$0xff]
  %v70 = vld [vmem:[%s0 + $0x1d8] sm:$0xff]
  %v71 = vld [vmem:[%s0 + $0x1e0] sm:$0xff]
  %v72 = vld [vmem:[%s0 + $0x1e8] sm:$0xff]
  %v73 = vld [vmem:[%s0 + $0x1f0] sm:$0xff]
  %v74 = vld [vmem:[%s0 + $0x1f8] sm:$0xff]
  %v75 = vld [vmem:[%s1] sm:$0x1]
  %v76 = vld [vmem:[%s1 + $0x1] sm:$0x1]
  %v77 = vlaneseq
  %v78 = vshrl.u32 %v77, 7
  %v79 = vsub.s32 0, %v78
  %v80 = vrot.slane %v75, %v79
  %v81 = vmul.f32 %v11, %v80
  %v82 = vmul.f32 %v12, %v80
  %v83 = vmul.f32 %v13, %v80
  %v84 = vmul.f32 %v14, %v80
  %v85 = vmul.f32 %v15, %v80
  %v86 = vmul.f32 %v16, %v80
  %v87 = vmul.f32 %v17, %v80
  %v88 = vmul.f32 %v18, %v80
  %v89 = vmul.f32 %v19, %v80
  %v90 = vmul.f32 %v20, %v80
  %v91 = vmul.f32 %v21, %v80
  %v92 = vmul.f32 %v22, %v80
  %v93 = vmul.f32 %v23, %v80
  %v94 = vmul.f32 %v24, %v80
  %v95 = vmul.f32 %v25, %v80
  %v96 = vmul.f32 %v26, %v80
  %v97 = vmul.f32 %v27, %v80
  %v98 = vmul.f32 %v28, %v80
  %v99 = vmul.f32 %v29, %v80
  %v100 = vmul.f32 %v30, %v80
  %v101 = vmul.f32 %v31, %v80
  %v102 = vmul.f32 %v32, %v80
  %v103 = vmul.f32 %v33, %v80
  %v104 = vmul.f32 %v34, %v80
  %v105 = vmul.f32 %v35, %v80
  %v106 = vmul.f32 %v36, %v80
  %v107 = vmul.f32 %v37, %v80
  %v108 = vmul.f32 %v38, %v80
  %v109 = vmul.f32 %v39, %v80
  %v110 = vmul.f32 %v40, %v80
  %v111 = vmul.f32 %v41, %v80
  %v112 = vmul.f32 %v42, %v80
  %v113 = vmul.f32 %v43, %v80
  %v114 = vmul.f32 %v44, %v80
  %v115 = vmul.f32 %v45, %v80
  %v116 = vmul.f32 %v46, %v80
  %v117 = vmul.f32 %v47, %v80
  %v118 = vmul.f32 %v48, %v80
  %v119 = vmul.f32 %v49, %v80
  %v120 = vmul.f32 %v50, %v80
  %v121 = vmul.f32 %v51, %v80
  %v122 = vmul.f32 %v52, %v80
  %v123 = vmul.f32 %v53, %v80
  %v124 = vmul.f32 %v54, %v80
  %v125 = vmul.f32 %v55, %v80
  %v126 = vmul.f32 %v56, %v80
  %v127 = vmul.f32 %v57, %v80
  %v128 = vmul.f32 %v58, %v80
  %v129 = vmul.f32 %v59, %v80
  %v130 = vmul.f32 %v60, %v80
  %v131 = vmul.f32 %v61, %v80
  %v132 = vmul.f32 %v62, %v80
  %v133 = vmul.f32 %v63, %v80
  %v134 = vmul.f32 %v64, %v80
  %v135 = vmul.f32 %v65, %v80
  %v136 = vmul.f32 %v66, %v80
  %v137 = vmul.f32 %v67, %v80
  %v138 = vmul.f32 %v68, %v80
  %v139 = vmul.f32 %v69, %v80
  %v140 = vmul.f32 %v70, %v80
  %v141 = vmul.f32 %v71, %v80
  %v142 = vmul.f32 %v72, %v80
  %v143 = vmul.f32 %v73, %v80
  %v144 = vmul.f32 %v74, %v80
  %v145 = vlaneseq
  %v146 = vshrl.u32 %v145, 7
  %v147 = vsub.s32 0, %v146
  %v148 = vrot.slane %v76, %v147
  %v149 = vadd.f32 %v81, %v148
  %v150 = vadd.f32 %v82, %v148
  %v151 = vadd.f32 %v83, %v148
  %v152 = vadd.f32 %v84, %v148
  %v153 = vadd.f32 %v85, %v148
  %v154 = vadd.f32 %v86, %v148
  %v155 = vadd.f32 %v87, %v148
  %v156 = vadd.f32 %v88, %v148
  %v157 = vadd.f32 %v89, %v148
  %v158 = vadd.f32 %v90, %v148
  %v159 = vadd.f32 %v91, %v148
  %v160 = vadd.f32 %v92, %v148
  %v161 = vadd.f32 %v93, %v148
  %v162 = vadd.f32 %v94, %v148
  %v163 = vadd.f32 %v95, %v148
  %v164 = vadd.f32 %v96, %v148
  %v165 = vadd.f32 %v97, %v148
  %v166 = vadd.f32 %v98, %v148
  %v167 = vadd.f32 %v99, %v148
  %v168 = vadd.f32 %v100, %v148
  %v169 = vadd.f32 %v101, %v148
  %v170 = vadd.f32 %v102, %v148
  %v171 = vadd.f32 %v103, %v148
  %v172 = vadd.f32 %v104, %v148
  %v173 = vadd.f32 %v105, %v148
  %v174 = vadd.f32 %v106, %v148
  %v175 = vadd.f32 %v107, %v148
  %v176 = vadd.f32 %v108, %v148
  %v177 = vadd.f32 %v109, %v148
  %v178 = vadd.f32 %v110, %v148
  %v179 = vadd.f32 %v111, %v148
  %v180 = vadd.f32 %v112, %v148
  %v181 = vadd.f32 %v113, %v148
  %v182 = vadd.f32 %v114, %v148
  %v183 = vadd.f32 %v115, %v148
  %v184 = vadd.f32 %v116, %v148
  %v185 = vadd.f32 %v117, %v148
  %v186 = vadd.f32 %v118, %v148
  %v187 = vadd.f32 %v119, %v148
  %v188 = vadd.f32 %v120, %v148
  %v189 = vadd.f32 %v121, %v148
  %v190 = vadd.f32 %v122, %v148
  %v191 = vadd.f32 %v123, %v148
  %v192 = vadd.f32 %v124, %v148
  %v193 = vadd.f32 %v125, %v148
  %v194 = vadd.f32 %v126, %v148
  %v195 = vadd.f32 %v127, %v148
  %v196 = vadd.f32 %v128, %v148
  %v197 = vadd.f32 %v129, %v148
  %v198 = vadd.f32 %v130, %v148
  %v199 = vadd.f32 %v131, %v148
  %v200 = vadd.f32 %v132, %v148
  %v201 = vadd.f32 %v133, %v148
  %v202 = vadd.f32 %v134, %v148
  %v203 = vadd.f32 %v135, %v148
  %v204 = vadd.f32 %v136, %v148
  %v205 = vadd.f32 %v137, %v148
  %v206 = vadd.f32 %v138, %v148
  %v207 = vadd.f32 %v139, %v148
  %v208 = vadd.f32 %v140, %v148
  %v209 = vadd.f32 %v141, %v148
  %v210 = vadd.f32 %v142, %v148
  %v211 = vadd.f32 %v143, %v148
  %v212 = vadd.f32 %v144, %v148
  %vm213 = vcmp.gt.f32.partialorder %v149, 0.0
  %vm214 = vcmp.gt.f32.partialorder %v150, 0.0
  %vm215 = vcmp.gt.f32.partialorder %v151, 0.0
  %vm216 = vcmp.gt.f32.partialorder %v152, 0.0
  %vm217 = vcmp.gt.f32.partialorder %v153, 0.0
  %vm218 = vcmp.gt.f32.partialorder %v154, 0.0
  %vm219 = vcmp.gt.f32.partialorder %v155, 0.0
  %vm220 = vcmp.gt.f32.partialorder %v156, 0.0
  %vm221 = vcmp.gt.f32.partialorder %v157, 0.0
  %vm222 = vcmp.gt.f32.partialorder %v158, 0.0
  %vm223 = vcmp.gt.f32.partialorder %v159, 0.0
  %vm224 = vcmp.gt.f32.partialorder %v160, 0.0
  %vm225 = vcmp.gt.f32.partialorder %v161, 0.0
  %vm226 = vcmp.gt.f32.partialorder %v162, 0.0
  %vm227 = vcmp.gt.f32.partialorder %v163, 0.0
  %vm228 = vcmp.gt.f32.partialorder %v164, 0.0
  %vm229 = vcmp.gt.f32.partialorder %v165, 0.0
  %vm230 = vcmp.gt.f32.partialorder %v166, 0.0
  %vm231 = vcmp.gt.f32.partialorder %v167, 0.0
  %vm232 = vcmp.gt.f32.partialorder %v168, 0.0
  %vm233 = vcmp.gt.f32.partialorder %v169, 0.0
  %vm234 = vcmp.gt.f32.partialorder %v170, 0.0
  %vm235 = vcmp.gt.f32.partialorder %v171, 0.0
  %vm236 = vcmp.gt.f32.partialorder %v172, 0.0
  %vm237 = vcmp.gt.f32.partialorder %v173, 0.0
  %vm238 = vcmp.gt.f32.partialorder %v174, 0.0
  %vm239 = vcmp.gt.f32.partialorder %v175, 0.0
  %vm240 = vcmp.gt.f32.partialorder %v176, 0.0
  %vm241 = vcmp.gt.f32.partialorder %v177, 0.0
  %vm242 = vcmp.gt.f32.partialorder %v178, 0.0
  %vm243 = vcmp.gt.f32.partialorder %v179, 0.0
  %vm244 = vcmp.gt.f32.partialorder %v180, 0.0
  %vm245 = vcmp.gt.f32.partialorder %v181, 0.0
  %vm246 = vcmp.gt.f32.partialorder %v182, 0.0
  %vm247 = vcmp.gt.f32.partialorder %v183, 0.0
  %vm248 = vcmp.gt.f32.partialorder %v184, 0.0
  %vm249 = vcmp.gt.f32.partialorder %v185, 0.0
  %vm250 = vcmp.gt.f32.partialorder %v186, 0.0
  %vm251 = vcmp.gt.f32.partialorder %v187, 0.0
  %vm252 = vcmp.gt.f32.partialorder %v188, 0.0
  %vm253 = vcmp.gt.f32.partialorder %v189, 0.0
  %vm254 = vcmp.gt.f32.partialorder %v190, 0.0
  %vm255 = vcmp.gt.f32.partialorder %v191, 0.0
  %vm256 = vcmp.gt.f32.partialorder %v192, 0.0
  %vm257 = vcmp.gt.f32.partialorder %v193, 0.0
  %vm258 = vcmp.gt.f32.partialorder %v194, 0.0
  %vm259 = vcmp.gt.f32.partialorder %v195, 0.0
  %vm260 = vcmp.gt.f32.partialorder %v196, 0.0
  %vm261 = vcmp.gt.f32.partialorder %v197, 0.0
  %vm262 = vcmp.gt.f32.partialorder %v198, 0.0
  %vm263 = vcmp.gt.f32.partialorder %v199, 0.0
  %vm264 = vcmp.gt.f32.partialorder %v200, 0.0
  %vm265 = vcmp.gt.f32.partialorder %v201, 0.0
  %vm266 = vcmp.gt.f32.partialorder %v202, 0.0
  %vm267 = vcmp.gt.f32.partialorder %v203, 0.0
  %vm268 = vcmp.gt.f32.partialorder %v204, 0.0
  %vm269 = vcmp.gt.f32.partialorder %v205, 0.0
  %vm270 = vcmp.gt.f32.partialorder %v206, 0.0
  %vm271 = vcmp.gt.f32.partialorder %v207, 0.0
  %vm272 = vcmp.gt.f32.partialorder %v208, 0.0
  %vm273 = vcmp.gt.f32.partialorder %v209, 0.0
  %vm274 = vcmp.gt.f32.partialorder %v210, 0.0
  %vm275 = vcmp.gt.f32.partialorder %v211, 0.0
  %vm276 = vcmp.gt.f32.partialorder %v212, 0.0
  %v277 = vmul.f32 %v149, 0.2
  %v278 = vmul.f32 %v150, 0.2
  %v279 = vmul.f32 %v151, 0.2
  %v280 = vmul.f32 %v152, 0.2
  %v281 = vmul.f32 %v153, 0.2
  %v282 = vmul.f32 %v154, 0.2
  %v283 = vmul.f32 %v155, 0.2
  %v284 = vmul.f32 %v156, 0.2
  %v285 = vmul.f32 %v157, 0.2
  %v286 = vmul.f32 %v158, 0.2
  %v287 = vmul.f32 %v159, 0.2
  %v288 = vmul.f32 %v160, 0.2
  %v289 = vmul.f32 %v161, 0.2
  %v290 = vmul.f32 %v162, 0.2
  %v291 = vmul.f32 %v163, 0.2
  %v292 = vmul.f32 %v164, 0.2
  %v293 = vmul.f32 %v165, 0.2
  %v294 = vmul.f32 %v166, 0.2
  %v295 = vmul.f32 %v167, 0.2
  %v296 = vmul.f32 %v168, 0.2
  %v297 = vmul.f32 %v169, 0.2
  %v298 = vmul.f32 %v170, 0.2
  %v299 = vmul.f32 %v171, 0.2
  %v300 = vmul.f32 %v172, 0.2
  %v301 = vmul.f32 %v173, 0.2
  %v302 = vmul.f32 %v174, 0.2
  %v303 = vmul.f32 %v175, 0.2
  %v304 = vmul.f32 %v176, 0.2
  %v305 = vmul.f32 %v177, 0.2
  %v306 = vmul.f32 %v178, 0.2
  %v307 = vmul.f32 %v179, 0.2
  %v308 = vmul.f32 %v180, 0.2
  %v309 = vmul.f32 %v181, 0.2
  %v310 = vmul.f32 %v182, 0.2
  %v311 = vmul.f32 %v183, 0.2
  %v312 = vmul.f32 %v184, 0.2
  %v313 = vmul.f32 %v185, 0.2
  %v314 = vmul.f32 %v186, 0.2
  %v315 = vmul.f32 %v187, 0.2
  %v316 = vmul.f32 %v188, 0.2
  %v317 = vmul.f32 %v189, 0.2
  %v318 = vmul.f32 %v190, 0.2
  %v319 = vmul.f32 %v191, 0.2
  %v320 = vmul.f32 %v192, 0.2
  %v321 = vmul.f32 %v193, 0.2
  %v322 = vmul.f32 %v194, 0.2
  %v323 = vmul.f32 %v195, 0.2
  %v324 = vmul.f32 %v196, 0.2
  %v325 = vmul.f32 %v197, 0.2
  %v326 = vmul.f32 %v198, 0.2
  %v327 = vmul.f32 %v199, 0.2
  %v328 = vmul.f32 %v200, 0.2
  %v329 = vmul.f32 %v201, 0.2
  %v330 = vmul.f32 %v202, 0.2
  %v331 = vmul.f32 %v203, 0.2
  %v332 = vmul.f32 %v204, 0.2
  %v333 = vmul.f32 %v205, 0.2
  %v334 = vmul.f32 %v206, 0.2
  %v335 = vmul.f32 %v207, 0.2
  %v336 = vmul.f32 %v208, 0.2
  %v337 = vmul.f32 %v209, 0.2
  %v338 = vmul.f32 %v210, 0.2
  %v339 = vmul.f32 %v211, 0.2
  %v340 = vmul.f32 %v212, 0.2
  %v341 = vsel %vm213, %v149, %v277
  %v342 = vsel %vm214, %v150, %v278
  %v343 = vsel %vm215, %v151, %v279
  %v344 = vsel %vm216, %v152, %v280
  %v345 = vsel %vm217, %v153, %v281
  %v346 = vsel %vm218, %v154, %v282
  %v347 = vsel %vm219, %v155, %v283
  %v348 = vsel %vm220, %v156, %v284
  %v349 = vsel %vm221, %v157, %v285
  %v350 = vsel %vm222, %v158, %v286
  %v351 = vsel %vm223, %v159, %v287
  %v352 = vsel %vm224, %v160, %v288
  %v353 = vsel %vm225, %v161, %v289
  %v354 = vsel %vm226, %v162, %v290
  %v355 = vsel %vm227, %v163, %v291
  %v356 = vsel %vm228, %v164, %v292
  %v357 = vsel %vm229, %v165, %v293
  %v358 = vsel %vm230, %v166, %v294
  %v359 = vsel %vm231, %v167, %v295
  %v360 = vsel %vm232, %v168, %v296
  %v361 = vsel %vm233, %v169, %v297
  %v362 = vsel %vm234, %v170, %v298
  %v363 = vsel %vm235, %v171, %v299
  %v364 = vsel %vm236, %v172, %v300
  %v365 = vsel %vm237, %v173, %v301
  %v366 = vsel %vm238, %v174, %v302
  %v367 = vsel %vm239, %v175, %v303
  %v368 = vsel %vm240, %v176, %v304
  %v369 = vsel %vm241, %v177, %v305
  %v370 = vsel %vm242, %v178, %v306
  %v371 = vsel %vm243, %v179, %v307
  %v372 = vsel %vm244, %v180, %v308
  %v373 = vsel %vm245, %v181, %v309
  %v374 = vsel %vm246, %v182, %v310
  %v375 = vsel %vm247, %v183, %v311
  %v376 = vsel %vm248, %v184, %v312
  %v377 = vsel %vm249, %v185, %v313
  %v378 = vsel %vm250, %v186, %v314
  %v379 = vsel %vm251, %v187, %v315
  %v380 = vsel %vm252, %v188, %v316
  %v381 = vsel %vm253, %v189, %v317
  %v382 = vsel %vm254, %v190, %v318
  %v383 = vsel %vm255, %v191, %v319
  %v384 = vsel %vm256, %v192, %v320
  %v385 = vsel %vm257, %v193, %v321
  %v386 = vsel %vm258, %v194, %v322
  %v387 = vsel %vm259, %v195, %v323
  %v388 = vsel %vm260, %v196, %v324
  %v389 = vsel %vm261, %v197, %v325
  %v390 = vsel %vm262, %v198, %v326
  %v391 = vsel %vm263, %v199, %v327
  %v392 = vsel %vm264, %v200, %v328
  %v393 = vsel %vm265, %v201, %v329
  %v394 = vsel %vm266, %v202, %v330
  %v395 = vsel %vm267, %v203, %v331
  %v396 = vsel %vm268, %v204, %v332
  %v397 = vsel %vm269, %v205, %v333
  %v398 = vsel %vm270, %v206, %v334
  %v399 = vsel %vm271, %v207, %v335
  %v400 = vsel %vm272, %v208, %v336
  %v401 = vsel %vm273, %v209, %v337
  %v402 = vsel %vm274, %v210, %v338
  %v403 = vsel %vm275, %v211, %v339
  %v404 = vsel %vm276, %v212, %v340
  %v405 = vpack.c.bf16 %v342, %v341
  %v406 = vpack.c.bf16 %v344, %v343
  %v407 = vpack.c.bf16 %v346, %v345
  %v408 = vpack.c.bf16 %v348, %v347
  %v409 = vpack.c.bf16 %v350, %v349
  %v410 = vpack.c.bf16 %v352, %v351
  %v411 = vpack.c.bf16 %v354, %v353
  %v412 = vpack.c.bf16 %v356, %v355
  %v413 = vpack.c.bf16 %v358, %v357
  %v414 = vpack.c.bf16 %v360, %v359
  %v415 = vpack.c.bf16 %v362, %v361
  %v416 = vpack.c.bf16 %v364, %v363
  %v417 = vpack.c.bf16 %v366, %v365
  %v418 = vpack.c.bf16 %v368, %v367
  %v419 = vpack.c.bf16 %v370, %v369
  %v420 = vpack.c.bf16 %v372, %v371
  %v421 = vpack.c.bf16 %v374, %v373
  %v422 = vpack.c.bf16 %v376, %v375
  %v423 = vpack.c.bf16 %v378, %v377
  %v424 = vpack.c.bf16 %v380, %v379
  %v425 = vpack.c.bf16 %v382, %v381
  %v426 = vpack.c.bf16 %v384, %v383
  %v427 = vpack.c.bf16 %v386, %v385
  %v428 = vpack.c.bf16 %v388, %v387
  %v429 = vpack.c.bf16 %v390, %v389
  %v430 = vpack.c.bf16 %v392, %v391
  %v431 = vpack.c.bf16 %v394, %v393
  %v432 = vpack.c.bf16 %v396, %v395
  %v433 = vpack.c.bf16 %v398, %v397
  %v434 = vpack.c.bf16 %v400, %v399
  %v435 = vpack.c.bf16 %v402, %v401
  %v436 = vpack.c.bf16 %v404, %v403
  %v469 = vunpack.c.l.b16 %v405
  %v470 = vunpack.c.h.b16 %v405
  %v471 = vunpack.c.l.b16 %v406
  %v472 = vunpack.c.h.b16 %v406
  %v473 = vunpack.c.l.b16 %v407
  %v474 = vunpack.c.h.b16 %v407
  %v475 = vunpack.c.l.b16 %v408
  %v476 = vunpack.c.h.b16 %v408
  %v477 = vunpack.c.l.b16 %v409
  %v478 = vunpack.c.h.b16 %v409
  %v479 = vunpack.c.l.b16 %v410
  %v480 = vunpack.c.h.b16 %v410
  %v481 = vunpack.c.l.b16 %v411
  %v482 = vunpack.c.h.b16 %v411
  %v483 = vunpack.c.l.b16 %v412
  %v484 = vunpack.c.h.b16 %v412
  %v485 = vunpack.c.l.b16 %v413
  %v486 = vunpack.c.h.b16 %v413
  %v487 = vunpack.c.l.b16 %v414
  %v488 = vunpack.c.h.b16 %v414
  %v489 = vunpack.c.l.b16 %v415
  %v490 = vunpack.c.h.b16 %v415
  %v491 = vunpack.c.l.b16 %v416
  %v492 = vunpack.c.h.b16 %v416
  %v493 = vunpack.c.l.b16 %v417
  %v494 = vunpack.c.h.b16 %v417
  %v495 = vunpack.c.l.b16 %v418
  %v496 = vunpack.c.h.b16 %v418
  %v497 = vunpack.c.l.b16 %v419
  %v498 = vunpack.c.h.b16 %v419
  %v499 = vunpack.c.l.b16 %v420
  %v500 = vunpack.c.h.b16 %v420
  %v501 = vunpack.c.l.b16 %v421
  %v502 = vunpack.c.h.b16 %v421
  %v503 = vunpack.c.l.b16 %v422
  %v504 = vunpack.c.h.b16 %v422
  %v505 = vunpack.c.l.b16 %v423
  %v506 = vunpack.c.h.b16 %v423
  %v507 = vunpack.c.l.b16 %v424
  %v508 = vunpack.c.h.b16 %v424
  %v509 = vunpack.c.l.b16 %v425
  %v510 = vunpack.c.h.b16 %v425
  %v511 = vunpack.c.l.b16 %v426
  %v512 = vunpack.c.h.b16 %v426
  %v513 = vunpack.c.l.b16 %v427
  %v514 = vunpack.c.h.b16 %v427
  %v515 = vunpack.c.l.b16 %v428
  %v516 = vunpack.c.h.b16 %v428
  %v517 = vunpack.c.l.b16 %v429
  %v518 = vunpack.c.h.b16 %v429
  %v519 = vunpack.c.l.b16 %v430
  %v520 = vunpack.c.h.b16 %v430
  %v521 = vunpack.c.l.b16 %v431
  %v522 = vunpack.c.h.b16 %v431
  %v523 = vunpack.c.l.b16 %v432
  %v524 = vunpack.c.h.b16 %v432
  %v525 = vunpack.c.l.b16 %v433
  %v526 = vunpack.c.h.b16 %v433
  %v527 = vunpack.c.l.b16 %v434
  %v528 = vunpack.c.h.b16 %v434
  %v529 = vunpack.c.l.b16 %v435
  %v530 = vunpack.c.h.b16 %v435
  %v531 = vunpack.c.l.b16 %v436
  %v532 = vunpack.c.h.b16 %v436
  %v533 = vpack.c.b16 %v469, %v469
  %v534 = vpack.c.b16 %v470, %v470
  %v535 = vpack.c.b16 %v471, %v471
  %v536 = vpack.c.b16 %v472, %v472
  %v537 = vpack.c.b16 %v473, %v473
  %v538 = vpack.c.b16 %v474, %v474
  %v539 = vpack.c.b16 %v475, %v475
  %v540 = vpack.c.b16 %v476, %v476
  %v541 = vpack.c.b16 %v477, %v477
  %v542 = vpack.c.b16 %v478, %v478
  %v543 = vpack.c.b16 %v479, %v479
  %v544 = vpack.c.b16 %v480, %v480
  %v545 = vpack.c.b16 %v481, %v481
  %v546 = vpack.c.b16 %v482, %v482
  %v547 = vpack.c.b16 %v483, %v483
  %v548 = vpack.c.b16 %v484, %v484
  %v549 = vpack.c.b16 %v485, %v485
  %v550 = vpack.c.b16 %v486, %v486
  %v551 = vpack.c.b16 %v487, %v487
  %v552 = vpack.c.b16 %v488, %v488
  %v553 = vpack.c.b16 %v489, %v489
  %v554 = vpack.c.b16 %v490, %v490
  %v555 = vpack.c.b16 %v491, %v491
  %v556 = vpack.c.b16 %v492, %v492
  %v557 = vpack.c.b16 %v493, %v493
  %v558 = vpack.c.b16 %v494, %v494
  %v559 = vpack.c.b16 %v495, %v495
  %v560 = vpack.c.b16 %v496, %v496
  %v561 = vpack.c.b16 %v497, %v497
  %v562 = vpack.c.b16 %v498, %v498
  %v563 = vpack.c.b16 %v499, %v499
  %v564 = vpack.c.b16 %v500, %v500
  %v565 = vpack.c.b16 %v501, %v501
  %v566 = vpack.c.b16 %v502, %v502
  %v567 = vpack.c.b16 %v503, %v503
  %v568 = vpack.c.b16 %v504, %v504
  %v569 = vpack.c.b16 %v505, %v505
  %v570 = vpack.c.b16 %v506, %v506
  %v571 = vpack.c.b16 %v507, %v507
  %v572 = vpack.c.b16 %v508, %v508
  %v573 = vpack.c.b16 %v509, %v509
  %v574 = vpack.c.b16 %v510, %v510
  %v575 = vpack.c.b16 %v511, %v511
  %v576 = vpack.c.b16 %v512, %v512
  %v577 = vpack.c.b16 %v513, %v513
  %v578 = vpack.c.b16 %v514, %v514
  %v579 = vpack.c.b16 %v515, %v515
  %v580 = vpack.c.b16 %v516, %v516
  %v581 = vpack.c.b16 %v517, %v517
  %v582 = vpack.c.b16 %v518, %v518
  %v583 = vpack.c.b16 %v519, %v519
  %v584 = vpack.c.b16 %v520, %v520
  %v585 = vpack.c.b16 %v521, %v521
  %v586 = vpack.c.b16 %v522, %v522
  %v587 = vpack.c.b16 %v523, %v523
  %v588 = vpack.c.b16 %v524, %v524
  %v589 = vpack.c.b16 %v525, %v525
  %v590 = vpack.c.b16 %v526, %v526
  %v591 = vpack.c.b16 %v527, %v527
  %v592 = vpack.c.b16 %v528, %v528
  %v593 = vpack.c.b16 %v529, %v529
  %v594 = vpack.c.b16 %v530, %v530
  %v595 = vpack.c.b16 %v531, %v531
  %v596 = vpack.c.b16 %v532, %v532
  %661 = vst [vmem:[%s2] sm:$0xf] %v533
  %662 = vst [vmem:[%s2 + $0x4] sm:$0xf] %v534
  %663 = vst [vmem:[%s2 + $0x8] sm:$0xf] %v535
  %664 = vst [vmem:[%s2 + $0xc] sm:$0xf] %v536
  %665 = vst [vmem:[%s2 + $0x10] sm:$0xf] %v537
  %666 = vst [vmem:[%s2 + $0x14] sm:$0xf] %v538
  %667 = vst [vmem:[%s2 + $0x18] sm:$0xf] %v539
  %668 = vst [vmem:[%s2 + $0x1c] sm:$0xf] %v540
  %669 = vst [vmem:[%s2 + $0x20] sm:$0xf] %v541
  %670 = vst [vmem:[%s2 + $0x24] sm:$0xf] %v542
  %671 = vst [vmem:[%s2 + $0x28] sm:$0xf] %v543
  %672 = vst [vmem:[%s2 + $0x2c] sm:$0xf] %v544
  %673 = vst [vmem:[%s2 + $0x30] sm:$0xf] %v545
  %674 = vst [vmem:[%s2 + $0x34] sm:$0xf] %v546
  %675 = vst [vmem:[%s2 + $0x38] sm:$0xf] %v547
  %676 = vst [vmem:[%s2 + $0x3c] sm:$0xf] %v548
  %677 = vst [vmem:[%s2 + $0x40] sm:$0xf] %v549
  %678 = vst [vmem:[%s2 + $0x44] sm:$0xf] %v550
  %679 = vst [vmem:[%s2 + $0x48] sm:$0xf] %v551
  %680 = vst [vmem:[%s2 + $0x4c] sm:$0xf] %v552
  %681 = vst [vmem:[%s2 + $0x50] sm:$0xf] %v553
  %682 = vst [vmem:[%s2 + $0x54] sm:$0xf] %v554
  %683 = vst [vmem:[%s2 + $0x58] sm:$0xf] %v555
  %684 = vst [vmem:[%s2 + $0x5c] sm:$0xf] %v556
  %685 = vst [vmem:[%s2 + $0x60] sm:$0xf] %v557
  %686 = vst [vmem:[%s2 + $0x64] sm:$0xf] %v558
  %687 = vst [vmem:[%s2 + $0x68] sm:$0xf] %v559
  %688 = vst [vmem:[%s2 + $0x6c] sm:$0xf] %v560
  %689 = vst [vmem:[%s2 + $0x70] sm:$0xf] %v561
  %690 = vst [vmem:[%s2 + $0x74] sm:$0xf] %v562
  %691 = vst [vmem:[%s2 + $0x78] sm:$0xf] %v563
  %692 = vst [vmem:[%s2 + $0x7c] sm:$0xf] %v564
  %693 = vst [vmem:[%s2 + $0x80] sm:$0xf] %v565
  %694 = vst [vmem:[%s2 + $0x84] sm:$0xf] %v566
  %695 = vst [vmem:[%s2 + $0x88] sm:$0xf] %v567
  %696 = vst [vmem:[%s2 + $0x8c] sm:$0xf] %v568
  %697 = vst [vmem:[%s2 + $0x90] sm:$0xf] %v569
  %698 = vst [vmem:[%s2 + $0x94] sm:$0xf] %v570
  %699 = vst [vmem:[%s2 + $0x98] sm:$0xf] %v571
  %700 = vst [vmem:[%s2 + $0x9c] sm:$0xf] %v572
  %701 = vst [vmem:[%s2 + $0xa0] sm:$0xf] %v573
  %702 = vst [vmem:[%s2 + $0xa4] sm:$0xf] %v574
  %703 = vst [vmem:[%s2 + $0xa8] sm:$0xf] %v575
  %704 = vst [vmem:[%s2 + $0xac] sm:$0xf] %v576
  %705 = vst [vmem:[%s2 + $0xb0] sm:$0xf] %v577
  %706 = vst [vmem:[%s2 + $0xb4] sm:$0xf] %v578
  %707 = vst [vmem:[%s2 + $0xb8] sm:$0xf] %v579
  %708 = vst [vmem:[%s2 + $0xbc] sm:$0xf] %v580
  %709 = vst [vmem:[%s2 + $0xc0] sm:$0xf] %v581
  %710 = vst [vmem:[%s2 + $0xc4] sm:$0xf] %v582
  %711 = vst [vmem:[%s2 + $0xc8] sm:$0xf] %v583
  %712 = vst [vmem:[%s2 + $0xcc] sm:$0xf] %v584
  %713 = vst [vmem:[%s2 + $0xd0] sm:$0xf] %v585
  %714 = vst [vmem:[%s2 + $0xd4] sm:$0xf] %v586
  %715 = vst [vmem:[%s2 + $0xd8] sm:$0xf] %v587
  %716 = vst [vmem:[%s2 + $0xdc] sm:$0xf] %v588
  %717 = vst [vmem:[%s2 + $0xe0] sm:$0xf] %v589
  %718 = vst [vmem:[%s2 + $0xe4] sm:$0xf] %v590
  %719 = vst [vmem:[%s2 + $0xe8] sm:$0xf] %v591
  %720 = vst [vmem:[%s2 + $0xec] sm:$0xf] %v592
  %721 = vst [vmem:[%s2 + $0xf0] sm:$0xf] %v593
  %722 = vst [vmem:[%s2 + $0xf4] sm:$0xf] %v594
  %723 = vst [vmem:[%s2 + $0xf8] sm:$0xf] %v595
  %724 = vst [vmem:[%s2 + $0xfc] sm:$0xf] %v596
  // Predicated region
  $region10: #{discriminator_forward.10} parent=0 // pred_check
    _
  $region11: #{discriminator_forward.10} parent=0 // pred_check_branch
    %726 = sbr.rel (0) target = $region13
  $region12: #{discriminator_forward.10} parent=0 // pred_region
    _
  $region13: #{discriminator_forward.10} parent=0 // pred_fallthru
    _
  // Predicated region
  $region14: #{discriminator_forward.10} parent=0 // pred_check
    _
  $region15: #{discriminator_forward.10} parent=0 // pred_check_branch
    %728 = sbr.rel (0) target = $region17
  $region16: #{discriminator_forward.10} parent=0 // pred_region
    _
  $region17: #{discriminator_forward.10} parent=0 // pred_fallthru
    _

// kernel: discriminator_forward.9
$region0: #{discriminator_forward.9}
  #allocation0 [shape = 'u32[]', space=smem, size = 0x4, offset = 0x4, fixed_abs, tag = 'smem constant byte address 0x4 - core index']
  #allocation1 [shape = 'u32[144,128]{1,0:T(1,128)}', space=vmem, size = 0x12000, scoped, tag = 'internal scratch']
  %s0 = inlined_call_operand.vmem [shape: bf16[512,2048], index: 0, kind: input, shape index: {}]
  %s1 = inlined_call_operand.vmem [shape: bf16[2048,128], index: 1, kind: input, shape index: {}]
  %s2 = inlined_call_operand.vmem [shape: f32[512,128], index: 2, kind: output, shape index: {0}]
  %s3 = inlined_call_operand.vmem [shape: f32[1,2,128], index: 3, kind: output, shape index: {1}]
  %4 = xla_tuple %s2, %s3
  %s5 = sld [smem:[#allocation0]]
  $region26: #{discriminator_forward.9} parent=0
    _
  %s7 = ssub.s32 1, %s5
  %s8 = scalar_select 0, %s7, %s5
  // Predicated region
  $region2: #{discriminator_forward.9} parent=0 // pred_check
    _
  $region3: #{discriminator_forward.9} parent=0 // pred_check_branch
    %10 = sbr.rel (0) target = $region5
  $region4: #{discriminator_forward.9} parent=0 // pred_region
    _
  $region5: #{discriminator_forward.9} parent=0 // pred_fallthru
    _
  // Predicated region
  $region6: #{discriminator_forward.9} parent=0 // pred_check
    _
  $region7: #{discriminator_forward.9} parent=0 // pred_check_branch
    %12 = sbr.rel (0) target = $region9
  $region8: #{discriminator_forward.9} parent=0 // pred_region
    _
  $region9: #{discriminator_forward.9} parent=0 // pred_fallthru
    _
  %v14 = vld [vmem:[%s0] sm:$0xff]
  %v15 = vld [vmem:[%s0 + $0x8] sm:$0xff]
  %v16 = vld [vmem:[%s0 + $0x10] sm:$0xff]
  %v17 = vld [vmem:[%s0 + $0x18] sm:$0xff]
  %v18 = vld [vmem:[%s0 + $0x20] sm:$0xff]
  %v19 = vld [vmem:[%s0 + $0x28] sm:$0xff]
  %v20 = vld [vmem:[%s0 + $0x30] sm:$0xff]
  %v21 = vld [vmem:[%s0 + $0x38] sm:$0xff]
  %v22 = vld [vmem:[%s0 + $0x40] sm:$0xff]
  %v23 = vld [vmem:[%s0 + $0x48] sm:$0xff]
  %v24 = vld [vmem:[%s0 + $0x50] sm:$0xff]
  %v25 = vld [vmem:[%s0 + $0x58] sm:$0xff]
  %v26 = vld [vmem:[%s0 + $0x60] sm:$0xff]
  %v27 = vld [vmem:[%s0 + $0x68] sm:$0xff]
  %v28 = vld [vmem:[%s0 + $0x70] sm:$0xff]
  %v29 = vld [vmem:[%s0 + $0x78] sm:$0xff]
  %v30 = vld [vmem:[%s0 + $0x80] sm:$0xff]
  %v31 = vld [vmem:[%s0 + $0x88] sm:$0xff]
  %v32 = vld [vmem:[%s0 + $0x90] sm:$0xff]
  %v33 = vld [vmem:[%s0 + $0x98] sm:$0xff]
  %v34 = vld [vmem:[%s0 + $0xa0] sm:$0xff]
  %v35 = vld [vmem:[%s0 + $0xa8] sm:$0xff]
  %v36 = vld [vmem:[%s0 + $0xb0] sm:$0xff]
  %v37 = vld [vmem:[%s0 + $0xb8] sm:$0xff]
  %v38 = vld [vmem:[%s0 + $0xc0] sm:$0xff]
  %v39 = vld [vmem:[%s0 + $0xc8] sm:$0xff]
  %v40 = vld [vmem:[%s0 + $0xd0] sm:$0xff]
  %v41 = vld [vmem:[%s0 + $0xd8] sm:$0xff]
  %v42 = vld [vmem:[%s0 + $0xe0] sm:$0xff]
  %v43 = vld [vmem:[%s0 + $0xe8] sm:$0xff]
  %v44 = vld [vmem:[%s0 + $0xf0] sm:$0xff]
  %v45 = vld [vmem:[%s0 + $0xf8] sm:$0xff]
  %v46 = vld [vmem:[%s0 + $0x100] sm:$0xff]
  %v47 = vld [vmem:[%s0 + $0x108] sm:$0xff]
  %v48 = vld [vmem:[%s0 + $0x110] sm:$0xff]
  %v49 = vld [vmem:[%s0 + $0x118] sm:$0xff]
  %v50 = vld [vmem:[%s0 + $0x120] sm:$0xff]
  %v51 = vld [vmem:[%s0 + $0x128] sm:$0xff]
  %v52 = vld [vmem:[%s0 + $0x130] sm:$0xff]
  %v53 = vld [vmem:[%s0 + $0x138] sm:$0xff]
  %v54 = vld [vmem:[%s0 + $0x140] sm:$0xff]
  %v55 = vld [vmem:[%s0 + $0x148] sm:$0xff]
  %v56 = vld [vmem:[%s0 + $0x150] sm:$0xff]
  %v57 = vld [vmem:[%s0 + $0x158] sm:$0xff]
  %v58 = vld [vmem:[%s0 + $0x160] sm:$0xff]
  %v59 = vld [vmem:[%s0 + $0x168] sm:$0xff]
  %v60 = vld [vmem:[%s0 + $0x170] sm:$0xff]
  %v61 = vld [vmem:[%s0 + $0x178] sm:$0xff]
  %v62 = vld [vmem:[%s0 + $0x180] sm:$0xff]
  %v63 = vld [vmem:[%s0 + $0x188] sm:$0xff]
  %v64 = vld [vmem:[%s0 + $0x190] sm:$0xff]
  %v65 = vld [vmem:[%s0 + $0x198] sm:$0xff]
  %v66 = vld [vmem:[%s0 + $0x1a0] sm:$0xff]
  %v67 = vld [vmem:[%s0 + $0x1a8] sm:$0xff]
  %v68 = vld [vmem:[%s0 + $0x1b0] sm:$0xff]
  %v69 = vld [vmem:[%s0 + $0x1b8] sm:$0xff]
  %v70 = vld [vmem:[%s0 + $0x1c0] sm:$0xff]
  %v71 = vld [vmem:[%s0 + $0x1c8] sm:$0xff]
  %v72 = vld [vmem:[%s0 + $0x1d0] sm:$0xff]
  %v73 = vld [vmem:[%s0 + $0x1d8] sm:$0xff]
  %v74 = vld [vmem:[%s0 + $0x1e0] sm:$0xff]
  %v75 = vld [vmem:[%s0 + $0x1e8] sm:$0xff]
  %v76 = vld [vmem:[%s0 + $0x1f0] sm:$0xff]
  %v77 = vld [vmem:[%s0 + $0x1f8] sm:$0xff]
  %v78 = vld [vmem:[%s0 + $0x200] sm:$0xff]
  %v79 = vld [vmem:[%s0 + $0x208] sm:$0xff]
  %v80 = vld [vmem:[%s0 + $0x210] sm:$0xff]
  %v81 = vld [vmem:[%s0 + $0x218] sm:$0xff]
  %v82 = vld [vmem:[%s0 + $0x220] sm:$0xff]
  %v83 = vld [vmem:[%s0 + $0x228] sm:$0xff]
  %v84 = vld [vmem:[%s0 + $0x230] sm:$0xff]
  %v85 = vld [vmem:[%s0 + $0x238] sm:$0xff]
  %v86 = vld [vmem:[%s0 + $0x240] sm:$0xff]
  %v87 = vld [vmem:[%s0 + $0x248] sm:$0xff]
  %v88 = vld [vmem:[%s0 + $0x250] sm:$0xff]
  %v89 = vld [vmem:[%s0 + $0x258] sm:$0xff]
  %v90 = vld [vmem:[%s0 + $0x260] sm:$0xff]
  %v91 = vld [vmem:[%s0 + $0x268] sm:$0xff]
  %v92 = vld [vmem:[%s0 + $0x270] sm:$0xff]
  %v93 = vld [vmem:[%s0 + $0x278] sm:$0xff]
  %v94 = vld [vmem:[%s0 + $0x280] sm:$0xff]
  %v95 = vld [vmem:[%s0 + $0x288] sm:$0xff]
  %v96 = vld [vmem:[%s0 + $0x290] sm:$0xff]
  %v97 = vld [vmem:[%s0 + $0x298] sm:$0xff]
  %v98 = vld [vmem:[%s0 + $0x2a0] sm:$0xff]
  %v99 = vld [vmem:[%s0 + $0x2a8] sm:$0xff]
  %v100 = vld [vmem:[%s0 + $0x2b0] sm:$0xff]
  %v101 = vld [vmem:[%s0 + $0x2b8] sm:$0xff]
  %v102 = vld [vmem:[%s0 + $0x2c0] sm:$0xff]
  %v103 = vld [vmem:[%s0 + $0x2c8] sm:$0xff]
  %v104 = vld [vmem:[%s0 + $0x2d0] sm:$0xff]
  %v105 = vld [vmem:[%s0 + $0x2d8] sm:$0xff]
  %v106 = vld [vmem:[%s0 + $0x2e0] sm:$0xff]
  %v107 = vld [vmem:[%s0 + $0x2e8] sm:$0xff]
  %v108 = vld [vmem:[%s0 + $0x2f0] sm:$0xff]
  %v109 = vld [vmem:[%s0 + $0x2f8] sm:$0xff]
  %v110 = vld [vmem:[%s0 + $0x300] sm:$0xff]
  %v111 = vld [vmem:[%s0 + $0x308] sm:$0xff]
  %v112 = vld [vmem:[%s0 + $0x310] sm:$0xff]
  %v113 = vld [vmem:[%s0 + $0x318] sm:$0xff]
  %v114 = vld [vmem:[%s0 + $0x320] sm:$0xff]
  %v115 = vld [vmem:[%s0 + $0x328] sm:$0xff]
  %v116 = vld [vmem:[%s0 + $0x330] sm:$0xff]
  %v117 = vld [vmem:[%s0 + $0x338] sm:$0xff]
  %v118 = vld [vmem:[%s0 + $0x340] sm:$0xff]
  %v119 = vld [vmem:[%s0 + $0x348] sm:$0xff]
  %v120 = vld [vmem:[%s0 + $0x350] sm:$0xff]
  %v121 = vld [vmem:[%s0 + $0x358] sm:$0xff]
  %v122 = vld [vmem:[%s0 + $0x360] sm:$0xff]
  %v123 = vld [vmem:[%s0 + $0x368] sm:$0xff]
  %v124 = vld [vmem:[%s0 + $0x370] sm:$0xff]
  %v125 = vld [vmem:[%s0 + $0x378] sm:$0xff]
  %v126 = vld [vmem:[%s0 + $0x380] sm:$0xff]
  %v127 = vld [vmem:[%s0 + $0x388] sm:$0xff]
  %v128 = vld [vmem:[%s0 + $0x390] sm:$0xff]
  %v129 = vld [vmem:[%s0 + $0x398] sm:$0xff]
  %v130 = vld [vmem:[%s0 + $0x3a0] sm:$0xff]
  %v131 = vld [vmem:[%s0 + $0x3a8] sm:$0xff]
  %v132 = vld [vmem:[%s0 + $0x3b0] sm:$0xff]
  %v133 = vld [vmem:[%s0 + $0x3b8] sm:$0xff]
  %v134 = vld [vmem:[%s0 + $0x3c0] sm:$0xff]
  %v135 = vld [vmem:[%s0 + $0x3c8] sm:$0xff]
  %v136 = vld [vmem:[%s0 + $0x3d0] sm:$0xff]
  %v137 = vld [vmem:[%s0 + $0x3d8] sm:$0xff]
  %v138 = vld [vmem:[%s0 + $0x3e0] sm:$0xff]
  %v139 = vld [vmem:[%s0 + $0x3e8] sm:$0xff]
  %v140 = vld [vmem:[%s0 + $0x3f0] sm:$0xff]
  %v141 = vld [vmem:[%s0 + $0x3f8] sm:$0xff]
  %v142 = vld [vmem:[%s0 + $0x400] sm:$0xff]
  %v143 = vld [vmem:[%s0 + $0x408] sm:$0xff]
  %v144 = vld [vmem:[%s0 + $0x410] sm:$0xff]
  %v145 = vld [vmem:[%s0 + $0x418] sm:$0xff]
  %v146 = vld [vmem:[%s0 + $0x420] sm:$0xff]
  %v147 = vld [vmem:[%s0 + $0x428] sm:$0xff]
  %v148 = vld [vmem:[%s0 + $0x430] sm:$0xff]
  %v149 = vld [vmem:[%s0 + $0x438] sm:$0xff]
  %v150 = vld [vmem:[%s0 + $0x440] sm:$0xff]
  %v151 = vld [vmem:[%s0 + $0x448] sm:$0xff]
  %v152 = vld [vmem:[%s0 + $0x450] sm:$0xff]
  %v153 = vld [vmem:[%s0 + $0x458] sm:$0xff]
  %v154 = vld [vmem:[%s0 + $0x460] sm:$0xff]
  %v155 = vld [vmem:[%s0 + $0x468] sm:$0xff]
  %v156 = vld [vmem:[%s0 + $0x470] sm:$0xff]
  %v157 = vld [vmem:[%s0 + $0x478] sm:$0xff]
  %v158 = vld [vmem:[%s0 + $0x480] sm:$0xff]
  %v159 = vld [vmem:[%s0 + $0x488] sm:$0xff]
  %v160 = vld [vmem:[%s0 + $0x490] sm:$0xff]
  %v161 = vld [vmem:[%s0 + $0x498] sm:$0xff]
  %v162 = vld [vmem:[%s0 + $0x4a0] sm:$0xff]
  %v163 = vld [vmem:[%s0 + $0x4a8] sm:$0xff]
  %v164 = vld [vmem:[%s0 + $0x4b0] sm:$0xff]
  %v165 = vld [vmem:[%s0 + $0x4b8] sm:$0xff]
  %v166 = vld [vmem:[%s0 + $0x4c0] sm:$0xff]
  %v167 = vld [vmem:[%s0 + $0x4c8] sm:$0xff]
  %v168 = vld [vmem:[%s0 + $0x4d0] sm:$0xff]
  %v169 = vld [vmem:[%s0 + $0x4d8] sm:$0xff]
  %v170 = vld [vmem:[%s0 + $0x4e0] sm:$0xff]
  %v171 = vld [vmem:[%s0 + $0x4e8] sm:$0xff]
  %v172 = vld [vmem:[%s0 + $0x4f0] sm:$0xff]
  %v173 = vld [vmem:[%s0 + $0x4f8] sm:$0xff]
  %v174 = vld [vmem:[%s0 + $0x500] sm:$0xff]
  %v175 = vld [vmem:[%s0 + $0x508] sm:$0xff]
  %v176 = vld [vmem:[%s0 + $0x510] sm:$0xff]
  %v177 = vld [vmem:[%s0 + $0x518] sm:$0xff]
  %v178 = vld [vmem:[%s0 + $0x520] sm:$0xff]
  %v179 = vld [vmem:[%s0 + $0x528] sm:$0xff]
  %v180 = vld [vmem:[%s0 + $0x530] sm:$0xff]
  %v181 = vld [vmem:[%s0 + $0x538] sm:$0xff]
  %v182 = vld [vmem:[%s0 + $0x540] sm:$0xff]
  %v183 = vld [vmem:[%s0 + $0x548] sm:$0xff]
  %v184 = vld [vmem:[%s0 + $0x550] sm:$0xff]
  %v185 = vld [vmem:[%s0 + $0x558] sm:$0xff]
  %v186 = vld [vmem:[%s0 + $0x560] sm:$0xff]
  %v187 = vld [vmem:[%s0 + $0x568] sm:$0xff]
  %v188 = vld [vmem:[%s0 + $0x570] sm:$0xff]
  %v189 = vld [vmem:[%s0 + $0x578] sm:$0xff]
  %v190 = vld [vmem:[%s0 + $0x580] sm:$0xff]
  %v191 = vld [vmem:[%s0 + $0x588] sm:$0xff]
  %v192 = vld [vmem:[%s0 + $0x590] sm:$0xff]
  %v193 = vld [vmem:[%s0 + $0x598] sm:$0xff]
  %v194 = vld [vmem:[%s0 + $0x5a0] sm:$0xff]
  %v195 = vld [vmem:[%s0 + $0x5a8] sm:$0xff]
  %v196 = vld [vmem:[%s0 + $0x5b0] sm:$0xff]
  %v197 = vld [vmem:[%s0 + $0x5b8] sm:$0xff]
  %v198 = vld [vmem:[%s0 + $0x5c0] sm:$0xff]
  %v199 = vld [vmem:[%s0 + $0x5c8] sm:$0xff]
  %v200 = vld [vmem:[%s0 + $0x5d0] sm:$0xff]
  %v201 = vld [vmem:[%s0 + $0x5d8] sm:$0xff]
  %v202 = vld [vmem:[%s0 + $0x5e0] sm:$0xff]
  %v203 = vld [vmem:[%s0 + $0x5e8] sm:$0xff]
  %v204 = vld [vmem:[%s0 + $0x5f0] sm:$0xff]
  %v205 = vld [vmem:[%s0 + $0x5f8] sm:$0xff]
  %v206 = vld [vmem:[%s0 + $0x600] sm:$0xff]
  %v207 = vld [vmem:[%s0 + $0x608] sm:$0xff]
  %v208 = vld [vmem:[%s0 + $0x610] sm:$0xff]
  %v209 = vld [vmem:[%s0 + $0x618] sm:$0xff]
  %v210 = vld [vmem:[%s0 + $0x620] sm:$0xff]
  %v211 = vld [vmem:[%s0 + $0x628] sm:$0xff]
  %v212 = vld [vmem:[%s0 + $0x630] sm:$0xff]
  %v213 = vld [vmem:[%s0 + $0x638] sm:$0xff]
  %v214 = vld [vmem:[%s0 + $0x640] sm:$0xff]
  %v215 = vld [vmem:[%s0 + $0x648] sm:$0xff]
  %v216 = vld [vmem:[%s0 + $0x650] sm:$0xff]
  %v217 = vld [vmem:[%s0 + $0x658] sm:$0xff]
  %v218 = vld [vmem:[%s0 + $0x660] sm:$0xff]
  %v219 = vld [vmem:[%s0 + $0x668] sm:$0xff]
  %v220 = vld [vmem:[%s0 + $0x670] sm:$0xff]
  %v221 = vld [vmem:[%s0 + $0x678] sm:$0xff]
  %v222 = vld [vmem:[%s0 + $0x680] sm:$0xff]
  %v223 = vld [vmem:[%s0 + $0x688] sm:$0xff]
  %v224 = vld [vmem:[%s0 + $0x690] sm:$0xff]
  %v225 = vld [vmem:[%s0 + $0x698] sm:$0xff]
  %v226 = vld [vmem:[%s0 + $0x6a0] sm:$0xff]
  %v227 = vld [vmem:[%s0 + $0x6a8] sm:$0xff]
  %v228 = vld [vmem:[%s0 + $0x6b0] sm:$0xff]
  %v229 = vld [vmem:[%s0 + $0x6b8] sm:$0xff]
  %v230 = vld [vmem:[%s0 + $0x6c0] sm:$0xff]
  %v231 = vld [vmem:[%s0 + $0x6c8] sm:$0xff]
  %v232 = vld [vmem:[%s0 + $0x6d0] sm:$0xff]
  %v233 = vld [vmem:[%s0 + $0x6d8] sm:$0xff]
  %v234 = vld [vmem:[%s0 + $0x6e0] sm:$0xff]
  %v235 = vld [vmem:[%s0 + $0x6e8] sm:$0xff]
  %v236 = vld [vmem:[%s0 + $0x6f0] sm:$0xff]
  %v237 = vld [vmem:[%s0 + $0x6f8] sm:$0xff]
  %v238 = vld [vmem:[%s0 + $0x700] sm:$0xff]
  %v239 = vld [vmem:[%s0 + $0x708] sm:$0xff]
  %v240 = vld [vmem:[%s0 + $0x710] sm:$0xff]
  %v241 = vld [vmem:[%s0 + $0x718] sm:$0xff]
  %v242 = vld [vmem:[%s0 + $0x720] sm:$0xff]
  %v243 = vld [vmem:[%s0 + $0x728] sm:$0xff]
  %v244 = vld [vmem:[%s0 + $0x730] sm:$0xff]
  %v245 = vld [vmem:[%s0 + $0x738] sm:$0xff]
  %v246 = vld [vmem:[%s0 + $0x740] sm:$0xff]
  %v247 = vld [vmem:[%s0 + $0x748] sm:$0xff]
  %v248 = vld [vmem:[%s0 + $0x750] sm:$0xff]
  %v249 = vld [vmem:[%s0 + $0x758] sm:$0xff]
  %v250 = vld [vmem:[%s0 + $0x760] sm:$0xff]
  %v251 = vld [vmem:[%s0 + $0x768] sm:$0xff]
  %v252 = vld [vmem:[%s0 + $0x770] sm:$0xff]
  %v253 = vld [vmem:[%s0 + $0x778] sm:$0xff]
  %v254 = vld [vmem:[%s0 + $0x780] sm:$0xff]
  %v255 = vld [vmem:[%s0 + $0x788] sm:$0xff]
  %v256 = vld [vmem:[%s0 + $0x790] sm:$0xff]
  %v257 = vld [vmem:[%s0 + $0x798] sm:$0xff]
  %v258 = vld [vmem:[%s0 + $0x7a0] sm:$0xff]
  %v259 = vld [vmem:[%s0 + $0x7a8] sm:$0xff]
  %v260 = vld [vmem:[%s0 + $0x7b0] sm:$0xff]
  %v261 = vld [vmem:[%s0 + $0x7b8] sm:$0xff]
  %v262 = vld [vmem:[%s0 + $0x7c0] sm:$0xff]
  %v263 = vld [vmem:[%s0 + $0x7c8] sm:$0xff]
  %v264 = vld [vmem:[%s0 + $0x7d0] sm:$0xff]
  %v265 = vld [vmem:[%s0 + $0x7d8] sm:$0xff]
  %v266 = vld [vmem:[%s0 + $0x7e0] sm:$0xff]
  %v267 = vld [vmem:[%s0 + $0x7e8] sm:$0xff]
  %v268 = vld [vmem:[%s0 + $0x7f0] sm:$0xff]
  %v269 = vld [vmem:[%s0 + $0x7f8] sm:$0xff]
  %v270 = vld [vmem:[%s0 + $0x800] sm:$0xff]
  %v271 = vld [vmem:[%s0 + $0x808] sm:$0xff]
  %v272 = vld [vmem:[%s0 + $0x810] sm:$0xff]
  %v273 = vld [vmem:[%s0 + $0x818] sm:$0xff]
  %v274 = vld [vmem:[%s0 + $0x820] sm:$0xff]
  %v275 = vld [vmem:[%s0 + $0x828] sm:$0xff]
  %v276 = vld [vmem:[%s0 + $0x830] sm:$0xff]
  %v277 = vld [vmem:[%s0 + $0x838] sm:$0xff]
  %v278 = vld [vmem:[%s0 + $0x840] sm:$0xff]
  %v279 = vld [vmem:[%s0 + $0x848] sm:$0xff]
  %v280 = vld [vmem:[%s0 + $0x850] sm:$0xff]
  %v281 = vld [vmem:[%s0 + $0x858] sm:$0xff]
  %v282 = vld [vmem:[%s0 + $0x860] sm:$0xff]
  %v283 = vld [vmem:[%s0 + $0x868] sm:$0xff]
  %v284 = vld [vmem:[%s0 + $0x870] sm:$0xff]
  %v285 = vld [vmem:[%s0 + $0x878] sm:$0xff]
  %v286 = vld [vmem:[%s0 + $0x880] sm:$0xff]
  %v287 = vld [vmem:[%s0 + $0x888] sm:$0xff]
  %v288 = vld [vmem:[%s0 + $0x890] sm:$0xff]
  %v289 = vld [vmem:[%s0 + $0x898] sm:$0xff]
  %v290 = vld [vmem:[%s0 + $0x8a0] sm:$0xff]
  %v291 = vld [vmem:[%s0 + $0x8a8] sm:$0xff]
  %v292 = vld [vmem:[%s0 + $0x8b0] sm:$0xff]
  %v293 = vld [vmem:[%s0 + $0x8b8] sm:$0xff]
  %v294 = vld [vmem:[%s0 + $0x8c0] sm:$0xff]
  %v295 = vld [vmem:[%s0 + $0x8c8] sm:$0xff]
  %v296 = vld [vmem:[%s0 + $0x8d0] sm:$0xff]
  %v297 = vld [vmem:[%s0 + $0x8d8] sm:$0xff]
  %v298 = vld [vmem:[%s0 + $0x8e0] sm:$0xff]
  %v299 = vld [vmem:[%s0 + $0x8e8] sm:$0xff]
  %v300 = vld [vmem:[%s0 + $0x8f0] sm:$0xff]
  %v301 = vld [vmem:[%s0 + $0x8f8] sm:$0xff]
  %v302 = vld [vmem:[%s0 + $0x900] sm:$0xff]
  %v303 = vld [vmem:[%s0 + $0x908] sm:$0xff]
  %v304 = vld [vmem:[%s0 + $0x910] sm:$0xff]
  %v305 = vld [vmem:[%s0 + $0x918] sm:$0xff]
  %v306 = vld [vmem:[%s0 + $0x920] sm:$0xff]
  %v307 = vld [vmem:[%s0 + $0x928] sm:$0xff]
  %v308 = vld [vmem:[%s0 + $0x930] sm:$0xff]
  %v309 = vld [vmem:[%s0 + $0x938] sm:$0xff]
  %v310 = vld [vmem:[%s0 + $0x940] sm:$0xff]
  %v311 = vld [vmem:[%s0 + $0x948] sm:$0xff]
  %v312 = vld [vmem:[%s0 + $0x950] sm:$0xff]
  %v313 = vld [vmem:[%s0 + $0x958] sm:$0xff]
  %v314 = vld [vmem:[%s0 + $0x960] sm:$0xff]
  %v315 = vld [vmem:[%s0 + $0x968] sm:$0xff]
  %v316 = vld [vmem:[%s0 + $0x970] sm:$0xff]
  %v317 = vld [vmem:[%s0 + $0x978] sm:$0xff]
  %v318 = vld [vmem:[%s0 + $0x980] sm:$0xff]
  %v319 = vld [vmem:[%s0 + $0x988] sm:$0xff]
  %v320 = vld [vmem:[%s0 + $0x990] sm:$0xff]
  %v321 = vld [vmem:[%s0 + $0x998] sm:$0xff]
  %v322 = vld [vmem:[%s0 + $0x9a0] sm:$0xff]
  %v323 = vld [vmem:[%s0 + $0x9a8] sm:$0xff]
  %v324 = vld [vmem:[%s0 + $0x9b0] sm:$0xff]
  %v325 = vld [vmem:[%s0 + $0x9b8] sm:$0xff]
  %v326 = vld [vmem:[%s0 + $0x9c0] sm:$0xff]
  %v327 = vld [vmem:[%s0 + $0x9c8] sm:$0xff]
  %v328 = vld [vmem:[%s0 + $0x9d0] sm:$0xff]
  %v329 = vld [vmem:[%s0 + $0x9d8] sm:$0xff]
  %v330 = vld [vmem:[%s0 + $0x9e0] sm:$0xff]
  %v331 = vld [vmem:[%s0 + $0x9e8] sm:$0xff]
  %v332 = vld [vmem:[%s0 + $0x9f0] sm:$0xff]
  %v333 = vld [vmem:[%s0 + $0x9f8] sm:$0xff]
  %v334 = vld [vmem:[%s0 + $0xa00] sm:$0xff]
  %v335 = vld [vmem:[%s0 + $0xa08] sm:$0xff]
  %v336 = vld [vmem:[%s0 + $0xa10] sm:$0xff]
  %v337 = vld [vmem:[%s0 + $0xa18] sm:$0xff]
  %v338 = vld [vmem:[%s0 + $0xa20] sm:$0xff]
  %v339 = vld [vmem:[%s0 + $0xa28] sm:$0xff]
  %v340 = vld [vmem:[%s0 + $0xa30] sm:$0xff]
  %v341 = vld [vmem:[%s0 + $0xa38] sm:$0xff]
  %v342 = vld [vmem:[%s0 + $0xa40] sm:$0xff]
  %v343 = vld [vmem:[%s0 + $0xa48] sm:$0xff]
  %v344 = vld [vmem:[%s0 + $0xa50] sm:$0xff]
  %v345 = vld [vmem:[%s0 + $0xa58] sm:$0xff]
  %v346 = vld [vmem:[%s0 + $0xa60] sm:$0xff]
  %v347 = vld [vmem:[%s0 + $0xa68] sm:$0xff]
  %v348 = vld [vmem:[%s0 + $0xa70] sm:$0xff]
  %v349 = vld [vmem:[%s0 + $0xa78] sm:$0xff]
  %v350 = vld [vmem:[%s0 + $0xa80] sm:$0xff]
  %v351 = vld [vmem:[%s0 + $0xa88] sm:$0xff]
  %v352 = vld [vmem:[%s0 + $0xa90] sm:$0xff]
  %v353 = vld [vmem:[%s0 + $0xa98] sm:$0xff]
  %v354 = vld [vmem:[%s0 + $0xaa0] sm:$0xff]
  %v355 = vld [vmem:[%s0 + $0xaa8] sm:$0xff]
  %v356 = vld [vmem:[%s0 + $0xab0] sm:$0xff]
  %v357 = vld [vmem:[%s0 + $0xab8] sm:$0xff]
  %v358 = vld [vmem:[%s0 + $0xac0] sm:$0xff]
  %v359 = vld [vmem:[%s0 + $0xac8] sm:$0xff]
  %v360 = vld [vmem:[%s0 + $0xad0] sm:$0xff]
  %v361 = vld [vmem:[%s0 + $0xad8] sm:$0xff]
  %v362 = vld [vmem:[%s0 + $0xae0] sm:$0xff]
  %v363 = vld [vmem:[%s0 + $0xae8] sm:$0xff]
  %v364 = vld [vmem:[%s0 + $0xaf0] sm:$0xff]
  %v365 = vld [vmem:[%s0 + $0xaf8] sm:$0xff]
  %v366 = vld [vmem:[%s0 + $0xb00] sm:$0xff]
  %v367 = vld [vmem:[%s0 + $0xb08] sm:$0xff]
  %v368 = vld [vmem:[%s0 + $0xb10] sm:$0xff]
  %v369 = vld [vmem:[%s0 + $0xb18] sm:$0xff]
  %v370 = vld [vmem:[%s0 + $0xb20] sm:$0xff]
  %v371 = vld [vmem:[%s0 + $0xb28] sm:$0xff]
  %v372 = vld [vmem:[%s0 + $0xb30] sm:$0xff]
  %v373 = vld [vmem:[%s0 + $0xb38] sm:$0xff]
  %v374 = vld [vmem:[%s0 + $0xb40] sm:$0xff]
  %v375 = vld [vmem:[%s0 + $0xb48] sm:$0xff]
  %v376 = vld [vmem:[%s0 + $0xb50] sm:$0xff]
  %v377 = vld [vmem:[%s0 + $0xb58] sm:$0xff]
  %v378 = vld [vmem:[%s0 + $0xb60] sm:$0xff]
  %v379 = vld [vmem:[%s0 + $0xb68] sm:$0xff]
  %v380 = vld [vmem:[%s0 + $0xb70] sm:$0xff]
  %v381 = vld [vmem:[%s0 + $0xb78] sm:$0xff]
  %v382 = vld [vmem:[%s0 + $0xb80] sm:$0xff]
  %v383 = vld [vmem:[%s0 + $0xb88] sm:$0xff]
  %v384 = vld [vmem:[%s0 + $0xb90] sm:$0xff]
  %v385 = vld [vmem:[%s0 + $0xb98] sm:$0xff]
  %v386 = vld [vmem:[%s0 + $0xba0] sm:$0xff]
  %v387 = vld [vmem:[%s0 + $0xba8] sm:$0xff]
  %v388 = vld [vmem:[%s0 + $0xbb0] sm:$0xff]
  %v389 = vld [vmem:[%s0 + $0xbb8] sm:$0xff]
  %v390 = vld [vmem:[%s0 + $0xbc0] sm:$0xff]
  %v391 = vld [vmem:[%s0 + $0xbc8] sm:$0xff]
  %v392 = vld [vmem:[%s0 + $0xbd0] sm:$0xff]
  %v393 = vld [vmem:[%s0 + $0xbd8] sm:$0xff]
  %v394 = vld [vmem:[%s0 + $0xbe0] sm:$0xff]
  %v395 = vld [vmem:[%s0 + $0xbe8] sm:$0xff]
  %v396 = vld [vmem:[%s0 + $0xbf0] sm:$0xff]
  %v397 = vld [vmem:[%s0 + $0xbf8] sm:$0xff]
  %v398 = vld [vmem:[%s0 + $0xc00] sm:$0xff]
  %v399 = vld [vmem:[%s0 + $0xc08] sm:$0xff]
  %v400 = vld [vmem:[%s0 + $0xc10] sm:$0xff]
  %v401 = vld [vmem:[%s0 + $0xc18] sm:$0xff]
  %v402 = vld [vmem:[%s0 + $0xc20] sm:$0xff]
  %v403 = vld [vmem:[%s0 + $0xc28] sm:$0xff]
  %v404 = vld [vmem:[%s0 + $0xc30] sm:$0xff]
  %v405 = vld [vmem:[%s0 + $0xc38] sm:$0xff]
  %v406 = vld [vmem:[%s0 + $0xc40] sm:$0xff]
  %v407 = vld [vmem:[%s0 + $0xc48] sm:$0xff]
  %v408 = vld [vmem:[%s0 + $0xc50] sm:$0xff]
  %v409 = vld [vmem:[%s0 + $0xc58] sm:$0xff]
  %v410 = vld [vmem:[%s0 + $0xc60] sm:$0xff]
  %v411 = vld [vmem:[%s0 + $0xc68] sm:$0xff]
  %v412 = vld [vmem:[%s0 + $0xc70] sm:$0xff]
  %v413 = vld [vmem:[%s0 + $0xc78] sm:$0xff]
  %v414 = vld [vmem:[%s0 + $0xc80] sm:$0xff]
  %v415 = vld [vmem:[%s0 + $0xc88] sm:$0xff]
  %v416 = vld [vmem:[%s0 + $0xc90] sm:$0xff]
  %v417 = vld [vmem:[%s0 + $0xc98] sm:$0xff]
  %v418 = vld [vmem:[%s0 + $0xca0] sm:$0xff]
  %v419 = vld [vmem:[%s0 + $0xca8] sm:$0xff]
  %v420 = vld [vmem:[%s0 + $0xcb0] sm:$0xff]
  %v421 = vld [vmem:[%s0 + $0xcb8] sm:$0xff]
  %v422 = vld [vmem:[%s0 + $0xcc0] sm:$0xff]
  %v423 = vld [vmem:[%s0 + $0xcc8] sm:$0xff]
  %v424 = vld [vmem:[%s0 + $0xcd0] sm:$0xff]
  %v425 = vld [vmem:[%s0 + $0xcd8] sm:$0xff]
  %v426 = vld [vmem:[%s0 + $0xce0] sm:$0xff]
  %v427 = vld [vmem:[%s0 + $0xce8] sm:$0xff]
  %v428 = vld [vmem:[%s0 + $0xcf0] sm:$0xff]
  %v429 = vld [vmem:[%s0 + $0xcf8] sm:$0xff]
  %v430 = vld [vmem:[%s0 + $0xd00] sm:$0xff]
  %v431 = vld [vmem:[%s0 + $0xd08] sm:$0xff]
  %v432 = vld [vmem:[%s0 + $0xd10] sm:$0xff]
  %v433 = vld [vmem:[%s0 + $0xd18] sm:$0xff]
  %v434 = vld [vmem:[%s0 + $0xd20] sm:$0xff]
  %v435 = vld [vmem:[%s0 + $0xd28] sm:$0xff]
  %v436 = vld [vmem:[%s0 + $0xd30] sm:$0xff]
  %v437 = vld [vmem:[%s0 + $0xd38] sm:$0xff]
  %v438 = vld [vmem:[%s0 + $0xd40] sm:$0xff]
  %v439 = vld [vmem:[%s0 + $0xd48] sm:$0xff]
  %v440 = vld [vmem:[%s0 + $0xd50] sm:$0xff]
  %v441 = vld [vmem:[%s0 + $0xd58] sm:$0xff]
  %v442 = vld [vmem:[%s0 + $0xd60] sm:$0xff]
  %v443 = vld [vmem:[%s0 + $0xd68] sm:$0xff]
  %v444 = vld [vmem:[%s0 + $0xd70] sm:$0xff]
  %v445 = vld [vmem:[%s0 + $0xd78] sm:$0xff]
  %v446 = vld [vmem:[%s0 + $0xd80] sm:$0xff]
  %v447 = vld [vmem:[%s0 + $0xd88] sm:$0xff]
  %v448 = vld [vmem:[%s0 + $0xd90] sm:$0xff]
  %v449 = vld [vmem:[%s0 + $0xd98] sm:$0xff]
  %v450 = vld [vmem:[%s0 + $0xda0] sm:$0xff]
  %v451 = vld [vmem:[%s0 + $0xda8] sm:$0xff]
  %v452 = vld [vmem:[%s0 + $0xdb0] sm:$0xff]
  %v453 = vld [vmem:[%s0 + $0xdb8] sm:$0xff]
  %v454 = vld [vmem:[%s0 + $0xdc0] sm:$0xff]
  %v455 = vld [vmem:[%s0 + $0xdc8] sm:$0xff]
  %v456 = vld [vmem:[%s0 + $0xdd0] sm:$0xff]
  %v457 = vld [vmem:[%s0 + $0xdd8] sm:$0xff]
  %v458 = vld [vmem:[%s0 + $0xde0] sm:$0xff]
  %v459 = vld [vmem:[%s0 + $0xde8] sm:$0xff]
  %v460 = vld [vmem:[%s0 + $0xdf0] sm:$0xff]
  %v461 = vld [vmem:[%s0 + $0xdf8] sm:$0xff]
  %v462 = vld [vmem:[%s0 + $0xe00] sm:$0xff]
  %v463 = vld [vmem:[%s0 + $0xe08] sm:$0xff]
  %v464 = vld [vmem:[%s0 + $0xe10] sm:$0xff]
  %v465 = vld [vmem:[%s0 + $0xe18] sm:$0xff]
  %v466 = vld [vmem:[%s0 + $0xe20] sm:$0xff]
  %v467 = vld [vmem:[%s0 + $0xe28] sm:$0xff]
  %v468 = vld [vmem:[%s0 + $0xe30] sm:$0xff]
  %v469 = vld [vmem:[%s0 + $0xe38] sm:$0xff]
  %v470 = vld [vmem:[%s0 + $0xe40] sm:$0xff]
  %v471 = vld [vmem:[%s0 + $0xe48] sm:$0xff]
  %v472 = vld [vmem:[%s0 + $0xe50] sm:$0xff]
  %v473 = vld [vmem:[%s0 + $0xe58] sm:$0xff]
  %v474 = vld [vmem:[%s0 + $0xe60] sm:$0xff]
  %v475 = vld [vmem:[%s0 + $0xe68] sm:$0xff]
  %v476 = vld [vmem:[%s0 + $0xe70] sm:$0xff]
  %v477 = vld [vmem:[%s0 + $0xe78] sm:$0xff]
  %v478 = vld [vmem:[%s0 + $0xe80] sm:$0xff]
  %v479 = vld [vmem:[%s0 + $0xe88] sm:$0xff]
  %v480 = vld [vmem:[%s0 + $0xe90] sm:$0xff]
  %v481 = vld [vmem:[%s0 + $0xe98] sm:$0xff]
  %v482 = vld [vmem:[%s0 + $0xea0] sm:$0xff]
  %v483 = vld [vmem:[%s0 + $0xea8] sm:$0xff]
  %v484 = vld [vmem:[%s0 + $0xeb0] sm:$0xff]
  %v485 = vld [vmem:[%s0 + $0xeb8] sm:$0xff]
  %v486 = vld [vmem:[%s0 + $0xec0] sm:$0xff]
  %v487 = vld [vmem:[%s0 + $0xec8] sm:$0xff]
  %v488 = vld [vmem:[%s0 + $0xed0] sm:$0xff]
  %v489 = vld [vmem:[%s0 + $0xed8] sm:$0xff]
  %v490 = vld [vmem:[%s0 + $0xee0] sm:$0xff]
  %v491 = vld [vmem:[%s0 + $0xee8] sm:$0xff]
  %v492 = vld [vmem:[%s0 + $0xef0] sm:$0xff]
  %v493 = vld [vmem:[%s0 + $0xef8] sm:$0xff]
  %v494 = vld [vmem:[%s0 + $0xf00] sm:$0xff]
  %v495 = vld [vmem:[%s0 + $0xf08] sm:$0xff]
  %v496 = vld [vmem:[%s0 + $0xf10] sm:$0xff]
  %v497 = vld [vmem:[%s0 + $0xf18] sm:$0xff]
  %v498 = vld [vmem:[%s0 + $0xf20] sm:$0xff]
  %v499 = vld [vmem:[%s0 + $0xf28] sm:$0xff]
  %v500 = vld [vmem:[%s0 + $0xf30] sm:$0xff]
  %v501 = vld [vmem:[%s0 + $0xf38] sm:$0xff]
  %v502 = vld [vmem:[%s0 + $0xf40] sm:$0xff]
  %v503 = vld [vmem:[%s0 + $0xf48] sm:$0xff]
  %v504 = vld [vmem:[%s0 + $0xf50] sm:$0xff]
  %v505 = vld [vmem:[%s0 + $0xf58] sm:$0xff]
  %v506 = vld [vmem:[%s0 + $0xf60] sm:$0xff]
  %v507 = vld [vmem:[%s0 + $0xf68] sm:$0xff]
  %v508 = vld [vmem:[%s0 + $0xf70] sm:$0xff]
  %v509 = vld [vmem:[%s0 + $0xf78] sm:$0xff]
  %v510 = vld [vmem:[%s0 + $0xf80] sm:$0xff]
  %v511 = vld [vmem:[%s0 + $0xf88] sm:$0xff]
  %v512 = vld [vmem:[%s0 + $0xf90] sm:$0xff]
  %v513 = vld [vmem:[%s0 + $0xf98] sm:$0xff]
  %v514 = vld [vmem:[%s0 + $0xfa0] sm:$0xff]
  %v515 = vld [vmem:[%s0 + $0xfa8] sm:$0xff]
  %v516 = vld [vmem:[%s0 + $0xfb0] sm:$0xff]
  %v517 = vld [vmem:[%s0 + $0xfb8] sm:$0xff]
  %v518 = vld [vmem:[%s0 + $0xfc0] sm:$0xff]
  %v519 = vld [vmem:[%s0 + $0xfc8] sm:$0xff]
  %v520 = vld [vmem:[%s0 + $0xfd0] sm:$0xff]
  %v521 = vld [vmem:[%s0 + $0xfd8] sm:$0xff]
  %v522 = vld [vmem:[%s0 + $0xfe0] sm:$0xff]
  %v523 = vld [vmem:[%s0 + $0xfe8] sm:$0xff]
  %v524 = vld [vmem:[%s0 + $0xff0] sm:$0xff]
  %v525 = vld [vmem:[%s0 + $0xff8] sm:$0xff]
  %v526 = vld [vmem:[%s1] sm:$0xf]
  %v527 = vld [vmem:[%s1 + $0x4] sm:$0xf]
  %v528 = vld [vmem:[%s1 + $0x8] sm:$0xf]
  %v529 = vld [vmem:[%s1 + $0xc] sm:$0xf]
  %v530 = vld [vmem:[%s1 + $0x10] sm:$0xf]
  %v531 = vld [vmem:[%s1 + $0x14] sm:$0xf]
  %v532 = vld [vmem:[%s1 + $0x18] sm:$0xf]
  %v533 = vld [vmem:[%s1 + $0x1c] sm:$0xf]
  %v534 = vld [vmem:[%s1 + $0x20] sm:$0xf]
  %v535 = vld [vmem:[%s1 + $0x24] sm:$0xf]
  %v536 = vld [vmem:[%s1 + $0x28] sm:$0xf]
  %v537 = vld [vmem:[%s1 + $0x2c] sm:$0xf]
  %v538 = vld [vmem:[%s1 + $0x30] sm:$0xf]
  %v539 = vld [vmem:[%s1 + $0x34] sm:$0xf]
  %v540 = vld [vmem:[%s1 + $0x38] sm:$0xf]
  %v541 = vld [vmem:[%s1 + $0x3c] sm:$0xf]
  %v542 = vld [vmem:[%s1 + $0x40] sm:$0xf]
  %v543 = vld [vmem:[%s1 + $0x44] sm:$0xf]
  %v544 = vld [vmem:[%s1 + $0x48] sm:$0xf]
  %v545 = vld [vmem:[%s1 + $0x4c] sm:$0xf]
  %v546 = vld [vmem:[%s1 + $0x50] sm:$0xf]
  %v547 = vld [vmem:[%s1 + $0x54] sm:$0xf]
  %v548 = vld [vmem:[%s1 + $0x58] sm:$0xf]
  %v549 = vld [vmem:[%s1 + $0x5c] sm:$0xf]
  %v550 = vld [vmem:[%s1 + $0x60] sm:$0xf]
  %v551 = vld [vmem:[%s1 + $0x64] sm:$0xf]
  %v552 = vld [vmem:[%s1 + $0x68] sm:$0xf]
  %v553 = vld [vmem:[%s1 + $0x6c] sm:$0xf]
  %v554 = vld [vmem:[%s1 + $0x70] sm:$0xf]
  %v555 = vld [vmem:[%s1 + $0x74] sm:$0xf]
  %v556 = vld [vmem:[%s1 + $0x78] sm:$0xf]
  %v557 = vld [vmem:[%s1 + $0x7c] sm:$0xf]
  %v558 = vld [vmem:[%s1 + $0x80] sm:$0xf]
  %v559 = vld [vmem:[%s1 + $0x84] sm:$0xf]
  %v560 = vld [vmem:[%s1 + $0x88] sm:$0xf]
  %v561 = vld [vmem:[%s1 + $0x8c] sm:$0xf]
  %v562 = vld [vmem:[%s1 + $0x90] sm:$0xf]
  %v563 = vld [vmem:[%s1 + $0x94] sm:$0xf]
  %v564 = vld [vmem:[%s1 + $0x98] sm:$0xf]
  %v565 = vld [vmem:[%s1 + $0x9c] sm:$0xf]
  %v566 = vld [vmem:[%s1 + $0xa0] sm:$0xf]
  %v567 = vld [vmem:[%s1 + $0xa4] sm:$0xf]
  %v568 = vld [vmem:[%s1 + $0xa8] sm:$0xf]
  %v569 = vld [vmem:[%s1 + $0xac] sm:$0xf]
  %v570 = vld [vmem:[%s1 + $0xb0] sm:$0xf]
  %v571 = vld [vmem:[%s1 + $0xb4] sm:$0xf]
  %v572 = vld [vmem:[%s1 + $0xb8] sm:$0xf]
  %v573 = vld [vmem:[%s1 + $0xbc] sm:$0xf]
  %v574 = vld [vmem:[%s1 + $0xc0] sm:$0xf]
  %v575 = vld [vmem:[%s1 + $0xc4] sm:$0xf]
  %v576 = vld [vmem:[%s1 + $0xc8] sm:$0xf]
  %v577 = vld [vmem:[%s1 + $0xcc] sm:$0xf]
  %v578 = vld [vmem:[%s1 + $0xd0] sm:$0xf]
  %v579 = vld [vmem:[%s1 + $0xd4] sm:$0xf]
  %v580 = vld [vmem:[%s1 + $0xd8] sm:$0xf]
  %v581 = vld [vmem:[%s1 + $0xdc] sm:$0xf]
  %v582 = vld [vmem:[%s1 + $0xe0] sm:$0xf]
  %v583 = vld [vmem:[%s1 + $0xe4] sm:$0xf]
  %v584 = vld [vmem:[%s1 + $0xe8] sm:$0xf]
  %v585 = vld [vmem:[%s1 + $0xec] sm:$0xf]
  %v586 = vld [vmem:[%s1 + $0xf0] sm:$0xf]
  %v587 = vld [vmem:[%s1 + $0xf4] sm:$0xf]
  %v588 = vld [vmem:[%s1 + $0xf8] sm:$0xf]
  %v589 = vld [vmem:[%s1 + $0xfc] sm:$0xf]
  %v590 = vld [vmem:[%s1 + $0x100] sm:$0xf]
  %v591 = vld [vmem:[%s1 + $0x104] sm:$0xf]
  %v592 = vld [vmem:[%s1 + $0x108] sm:$0xf]
  %v593 = vld [vmem:[%s1 + $0x10c] sm:$0xf]
  %v594 = vld [vmem:[%s1 + $0x110] sm:$0xf]
  %v595 = vld [vmem:[%s1 + $0x114] sm:$0xf]
  %v596 = vld [vmem:[%s1 + $0x118] sm:$0xf]
  %v597 = vld [vmem:[%s1 + $0x11c] sm:$0xf]
  %v598 = vld [vmem:[%s1 + $0x120] sm:$0xf]
  %v599 = vld [vmem:[%s1 + $0x124] sm:$0xf]
  %v600 = vld [vmem:[%s1 + $0x128] sm:$0xf]
  %v601 = vld [vmem:[%s1 + $0x12c] sm:$0xf]
  %v602 = vld [vmem:[%s1 + $0x130] sm:$0xf]
  %v603 = vld [vmem:[%s1 + $0x134] sm:$0xf]
  %v604 = vld [vmem:[%s1 + $0x138] sm:$0xf]
  %v605 = vld [vmem:[%s1 + $0x13c] sm:$0xf]
  %v606 = vld [vmem:[%s1 + $0x140] sm:$0xf]
  %v607 = vld [vmem:[%s1 + $0x144] sm:$0xf]
  %v608 = vld [vmem:[%s1 + $0x148] sm:$0xf]
  %v609 = vld [vmem:[%s1 + $0x14c] sm:$0xf]
  %v610 = vld [vmem:[%s1 + $0x150] sm:$0xf]
  %v611 = vld [vmem:[%s1 + $0x154] sm:$0xf]
  %v612 = vld [vmem:[%s1 + $0x158] sm:$0xf]
  %v613 = vld [vmem:[%s1 + $0x15c] sm:$0xf]
  %v614 = vld [vmem:[%s1 + $0x160] sm:$0xf]
  %v615 = vld [vmem:[%s1 + $0x164] sm:$0xf]
  %v616 = vld [vmem:[%s1 + $0x168] sm:$0xf]
  %v617 = vld [vmem:[%s1 + $0x16c] sm:$0xf]
  %v618 = vld [vmem:[%s1 + $0x170] sm:$0xf]
  %v619 = vld [vmem:[%s1 + $0x174] sm:$0xf]
  %v620 = vld [vmem:[%s1 + $0x178] sm:$0xf]
  %v621 = vld [vmem:[%s1 + $0x17c] sm:$0xf]
  %v622 = vld [vmem:[%s1 + $0x180] sm:$0xf]
  %v623 = vld [vmem:[%s1 + $0x184] sm:$0xf]
  %v624 = vld [vmem:[%s1 + $0x188] sm:$0xf]
  %v625 = vld [vmem:[%s1 + $0x18c] sm:$0xf]
  %v626 = vld [vmem:[%s1 + $0x190] sm:$0xf]
  %v627 = vld [vmem:[%s1 + $0x194] sm:$0xf]
  %v628 = vld [vmem:[%s1 + $0x198] sm:$0xf]
  %v629 = vld [vmem:[%s1 + $0x19c] sm:$0xf]
  %v630 = vld [vmem:[%s1 + $0x1a0] sm:$0xf]
  %v631 = vld [vmem:[%s1 + $0x1a4] sm:$0xf]
  %v632 = vld [vmem:[%s1 + $0x1a8] sm:$0xf]
  %v633 = vld [vmem:[%s1 + $0x1ac] sm:$0xf]
  %v634 = vld [vmem:[%s1 + $0x1b0] sm:$0xf]
  %v635 = vld [vmem:[%s1 + $0x1b4] sm:$0xf]
  %v636 = vld [vmem:[%s1 + $0x1b8] sm:$0xf]
  %v637 = vld [vmem:[%s1 + $0x1bc] sm:$0xf]
  %v638 = vld [vmem:[%s1 + $0x1c0] sm:$0xf]
  %v639 = vld [vmem:[%s1 + $0x1c4] sm:$0xf]
  %v640 = vld [vmem:[%s1 + $0x1c8] sm:$0xf]
  %v641 = vld [vmem:[%s1 + $0x1cc] sm:$0xf]
  %v642 = vld [vmem:[%s1 + $0x1d0] sm:$0xf]
  %v643 = vld [vmem:[%s1 + $0x1d4] sm:$0xf]
  %v644 = vld [vmem:[%s1 + $0x1d8] sm:$0xf]
  %v645 = vld [vmem:[%s1 + $0x1dc] sm:$0xf]
  %v646 = vld [vmem:[%s1 + $0x1e0] sm:$0xf]
  %v647 = vld [vmem:[%s1 + $0x1e4] sm:$0xf]
  %v648 = vld [vmem:[%s1 + $0x1e8] sm:$0xf]
  %v649 = vld [vmem:[%s1 + $0x1ec] sm:$0xf]
  %v650 = vld [vmem:[%s1 + $0x1f0] sm:$0xf]
  %v651 = vld [vmem:[%s1 + $0x1f4] sm:$0xf]
  %v652 = vld [vmem:[%s1 + $0x1f8] sm:$0xf]
  %v653 = vld [vmem:[%s1 + $0x1fc] sm:$0xf]
  %v654 = vld [vmem:[%s1 + $0x200] sm:$0xf]
  %v655 = vld [vmem:[%s1 + $0x204] sm:$0xf]
  %v656 = vld [vmem:[%s1 + $0x208] sm:$0xf]
  %v657 = vld [vmem:[%s1 + $0x20c] sm:$0xf]
  %v658 = vld [vmem:[%s1 + $0x210] sm:$0xf]
  %v659 = vld [vmem:[%s1 + $0x214] sm:$0xf]
  %v660 = vld [vmem:[%s1 + $0x218] sm:$0xf]
  %v661 = vld [vmem:[%s1 + $0x21c] sm:$0xf]
  %v662 = vld [vmem:[%s1 + $0x220] sm:$0xf]
  %v663 = vld [vmem:[%s1 + $0x224] sm:$0xf]
  %v664 = vld [vmem:[%s1 + $0x228] sm:$0xf]
  %v665 = vld [vmem:[%s1 + $0x22c] sm:$0xf]
  %v666 = vld [vmem:[%s1 + $0x230] sm:$0xf]
  %v667 = vld [vmem:[%s1 + $0x234] sm:$0xf]
  %v668 = vld [vmem:[%s1 + $0x238] sm:$0xf]
  %v669 = vld [vmem:[%s1 + $0x23c] sm:$0xf]
  %v670 = vld [vmem:[%s1 + $0x240] sm:$0xf]
  %v671 = vld [vmem:[%s1 + $0x244] sm:$0xf]
  %v672 = vld [vmem:[%s1 + $0x248] sm:$0xf]
  %v673 = vld [vmem:[%s1 + $0x24c] sm:$0xf]
  %v674 = vld [vmem:[%s1 + $0x250] sm:$0xf]
  %v675 = vld [vmem:[%s1 + $0x254] sm:$0xf]
  %v676 = vld [vmem:[%s1 + $0x258] sm:$0xf]
  %v677 = vld [vmem:[%s1 + $0x25c] sm:$0xf]
  %v678 = vld [vmem:[%s1 + $0x260] sm:$0xf]
  %v679 = vld [vmem:[%s1 + $0x264] sm:$0xf]
  %v680 = vld [vmem:[%s1 + $0x268] sm:$0xf]
  %v681 = vld [vmem:[%s1 + $0x26c] sm:$0xf]
  %v682 = vld [vmem:[%s1 + $0x270] sm:$0xf]
  %v683 = vld [vmem:[%s1 + $0x274] sm:$0xf]
  %v684 = vld [vmem:[%s1 + $0x278] sm:$0xf]
  %v685 = vld [vmem:[%s1 + $0x27c] sm:$0xf]
  %v686 = vld [vmem:[%s1 + $0x280] sm:$0xf]
  %v687 = vld [vmem:[%s1 + $0x284] sm:$0xf]
  %v688 = vld [vmem:[%s1 + $0x288] sm:$0xf]
  %v689 = vld [vmem:[%s1 + $0x28c] sm:$0xf]
  %v690 = vld [vmem:[%s1 + $0x290] sm:$0xf]
  %v691 = vld [vmem:[%s1 + $0x294] sm:$0xf]
  %v692 = vld [vmem:[%s1 + $0x298] sm:$0xf]
  %v693 = vld [vmem:[%s1 + $0x29c] sm:$0xf]
  %v694 = vld [vmem:[%s1 + $0x2a0] sm:$0xf]
  %v695 = vld [vmem:[%s1 + $0x2a4] sm:$0xf]
  %v696 = vld [vmem:[%s1 + $0x2a8] sm:$0xf]
  %v697 = vld [vmem:[%s1 + $0x2ac] sm:$0xf]
  %v698 = vld [vmem:[%s1 + $0x2b0] sm:$0xf]
  %v699 = vld [vmem:[%s1 + $0x2b4] sm:$0xf]
  %v700 = vld [vmem:[%s1 + $0x2b8] sm:$0xf]
  %v701 = vld [vmem:[%s1 + $0x2bc] sm:$0xf]
  %v702 = vld [vmem:[%s1 + $0x2c0] sm:$0xf]
  %v703 = vld [vmem:[%s1 + $0x2c4] sm:$0xf]
  %v704 = vld [vmem:[%s1 + $0x2c8] sm:$0xf]
  %v705 = vld [vmem:[%s1 + $0x2cc] sm:$0xf]
  %v706 = vld [vmem:[%s1 + $0x2d0] sm:$0xf]
  %v707 = vld [vmem:[%s1 + $0x2d4] sm:$0xf]
  %v708 = vld [vmem:[%s1 + $0x2d8] sm:$0xf]
  %v709 = vld [vmem:[%s1 + $0x2dc] sm:$0xf]
  %v710 = vld [vmem:[%s1 + $0x2e0] sm:$0xf]
  %v711 = vld [vmem:[%s1 + $0x2e4] sm:$0xf]
  %v712 = vld [vmem:[%s1 + $0x2e8] sm:$0xf]
  %v713 = vld [vmem:[%s1 + $0x2ec] sm:$0xf]
  %v714 = vld [vmem:[%s1 + $0x2f0] sm:$0xf]
  %v715 = vld [vmem:[%s1 + $0x2f4] sm:$0xf]
  %v716 = vld [vmem:[%s1 + $0x2f8] sm:$0xf]
  %v717 = vld [vmem:[%s1 + $0x2fc] sm:$0xf]
  %v718 = vld [vmem:[%s1 + $0x300] sm:$0xf]
  %v719 = vld [vmem:[%s1 + $0x304] sm:$0xf]
  %v720 = vld [vmem:[%s1 + $0x308] sm:$0xf]
  %v721 = vld [vmem:[%s1 + $0x30c] sm:$0xf]
  %v722 = vld [vmem:[%s1 + $0x310] sm:$0xf]
  %v723 = vld [vmem:[%s1 + $0x314] sm:$0xf]
  %v724 = vld [vmem:[%s1 + $0x318] sm:$0xf]
  %v725 = vld [vmem:[%s1 + $0x31c] sm:$0xf]
  %v726 = vld [vmem:[%s1 + $0x320] sm:$0xf]
  %v727 = vld [vmem:[%s1 + $0x324] sm:$0xf]
  %v728 = vld [vmem:[%s1 + $0x328] sm:$0xf]
  %v729 = vld [vmem:[%s1 + $0x32c] sm:$0xf]
  %v730 = vld [vmem:[%s1 + $0x330] sm:$0xf]
  %v731 = vld [vmem:[%s1 + $0x334] sm:$0xf]
  %v732 = vld [vmem:[%s1 + $0x338] sm:$0xf]
  %v733 = vld [vmem:[%s1 + $0x33c] sm:$0xf]
  %v734 = vld [vmem:[%s1 + $0x340] sm:$0xf]
  %v735 = vld [vmem:[%s1 + $0x344] sm:$0xf]
  %v736 = vld [vmem:[%s1 + $0x348] sm:$0xf]
  %v737 = vld [vmem:[%s1 + $0x34c] sm:$0xf]
  %v738 = vld [vmem:[%s1 + $0x350] sm:$0xf]
  %v739 = vld [vmem:[%s1 + $0x354] sm:$0xf]
  %v740 = vld [vmem:[%s1 + $0x358] sm:$0xf]
  %v741 = vld [vmem:[%s1 + $0x35c] sm:$0xf]
  %v742 = vld [vmem:[%s1 + $0x360] sm:$0xf]
  %v743 = vld [vmem:[%s1 + $0x364] sm:$0xf]
  %v744 = vld [vmem:[%s1 + $0x368] sm:$0xf]
  %v745 = vld [vmem:[%s1 + $0x36c] sm:$0xf]
  %v746 = vld [vmem:[%s1 + $0x370] sm:$0xf]
  %v747 = vld [vmem:[%s1 + $0x374] sm:$0xf]
  %v748 = vld [vmem:[%s1 + $0x378] sm:$0xf]
  %v749 = vld [vmem:[%s1 + $0x37c] sm:$0xf]
  %v750 = vld [vmem:[%s1 + $0x380] sm:$0xf]
  %v751 = vld [vmem:[%s1 + $0x384] sm:$0xf]
  %v752 = vld [vmem:[%s1 + $0x388] sm:$0xf]
  %v753 = vld [vmem:[%s1 + $0x38c] sm:$0xf]
  %v754 = vld [vmem:[%s1 + $0x390] sm:$0xf]
  %v755 = vld [vmem:[%s1 + $0x394] sm:$0xf]
  %v756 = vld [vmem:[%s1 + $0x398] sm:$0xf]
  %v757 = vld [vmem:[%s1 + $0x39c] sm:$0xf]
  %v758 = vld [vmem:[%s1 + $0x3a0] sm:$0xf]
  %v759 = vld [vmem:[%s1 + $0x3a4] sm:$0xf]
  %v760 = vld [vmem:[%s1 + $0x3a8] sm:$0xf]
  %v761 = vld [vmem:[%s1 + $0x3ac] sm:$0xf]
  %v762 = vld [vmem:[%s1 + $0x3b0] sm:$0xf]
  %v763 = vld [vmem:[%s1 + $0x3b4] sm:$0xf]
  %v764 = vld [vmem:[%s1 + $0x3b8] sm:$0xf]
  %v765 = vld [vmem:[%s1 + $0x3bc] sm:$0xf]
  %v766 = vld [vmem:[%s1 + $0x3c0] sm:$0xf]
  %v767 = vld [vmem:[%s1 + $0x3c4] sm:$0xf]
  %v768 = vld [vmem:[%s1 + $0x3c8] sm:$0xf]
  %v769 = vld [vmem:[%s1 + $0x3cc] sm:$0xf]
  %v770 = vld [vmem:[%s1 + $0x3d0] sm:$0xf]
  %v771 = vld [vmem:[%s1 + $0x3d4] sm:$0xf]
  %v772 = vld [vmem:[%s1 + $0x3d8] sm:$0xf]
  %v773 = vld [vmem:[%s1 + $0x3dc] sm:$0xf]
  %v774 = vld [vmem:[%s1 + $0x3e0] sm:$0xf]
  %v775 = vld [vmem:[%s1 + $0x3e4] sm:$0xf]
  %v776 = vld [vmem:[%s1 + $0x3e8] sm:$0xf]
  %v777 = vld [vmem:[%s1 + $0x3ec] sm:$0xf]
  %v778 = vld [vmem:[%s1 + $0x3f0] sm:$0xf]
  %v779 = vld [vmem:[%s1 + $0x3f4] sm:$0xf]
  %v780 = vld [vmem:[%s1 + $0x3f8] sm:$0xf]
  %v781 = vld [vmem:[%s1 + $0x3fc] sm:$0xf]
  %v1294 = vunpack.c.l.b16 %v14
  %v1295 = vunpack.c.h.b16 %v14
  %v1296 = vunpack.c.l.b16 %v15
  %v1297 = vunpack.c.h.b16 %v15
  %v1298 = vunpack.c.l.b16 %v16
  %v1299 = vunpack.c.h.b16 %v16
  %v1300 = vunpack.c.l.b16 %v17
  %v1301 = vunpack.c.h.b16 %v17
  %v1302 = vunpack.c.l.b16 %v18
  %v1303 = vunpack.c.h.b16 %v18
  %v1304 = vunpack.c.l.b16 %v19
  %v1305 = vunpack.c.h.b16 %v19
  %v1306 = vunpack.c.l.b16 %v20
  %v1307 = vunpack.c.h.b16 %v20
  %v1308 = vunpack.c.l.b16 %v21
  %v1309 = vunpack.c.h.b16 %v21
  %v1310 = vunpack.c.l.b16 %v22
  %v1311 = vunpack.c.h.b16 %v22
  %v1312 = vunpack.c.l.b16 %v23
  %v1313 = vunpack.c.h.b16 %v23
  %v1314 = vunpack.c.l.b16 %v24
  %v1315 = vunpack.c.h.b16 %v24
  %v1316 = vunpack.c.l.b16 %v25
  %v1317 = vunpack.c.h.b16 %v25
  %v1318 = vunpack.c.l.b16 %v26
  %v1319 = vunpack.c.h.b16 %v26
  %v1320 = vunpack.c.l.b16 %v27
  %v1321 = vunpack.c.h.b16 %v27
  %v1322 = vunpack.c.l.b16 %v28
  %v1323 = vunpack.c.h.b16 %v28
  %v1324 = vunpack.c.l.b16 %v29
  %v1325 = vunpack.c.h.b16 %v29
  %v1326 = vunpack.c.l.b16 %v30
  %v1327 = vunpack.c.h.b16 %v30
  %v1328 = vunpack.c.l.b16 %v31
  %v1329 = vunpack.c.h.b16 %v31
  %v1330 = vunpack.c.l.b16 %v32
  %v1331 = vunpack.c.h.b16 %v32
  %v1332 = vunpack.c.l.b16 %v33
  %v1333 = vunpack.c.h.b16 %v33
  %v1334 = vunpack.c.l.b16 %v34
  %v1335 = vunpack.c.h.b16 %v34
  %v1336 = vunpack.c.l.b16 %v35
  %v1337 = vunpack.c.h.b16 %v35
  %v1338 = vunpack.c.l.b16 %v36
  %v1339 = vunpack.c.h.b16 %v36
  %v1340 = vunpack.c.l.b16 %v37
  %v1341 = vunpack.c.h.b16 %v37
  %v1342 = vunpack.c.l.b16 %v38
  %v1343 = vunpack.c.h.b16 %v38
  %v1344 = vunpack.c.l.b16 %v39
  %v1345 = vunpack.c.h.b16 %v39
  %v1346 = vunpack.c.l.b16 %v40
  %v1347 = vunpack.c.h.b16 %v40
  %v1348 = vunpack.c.l.b16 %v41
  %v1349 = vunpack.c.h.b16 %v41
  %v1350 = vunpack.c.l.b16 %v42
  %v1351 = vunpack.c.h.b16 %v42
  %v1352 = vunpack.c.l.b16 %v43
  %v1353 = vunpack.c.h.b16 %v43
  %v1354 = vunpack.c.l.b16 %v44
  %v1355 = vunpack.c.h.b16 %v44
  %v1356 = vunpack.c.l.b16 %v45
  %v1357 = vunpack.c.h.b16 %v45
  %v1358 = vunpack.c.l.b16 %v46
  %v1359 = vunpack.c.h.b16 %v46
  %v1360 = vunpack.c.l.b16 %v47
  %v1361 = vunpack.c.h.b16 %v47
  %v1362 = vunpack.c.l.b16 %v48
  %v1363 = vunpack.c.h.b16 %v48
  %v1364 = vunpack.c.l.b16 %v49
  %v1365 = vunpack.c.h.b16 %v49
  %v1366 = vunpack.c.l.b16 %v50
  %v1367 = vunpack.c.h.b16 %v50
  %v1368 = vunpack.c.l.b16 %v51
  %v1369 = vunpack.c.h.b16 %v51
  %v1370 = vunpack.c.l.b16 %v52
  %v1371 = vunpack.c.h.b16 %v52
  %v1372 = vunpack.c.l.b16 %v53
  %v1373 = vunpack.c.h.b16 %v53
  %v1374 = vunpack.c.l.b16 %v54
  %v1375 = vunpack.c.h.b16 %v54
  %v1376 = vunpack.c.l.b16 %v55
  %v1377 = vunpack.c.h.b16 %v55
  %v1378 = vunpack.c.l.b16 %v56
  %v1379 = vunpack.c.h.b16 %v56
  %v1380 = vunpack.c.l.b16 %v57
  %v1381 = vunpack.c.h.b16 %v57
  %v1382 = vunpack.c.l.b16 %v58
  %v1383 = vunpack.c.h.b16 %v58
  %v1384 = vunpack.c.l.b16 %v59
  %v1385 = vunpack.c.h.b16 %v59
  %v1386 = vunpack.c.l.b16 %v60
  %v1387 = vunpack.c.h.b16 %v60
  %v1388 = vunpack.c.l.b16 %v61
  %v1389 = vunpack.c.h.b16 %v61
  %v1390 = vunpack.c.l.b16 %v62
  %v1391 = vunpack.c.h.b16 %v62
  %v1392 = vunpack.c.l.b16 %v63
  %v1393 = vunpack.c.h.b16 %v63
  %v1394 = vunpack.c.l.b16 %v64
  %v1395 = vunpack.c.h.b16 %v64
  %v1396 = vunpack.c.l.b16 %v65
  %v1397 = vunpack.c.h.b16 %v65
  %v1398 = vunpack.c.l.b16 %v66
  %v1399 = vunpack.c.h.b16 %v66
  %v1400 = vunpack.c.l.b16 %v67
  %v1401 = vunpack.c.h.b16 %v67
  %v1402 = vunpack.c.l.b16 %v68
  %v1403 = vunpack.c.h.b16 %v68
  %v1404 = vunpack.c.l.b16 %v69
  %v1405 = vunpack.c.h.b16 %v69
  %v1406 = vunpack.c.l.b16 %v70
  %v1407 = vunpack.c.h.b16 %v70
  %v1408 = vunpack.c.l.b16 %v71
  %v1409 = vunpack.c.h.b16 %v71
  %v1410 = vunpack.c.l.b16 %v72
  %v1411 = vunpack.c.h.b16 %v72
  %v1412 = vunpack.c.l.b16 %v73
  %v1413 = vunpack.c.h.b16 %v73
  %v1414 = vunpack.c.l.b16 %v74
  %v1415 = vunpack.c.h.b16 %v74
  %v1416 = vunpack.c.l.b16 %v75
  %v1417 = vunpack.c.h.b16 %v75
  %v1418 = vunpack.c.l.b16 %v76
  %v1419 = vunpack.c.h.b16 %v76
  %v1420 = vunpack.c.l.b16 %v77
  %v1421 = vunpack.c.h.b16 %v77
  %v1422 = vunpack.c.l.b16 %v78
  %v1423 = vunpack.c.h.b16 %v78
  %v1424 = vunpack.c.l.b16 %v79
  %v1425 = vunpack.c.h.b16 %v79
  %v1426 = vunpack.c.l.b16 %v80
  %v1427 = vunpack.c.h.b16 %v80
  %v1428 = vunpack.c.l.b16 %v81
  %v1429 = vunpack.c.h.b16 %v81
  %v1430 = vunpack.c.l.b16 %v82
  %v1431 = vunpack.c.h.b16 %v82
  %v1432 = vunpack.c.l.b16 %v83
  %v1433 = vunpack.c.h.b16 %v83
  %v1434 = vunpack.c.l.b16 %v84
  %v1435 = vunpack.c.h.b16 %v84
  %v1436 = vunpack.c.l.b16 %v85
  %v1437 = vunpack.c.h.b16 %v85
  %v1438 = vunpack.c.l.b16 %v86
  %v1439 = vunpack.c.h.b16 %v86
  %v1440 = vunpack.c.l.b16 %v87
  %v1441 = vunpack.c.h.b16 %v87
  %v1442 = vunpack.c.l.b16 %v88
  %v1443 = vunpack.c.h.b16 %v88
  %v1444 = vunpack.c.l.b16 %v89
  %v1445 = vunpack.c.h.b16 %v89
  %v1446 = vunpack.c.l.b16 %v90
  %v1447 = vunpack.c.h.b16 %v90
  %v1448 = vunpack.c.l.b16 %v91
  %v1449 = vunpack.c.h.b16 %v91
  %v1450 = vunpack.c.l.b16 %v92
  %v1451 = vunpack.c.h.b16 %v92
  %v1452 = vunpack.c.l.b16 %v93
  %v1453 = vunpack.c.h.b16 %v93
  %v1454 = vunpack.c.l.b16 %v94
  %v1455 = vunpack.c.h.b16 %v94
  %v1456 = vunpack.c.l.b16 %v95
  %v1457 = vunpack.c.h.b16 %v95
  %v1458 = vunpack.c.l.b16 %v96
  %v1459 = vunpack.c.h.b16 %v96
  %v1460 = vunpack.c.l.b16 %v97
  %v1461 = vunpack.c.h.b16 %v97
  %v1462 = vunpack.c.l.b16 %v98
  %v1463 = vunpack.c.h.b16 %v98
  %v1464 = vunpack.c.l.b16 %v99
  %v1465 = vunpack.c.h.b16 %v99
  %v1466 = vunpack.c.l.b16 %v100
  %v1467 = vunpack.c.h.b16 %v100
  %v1468 = vunpack.c.l.b16 %v101
  %v1469 = vunpack.c.h.b16 %v101
  %v1470 = vunpack.c.l.b16 %v102
  %v1471 = vunpack.c.h.b16 %v102
  %v1472 = vunpack.c.l.b16 %v103
  %v1473 = vunpack.c.h.b16 %v103
  %v1474 = vunpack.c.l.b16 %v104
  %v1475 = vunpack.c.h.b16 %v104
  %v1476 = vunpack.c.l.b16 %v105
  %v1477 = vunpack.c.h.b16 %v105
  %v1478 = vunpack.c.l.b16 %v106
  %v1479 = vunpack.c.h.b16 %v106
  %v1480 = vunpack.c.l.b16 %v107
  %v1481 = vunpack.c.h.b16 %v107
  %v1482 = vunpack.c.l.b16 %v108
  %v1483 = vunpack.c.h.b16 %v108
  %v1484 = vunpack.c.l.b16 %v109
  %v1485 = vunpack.c.h.b16 %v109
  %v1486 = vunpack.c.l.b16 %v110
  %v1487 = vunpack.c.h.b16 %v110
  %v1488 = vunpack.c.l.b16 %v111
  %v1489 = vunpack.c.h.b16 %v111
  %v1490 = vunpack.c.l.b16 %v112
  %v1491 = vunpack.c.h.b16 %v112
  %v1492 = vunpack.c.l.b16 %v113
  %v1493 = vunpack.c.h.b16 %v113
  %v1494 = vunpack.c.l.b16 %v114
  %v1495 = vunpack.c.h.b16 %v114
  %v1496 = vunpack.c.l.b16 %v115
  %v1497 = vunpack.c.h.b16 %v115
  %v1498 = vunpack.c.l.b16 %v116
  %v1499 = vunpack.c.h.b16 %v116
  %v1500 = vunpack.c.l.b16 %v117
  %v1501 = vunpack.c.h.b16 %v117
  %v1502 = vunpack.c.l.b16 %v118
  %v1503 = vunpack.c.h.b16 %v118
  %v1504 = vunpack.c.l.b16 %v119
  %v1505 = vunpack.c.h.b16 %v119
  %v1506 = vunpack.c.l.b16 %v120
  %v1507 = vunpack.c.h.b16 %v120
  %v1508 = vunpack.c.l.b16 %v121
  %v1509 = vunpack.c.h.b16 %v121
  %v1510 = vunpack.c.l.b16 %v122
  %v1511 = vunpack.c.h.b16 %v122
  %v1512 = vunpack.c.l.b16 %v123
  %v1513 = vunpack.c.h.b16 %v123
  %v1514 = vunpack.c.l.b16 %v124
  %v1515 = vunpack.c.h.b16 %v124
  %v1516 = vunpack.c.l.b16 %v125
  %v1517 = vunpack.c.h.b16 %v125
  %v1518 = vunpack.c.l.b16 %v126
  %v1519 = vunpack.c.h.b16 %v126
  %v1520 = vunpack.c.l.b16 %v127
  %v1521 = vunpack.c.h.b16 %v127
  %v1522 = vunpack.c.l.b16 %v128
  %v1523 = vunpack.c.h.b16 %v128
  %v1524 = vunpack.c.l.b16 %v129
  %v1525 = vunpack.c.h.b16 %v129
  %v1526 = vunpack.c.l.b16 %v130
  %v1527 = vunpack.c.h.b16 %v130
  %v1528 = vunpack.c.l.b16 %v131
  %v1529 = vunpack.c.h.b16 %v131
  %v1530 = vunpack.c.l.b16 %v132
  %v1531 = vunpack.c.h.b16 %v132
  %v1532 = vunpack.c.l.b16 %v133
  %v1533 = vunpack.c.h.b16 %v133
  %v1534 = vunpack.c.l.b16 %v134
  %v1535 = vunpack.c.h.b16 %v134
  %v1536 = vunpack.c.l.b16 %v135
  %v1537 = vunpack.c.h.b16 %v135
  %v1538 = vunpack.c.l.b16 %v136
  %v1539 = vunpack.c.h.b16 %v136
  %v1540 = vunpack.c.l.b16 %v137
  %v1541 = vunpack.c.h.b16 %v137
  %v1542 = vunpack.c.l.b16 %v138
  %v1543 = vunpack.c.h.b16 %v138
  %v1544 = vunpack.c.l.b16 %v139
  %v1545 = vunpack.c.h.b16 %v139
  %v1546 = vunpack.c.l.b16 %v140
  %v1547 = vunpack.c.h.b16 %v140
  %v1548 = vunpack.c.l.b16 %v141
  %v1549 = vunpack.c.h.b16 %v141
  %v1550 = vunpack.c.l.b16 %v142
  %v1551 = vunpack.c.h.b16 %v142
  %v1552 = vunpack.c.l.b16 %v143
  %v1553 = vunpack.c.h.b16 %v143
  %v1554 = vunpack.c.l.b16 %v144
  %v1555 = vunpack.c.h.b16 %v144
  %v1556 = vunpack.c.l.b16 %v145
  %v1557 = vunpack.c.h.b16 %v145
  %v1558 = vunpack.c.l.b16 %v146
  %v1559 = vunpack.c.h.b16 %v146
  %v1560 = vunpack.c.l.b16 %v147
  %v1561 = vunpack.c.h.b16 %v147
  %v1562 = vunpack.c.l.b16 %v148
  %v1563 = vunpack.c.h.b16 %v148
  %v1564 = vunpack.c.l.b16 %v149
  %v1565 = vunpack.c.h.b16 %v149
  %v1566 = vunpack.c.l.b16 %v150
  %v1567 = vunpack.c.h.b16 %v150
  %v1568 = vunpack.c.l.b16 %v151
  %v1569 = vunpack.c.h.b16 %v151
  %v1570 = vunpack.c.l.b16 %v152
  %v1571 = vunpack.c.h.b16 %v152
  %v1572 = vunpack.c.l.b16 %v153
  %v1573 = vunpack.c.h.b16 %v153
  %v1574 = vunpack.c.l.b16 %v154
  %v1575 = vunpack.c.h.b16 %v154
  %v1576 = vunpack.c.l.b16 %v155
  %v1577 = vunpack.c.h.b16 %v155
  %v1578 = vunpack.c.l.b16 %v156
  %v1579 = vunpack.c.h.b16 %v156
  %v1580 = vunpack.c.l.b16 %v157
  %v1581 = vunpack.c.h.b16 %v157
  %v1582 = vunpack.c.l.b16 %v158
  %v1583 = vunpack.c.h.b16 %v158
  %v1584 = vunpack.c.l.b16 %v159
  %v1585 = vunpack.c.h.b16 %v159
  %v1586 = vunpack.c.l.b16 %v160
  %v1587 = vunpack.c.h.b16 %v160
  %v1588 = vunpack.c.l.b16 %v161
  %v1589 = vunpack.c.h.b16 %v161
  %v1590 = vunpack.c.l.b16 %v162
  %v1591 = vunpack.c.h.b16 %v162
  %v1592 = vunpack.c.l.b16 %v163
  %v1593 = vunpack.c.h.b16 %v163
  %v1594 = vunpack.c.l.b16 %v164
  %v1595 = vunpack.c.h.b16 %v164
  %v1596 = vunpack.c.l.b16 %v165
  %v1597 = vunpack.c.h.b16 %v165
  %v1598 = vunpack.c.l.b16 %v166
  %v1599 = vunpack.c.h.b16 %v166
  %v1600 = vunpack.c.l.b16 %v167
  %v1601 = vunpack.c.h.b16 %v167
  %v1602 = vunpack.c.l.b16 %v168
  %v1603 = vunpack.c.h.b16 %v168
  %v1604 = vunpack.c.l.b16 %v169
  %v1605 = vunpack.c.h.b16 %v169
  %v1606 = vunpack.c.l.b16 %v170
  %v1607 = vunpack.c.h.b16 %v170
  %v1608 = vunpack.c.l.b16 %v171
  %v1609 = vunpack.c.h.b16 %v171
  %v1610 = vunpack.c.l.b16 %v172
  %v1611 = vunpack.c.h.b16 %v172
  %v1612 = vunpack.c.l.b16 %v173
  %v1613 = vunpack.c.h.b16 %v173
  %v1614 = vunpack.c.l.b16 %v174
  %v1615 = vunpack.c.h.b16 %v174
  %v1616 = vunpack.c.l.b16 %v175
  %v1617 = vunpack.c.h.b16 %v175
  %v1618 = vunpack.c.l.b16 %v176
  %v1619 = vunpack.c.h.b16 %v176
  %v1620 = vunpack.c.l.b16 %v177
  %v1621 = vunpack.c.h.b16 %v177
  %v1622 = vunpack.c.l.b16 %v178
  %v1623 = vunpack.c.h.b16 %v178
  %v1624 = vunpack.c.l.b16 %v179
  %v1625 = vunpack.c.h.b16 %v179
  %v1626 = vunpack.c.l.b16 %v180
  %v1627 = vunpack.c.h.b16 %v180
  %v1628 = vunpack.c.l.b16 %v181
  %v1629 = vunpack.c.h.b16 %v181
  %v1630 = vunpack.c.l.b16 %v182
  %v1631 = vunpack.c.h.b16 %v182
  %v1632 = vunpack.c.l.b16 %v183
  %v1633 = vunpack.c.h.b16 %v183
  %v1634 = vunpack.c.l.b16 %v184
  %v1635 = vunpack.c.h.b16 %v184
  %v1636 = vunpack.c.l.b16 %v185
  %v1637 = vunpack.c.h.b16 %v185
  %v1638 = vunpack.c.l.b16 %v186
  %v1639 = vunpack.c.h.b16 %v186
  %v1640 = vunpack.c.l.b16 %v187
  %v1641 = vunpack.c.h.b16 %v187
  %v1642 = vunpack.c.l.b16 %v188
  %v1643 = vunpack.c.h.b16 %v188
  %v1644 = vunpack.c.l.b16 %v189
  %v1645 = vunpack.c.h.b16 %v189
  %v1646 = vunpack.c.l.b16 %v190
  %v1647 = vunpack.c.h.b16 %v190
  %v1648 = vunpack.c.l.b16 %v191
  %v1649 = vunpack.c.h.b16 %v191
  %v1650 = vunpack.c.l.b16 %v192
  %v1651 = vunpack.c.h.b16 %v192
  %v1652 = vunpack.c.l.b16 %v193
  %v1653 = vunpack.c.h.b16 %v193
  %v1654 = vunpack.c.l.b16 %v194
  %v1655 = vunpack.c.h.b16 %v194
  %v1656 = vunpack.c.l.b16 %v195
  %v1657 = vunpack.c.h.b16 %v195
  %v1658 = vunpack.c.l.b16 %v196
  %v1659 = vunpack.c.h.b16 %v196
  %v1660 = vunpack.c.l.b16 %v197
  %v1661 = vunpack.c.h.b16 %v197
  %v1662 = vunpack.c.l.b16 %v198
  %v1663 = vunpack.c.h.b16 %v198
  %v1664 = vunpack.c.l.b16 %v199
  %v1665 = vunpack.c.h.b16 %v199
  %v1666 = vunpack.c.l.b16 %v200
  %v1667 = vunpack.c.h.b16 %v200
  %v1668 = vunpack.c.l.b16 %v201
  %v1669 = vunpack.c.h.b16 %v201
  %v1670 = vunpack.c.l.b16 %v202
  %v1671 = vunpack.c.h.b16 %v202
  %v1672 = vunpack.c.l.b16 %v203
  %v1673 = vunpack.c.h.b16 %v203
  %v1674 = vunpack.c.l.b16 %v204
  %v1675 = vunpack.c.h.b16 %v204
  %v1676 = vunpack.c.l.b16 %v205
  %v1677 = vunpack.c.h.b16 %v205
  %v1678 = vunpack.c.l.b16 %v206
  %v1679 = vunpack.c.h.b16 %v206
  %v1680 = vunpack.c.l.b16 %v207
  %v1681 = vunpack.c.h.b16 %v207
  %v1682 = vunpack.c.l.b16 %v208
  %v1683 = vunpack.c.h.b16 %v208
  %v1684 = vunpack.c.l.b16 %v209
  %v1685 = vunpack.c.h.b16 %v209
  %v1686 = vunpack.c.l.b16 %v210
  %v1687 = vunpack.c.h.b16 %v210
  %v1688 = vunpack.c.l.b16 %v211
  %v1689 = vunpack.c.h.b16 %v211
  %v1690 = vunpack.c.l.b16 %v212
  %v1691 = vunpack.c.h.b16 %v212
  %v1692 = vunpack.c.l.b16 %v213
  %v1693 = vunpack.c.h.b16 %v213
  %v1694 = vunpack.c.l.b16 %v214
  %v1695 = vunpack.c.h.b16 %v214
  %v1696 = vunpack.c.l.b16 %v215
  %v1697 = vunpack.c.h.b16 %v215
  %v1698 = vunpack.c.l.b16 %v216
  %v1699 = vunpack.c.h.b16 %v216
  %v1700 = vunpack.c.l.b16 %v217
  %v1701 = vunpack.c.h.b16 %v217
  %v1702 = vunpack.c.l.b16 %v218
  %v1703 = vunpack.c.h.b16 %v218
  %v1704 = vunpack.c.l.b16 %v219
  %v1705 = vunpack.c.h.b16 %v219
  %v1706 = vunpack.c.l.b16 %v220
  %v1707 = vunpack.c.h.b16 %v220
  %v1708 = vunpack.c.l.b16 %v221
  %v1709 = vunpack.c.h.b16 %v221
  %v1710 = vunpack.c.l.b16 %v222
  %v1711 = vunpack.c.h.b16 %v222
  %v1712 = vunpack.c.l.b16 %v223
  %v1713 = vunpack.c.h.b16 %v223
  %v1714 = vunpack.c.l.b16 %v224
  %v1715 = vunpack.c.h.b16 %v224
  %v1716 = vunpack.c.l.b16 %v225
  %v1717 = vunpack.c.h.b16 %v225
  %v1718 = vunpack.c.l.b16 %v226
  %v1719 = vunpack.c.h.b16 %v226
  %v1720 = vunpack.c.l.b16 %v227
  %v1721 = vunpack.c.h.b16 %v227
  %v1722 = vunpack.c.l.b16 %v228
  %v1723 = vunpack.c.h.b16 %v228
  %v1724 = vunpack.c.l.b16 %v229
  %v1725 = vunpack.c.h.b16 %v229
  %v1726 = vunpack.c.l.b16 %v230
  %v1727 = vunpack.c.h.b16 %v230
  %v1728 = vunpack.c.l.b16 %v231
  %v1729 = vunpack.c.h.b16 %v231
  %v1730 = vunpack.c.l.b16 %v232
  %v1731 = vunpack.c.h.b16 %v232
  %v1732 = vunpack.c.l.b16 %v233
  %v1733 = vunpack.c.h.b16 %v233
  %v1734 = vunpack.c.l.b16 %v234
  %v1735 = vunpack.c.h.b16 %v234
  %v1736 = vunpack.c.l.b16 %v235
  %v1737 = vunpack.c.h.b16 %v235
  %v1738 = vunpack.c.l.b16 %v236
  %v1739 = vunpack.c.h.b16 %v236
  %v1740 = vunpack.c.l.b16 %v237
  %v1741 = vunpack.c.h.b16 %v237
  %v1742 = vunpack.c.l.b16 %v238
  %v1743 = vunpack.c.h.b16 %v238
  %v1744 = vunpack.c.l.b16 %v239
  %v1745 = vunpack.c.h.b16 %v239
  %v1746 = vunpack.c.l.b16 %v240
  %v1747 = vunpack.c.h.b16 %v240
  %v1748 = vunpack.c.l.b16 %v241
  %v1749 = vunpack.c.h.b16 %v241
  %v1750 = vunpack.c.l.b16 %v242
  %v1751 = vunpack.c.h.b16 %v242
  %v1752 = vunpack.c.l.b16 %v243
  %v1753 = vunpack.c.h.b16 %v243
  %v1754 = vunpack.c.l.b16 %v244
  %v1755 = vunpack.c.h.b16 %v244
  %v1756 = vunpack.c.l.b16 %v245
  %v1757 = vunpack.c.h.b16 %v245
  %v1758 = vunpack.c.l.b16 %v246
  %v1759 = vunpack.c.h.b16 %v246
  %v1760 = vunpack.c.l.b16 %v247
  %v1761 = vunpack.c.h.b16 %v247
  %v1762 = vunpack.c.l.b16 %v248
  %v1763 = vunpack.c.h.b16 %v248
  %v1764 = vunpack.c.l.b16 %v249
  %v1765 = vunpack.c.h.b16 %v249
  %v1766 = vunpack.c.l.b16 %v250
  %v1767 = vunpack.c.h.b16 %v250
  %v1768 = vunpack.c.l.b16 %v251
  %v1769 = vunpack.c.h.b16 %v251
  %v1770 = vunpack.c.l.b16 %v252
  %v1771 = vunpack.c.h.b16 %v252
  %v1772 = vunpack.c.l.b16 %v253
  %v1773 = vunpack.c.h.b16 %v253
  %v1774 = vunpack.c.l.b16 %v254
  %v1775 = vunpack.c.h.b16 %v254
  %v1776 = vunpack.c.l.b16 %v255
  %v1777 = vunpack.c.h.b16 %v255
  %v1778 = vunpack.c.l.b16 %v256
  %v1779 = vunpack.c.h.b16 %v256
  %v1780 = vunpack.c.l.b16 %v257
  %v1781 = vunpack.c.h.b16 %v257
  %v1782 = vunpack.c.l.b16 %v258
  %v1783 = vunpack.c.h.b16 %v258
  %v1784 = vunpack.c.l.b16 %v259
  %v1785 = vunpack.c.h.b16 %v259
  %v1786 = vunpack.c.l.b16 %v260
  %v1787 = vunpack.c.h.b16 %v260
  %v1788 = vunpack.c.l.b16 %v261
  %v1789 = vunpack.c.h.b16 %v261
  %v1790 = vunpack.c.l.b16 %v262
  %v1791 = vunpack.c.h.b16 %v262
  %v1792 = vunpack.c.l.b16 %v263
  %v1793 = vunpack.c.h.b16 %v263
  %v1794 = vunpack.c.l.b16 %v264
  %v1795 = vunpack.c.h.b16 %v264
  %v1796 = vunpack.c.l.b16 %v265
  %v1797 = vunpack.c.h.b16 %v265
  %v1798 = vunpack.c.l.b16 %v266
  %v1799 = vunpack.c.h.b16 %v266
  %v1800 = vunpack.c.l.b16 %v267
  %v1801 = vunpack.c.h.b16 %v267
  %v1802 = vunpack.c.l.b16 %v268
  %v1803 = vunpack.c.h.b16 %v268
  %v1804 = vunpack.c.l.b16 %v269
  %v1805 = vunpack.c.h.b16 %v269
  %v1806 = vunpack.c.l.b16 %v270
  %v1807 = vunpack.c.h.b16 %v270
  %v1808 = vunpack.c.l.b16 %v271
  %v1809 = vunpack.c.h.b16 %v271
  %v1810 = vunpack.c.l.b16 %v272
  %v1811 = vunpack.c.h.b16 %v272
  %v1812 = vunpack.c.l.b16 %v273
  %v1813 = vunpack.c.h.b16 %v273
  %v1814 = vunpack.c.l.b16 %v274
  %v1815 = vunpack.c.h.b16 %v274
  %v1816 = vunpack.c.l.b16 %v275
  %v1817 = vunpack.c.h.b16 %v275
  %v1818 = vunpack.c.l.b16 %v276
  %v1819 = vunpack.c.h.b16 %v276
  %v1820 = vunpack.c.l.b16 %v277
  %v1821 = vunpack.c.h.b16 %v277
  %v1822 = vunpack.c.l.b16 %v278
  %v1823 = vunpack.c.h.b16 %v278
  %v1824 = vunpack.c.l.b16 %v279
  %v1825 = vunpack.c.h.b16 %v279
  %v1826 = vunpack.c.l.b16 %v280
  %v1827 = vunpack.c.h.b16 %v280
  %v1828 = vunpack.c.l.b16 %v281
  %v1829 = vunpack.c.h.b16 %v281
  %v1830 = vunpack.c.l.b16 %v282
  %v1831 = vunpack.c.h.b16 %v282
  %v1832 = vunpack.c.l.b16 %v283
  %v1833 = vunpack.c.h.b16 %v283
  %v1834 = vunpack.c.l.b16 %v284
  %v1835 = vunpack.c.h.b16 %v284
  %v1836 = vunpack.c.l.b16 %v285
  %v1837 = vunpack.c.h.b16 %v285
  %v1838 = vunpack.c.l.b16 %v286
  %v1839 = vunpack.c.h.b16 %v286
  %v1840 = vunpack.c.l.b16 %v287
  %v1841 = vunpack.c.h.b16 %v287
  %v1842 = vunpack.c.l.b16 %v288
  %v1843 = vunpack.c.h.b16 %v288
  %v1844 = vunpack.c.l.b16 %v289
  %v1845 = vunpack.c.h.b16 %v289
  %v1846 = vunpack.c.l.b16 %v290
  %v1847 = vunpack.c.h.b16 %v290
  %v1848 = vunpack.c.l.b16 %v291
  %v1849 = vunpack.c.h.b16 %v291
  %v1850 = vunpack.c.l.b16 %v292
  %v1851 = vunpack.c.h.b16 %v292
  %v1852 = vunpack.c.l.b16 %v293
  %v1853 = vunpack.c.h.b16 %v293
  %v1854 = vunpack.c.l.b16 %v294
  %v1855 = vunpack.c.h.b16 %v294
  %v1856 = vunpack.c.l.b16 %v295
  %v1857 = vunpack.c.h.b16 %v295
  %v1858 = vunpack.c.l.b16 %v296
  %v1859 = vunpack.c.h.b16 %v296
  %v1860 = vunpack.c.l.b16 %v297
  %v1861 = vunpack.c.h.b16 %v297
  %v1862 = vunpack.c.l.b16 %v298
  %v1863 = vunpack.c.h.b16 %v298
  %v1864 = vunpack.c.l.b16 %v299
  %v1865 = vunpack.c.h.b16 %v299
  %v1866 = vunpack.c.l.b16 %v300
  %v1867 = vunpack.c.h.b16 %v300
  %v1868 = vunpack.c.l.b16 %v301
  %v1869 = vunpack.c.h.b16 %v301
  %v1870 = vunpack.c.l.b16 %v302
  %v1871 = vunpack.c.h.b16 %v302
  %v1872 = vunpack.c.l.b16 %v303
  %v1873 = vunpack.c.h.b16 %v303
  %v1874 = vunpack.c.l.b16 %v304
  %v1875 = vunpack.c.h.b16 %v304
  %v1876 = vunpack.c.l.b16 %v305
  %v1877 = vunpack.c.h.b16 %v305
  %v1878 = vunpack.c.l.b16 %v306
  %v1879 = vunpack.c.h.b16 %v306
  %v1880 = vunpack.c.l.b16 %v307
  %v1881 = vunpack.c.h.b16 %v307
  %v1882 = vunpack.c.l.b16 %v308
  %v1883 = vunpack.c.h.b16 %v308
  %v1884 = vunpack.c.l.b16 %v309
  %v1885 = vunpack.c.h.b16 %v309
  %v1886 = vunpack.c.l.b16 %v310
  %v1887 = vunpack.c.h.b16 %v310
  %v1888 = vunpack.c.l.b16 %v311
  %v1889 = vunpack.c.h.b16 %v311
  %v1890 = vunpack.c.l.b16 %v312
  %v1891 = vunpack.c.h.b16 %v312
  %v1892 = vunpack.c.l.b16 %v313
  %v1893 = vunpack.c.h.b16 %v313
  %v1894 = vunpack.c.l.b16 %v314
  %v1895 = vunpack.c.h.b16 %v314
  %v1896 = vunpack.c.l.b16 %v315
  %v1897 = vunpack.c.h.b16 %v315
  %v1898 = vunpack.c.l.b16 %v316
  %v1899 = vunpack.c.h.b16 %v316
  %v1900 = vunpack.c.l.b16 %v317
  %v1901 = vunpack.c.h.b16 %v317
  %v1902 = vunpack.c.l.b16 %v318
  %v1903 = vunpack.c.h.b16 %v318
  %v1904 = vunpack.c.l.b16 %v319
  %v1905 = vunpack.c.h.b16 %v319
  %v1906 = vunpack.c.l.b16 %v320
  %v1907 = vunpack.c.h.b16 %v320
  %v1908 = vunpack.c.l.b16 %v321
  %v1909 = vunpack.c.h.b16 %v321
  %v1910 = vunpack.c.l.b16 %v322
  %v1911 = vunpack.c.h.b16 %v322
  %v1912 = vunpack.c.l.b16 %v323
  %v1913 = vunpack.c.h.b16 %v323
  %v1914 = vunpack.c.l.b16 %v324
  %v1915 = vunpack.c.h.b16 %v324
  %v1916 = vunpack.c.l.b16 %v325
  %v1917 = vunpack.c.h.b16 %v325
  %v1918 = vunpack.c.l.b16 %v326
  %v1919 = vunpack.c.h.b16 %v326
  %v1920 = vunpack.c.l.b16 %v327
  %v1921 = vunpack.c.h.b16 %v327
  %v1922 = vunpack.c.l.b16 %v328
  %v1923 = vunpack.c.h.b16 %v328
  %v1924 = vunpack.c.l.b16 %v329
  %v1925 = vunpack.c.h.b16 %v329
  %v1926 = vunpack.c.l.b16 %v330
  %v1927 = vunpack.c.h.b16 %v330
  %v1928 = vunpack.c.l.b16 %v331
  %v1929 = vunpack.c.h.b16 %v331
  %v1930 = vunpack.c.l.b16 %v332
  %v1931 = vunpack.c.h.b16 %v332
  %v1932 = vunpack.c.l.b16 %v333
  %v1933 = vunpack.c.h.b16 %v333
  %v1934 = vunpack.c.l.b16 %v334
  %v1935 = vunpack.c.h.b16 %v334
  %v1936 = vunpack.c.l.b16 %v335
  %v1937 = vunpack.c.h.b16 %v335
  %v1938 = vunpack.c.l.b16 %v336
  %v1939 = vunpack.c.h.b16 %v336
  %v1940 = vunpack.c.l.b16 %v337
  %v1941 = vunpack.c.h.b16 %v337
  %v1942 = vunpack.c.l.b16 %v338
  %v1943 = vunpack.c.h.b16 %v338
  %v1944 = vunpack.c.l.b16 %v339
  %v1945 = vunpack.c.h.b16 %v339
  %v1946 = vunpack.c.l.b16 %v340
  %v1947 = vunpack.c.h.b16 %v340
  %v1948 = vunpack.c.l.b16 %v341
  %v1949 = vunpack.c.h.b16 %v341
  %v1950 = vunpack.c.l.b16 %v342
  %v1951 = vunpack.c.h.b16 %v342
  %v1952 = vunpack.c.l.b16 %v343
  %v1953 = vunpack.c.h.b16 %v343
  %v1954 = vunpack.c.l.b16 %v344
  %v1955 = vunpack.c.h.b16 %v344
  %v1956 = vunpack.c.l.b16 %v345
  %v1957 = vunpack.c.h.b16 %v345
  %v1958 = vunpack.c.l.b16 %v346
  %v1959 = vunpack.c.h.b16 %v346
  %v1960 = vunpack.c.l.b16 %v347
  %v1961 = vunpack.c.h.b16 %v347
  %v1962 = vunpack.c.l.b16 %v348
  %v1963 = vunpack.c.h.b16 %v348
  %v1964 = vunpack.c.l.b16 %v349
  %v1965 = vunpack.c.h.b16 %v349
  %v1966 = vunpack.c.l.b16 %v350
  %v1967 = vunpack.c.h.b16 %v350
  %v1968 = vunpack.c.l.b16 %v351
  %v1969 = vunpack.c.h.b16 %v351
  %v1970 = vunpack.c.l.b16 %v352
  %v1971 = vunpack.c.h.b16 %v352
  %v1972 = vunpack.c.l.b16 %v353
  %v1973 = vunpack.c.h.b16 %v353
  %v1974 = vunpack.c.l.b16 %v354
  %v1975 = vunpack.c.h.b16 %v354
  %v1976 = vunpack.c.l.b16 %v355
  %v1977 = vunpack.c.h.b16 %v355
  %v1978 = vunpack.c.l.b16 %v356
  %v1979 = vunpack.c.h.b16 %v356
  %v1980 = vunpack.c.l.b16 %v357
  %v1981 = vunpack.c.h.b16 %v357
  %v1982 = vunpack.c.l.b16 %v358
  %v1983 = vunpack.c.h.b16 %v358
  %v1984 = vunpack.c.l.b16 %v359
  %v1985 = vunpack.c.h.b16 %v359
  %v1986 = vunpack.c.l.b16 %v360
  %v1987 = vunpack.c.h.b16 %v360
  %v1988 = vunpack.c.l.b16 %v361
  %v1989 = vunpack.c.h.b16 %v361
  %v1990 = vunpack.c.l.b16 %v362
  %v1991 = vunpack.c.h.b16 %v362
  %v1992 = vunpack.c.l.b16 %v363
  %v1993 = vunpack.c.h.b16 %v363
  %v1994 = vunpack.c.l.b16 %v364
  %v1995 = vunpack.c.h.b16 %v364
  %v1996 = vunpack.c.l.b16 %v365
  %v1997 = vunpack.c.h.b16 %v365
  %v1998 = vunpack.c.l.b16 %v366
  %v1999 = vunpack.c.h.b16 %v366
  %v2000 = vunpack.c.l.b16 %v367
  %v2001 = vunpack.c.h.b16 %v367
  %v2002 = vunpack.c.l.b16 %v368
  %v2003 = vunpack.c.h.b16 %v368
  %v2004 = vunpack.c.l.b16 %v369
  %v2005 = vunpack.c.h.b16 %v369
  %v2006 = vunpack.c.l.b16 %v370
  %v2007 = vunpack.c.h.b16 %v370
  %v2008 = vunpack.c.l.b16 %v371
  %v2009 = vunpack.c.h.b16 %v371
  %v2010 = vunpack.c.l.b16 %v372
  %v2011 = vunpack.c.h.b16 %v372
  %v2012 = vunpack.c.l.b16 %v373
  %v2013 = vunpack.c.h.b16 %v373
  %v2014 = vunpack.c.l.b16 %v374
  %v2015 = vunpack.c.h.b16 %v374
  %v2016 = vunpack.c.l.b16 %v375
  %v2017 = vunpack.c.h.b16 %v375
  %v2018 = vunpack.c.l.b16 %v376
  %v2019 = vunpack.c.h.b16 %v376
  %v2020 = vunpack.c.l.b16 %v377
  %v2021 = vunpack.c.h.b16 %v377
  %v2022 = vunpack.c.l.b16 %v378
  %v2023 = vunpack.c.h.b16 %v378
  %v2024 = vunpack.c.l.b16 %v379
  %v2025 = vunpack.c.h.b16 %v379
  %v2026 = vunpack.c.l.b16 %v380
  %v2027 = vunpack.c.h.b16 %v380
  %v2028 = vunpack.c.l.b16 %v381
  %v2029 = vunpack.c.h.b16 %v381
  %v2030 = vunpack.c.l.b16 %v382
  %v2031 = vunpack.c.h.b16 %v382
  %v2032 = vunpack.c.l.b16 %v383
  %v2033 = vunpack.c.h.b16 %v383
  %v2034 = vunpack.c.l.b16 %v384
  %v2035 = vunpack.c.h.b16 %v384
  %v2036 = vunpack.c.l.b16 %v385
  %v2037 = vunpack.c.h.b16 %v385
  %v2038 = vunpack.c.l.b16 %v386
  %v2039 = vunpack.c.h.b16 %v386
  %v2040 = vunpack.c.l.b16 %v387
  %v2041 = vunpack.c.h.b16 %v387
  %v2042 = vunpack.c.l.b16 %v388
  %v2043 = vunpack.c.h.b16 %v388
  %v2044 = vunpack.c.l.b16 %v389
  %v2045 = vunpack.c.h.b16 %v389
  %v2046 = vunpack.c.l.b16 %v390
  %v2047 = vunpack.c.h.b16 %v390
  %v2048 = vunpack.c.l.b16 %v391
  %v2049 = vunpack.c.h.b16 %v391
  %v2050 = vunpack.c.l.b16 %v392
  %v2051 = vunpack.c.h.b16 %v392
  %v2052 = vunpack.c.l.b16 %v393
  %v2053 = vunpack.c.h.b16 %v393
  %v2054 = vunpack.c.l.b16 %v394
  %v2055 = vunpack.c.h.b16 %v394
  %v2056 = vunpack.c.l.b16 %v395
  %v2057 = vunpack.c.h.b16 %v395
  %v2058 = vunpack.c.l.b16 %v396
  %v2059 = vunpack.c.h.b16 %v396
  %v2060 = vunpack.c.l.b16 %v397
  %v2061 = vunpack.c.h.b16 %v397
  %v2062 = vunpack.c.l.b16 %v398
  %v2063 = vunpack.c.h.b16 %v398
  %v2064 = vunpack.c.l.b16 %v399
  %v2065 = vunpack.c.h.b16 %v399
  %v2066 = vunpack.c.l.b16 %v400
  %v2067 = vunpack.c.h.b16 %v400
  %v2068 = vunpack.c.l.b16 %v401
  %v2069 = vunpack.c.h.b16 %v401
  %v2070 = vunpack.c.l.b16 %v402
  %v2071 = vunpack.c.h.b16 %v402
  %v2072 = vunpack.c.l.b16 %v403
  %v2073 = vunpack.c.h.b16 %v403
  %v2074 = vunpack.c.l.b16 %v404
  %v2075 = vunpack.c.h.b16 %v404
  %v2076 = vunpack.c.l.b16 %v405
  %v2077 = vunpack.c.h.b16 %v405
  %v2078 = vunpack.c.l.b16 %v406
  %v2079 = vunpack.c.h.b16 %v406
  %v2080 = vunpack.c.l.b16 %v407
  %v2081 = vunpack.c.h.b16 %v407
  %v2082 = vunpack.c.l.b16 %v408
  %v2083 = vunpack.c.h.b16 %v408
  %v2084 = vunpack.c.l.b16 %v409
  %v2085 = vunpack.c.h.b16 %v409
  %v2086 = vunpack.c.l.b16 %v410
  %v2087 = vunpack.c.h.b16 %v410
  %v2088 = vunpack.c.l.b16 %v411
  %v2089 = vunpack.c.h.b16 %v411
  %v2090 = vunpack.c.l.b16 %v412
  %v2091 = vunpack.c.h.b16 %v412
  %v2092 = vunpack.c.l.b16 %v413
  %v2093 = vunpack.c.h.b16 %v413
  %v2094 = vunpack.c.l.b16 %v414
  %v2095 = vunpack.c.h.b16 %v414
  %v2096 = vunpack.c.l.b16 %v415
  %v2097 = vunpack.c.h.b16 %v415
  %v2098 = vunpack.c.l.b16 %v416
  %v2099 = vunpack.c.h.b16 %v416
  %v2100 = vunpack.c.l.b16 %v417
  %v2101 = vunpack.c.h.b16 %v417
  %v2102 = vunpack.c.l.b16 %v418
  %v2103 = vunpack.c.h.b16 %v418
  %v2104 = vunpack.c.l.b16 %v419
  %v2105 = vunpack.c.h.b16 %v419
  %v2106 = vunpack.c.l.b16 %v420
  %v2107 = vunpack.c.h.b16 %v420
  %v2108 = vunpack.c.l.b16 %v421
  %v2109 = vunpack.c.h.b16 %v421
  %v2110 = vunpack.c.l.b16 %v422
  %v2111 = vunpack.c.h.b16 %v422
  %v2112 = vunpack.c.l.b16 %v423
  %v2113 = vunpack.c.h.b16 %v423
  %v2114 = vunpack.c.l.b16 %v424
  %v2115 = vunpack.c.h.b16 %v424
  %v2116 = vunpack.c.l.b16 %v425
  %v2117 = vunpack.c.h.b16 %v425
  %v2118 = vunpack.c.l.b16 %v426
  %v2119 = vunpack.c.h.b16 %v426
  %v2120 = vunpack.c.l.b16 %v427
  %v2121 = vunpack.c.h.b16 %v427
  %v2122 = vunpack.c.l.b16 %v428
  %v2123 = vunpack.c.h.b16 %v428
  %v2124 = vunpack.c.l.b16 %v429
  %v2125 = vunpack.c.h.b16 %v429
  %v2126 = vunpack.c.l.b16 %v430
  %v2127 = vunpack.c.h.b16 %v430
  %v2128 = vunpack.c.l.b16 %v431
  %v2129 = vunpack.c.h.b16 %v431
  %v2130 = vunpack.c.l.b16 %v432
  %v2131 = vunpack.c.h.b16 %v432
  %v2132 = vunpack.c.l.b16 %v433
  %v2133 = vunpack.c.h.b16 %v433
  %v2134 = vunpack.c.l.b16 %v434
  %v2135 = vunpack.c.h.b16 %v434
  %v2136 = vunpack.c.l.b16 %v435
  %v2137 = vunpack.c.h.b16 %v435
  %v2138 = vunpack.c.l.b16 %v436
  %v2139 = vunpack.c.h.b16 %v436
  %v2140 = vunpack.c.l.b16 %v437
  %v2141 = vunpack.c.h.b16 %v437
  %v2142 = vunpack.c.l.b16 %v438
  %v2143 = vunpack.c.h.b16 %v438
  %v2144 = vunpack.c.l.b16 %v439
  %v2145 = vunpack.c.h.b16 %v439
  %v2146 = vunpack.c.l.b16 %v440
  %v2147 = vunpack.c.h.b16 %v440
  %v2148 = vunpack.c.l.b16 %v441
  %v2149 = vunpack.c.h.b16 %v441
  %v2150 = vunpack.c.l.b16 %v442
  %v2151 = vunpack.c.h.b16 %v442
  %v2152 = vunpack.c.l.b16 %v443
  %v2153 = vunpack.c.h.b16 %v443
  %v2154 = vunpack.c.l.b16 %v444
  %v2155 = vunpack.c.h.b16 %v444
  %v2156 = vunpack.c.l.b16 %v445
  %v2157 = vunpack.c.h.b16 %v445
  %v2158 = vunpack.c.l.b16 %v446
  %v2159 = vunpack.c.h.b16 %v446
  %v2160 = vunpack.c.l.b16 %v447
  %v2161 = vunpack.c.h.b16 %v447
  %v2162 = vunpack.c.l.b16 %v448
  %v2163 = vunpack.c.h.b16 %v448
  %v2164 = vunpack.c.l.b16 %v449
  %v2165 = vunpack.c.h.b16 %v449
  %v2166 = vunpack.c.l.b16 %v450
  %v2167 = vunpack.c.h.b16 %v450
  %v2168 = vunpack.c.l.b16 %v451
  %v2169 = vunpack.c.h.b16 %v451
  %v2170 = vunpack.c.l.b16 %v452
  %v2171 = vunpack.c.h.b16 %v452
  %v2172 = vunpack.c.l.b16 %v453
  %v2173 = vunpack.c.h.b16 %v453
  %v2174 = vunpack.c.l.b16 %v454
  %v2175 = vunpack.c.h.b16 %v454
  %v2176 = vunpack.c.l.b16 %v455
  %v2177 = vunpack.c.h.b16 %v455
  %v2178 = vunpack.c.l.b16 %v456
  %v2179 = vunpack.c.h.b16 %v456
  %v2180 = vunpack.c.l.b16 %v457
  %v2181 = vunpack.c.h.b16 %v457
  %v2182 = vunpack.c.l.b16 %v458
  %v2183 = vunpack.c.h.b16 %v458
  %v2184 = vunpack.c.l.b16 %v459
  %v2185 = vunpack.c.h.b16 %v459
  %v2186 = vunpack.c.l.b16 %v460
  %v2187 = vunpack.c.h.b16 %v460
  %v2188 = vunpack.c.l.b16 %v461
  %v2189 = vunpack.c.h.b16 %v461
  %v2190 = vunpack.c.l.b16 %v462
  %v2191 = vunpack.c.h.b16 %v462
  %v2192 = vunpack.c.l.b16 %v463
  %v2193 = vunpack.c.h.b16 %v463
  %v2194 = vunpack.c.l.b16 %v464
  %v2195 = vunpack.c.h.b16 %v464
  %v2196 = vunpack.c.l.b16 %v465
  %v2197 = vunpack.c.h.b16 %v465
  %v2198 = vunpack.c.l.b16 %v466
  %v2199 = vunpack.c.h.b16 %v466
  %v2200 = vunpack.c.l.b16 %v467
  %v2201 = vunpack.c.h.b16 %v467
  %v2202 = vunpack.c.l.b16 %v468
  %v2203 = vunpack.c.h.b16 %v468
  %v2204 = vunpack.c.l.b16 %v469
  %v2205 = vunpack.c.h.b16 %v469
  %v2206 = vunpack.c.l.b16 %v470
  %v2207 = vunpack.c.h.b16 %v470
  %v2208 = vunpack.c.l.b16 %v471
  %v2209 = vunpack.c.h.b16 %v471
  %v2210 = vunpack.c.l.b16 %v472
  %v2211 = vunpack.c.h.b16 %v472
  %v2212 = vunpack.c.l.b16 %v473
  %v2213 = vunpack.c.h.b16 %v473
  %v2214 = vunpack.c.l.b16 %v474
  %v2215 = vunpack.c.h.b16 %v474
  %v2216 = vunpack.c.l.b16 %v475
  %v2217 = vunpack.c.h.b16 %v475
  %v2218 = vunpack.c.l.b16 %v476
  %v2219 = vunpack.c.h.b16 %v476
  %v2220 = vunpack.c.l.b16 %v477
  %v2221 = vunpack.c.h.b16 %v477
  %v2222 = vunpack.c.l.b16 %v478
  %v2223 = vunpack.c.h.b16 %v478
  %v2224 = vunpack.c.l.b16 %v479
  %v2225 = vunpack.c.h.b16 %v479
  %v2226 = vunpack.c.l.b16 %v480
  %v2227 = vunpack.c.h.b16 %v480
  %v2228 = vunpack.c.l.b16 %v481
  %v2229 = vunpack.c.h.b16 %v481
  %v2230 = vunpack.c.l.b16 %v482
  %v2231 = vunpack.c.h.b16 %v482
  %v2232 = vunpack.c.l.b16 %v483
  %v2233 = vunpack.c.h.b16 %v483
  %v2234 = vunpack.c.l.b16 %v484
  %v2235 = vunpack.c.h.b16 %v484
  %v2236 = vunpack.c.l.b16 %v485
  %v2237 = vunpack.c.h.b16 %v485
  %v2238 = vunpack.c.l.b16 %v486
  %v2239 = vunpack.c.h.b16 %v486
  %v2240 = vunpack.c.l.b16 %v487
  %v2241 = vunpack.c.h.b16 %v487
  %v2242 = vunpack.c.l.b16 %v488
  %v2243 = vunpack.c.h.b16 %v488
  %v2244 = vunpack.c.l.b16 %v489
  %v2245 = vunpack.c.h.b16 %v489
  %v2246 = vunpack.c.l.b16 %v490
  %v2247 = vunpack.c.h.b16 %v490
  %v2248 = vunpack.c.l.b16 %v491
  %v2249 = vunpack.c.h.b16 %v491
  %v2250 = vunpack.c.l.b16 %v492
  %v2251 = vunpack.c.h.b16 %v492
  %v2252 = vunpack.c.l.b16 %v493
  %v2253 = vunpack.c.h.b16 %v493
  %v2254 = vunpack.c.l.b16 %v494
  %v2255 = vunpack.c.h.b16 %v494
  %v2256 = vunpack.c.l.b16 %v495
  %v2257 = vunpack.c.h.b16 %v495
  %v2258 = vunpack.c.l.b16 %v496
  %v2259 = vunpack.c.h.b16 %v496
  %v2260 = vunpack.c.l.b16 %v497
  %v2261 = vunpack.c.h.b16 %v497
  %v2262 = vunpack.c.l.b16 %v498
  %v2263 = vunpack.c.h.b16 %v498
  %v2264 = vunpack.c.l.b16 %v499
  %v2265 = vunpack.c.h.b16 %v499
  %v2266 = vunpack.c.l.b16 %v500
  %v2267 = vunpack.c.h.b16 %v500
  %v2268 = vunpack.c.l.b16 %v501
  %v2269 = vunpack.c.h.b16 %v501
  %v2270 = vunpack.c.l.b16 %v502
  %v2271 = vunpack.c.h.b16 %v502
  %v2272 = vunpack.c.l.b16 %v503
  %v2273 = vunpack.c.h.b16 %v503
  %v2274 = vunpack.c.l.b16 %v504
  %v2275 = vunpack.c.h.b16 %v504
  %v2276 = vunpack.c.l.b16 %v505
  %v2277 = vunpack.c.h.b16 %v505
  %v2278 = vunpack.c.l.b16 %v506
  %v2279 = vunpack.c.h.b16 %v506
  %v2280 = vunpack.c.l.b16 %v507
  %v2281 = vunpack.c.h.b16 %v507
  %v2282 = vunpack.c.l.b16 %v508
  %v2283 = vunpack.c.h.b16 %v508
  %v2284 = vunpack.c.l.b16 %v509
  %v2285 = vunpack.c.h.b16 %v509
  %v2286 = vunpack.c.l.b16 %v510
  %v2287 = vunpack.c.h.b16 %v510
  %v2288 = vunpack.c.l.b16 %v511
  %v2289 = vunpack.c.h.b16 %v511
  %v2290 = vunpack.c.l.b16 %v512
  %v2291 = vunpack.c.h.b16 %v512
  %v2292 = vunpack.c.l.b16 %v513
  %v2293 = vunpack.c.h.b16 %v513
  %v2294 = vunpack.c.l.b16 %v514
  %v2295 = vunpack.c.h.b16 %v514
  %v2296 = vunpack.c.l.b16 %v515
  %v2297 = vunpack.c.h.b16 %v515
  %v2298 = vunpack.c.l.b16 %v516
  %v2299 = vunpack.c.h.b16 %v516
  %v2300 = vunpack.c.l.b16 %v517
  %v2301 = vunpack.c.h.b16 %v517
  %v2302 = vunpack.c.l.b16 %v518
  %v2303 = vunpack.c.h.b16 %v518
  %v2304 = vunpack.c.l.b16 %v519
  %v2305 = vunpack.c.h.b16 %v519
  %v2306 = vunpack.c.l.b16 %v520
  %v2307 = vunpack.c.h.b16 %v520
  %v2308 = vunpack.c.l.b16 %v521
  %v2309 = vunpack.c.h.b16 %v521
  %v2310 = vunpack.c.l.b16 %v522
  %v2311 = vunpack.c.h.b16 %v522
  %v2312 = vunpack.c.l.b16 %v523
  %v2313 = vunpack.c.h.b16 %v523
  %v2314 = vunpack.c.l.b16 %v524
  %v2315 = vunpack.c.h.b16 %v524
  %v2316 = vunpack.c.l.b16 %v525
  %v2317 = vunpack.c.h.b16 %v525
  %v2318 = vpack.c.b16 %v1310, %v1294
  %v2319 = vpack.c.b16 %v1311, %v1295
  %v2320 = vpack.c.b16 %v1312, %v1296
  %v2321 = vpack.c.b16 %v1313, %v1297
  %v2322 = vpack.c.b16 %v1314, %v1298
  %v2323 = vpack.c.b16 %v1315, %v1299
  %v2324 = vpack.c.b16 %v1316, %v1300
  %v2325 = vpack.c.b16 %v1317, %v1301
  %v2326 = vpack.c.b16 %v1318, %v1302
  %v2327 = vpack.c.b16 %v1319, %v1303
  %v2328 = vpack.c.b16 %v1320, %v1304
  %v2329 = vpack.c.b16 %v1321, %v1305
  %v2330 = vpack.c.b16 %v1322, %v1306
  %v2331 = vpack.c.b16 %v1323, %v1307
  %v2332 = vpack.c.b16 %v1324, %v1308
  %v2333 = vpack.c.b16 %v1325, %v1309
  %v2334 = vpack.c.b16 %v1342, %v1326
  %v2335 = vpack.c.b16 %v1343, %v1327
  %v2336 = vpack.c.b16 %v1344, %v1328
  %v2337 = vpack.c.b16 %v1345, %v1329
  %v2338 = vpack.c.b16 %v1346, %v1330
  %v2339 = vpack.c.b16 %v1347, %v1331
  %v2340 = vpack.c.b16 %v1348, %v1332
  %v2341 = vpack.c.b16 %v1349, %v1333
  %v2342 = vpack.c.b16 %v1350, %v1334
  %v2343 = vpack.c.b16 %v1351, %v1335
  %v2344 = vpack.c.b16 %v1352, %v1336
  %v2345 = vpack.c.b16 %v1353, %v1337
  %v2346 = vpack.c.b16 %v1354, %v1338
  %v2347 = vpack.c.b16 %v1355, %v1339
  %v2348 = vpack.c.b16 %v1356, %v1340
  %v2349 = vpack.c.b16 %v1357, %v1341
  %v2350 = vpack.c.b16 %v1374, %v1358
  %v2351 = vpack.c.b16 %v1375, %v1359
  %v2352 = vpack.c.b16 %v1376, %v1360
  %v2353 = vpack.c.b16 %v1377, %v1361
  %v2354 = vpack.c.b16 %v1378, %v1362
  %v2355 = vpack.c.b16 %v1379, %v1363
  %v2356 = vpack.c.b16 %v1380, %v1364
  %v2357 = vpack.c.b16 %v1381, %v1365
  %v2358 = vpack.c.b16 %v1382, %v1366
  %v2359 = vpack.c.b16 %v1383, %v1367
  %v2360 = vpack.c.b16 %v1384, %v1368
  %v2361 = vpack.c.b16 %v1385, %v1369
  %v2362 = vpack.c.b16 %v1386, %v1370
  %v2363 = vpack.c.b16 %v1387, %v1371
  %v2364 = vpack.c.b16 %v1388, %v1372
  %v2365 = vpack.c.b16 %v1389, %v1373
  %v2366 = vpack.c.b16 %v1406, %v1390
  %v2367 = vpack.c.b16 %v1407, %v1391
  %v2368 = vpack.c.b16 %v1408, %v1392
  %v2369 = vpack.c.b16 %v1409, %v1393
  %v2370 = vpack.c.b16 %v1410, %v1394
  %v2371 = vpack.c.b16 %v1411, %v1395
  %v2372 = vpack.c.b16 %v1412, %v1396
  %v2373 = vpack.c.b16 %v1413, %v1397
  %v2374 = vpack.c.b16 %v1414, %v1398
  %v2375 = vpack.c.b16 %v1415, %v1399
  %v2376 = vpack.c.b16 %v1416, %v1400
  %v2377 = vpack.c.b16 %v1417, %v1401
  %v2378 = vpack.c.b16 %v1418, %v1402
  %v2379 = vpack.c.b16 %v1419, %v1403
  %v2380 = vpack.c.b16 %v1420, %v1404
  %v2381 = vpack.c.b16 %v1421, %v1405
  %v2382 = vpack.c.b16 %v1438, %v1422
  %v2383 = vpack.c.b16 %v1439, %v1423
  %v2384 = vpack.c.b16 %v1440, %v1424
  %v2385 = vpack.c.b16 %v1441, %v1425
  %v2386 = vpack.c.b16 %v1442, %v1426
  %v2387 = vpack.c.b16 %v1443, %v1427
  %v2388 = vpack.c.b16 %v1444, %v1428
  %v2389 = vpack.c.b16 %v1445, %v1429
  %v2390 = vpack.c.b16 %v1446, %v1430
  %v2391 = vpack.c.b16 %v1447, %v1431
  %v2392 = vpack.c.b16 %v1448, %v1432
  %v2393 = vpack.c.b16 %v1449, %v1433
  %v2394 = vpack.c.b16 %v1450, %v1434
  %v2395 = vpack.c.b16 %v1451, %v1435
  %v2396 = vpack.c.b16 %v1452, %v1436
  %v2397 = vpack.c.b16 %v1453, %v1437
  %v2398 = vpack.c.b16 %v1470, %v1454
  %v2399 = vpack.c.b16 %v1471, %v1455
  %v2400 = vpack.c.b16 %v1472, %v1456
  %v2401 = vpack.c.b16 %v1473, %v1457
  %v2402 = vpack.c.b16 %v1474, %v1458
  %v2403 = vpack.c.b16 %v1475, %v1459
  %v2404 = vpack.c.b16 %v1476, %v1460
  %v2405 = vpack.c.b16 %v1477, %v1461
  %v2406 = vpack.c.b16 %v1478, %v1462
  %v2407 = vpack.c.b16 %v1479, %v1463
  %v2408 = vpack.c.b16 %v1480, %v1464
  %v2409 = vpack.c.b16 %v1481, %v1465
  %v2410 = vpack.c.b16 %v1482, %v1466
  %v2411 = vpack.c.b16 %v1483, %v1467
  %v2412 = vpack.c.b16 %v1484, %v1468
  %v2413 = vpack.c.b16 %v1485, %v1469
  %v2414 = vpack.c.b16 %v1502, %v1486
  %v2415 = vpack.c.b16 %v1503, %v1487
  %v2416 = vpack.c.b16 %v1504, %v1488
  %v2417 = vpack.c.b16 %v1505, %v1489
  %v2418 = vpack.c.b16 %v1506, %v1490
  %v2419 = vpack.c.b16 %v1507, %v1491
  %v2420 = vpack.c.b16 %v1508, %v1492
  %v2421 = vpack.c.b16 %v1509, %v1493
  %v2422 = vpack.c.b16 %v1510, %v1494
  %v2423 = vpack.c.b16 %v1511, %v1495
  %v2424 = vpack.c.b16 %v1512, %v1496
  %v2425 = vpack.c.b16 %v1513, %v1497
  %v2426 = vpack.c.b16 %v1514, %v1498
  %v2427 = vpack.c.b16 %v1515, %v1499
  %v2428 = vpack.c.b16 %v1516, %v1500
  %v2429 = vpack.c.b16 %v1517, %v1501
  %v2430 = vpack.c.b16 %v1534, %v1518
  %v2431 = vpack.c.b16 %v1535, %v1519
  %v2432 = vpack.c.b16 %v1536, %v1520
  %v2433 = vpack.c.b16 %v1537, %v1521
  %v2434 = vpack.c.b16 %v1538, %v1522
  %v2435 = vpack.c.b16 %v1539, %v1523
  %v2436 = vpack.c.b16 %v1540, %v1524
  %v2437 = vpack.c.b16 %v1541, %v1525
  %v2438 = vpack.c.b16 %v1542, %v1526
  %v2439 = vpack.c.b16 %v1543, %v1527
  %v2440 = vpack.c.b16 %v1544, %v1528
  %v2441 = vpack.c.b16 %v1545, %v1529
  %v2442 = vpack.c.b16 %v1546, %v1530
  %v2443 = vpack.c.b16 %v1547, %v1531
  %v2444 = vpack.c.b16 %v1548, %v1532
  %v2445 = vpack.c.b16 %v1549, %v1533
  %v2446 = vpack.c.b16 %v1566, %v1550
  %v2447 = vpack.c.b16 %v1567, %v1551
  %v2448 = vpack.c.b16 %v1568, %v1552
  %v2449 = vpack.c.b16 %v1569, %v1553
  %v2450 = vpack.c.b16 %v1570, %v1554
  %v2451 = vpack.c.b16 %v1571, %v1555
  %v2452 = vpack.c.b16 %v1572, %v1556
  %v2453 = vpack.c.b16 %v1573, %v1557
  %v2454 = vpack.c.b16 %v1574, %v1558
  %v2455 = vpack.c.b16 %v1575, %v1559
  %v2456 = vpack.c.b16 %v1576, %v1560
  %v2457 = vpack.c.b16 %v1577, %v1561
  %v2458 = vpack.c.b16 %v1578, %v1562
  %v2459 = vpack.c.b16 %v1579, %v1563
  %v2460 = vpack.c.b16 %v1580, %v1564
  %v2461 = vpack.c.b16 %v1581, %v1565
  %v2462 = vpack.c.b16 %v1598, %v1582
  %v2463 = vpack.c.b16 %v1599, %v1583
  %v2464 = vpack.c.b16 %v1600, %v1584
  %v2465 = vpack.c.b16 %v1601, %v1585
  %v2466 = vpack.c.b16 %v1602, %v1586
  %v2467 = vpack.c.b16 %v1603, %v1587
  %v2468 = vpack.c.b16 %v1604, %v1588
  %v2469 = vpack.c.b16 %v1605, %v1589
  %v2470 = vpack.c.b16 %v1606, %v1590
  %v2471 = vpack.c.b16 %v1607, %v1591
  %v2472 = vpack.c.b16 %v1608, %v1592
  %v2473 = vpack.c.b16 %v1609, %v1593
  %v2474 = vpack.c.b16 %v1610, %v1594
  %v2475 = vpack.c.b16 %v1611, %v1595
  %v2476 = vpack.c.b16 %v1612, %v1596
  %v2477 = vpack.c.b16 %v1613, %v1597
  %v2478 = vpack.c.b16 %v1630, %v1614
  %v2479 = vpack.c.b16 %v1631, %v1615
  %v2480 = vpack.c.b16 %v1632, %v1616
  %v2481 = vpack.c.b16 %v1633, %v1617
  %v2482 = vpack.c.b16 %v1634, %v1618
  %v2483 = vpack.c.b16 %v1635, %v1619
  %v2484 = vpack.c.b16 %v1636, %v1620
  %v2485 = vpack.c.b16 %v1637, %v1621
  %v2486 = vpack.c.b16 %v1638, %v1622
  %v2487 = vpack.c.b16 %v1639, %v1623
  %v2488 = vpack.c.b16 %v1640, %v1624
  %v2489 = vpack.c.b16 %v1641, %v1625
  %v2490 = vpack.c.b16 %v1642, %v1626
  %v2491 = vpack.c.b16 %v1643, %v1627
  %v2492 = vpack.c.b16 %v1644, %v1628
  %v2493 = vpack.c.b16 %v1645, %v1629
  %v2494 = vpack.c.b16 %v1662, %v1646
  %v2495 = vpack.c.b16 %v1663, %v1647
  %v2496 = vpack.c.b16 %v1664, %v1648
  %v2497 = vpack.c.b16 %v1665, %v1649
  %v2498 = vpack.c.b16 %v1666, %v1650
  %v2499 = vpack.c.b16 %v1667, %v1651
  %v2500 = vpack.c.b16 %v1668, %v1652
  %v2501 = vpack.c.b16 %v1669, %v1653
  %v2502 = vpack.c.b16 %v1670, %v1654
  %v2503 = vpack.c.b16 %v1671, %v1655
  %v2504 = vpack.c.b16 %v1672, %v1656
  %v2505 = vpack.c.b16 %v1673, %v1657
  %v2506 = vpack.c.b16 %v1674, %v1658
  %v2507 = vpack.c.b16 %v1675, %v1659
  %v2508 = vpack.c.b16 %v1676, %v1660
  %v2509 = vpack.c.b16 %v1677, %v1661
  %v2510 = vpack.c.b16 %v1694, %v1678
  %v2511 = vpack.c.b16 %v1695, %v1679
  %v2512 = vpack.c.b16 %v1696, %v1680
  %v2513 = vpack.c.b16 %v1697, %v1681
  %v2514 = vpack.c.b16 %v1698, %v1682
  %v2515 = vpack.c.b16 %v1699, %v1683
  %v2516 = vpack.c.b16 %v1700, %v1684
  %v2517 = vpack.c.b16 %v1701, %v1685
  %v2518 = vpack.c.b16 %v1702, %v1686
  %v2519 = vpack.c.b16 %v1703, %v1687
  %v2520 = vpack.c.b16 %v1704, %v1688
  %v2521 = vpack.c.b16 %v1705, %v1689
  %v2522 = vpack.c.b16 %v1706, %v1690
  %v2523 = vpack.c.b16 %v1707, %v1691
  %v2524 = vpack.c.b16 %v1708, %v1692
  %v2525 = vpack.c.b16 %v1709, %v1693
  %v2526 = vpack.c.b16 %v1726, %v1710
  %v2527 = vpack.c.b16 %v1727, %v1711
  %v2528 = vpack.c.b16 %v1728, %v1712
  %v2529 = vpack.c.b16 %v1729, %v1713
  %v2530 = vpack.c.b16 %v1730, %v1714
  %v2531 = vpack.c.b16 %v1731, %v1715
  %v2532 = vpack.c.b16 %v1732, %v1716
  %v2533 = vpack.c.b16 %v1733, %v1717
  %v2534 = vpack.c.b16 %v1734, %v1718
  %v2535 = vpack.c.b16 %v1735, %v1719
  %v2536 = vpack.c.b16 %v1736, %v1720
  %v2537 = vpack.c.b16 %v1737, %v1721
  %v2538 = vpack.c.b16 %v1738, %v1722
  %v2539 = vpack.c.b16 %v1739, %v1723
  %v2540 = vpack.c.b16 %v1740, %v1724
  %v2541 = vpack.c.b16 %v1741, %v1725
  %v2542 = vpack.c.b16 %v1758, %v1742
  %v2543 = vpack.c.b16 %v1759, %v1743
  %v2544 = vpack.c.b16 %v1760, %v1744
  %v2545 = vpack.c.b16 %v1761, %v1745
  %v2546 = vpack.c.b16 %v1762, %v1746
  %v2547 = vpack.c.b16 %v1763, %v1747
  %v2548 = vpack.c.b16 %v1764, %v1748
  %v2549 = vpack.c.b16 %v1765, %v1749
  %v2550 = vpack.c.b16 %v1766, %v1750
  %v2551 = vpack.c.b16 %v1767, %v1751
  %v2552 = vpack.c.b16 %v1768, %v1752
  %v2553 = vpack.c.b16 %v1769, %v1753
  %v2554 = vpack.c.b16 %v1770, %v1754
  %v2555 = vpack.c.b16 %v1771, %v1755
  %v2556 = vpack.c.b16 %v1772, %v1756
  %v2557 = vpack.c.b16 %v1773, %v1757
  %v2558 = vpack.c.b16 %v1790, %v1774
  %v2559 = vpack.c.b16 %v1791, %v1775
  %v2560 = vpack.c.b16 %v1792, %v1776
  %v2561 = vpack.c.b16 %v1793, %v1777
  %v2562 = vpack.c.b16 %v1794, %v1778
  %v2563 = vpack.c.b16 %v1795, %v1779
  %v2564 = vpack.c.b16 %v1796, %v1780
  %v2565 = vpack.c.b16 %v1797, %v1781
  %v2566 = vpack.c.b16 %v1798, %v1782
  %v2567 = vpack.c.b16 %v1799, %v1783
  %v2568 = vpack.c.b16 %v1800, %v1784
  %v2569 = vpack.c.b16 %v1801, %v1785
  %v2570 = vpack.c.b16 %v1802, %v1786
  %v2571 = vpack.c.b16 %v1803, %v1787
  %v2572 = vpack.c.b16 %v1804, %v1788
  %v2573 = vpack.c.b16 %v1805, %v1789
  %v2574 = vpack.c.b16 %v1822, %v1806
  %v2575 = vpack.c.b16 %v1823, %v1807
  %v2576 = vpack.c.b16 %v1824, %v1808
  %v2577 = vpack.c.b16 %v1825, %v1809
  %v2578 = vpack.c.b16 %v1826, %v1810
  %v2579 = vpack.c.b16 %v1827, %v1811
  %v2580 = vpack.c.b16 %v1828, %v1812
  %v2581 = vpack.c.b16 %v1829, %v1813
  %v2582 = vpack.c.b16 %v1830, %v1814
  %v2583 = vpack.c.b16 %v1831, %v1815
  %v2584 = vpack.c.b16 %v1832, %v1816
  %v2585 = vpack.c.b16 %v1833, %v1817
  %v2586 = vpack.c.b16 %v1834, %v1818
  %v2587 = vpack.c.b16 %v1835, %v1819
  %v2588 = vpack.c.b16 %v1836, %v1820
  %v2589 = vpack.c.b16 %v1837, %v1821
  %v2590 = vpack.c.b16 %v1854, %v1838
  %v2591 = vpack.c.b16 %v1855, %v1839
  %v2592 = vpack.c.b16 %v1856, %v1840
  %v2593 = vpack.c.b16 %v1857, %v1841
  %v2594 = vpack.c.b16 %v1858, %v1842
  %v2595 = vpack.c.b16 %v1859, %v1843
  %v2596 = vpack.c.b16 %v1860, %v1844
  %v2597 = vpack.c.b16 %v1861, %v1845
  %v2598 = vpack.c.b16 %v1862, %v1846
  %v2599 = vpack.c.b16 %v1863, %v1847
  %v2600 = vpack.c.b16 %v1864, %v1848
  %v2601 = vpack.c.b16 %v1865, %v1849
  %v2602 = vpack.c.b16 %v1866, %v1850
  %v2603 = vpack.c.b16 %v1867, %v1851
  %v2604 = vpack.c.b16 %v1868, %v1852
  %v2605 = vpack.c.b16 %v1869, %v1853
  %v2606 = vpack.c.b16 %v1886, %v1870
  %v2607 = vpack.c.b16 %v1887, %v1871
  %v2608 = vpack.c.b16 %v1888, %v1872
  %v2609 = vpack.c.b16 %v1889, %v1873
  %v2610 = vpack.c.b16 %v1890, %v1874
  %v2611 = vpack.c.b16 %v1891, %v1875
  %v2612 = vpack.c.b16 %v1892, %v1876
  %v2613 = vpack.c.b16 %v1893, %v1877
  %v2614 = vpack.c.b16 %v1894, %v1878
  %v2615 = vpack.c.b16 %v1895, %v1879
  %v2616 = vpack.c.b16 %v1896, %v1880
  %v2617 = vpack.c.b16 %v1897, %v1881
  %v2618 = vpack.c.b16 %v1898, %v1882
  %v2619 = vpack.c.b16 %v1899, %v1883
  %v2620 = vpack.c.b16 %v1900, %v1884
  %v2621 = vpack.c.b16 %v1901, %v1885
  %v2622 = vpack.c.b16 %v1918, %v1902
  %v2623 = vpack.c.b16 %v1919, %v1903
  %v2624 = vpack.c.b16 %v1920, %v1904
  %v2625 = vpack.c.b16 %v1921, %v1905
  %v2626 = vpack.c.b16 %v1922, %v1906
  %v2627 = vpack.c.b16 %v1923, %v1907
  %v2628 = vpack.c.b16 %v1924, %v1908
  %v2629 = vpack.c.b16 %v1925, %v1909
  %v2630 = vpack.c.b16 %v1926, %v1910
  %v2631 = vpack.c.b16 %v1927, %v1911
  %v2632 = vpack.c.b16 %v1928, %v1912
  %v2633 = vpack.c.b16 %v1929, %v1913
  %v2634 = vpack.c.b16 %v1930, %v1914
  %v2635 = vpack.c.b16 %v1931, %v1915
  %v2636 = vpack.c.b16 %v1932, %v1916
  %v2637 = vpack.c.b16 %v1933, %v1917
  %v2638 = vpack.c.b16 %v1950, %v1934
  %v2639 = vpack.c.b16 %v1951, %v1935
  %v2640 = vpack.c.b16 %v1952, %v1936
  %v2641 = vpack.c.b16 %v1953, %v1937
  %v2642 = vpack.c.b16 %v1954, %v1938
  %v2643 = vpack.c.b16 %v1955, %v1939
  %v2644 = vpack.c.b16 %v1956, %v1940
  %v2645 = vpack.c.b16 %v1957, %v1941
  %v2646 = vpack.c.b16 %v1958, %v1942
  %v2647 = vpack.c.b16 %v1959, %v1943
  %v2648 = vpack.c.b16 %v1960, %v1944
  %v2649 = vpack.c.b16 %v1961, %v1945
  %v2650 = vpack.c.b16 %v1962, %v1946
  %v2651 = vpack.c.b16 %v1963, %v1947
  %v2652 = vpack.c.b16 %v1964, %v1948
  %v2653 = vpack.c.b16 %v1965, %v1949
  %v2654 = vpack.c.b16 %v1982, %v1966
  %v2655 = vpack.c.b16 %v1983, %v1967
  %v2656 = vpack.c.b16 %v1984, %v1968
  %v2657 = vpack.c.b16 %v1985, %v1969
  %v2658 = vpack.c.b16 %v1986, %v1970
  %v2659 = vpack.c.b16 %v1987, %v1971
  %v2660 = vpack.c.b16 %v1988, %v1972
  %v2661 = vpack.c.b16 %v1989, %v1973
  %v2662 = vpack.c.b16 %v1990, %v1974
  %v2663 = vpack.c.b16 %v1991, %v1975
  %v2664 = vpack.c.b16 %v1992, %v1976
  %v2665 = vpack.c.b16 %v1993, %v1977
  %v2666 = vpack.c.b16 %v1994, %v1978
  %v2667 = vpack.c.b16 %v1995, %v1979
  %v2668 = vpack.c.b16 %v1996, %v1980
  %v2669 = vpack.c.b16 %v1997, %v1981
  %v2670 = vpack.c.b16 %v2014, %v1998
  %v2671 = vpack.c.b16 %v2015, %v1999
  %v2672 = vpack.c.b16 %v2016, %v2000
  %v2673 = vpack.c.b16 %v2017, %v2001
  %v2674 = vpack.c.b16 %v2018, %v2002
  %v2675 = vpack.c.b16 %v2019, %v2003
  %v2676 = vpack.c.b16 %v2020, %v2004
  %v2677 = vpack.c.b16 %v2021, %v2005
  %v2678 = vpack.c.b16 %v2022, %v2006
  %v2679 = vpack.c.b16 %v2023, %v2007
  %v2680 = vpack.c.b16 %v2024, %v2008
  %v2681 = vpack.c.b16 %v2025, %v2009
  %v2682 = vpack.c.b16 %v2026, %v2010
  %v2683 = vpack.c.b16 %v2027, %v2011
  %v2684 = vpack.c.b16 %v2028, %v2012
  %v2685 = vpack.c.b16 %v2029, %v2013
  %v2686 = vpack.c.b16 %v2046, %v2030
  %v2687 = vpack.c.b16 %v2047, %v2031
  %v2688 = vpack.c.b16 %v2048, %v2032
  %v2689 = vpack.c.b16 %v2049, %v2033
  %v2690 = vpack.c.b16 %v2050, %v2034
  %v2691 = vpack.c.b16 %v2051, %v2035
  %v2692 = vpack.c.b16 %v2052, %v2036
  %v2693 = vpack.c.b16 %v2053, %v2037
  %v2694 = vpack.c.b16 %v2054, %v2038
  %v2695 = vpack.c.b16 %v2055, %v2039
  %v2696 = vpack.c.b16 %v2056, %v2040
  %v2697 = vpack.c.b16 %v2057, %v2041
  %v2698 = vpack.c.b16 %v2058, %v2042
  %v2699 = vpack.c.b16 %v2059, %v2043
  %v2700 = vpack.c.b16 %v2060, %v2044
  %v2701 = vpack.c.b16 %v2061, %v2045
  %v2702 = vpack.c.b16 %v2078, %v2062
  %v2703 = vpack.c.b16 %v2079, %v2063
  %v2704 = vpack.c.b16 %v2080, %v2064
  %v2705 = vpack.c.b16 %v2081, %v2065
  %v2706 = vpack.c.b16 %v2082, %v2066
  %v2707 = vpack.c.b16 %v2083, %v2067
  %v2708 = vpack.c.b16 %v2084, %v2068
  %v2709 = vpack.c.b16 %v2085, %v2069
  %v2710 = vpack.c.b16 %v2086, %v2070
  %v2711 = vpack.c.b16 %v2087, %v2071
  %v2712 = vpack.c.b16 %v2088, %v2072
  %v2713 = vpack.c.b16 %v2089, %v2073
  %v2714 = vpack.c.b16 %v2090, %v2074
  %v2715 = vpack.c.b16 %v2091, %v2075
  %v2716 = vpack.c.b16 %v2092, %v2076
  %v2717 = vpack.c.b16 %v2093, %v2077
  %v2718 = vpack.c.b16 %v2110, %v2094
  %v2719 = vpack.c.b16 %v2111, %v2095
  %v2720 = vpack.c.b16 %v2112, %v2096
  %v2721 = vpack.c.b16 %v2113, %v2097
  %v2722 = vpack.c.b16 %v2114, %v2098
  %v2723 = vpack.c.b16 %v2115, %v2099
  %v2724 = vpack.c.b16 %v2116, %v2100
  %v2725 = vpack.c.b16 %v2117, %v2101
  %v2726 = vpack.c.b16 %v2118, %v2102
  %v2727 = vpack.c.b16 %v2119, %v2103
  %v2728 = vpack.c.b16 %v2120, %v2104
  %v2729 = vpack.c.b16 %v2121, %v2105
  %v2730 = vpack.c.b16 %v2122, %v2106
  %v2731 = vpack.c.b16 %v2123, %v2107
  %v2732 = vpack.c.b16 %v2124, %v2108
  %v2733 = vpack.c.b16 %v2125, %v2109
  %v2734 = vpack.c.b16 %v2142, %v2126
  %v2735 = vpack.c.b16 %v2143, %v2127
  %v2736 = vpack.c.b16 %v2144, %v2128
  %v2737 = vpack.c.b16 %v2145, %v2129
  %v2738 = vpack.c.b16 %v2146, %v2130
  %v2739 = vpack.c.b16 %v2147, %v2131
  %v2740 = vpack.c.b16 %v2148, %v2132
  %v2741 = vpack.c.b16 %v2149, %v2133
  %v2742 = vpack.c.b16 %v2150, %v2134
  %v2743 = vpack.c.b16 %v2151, %v2135
  %v2744 = vpack.c.b16 %v2152, %v2136
  %v2745 = vpack.c.b16 %v2153, %v2137
  %v2746 = vpack.c.b16 %v2154, %v2138
  %v2747 = vpack.c.b16 %v2155, %v2139
  %v2748 = vpack.c.b16 %v2156, %v2140
  %v2749 = vpack.c.b16 %v2157, %v2141
  %v2750 = vpack.c.b16 %v2174, %v2158
  %v2751 = vpack.c.b16 %v2175, %v2159
  %v2752 = vpack.c.b16 %v2176, %v2160
  %v2753 = vpack.c.b16 %v2177, %v2161
  %v2754 = vpack.c.b16 %v2178, %v2162
  %v2755 = vpack.c.b16 %v2179, %v2163
  %v2756 = vpack.c.b16 %v2180, %v2164
  %v2757 = vpack.c.b16 %v2181, %v2165
  %v2758 = vpack.c.b16 %v2182, %v2166
  %v2759 = vpack.c.b16 %v2183, %v2167
  %v2760 = vpack.c.b16 %v2184, %v2168
  %v2761 = vpack.c.b16 %v2185, %v2169
  %v2762 = vpack.c.b16 %v2186, %v2170
  %v2763 = vpack.c.b16 %v2187, %v2171
  %v2764 = vpack.c.b16 %v2188, %v2172
  %v2765 = vpack.c.b16 %v2189, %v2173
  %v2766 = vpack.c.b16 %v2206, %v2190
  %v2767 = vpack.c.b16 %v2207, %v2191
  %v2768 = vpack.c.b16 %v2208, %v2192
  %v2769 = vpack.c.b16 %v2209, %v2193
  %v2770 = vpack.c.b16 %v2210, %v2194
  %v2771 = vpack.c.b16 %v2211, %v2195
  %v2772 = vpack.c.b16 %v2212, %v2196
  %v2773 = vpack.c.b16 %v2213, %v2197
  %v2774 = vpack.c.b16 %v2214, %v2198
  %v2775 = vpack.c.b16 %v2215, %v2199
  %v2776 = vpack.c.b16 %v2216, %v2200
  %v2777 = vpack.c.b16 %v2217, %v2201
  %v2778 = vpack.c.b16 %v2218, %v2202
  %v2779 = vpack.c.b16 %v2219, %v2203
  %v2780 = vpack.c.b16 %v2220, %v2204
  %v2781 = vpack.c.b16 %v2221, %v2205
  %v2782 = vpack.c.b16 %v2238, %v2222
  %v2783 = vpack.c.b16 %v2239, %v2223
  %v2784 = vpack.c.b16 %v2240, %v2224
  %v2785 = vpack.c.b16 %v2241, %v2225
  %v2786 = vpack.c.b16 %v2242, %v2226
  %v2787 = vpack.c.b16 %v2243, %v2227
  %v2788 = vpack.c.b16 %v2244, %v2228
  %v2789 = vpack.c.b16 %v2245, %v2229
  %v2790 = vpack.c.b16 %v2246, %v2230
  %v2791 = vpack.c.b16 %v2247, %v2231
  %v2792 = vpack.c.b16 %v2248, %v2232
  %v2793 = vpack.c.b16 %v2249, %v2233
  %v2794 = vpack.c.b16 %v2250, %v2234
  %v2795 = vpack.c.b16 %v2251, %v2235
  %v2796 = vpack.c.b16 %v2252, %v2236
  %v2797 = vpack.c.b16 %v2253, %v2237
  %v2798 = vpack.c.b16 %v2270, %v2254
  %v2799 = vpack.c.b16 %v2271, %v2255
  %v2800 = vpack.c.b16 %v2272, %v2256
  %v2801 = vpack.c.b16 %v2273, %v2257
  %v2802 = vpack.c.b16 %v2274, %v2258
  %v2803 = vpack.c.b16 %v2275, %v2259
  %v2804 = vpack.c.b16 %v2276, %v2260
  %v2805 = vpack.c.b16 %v2277, %v2261
  %v2806 = vpack.c.b16 %v2278, %v2262
  %v2807 = vpack.c.b16 %v2279, %v2263
  %v2808 = vpack.c.b16 %v2280, %v2264
  %v2809 = vpack.c.b16 %v2281, %v2265
  %v2810 = vpack.c.b16 %v2282, %v2266
  %v2811 = vpack.c.b16 %v2283, %v2267
  %v2812 = vpack.c.b16 %v2284, %v2268
  %v2813 = vpack.c.b16 %v2285, %v2269
  %v2814 = vpack.c.b16 %v2302, %v2286
  %v2815 = vpack.c.b16 %v2303, %v2287
  %v2816 = vpack.c.b16 %v2304, %v2288
  %v2817 = vpack.c.b16 %v2305, %v2289
  %v2818 = vpack.c.b16 %v2306, %v2290
  %v2819 = vpack.c.b16 %v2307, %v2291
  %v2820 = vpack.c.b16 %v2308, %v2292
  %v2821 = vpack.c.b16 %v2309, %v2293
  %v2822 = vpack.c.b16 %v2310, %v2294
  %v2823 = vpack.c.b16 %v2311, %v2295
  %v2824 = vpack.c.b16 %v2312, %v2296
  %v2825 = vpack.c.b16 %v2313, %v2297
  %v2826 = vpack.c.b16 %v2314, %v2298
  %v2827 = vpack.c.b16 %v2315, %v2299
  %v2828 = vpack.c.b16 %v2316, %v2300
  %v2829 = vpack.c.b16 %v2317, %v2301
  %v3598 = vunpack.c.l.b16 %v526
  %v3599 = vunpack.c.l.b16 %v527
  %v3600 = vunpack.c.l.b16 %v528
  %v3601 = vunpack.c.l.b16 %v529
  %v3602 = vunpack.c.l.b16 %v530
  %v3603 = vunpack.c.l.b16 %v531
  %v3604 = vunpack.c.l.b16 %v532
  %v3605 = vunpack.c.l.b16 %v533
  %v3606 = vunpack.c.l.b16 %v534
  %v3607 = vunpack.c.l.b16 %v535
  %v3608 = vunpack.c.l.b16 %v536
  %v3609 = vunpack.c.l.b16 %v537
  %v3610 = vunpack.c.l.b16 %v538
  %v3611 = vunpack.c.l.b16 %v539
  %v3612 = vunpack.c.l.b16 %v540
  %v3613 = vunpack.c.l.b16 %v541
  %v3614 = vunpack.c.l.b16 %v542
  %v3615 = vunpack.c.l.b16 %v543
  %v3616 = vunpack.c.l.b16 %v544
  %v3617 = vunpack.c.l.b16 %v545
  %v3618 = vunpack.c.l.b16 %v546
  %v3619 = vunpack.c.l.b16 %v547
  %v3620 = vunpack.c.l.b16 %v548
  %v3621 = vunpack.c.l.b16 %v549
  %v3622 = vunpack.c.l.b16 %v550
  %v3623 = vunpack.c.l.b16 %v551
  %v3624 = vunpack.c.l.b16 %v552
  %v3625 = vunpack.c.l.b16 %v553
  %v3626 = vunpack.c.l.b16 %v554
  %v3627 = vunpack.c.l.b16 %v555
  %v3628 = vunpack.c.l.b16 %v556
  %v3629 = vunpack.c.l.b16 %v557
  %v3630 = vunpack.c.l.b16 %v558
  %v3631 = vunpack.c.l.b16 %v559
  %v3632 = vunpack.c.l.b16 %v560
  %v3633 = vunpack.c.l.b16 %v561
  %v3634 = vunpack.c.l.b16 %v562
  %v3635 = vunpack.c.l.b16 %v563
  %v3636 = vunpack.c.l.b16 %v564
  %v3637 = vunpack.c.l.b16 %v565
  %v3638 = vunpack.c.l.b16 %v566
  %v3639 = vunpack.c.l.b16 %v567
  %v3640 = vunpack.c.l.b16 %v568
  %v3641 = vunpack.c.l.b16 %v569
  %v3642 = vunpack.c.l.b16 %v570
  %v3643 = vunpack.c.l.b16 %v571
  %v3644 = vunpack.c.l.b16 %v572
  %v3645 = vunpack.c.l.b16 %v573
  %v3646 = vunpack.c.l.b16 %v574
  %v3647 = vunpack.c.l.b16 %v575
  %v3648 = vunpack.c.l.b16 %v576
  %v3649 = vunpack.c.l.b16 %v577
  %v3650 = vunpack.c.l.b16 %v578
  %v3651 = vunpack.c.l.b16 %v579
  %v3652 = vunpack.c.l.b16 %v580
  %v3653 = vunpack.c.l.b16 %v581
  %v3654 = vunpack.c.l.b16 %v582
  %v3655 = vunpack.c.l.b16 %v583
  %v3656 = vunpack.c.l.b16 %v584
  %v3657 = vunpack.c.l.b16 %v585
  %v3658 = vunpack.c.l.b16 %v586
  %v3659 = vunpack.c.l.b16 %v587
  %v3660 = vunpack.c.l.b16 %v588
  %v3661 = vunpack.c.l.b16 %v589
  %v3662 = vunpack.c.l.b16 %v590
  %v3663 = vunpack.c.l.b16 %v591
  %v3664 = vunpack.c.l.b16 %v592
  %v3665 = vunpack.c.l.b16 %v593
  %v3666 = vunpack.c.l.b16 %v594
  %v3667 = vunpack.c.l.b16 %v595
  %v3668 = vunpack.c.l.b16 %v596
  %v3669 = vunpack.c.l.b16 %v597
  %v3670 = vunpack.c.l.b16 %v598
  %v3671 = vunpack.c.l.b16 %v599
  %v3672 = vunpack.c.l.b16 %v600
  %v3673 = vunpack.c.l.b16 %v601
  %v3674 = vunpack.c.l.b16 %v602
  %v3675 = vunpack.c.l.b16 %v603
  %v3676 = vunpack.c.l.b16 %v604
  %v3677 = vunpack.c.l.b16 %v605
  %v3678 = vunpack.c.l.b16 %v606
  %v3679 = vunpack.c.l.b16 %v607
  %v3680 = vunpack.c.l.b16 %v608
  %v3681 = vunpack.c.l.b16 %v609
  %v3682 = vunpack.c.l.b16 %v610
  %v3683 = vunpack.c.l.b16 %v611
  %v3684 = vunpack.c.l.b16 %v612
  %v3685 = vunpack.c.l.b16 %v613
  %v3686 = vunpack.c.l.b16 %v614
  %v3687 = vunpack.c.l.b16 %v615
  %v3688 = vunpack.c.l.b16 %v616
  %v3689 = vunpack.c.l.b16 %v617
  %v3690 = vunpack.c.l.b16 %v618
  %v3691 = vunpack.c.l.b16 %v619
  %v3692 = vunpack.c.l.b16 %v620
  %v3693 = vunpack.c.l.b16 %v621
  %v3694 = vunpack.c.l.b16 %v622
  %v3695 = vunpack.c.l.b16 %v623
  %v3696 = vunpack.c.l.b16 %v624
  %v3697 = vunpack.c.l.b16 %v625
  %v3698 = vunpack.c.l.b16 %v626
  %v3699 = vunpack.c.l.b16 %v627
  %v3700 = vunpack.c.l.b16 %v628
  %v3701 = vunpack.c.l.b16 %v629
  %v3702 = vunpack.c.l.b16 %v630
  %v3703 = vunpack.c.l.b16 %v631
  %v3704 = vunpack.c.l.b16 %v632
  %v3705 = vunpack.c.l.b16 %v633
  %v3706 = vunpack.c.l.b16 %v634
  %v3707 = vunpack.c.l.b16 %v635
  %v3708 = vunpack.c.l.b16 %v636
  %v3709 = vunpack.c.l.b16 %v637
  %v3710 = vunpack.c.l.b16 %v638
  %v3711 = vunpack.c.l.b16 %v639
  %v3712 = vunpack.c.l.b16 %v640
  %v3713 = vunpack.c.l.b16 %v641
  %v3714 = vunpack.c.l.b16 %v642
  %v3715 = vunpack.c.l.b16 %v643
  %v3716 = vunpack.c.l.b16 %v644
  %v3717 = vunpack.c.l.b16 %v645
  %v3718 = vunpack.c.l.b16 %v646
  %v3719 = vunpack.c.l.b16 %v647
  %v3720 = vunpack.c.l.b16 %v648
  %v3721 = vunpack.c.l.b16 %v649
  %v3722 = vunpack.c.l.b16 %v650
  %v3723 = vunpack.c.l.b16 %v651
  %v3724 = vunpack.c.l.b16 %v652
  %v3725 = vunpack.c.l.b16 %v653
  %v3726 = vunpack.c.l.b16 %v654
  %v3727 = vunpack.c.l.b16 %v655
  %v3728 = vunpack.c.l.b16 %v656
  %v3729 = vunpack.c.l.b16 %v657
  %v3730 = vunpack.c.l.b16 %v658
  %v3731 = vunpack.c.l.b16 %v659
  %v3732 = vunpack.c.l.b16 %v660
  %v3733 = vunpack.c.l.b16 %v661
  %v3734 = vunpack.c.l.b16 %v662
  %v3735 = vunpack.c.l.b16 %v663
  %v3736 = vunpack.c.l.b16 %v664
  %v3737 = vunpack.c.l.b16 %v665
  %v3738 = vunpack.c.l.b16 %v666
  %v3739 = vunpack.c.l.b16 %v667
  %v3740 = vunpack.c.l.b16 %v668
  %v3741 = vunpack.c.l.b16 %v669
  %v3742 = vunpack.c.l.b16 %v670
  %v3743 = vunpack.c.l.b16 %v671
  %v3744 = vunpack.c.l.b16 %v672
  %v3745 = vunpack.c.l.b16 %v673
  %v3746 = vunpack.c.l.b16 %v674
  %v3747 = vunpack.c.l.b16 %v675
  %v3748 = vunpack.c.l.b16 %v676
  %v3749 = vunpack.c.l.b16 %v677
  %v3750 = vunpack.c.l.b16 %v678
  %v3751 = vunpack.c.l.b16 %v679
  %v3752 = vunpack.c.l.b16 %v680
  %v3753 = vunpack.c.l.b16 %v681
  %v3754 = vunpack.c.l.b16 %v682
  %v3755 = vunpack.c.l.b16 %v683
  %v3756 = vunpack.c.l.b16 %v684
  %v3757 = vunpack.c.l.b16 %v685
  %v3758 = vunpack.c.l.b16 %v686
  %v3759 = vunpack.c.l.b16 %v687
  %v3760 = vunpack.c.l.b16 %v688
  %v3761 = vunpack.c.l.b16 %v689
  %v3762 = vunpack.c.l.b16 %v690
  %v3763 = vunpack.c.l.b16 %v691
  %v3764 = vunpack.c.l.b16 %v692
  %v3765 = vunpack.c.l.b16 %v693
  %v3766 = vunpack.c.l.b16 %v694
  %v3767 = vunpack.c.l.b16 %v695
  %v3768 = vunpack.c.l.b16 %v696
  %v3769 = vunpack.c.l.b16 %v697
  %v3770 = vunpack.c.l.b16 %v698
  %v3771 = vunpack.c.l.b16 %v699
  %v3772 = vunpack.c.l.b16 %v700
  %v3773 = vunpack.c.l.b16 %v701
  %v3774 = vunpack.c.l.b16 %v702
  %v3775 = vunpack.c.l.b16 %v703
  %v3776 = vunpack.c.l.b16 %v704
  %v3777 = vunpack.c.l.b16 %v705
  %v3778 = vunpack.c.l.b16 %v706
  %v3779 = vunpack.c.l.b16 %v707
  %v3780 = vunpack.c.l.b16 %v708
  %v3781 = vunpack.c.l.b16 %v709
  %v3782 = vunpack.c.l.b16 %v710
  %v3783 = vunpack.c.l.b16 %v711
  %v3784 = vunpack.c.l.b16 %v712
  %v3785 = vunpack.c.l.b16 %v713
  %v3786 = vunpack.c.l.b16 %v714
  %v3787 = vunpack.c.l.b16 %v715
  %v3788 = vunpack.c.l.b16 %v716
  %v3789 = vunpack.c.l.b16 %v717
  %v3790 = vunpack.c.l.b16 %v718
  %v3791 = vunpack.c.l.b16 %v719
  %v3792 = vunpack.c.l.b16 %v720
  %v3793 = vunpack.c.l.b16 %v721
  %v3794 = vunpack.c.l.b16 %v722
  %v3795 = vunpack.c.l.b16 %v723
  %v3796 = vunpack.c.l.b16 %v724
  %v3797 = vunpack.c.l.b16 %v725
  %v3798 = vunpack.c.l.b16 %v726
  %v3799 = vunpack.c.l.b16 %v727
  %v3800 = vunpack.c.l.b16 %v728
  %v3801 = vunpack.c.l.b16 %v729
  %v3802 = vunpack.c.l.b16 %v730
  %v3803 = vunpack.c.l.b16 %v731
  %v3804 = vunpack.c.l.b16 %v732
  %v3805 = vunpack.c.l.b16 %v733
  %v3806 = vunpack.c.l.b16 %v734
  %v3807 = vunpack.c.l.b16 %v735
  %v3808 = vunpack.c.l.b16 %v736
  %v3809 = vunpack.c.l.b16 %v737
  %v3810 = vunpack.c.l.b16 %v738
  %v3811 = vunpack.c.l.b16 %v739
  %v3812 = vunpack.c.l.b16 %v740
  %v3813 = vunpack.c.l.b16 %v741
  %v3814 = vunpack.c.l.b16 %v742
  %v3815 = vunpack.c.l.b16 %v743
  %v3816 = vunpack.c.l.b16 %v744
  %v3817 = vunpack.c.l.b16 %v745
  %v3818 = vunpack.c.l.b16 %v746
  %v3819 = vunpack.c.l.b16 %v747
  %v3820 = vunpack.c.l.b16 %v748
  %v3821 = vunpack.c.l.b16 %v749
  %v3822 = vunpack.c.l.b16 %v750
  %v3823 = vunpack.c.l.b16 %v751
  %v3824 = vunpack.c.l.b16 %v752
  %v3825 = vunpack.c.l.b16 %v753
  %v3826 = vunpack.c.l.b16 %v754
  %v3827 = vunpack.c.l.b16 %v755
  %v3828 = vunpack.c.l.b16 %v756
  %v3829 = vunpack.c.l.b16 %v757
  %v3830 = vunpack.c.l.b16 %v758
  %v3831 = vunpack.c.l.b16 %v759
  %v3832 = vunpack.c.l.b16 %v760
  %v3833 = vunpack.c.l.b16 %v761
  %v3834 = vunpack.c.l.b16 %v762
  %v3835 = vunpack.c.l.b16 %v763
  %v3836 = vunpack.c.l.b16 %v764
  %v3837 = vunpack.c.l.b16 %v765
  %v3838 = vunpack.c.l.b16 %v766
  %v3839 = vunpack.c.l.b16 %v767
  %v3840 = vunpack.c.l.b16 %v768
  %v3841 = vunpack.c.l.b16 %v769
  %v3842 = vunpack.c.l.b16 %v770
  %v3843 = vunpack.c.l.b16 %v771
  %v3844 = vunpack.c.l.b16 %v772
  %v3845 = vunpack.c.l.b16 %v773
  %v3846 = vunpack.c.l.b16 %v774
  %v3847 = vunpack.c.l.b16 %v775
  %v3848 = vunpack.c.l.b16 %v776
  %v3849 = vunpack.c.l.b16 %v777
  %v3850 = vunpack.c.l.b16 %v778
  %v3851 = vunpack.c.l.b16 %v779
  %v3852 = vunpack.c.l.b16 %v780
  %v3853 = vunpack.c.l.b16 %v781
  %v3854 = vpack.c.b16 %v3599, %v3598
  %v3855 = vpack.c.b16 %v3601, %v3600
  %v3856 = vpack.c.b16 %v3603, %v3602
  %v3857 = vpack.c.b16 %v3605, %v3604
  %v3858 = vpack.c.b16 %v3607, %v3606
  %v3859 = vpack.c.b16 %v3609, %v3608
  %v3860 = vpack.c.b16 %v3611, %v3610
  %v3861 = vpack.c.b16 %v3613, %v3612
  %v3862 = vpack.c.b16 %v3615, %v3614
  %v3863 = vpack.c.b16 %v3617, %v3616
  %v3864 = vpack.c.b16 %v3619, %v3618
  %v3865 = vpack.c.b16 %v3621, %v3620
  %v3866 = vpack.c.b16 %v3623, %v3622
  %v3867 = vpack.c.b16 %v3625, %v3624
  %v3868 = vpack.c.b16 %v3627, %v3626
  %v3869 = vpack.c.b16 %v3629, %v3628
  %v3870 = vpack.c.b16 %v3631, %v3630
  %v3871 = vpack.c.b16 %v3633, %v3632
  %v3872 = vpack.c.b16 %v3635, %v3634
  %v3873 = vpack.c.b16 %v3637, %v3636
  %v3874 = vpack.c.b16 %v3639, %v3638
  %v3875 = vpack.c.b16 %v3641, %v3640
  %v3876 = vpack.c.b16 %v3643, %v3642
  %v3877 = vpack.c.b16 %v3645, %v3644
  %v3878 = vpack.c.b16 %v3647, %v3646
  %v3879 = vpack.c.b16 %v3649, %v3648
  %v3880 = vpack.c.b16 %v3651, %v3650
  %v3881 = vpack.c.b16 %v3653, %v3652
  %v3882 = vpack.c.b16 %v3655, %v3654
  %v3883 = vpack.c.b16 %v3657, %v3656
  %v3884 = vpack.c.b16 %v3659, %v3658
  %v3885 = vpack.c.b16 %v3661, %v3660
  %v3886 = vpack.c.b16 %v3663, %v3662
  %v3887 = vpack.c.b16 %v3665, %v3664
  %v3888 = vpack.c.b16 %v3667, %v3666
  %v3889 = vpack.c.b16 %v3669, %v3668
  %v3890 = vpack.c.b16 %v3671, %v3670
  %v3891 = vpack.c.b16 %v3673, %v3672
  %v3892 = vpack.c.b16 %v3675, %v3674
  %v3893 = vpack.c.b16 %v3677, %v3676
  %v3894 = vpack.c.b16 %v3679, %v3678
  %v3895 = vpack.c.b16 %v3681, %v3680
  %v3896 = vpack.c.b16 %v3683, %v3682
  %v3897 = vpack.c.b16 %v3685, %v3684
  %v3898 = vpack.c.b16 %v3687, %v3686
  %v3899 = vpack.c.b16 %v3689, %v3688
  %v3900 = vpack.c.b16 %v3691, %v3690
  %v3901 = vpack.c.b16 %v3693, %v3692
  %v3902 = vpack.c.b16 %v3695, %v3694
  %v3903 = vpack.c.b16 %v3697, %v3696
  %v3904 = vpack.c.b16 %v3699, %v3698
  %v3905 = vpack.c.b16 %v3701, %v3700
  %v3906 = vpack.c.b16 %v3703, %v3702
  %v3907 = vpack.c.b16 %v3705, %v3704
  %v3908 = vpack.c.b16 %v3707, %v3706
  %v3909 = vpack.c.b16 %v3709, %v3708
  %v3910 = vpack.c.b16 %v3711, %v3710
  %v3911 = vpack.c.b16 %v3713, %v3712
  %v3912 = vpack.c.b16 %v3715, %v3714
  %v3913 = vpack.c.b16 %v3717, %v3716
  %v3914 = vpack.c.b16 %v3719, %v3718
  %v3915 = vpack.c.b16 %v3721, %v3720
  %v3916 = vpack.c.b16 %v3723, %v3722
  %v3917 = vpack.c.b16 %v3725, %v3724
  %v3918 = vpack.c.b16 %v3727, %v3726
  %v3919 = vpack.c.b16 %v3729, %v3728
  %v3920 = vpack.c.b16 %v3731, %v3730
  %v3921 = vpack.c.b16 %v3733, %v3732
  %v3922 = vpack.c.b16 %v3735, %v3734
  %v3923 = vpack.c.b16 %v3737, %v3736
  %v3924 = vpack.c.b16 %v3739, %v3738
  %v3925 = vpack.c.b16 %v3741, %v3740
  %v3926 = vpack.c.b16 %v3743, %v3742
  %v3927 = vpack.c.b16 %v3745, %v3744
  %v3928 = vpack.c.b16 %v3747, %v3746
  %v3929 = vpack.c.b16 %v3749, %v3748
  %v3930 = vpack.c.b16 %v3751, %v3750
  %v3931 = vpack.c.b16 %v3753, %v3752
  %v3932 = vpack.c.b16 %v3755, %v3754
  %v3933 = vpack.c.b16 %v3757, %v3756
  %v3934 = vpack.c.b16 %v3759, %v3758
  %v3935 = vpack.c.b16 %v3761, %v3760
  %v3936 = vpack.c.b16 %v3763, %v3762
  %v3937 = vpack.c.b16 %v3765, %v3764
  %v3938 = vpack.c.b16 %v3767, %v3766
  %v3939 = vpack.c.b16 %v3769, %v3768
  %v3940 = vpack.c.b16 %v3771, %v3770
  %v3941 = vpack.c.b16 %v3773, %v3772
  %v3942 = vpack.c.b16 %v3775, %v3774
  %v3943 = vpack.c.b16 %v3777, %v3776
  %v3944 = vpack.c.b16 %v3779, %v3778
  %v3945 = vpack.c.b16 %v3781, %v3780
  %v3946 = vpack.c.b16 %v3783, %v3782
  %v3947 = vpack.c.b16 %v3785, %v3784
  %v3948 = vpack.c.b16 %v3787, %v3786
  %v3949 = vpack.c.b16 %v3789, %v3788
  %v3950 = vpack.c.b16 %v3791, %v3790
  %v3951 = vpack.c.b16 %v3793, %v3792
  %v3952 = vpack.c.b16 %v3795, %v3794
  %v3953 = vpack.c.b16 %v3797, %v3796
  %v3954 = vpack.c.b16 %v3799, %v3798
  %v3955 = vpack.c.b16 %v3801, %v3800
  %v3956 = vpack.c.b16 %v3803, %v3802
  %v3957 = vpack.c.b16 %v3805, %v3804
  %v3958 = vpack.c.b16 %v3807, %v3806
  %v3959 = vpack.c.b16 %v3809, %v3808
  %v3960 = vpack.c.b16 %v3811, %v3810
  %v3961 = vpack.c.b16 %v3813, %v3812
  %v3962 = vpack.c.b16 %v3815, %v3814
  %v3963 = vpack.c.b16 %v3817, %v3816
  %v3964 = vpack.c.b16 %v3819, %v3818
  %v3965 = vpack.c.b16 %v3821, %v3820
  %v3966 = vpack.c.b16 %v3823, %v3822
  %v3967 = vpack.c.b16 %v3825, %v3824
  %v3968 = vpack.c.b16 %v3827, %v3826
  %v3969 = vpack.c.b16 %v3829, %v3828
  %v3970 = vpack.c.b16 %v3831, %v3830
  %v3971 = vpack.c.b16 %v3833, %v3832
  %v3972 = vpack.c.b16 %v3835, %v3834
  %v3973 = vpack.c.b16 %v3837, %v3836
  %v3974 = vpack.c.b16 %v3839, %v3838
  %v3975 = vpack.c.b16 %v3841, %v3840
  %v3976 = vpack.c.b16 %v3843, %v3842
  %v3977 = vpack.c.b16 %v3845, %v3844
  %v3978 = vpack.c.b16 %v3847, %v3846
  %v3979 = vpack.c.b16 %v3849, %v3848
  %v3980 = vpack.c.b16 %v3851, %v3850
  %v3981 = vpack.c.b16 %v3853, %v3852
  %4110 = vmatprep.subr.bf16.mxu0 0
  %4111 = vmatpush1.bf16.msra.mxu0 %v3861
  %4112 = vmatprep.subr.bf16.mxu0 0
  %4113 = vmatpush1.bf16.msra.mxu0 %v3860
  %4114 = vmatprep.subr.bf16.mxu0 0
  %4115 = vmatpush1.bf16.msra.mxu0 %v3859
  %4116 = vmatprep.subr.bf16.mxu0 0
  %4117 = vmatpush1.bf16.msra.mxu0 %v3858
  %4118 = vmatprep.subr.bf16.mxu0 0
  %4119 = vmatpush1.bf16.msra.mxu0 %v3857
  %4120 = vmatprep.subr.bf16.mxu0 0
  %4121 = vmatpush1.bf16.msra.mxu0 %v3856
  %4122 = vmatprep.subr.bf16.mxu0 0
  %4123 = vmatpush1.bf16.msra.mxu0 %v3855
  %4124 = vmatprep.subr.bf16.mxu0 0
  %4125 = vmatpush1.bf16.msra.mxu0 %v3854
  %4126 = vmatprep.subr.bf16.mxu0 0
  %4127 = vmatpush2.bf16.msra.mxu0 %v3869
  %4128 = vmatprep.subr.bf16.mxu0 0
  %4129 = vmatpush2.bf16.msra.mxu0 %v3868
  %4130 = vmatprep.subr.bf16.mxu0 0
  %4131 = vmatpush2.bf16.msra.mxu0 %v3867
  %4132 = vmatprep.subr.bf16.mxu0 0
  %4133 = vmatpush2.bf16.msra.mxu0 %v3866
  %4134 = vmatprep.subr.bf16.mxu0 0
  %4135 = vmatpush2.bf16.msra.mxu0 %v3865
  %4136 = vmatprep.subr.bf16.mxu0 0
  %4137 = vmatpush2.bf16.msra.mxu0 %v3864
  %4138 = vmatprep.subr.bf16.mxu0 0
  %4139 = vmatpush2.bf16.msra.mxu0 %v3863
  %4140 = vmatprep.subr.bf16.mxu0 0
  %4141 = vmatpush2.bf16.msra.mxu0 %v3862
  %4142 = vmatprep.mubr.bf16.mxu0 %v2319
  %4143 = vmatmul.mubr.bf16.gmra.mxu0 %v2318
  %v4144 = vpop.f32.mrf.mxu0
  %v4145 = vadd.f32 0.0, %v4144
  %v4146 = vpop.f32.mrf.mxu0
  %v4147 = vpop.f32.mrf.mxu0
  %v4148 = vadd.f32 0.0, %v4147
  %v4149 = vpop.f32.mrf.mxu0
  %4150 = vmatprep.mubr.bf16.mxu0 %v2335
  %4151 = vmatmul.mubr.bf16.gmra.mxu0 %v2334
  %v4152 = vpop.f32.mrf.mxu0
  %v4153 = vadd.f32 0.0, %v4152
  %v4154 = vpop.f32.mrf.mxu0
  %v4155 = vpop.f32.mrf.mxu0
  %v4156 = vadd.f32 0.0, %v4155
  %v4157 = vpop.f32.mrf.mxu0
  %4158 = vmatprep.mubr.bf16.mxu0 %v2351
  %4159 = vmatmul.mubr.bf16.gmra.mxu0 %v2350
  %v4160 = vpop.f32.mrf.mxu0
  %v4161 = vadd.f32 0.0, %v4160
  %v4162 = vpop.f32.mrf.mxu0
  %v4163 = vpop.f32.mrf.mxu0
  %v4164 = vadd.f32 0.0, %v4163
  %v4165 = vpop.f32.mrf.mxu0
  %4166 = vmatprep.mubr.bf16.mxu0 %v2367
  %4167 = vmatmul.mubr.bf16.gmra.mxu0 %v2366
  %v4168 = vpop.f32.mrf.mxu0
  %v4169 = vadd.f32 0.0, %v4168
  %v4170 = vpop.f32.mrf.mxu0
  %v4171 = vpop.f32.mrf.mxu0
  %v4172 = vadd.f32 0.0, %v4171
  %v4173 = vpop.f32.mrf.mxu0
  %4174 = vmatprep.mubr.bf16.mxu0 %v2383
  %4175 = vmatmul.mubr.bf16.gmra.mxu0 %v2382
  %v4176 = vpop.f32.mrf.mxu0
  %v4177 = vadd.f32 0.0, %v4176
  %v4178 = vpop.f32.mrf.mxu0
  %v4179 = vpop.f32.mrf.mxu0
  %v4180 = vadd.f32 0.0, %v4179
  %v4181 = vpop.f32.mrf.mxu0
  %4182 = vmatprep.mubr.bf16.mxu0 %v2399
  %4183 = vmatmul.mubr.bf16.gmra.mxu0 %v2398
  %v4184 = vpop.f32.mrf.mxu0
  %v4185 = vadd.f32 0.0, %v4184
  %v4186 = vpop.f32.mrf.mxu0
  %v4187 = vpop.f32.mrf.mxu0
  %v4188 = vadd.f32 0.0, %v4187
  %v4189 = vpop.f32.mrf.mxu0
  %4190 = vmatprep.mubr.bf16.mxu0 %v2415
  %4191 = vmatmul.mubr.bf16.gmra.mxu0 %v2414
  %v4192 = vpop.f32.mrf.mxu0
  %v4193 = vadd.f32 0.0, %v4192
  %v4194 = vpop.f32.mrf.mxu0
  %v4195 = vpop.f32.mrf.mxu0
  %v4196 = vadd.f32 0.0, %v4195
  %v4197 = vpop.f32.mrf.mxu0
  %4198 = vmatprep.mubr.bf16.mxu0 %v2431
  %4199 = vmatmul.mubr.bf16.gmra.mxu0 %v2430
  %v4200 = vpop.f32.mrf.mxu0
  %v4201 = vadd.f32 0.0, %v4200
  %v4202 = vpop.f32.mrf.mxu0
  %v4203 = vpop.f32.mrf.mxu0
  %v4204 = vadd.f32 0.0, %v4203
  %v4205 = vpop.f32.mrf.mxu0
  %4206 = vmatprep.mubr.bf16.mxu0 %v2447
  %4207 = vmatmul.mubr.bf16.gmra.mxu0 %v2446
  %v4208 = vpop.f32.mrf.mxu0
  %v4209 = vadd.f32 0.0, %v4208
  %v4210 = vpop.f32.mrf.mxu0
  %v4211 = vpop.f32.mrf.mxu0
  %v4212 = vadd.f32 0.0, %v4211
  %v4213 = vpop.f32.mrf.mxu0
  %4214 = vmatprep.mubr.bf16.mxu0 %v2463
  %4215 = vmatmul.mubr.bf16.gmra.mxu0 %v2462
  %v4216 = vpop.f32.mrf.mxu0
  %v4217 = vadd.f32 0.0, %v4216
  %v4218 = vpop.f32.mrf.mxu0
  %v4219 = vpop.f32.mrf.mxu0
  %v4220 = vadd.f32 0.0, %v4219
  %v4221 = vpop.f32.mrf.mxu0
  %4222 = vmatprep.mubr.bf16.mxu0 %v2479
  %4223 = vmatmul.mubr.bf16.gmra.mxu0 %v2478
  %v4224 = vpop.f32.mrf.mxu0
  %v4225 = vadd.f32 0.0, %v4224
  %v4226 = vpop.f32.mrf.mxu0
  %v4227 = vpop.f32.mrf.mxu0
  %v4228 = vadd.f32 0.0, %v4227
  %v4229 = vpop.f32.mrf.mxu0
  %4230 = vmatprep.mubr.bf16.mxu0 %v2495
  %4231 = vmatmul.mubr.bf16.gmra.mxu0 %v2494
  %v4232 = vpop.f32.mrf.mxu0
  %v4233 = vadd.f32 0.0, %v4232
  %v4234 = vpop.f32.mrf.mxu0
  %v4235 = vpop.f32.mrf.mxu0
  %v4236 = vadd.f32 0.0, %v4235
  %v4237 = vpop.f32.mrf.mxu0
  %4238 = vmatprep.mubr.bf16.mxu0 %v2511
  %4239 = vmatmul.mubr.bf16.gmra.mxu0 %v2510
  %v4240 = vpop.f32.mrf.mxu0
  %v4241 = vadd.f32 0.0, %v4240
  %v4242 = vpop.f32.mrf.mxu0
  %v4243 = vpop.f32.mrf.mxu0
  %v4244 = vadd.f32 0.0, %v4243
  %v4245 = vpop.f32.mrf.mxu0
  %4246 = vmatprep.mubr.bf16.mxu0 %v2527
  %4247 = vmatmul.mubr.bf16.gmra.mxu0 %v2526
  %v4248 = vpop.f32.mrf.mxu0
  %v4249 = vadd.f32 0.0, %v4248
  %v4250 = vpop.f32.mrf.mxu0
  %v4251 = vpop.f32.mrf.mxu0
  %v4252 = vadd.f32 0.0, %v4251
  %v4253 = vpop.f32.mrf.mxu0
  %4254 = vmatprep.mubr.bf16.mxu0 %v2543
  %4255 = vmatmul.mubr.bf16.gmra.mxu0 %v2542
  %v4256 = vpop.f32.mrf.mxu0
  %v4257 = vadd.f32 0.0, %v4256
  %v4258 = vpop.f32.mrf.mxu0
  %v4259 = vpop.f32.mrf.mxu0
  %v4260 = vadd.f32 0.0, %v4259
  %v4261 = vpop.f32.mrf.mxu0
  %4262 = vmatprep.mubr.bf16.mxu0 %v2559
  %4263 = vmatmul.mubr.bf16.gmra.mxu0 %v2558
  %v4264 = vpop.f32.mrf.mxu0
  %v4265 = vadd.f32 0.0, %v4264
  %v4266 = vpop.f32.mrf.mxu0
  %v4267 = vpop.f32.mrf.mxu0
  %v4268 = vadd.f32 0.0, %v4267
  %v4269 = vpop.f32.mrf.mxu0
  %4270 = vmatprep.mubr.bf16.mxu0 %v2575
  %4271 = vmatmul.mubr.bf16.gmra.mxu0 %v2574
  %v4272 = vpop.f32.mrf.mxu0
  %v4273 = vadd.f32 0.0, %v4272
  %v4274 = vpop.f32.mrf.mxu0
  %v4275 = vpop.f32.mrf.mxu0
  %v4276 = vadd.f32 0.0, %v4275
  %v4277 = vpop.f32.mrf.mxu0
  %4278 = vmatprep.mubr.bf16.mxu0 %v2591
  %4279 = vmatmul.mubr.bf16.gmra.mxu0 %v2590
  %v4280 = vpop.f32.mrf.mxu0
  %v4281 = vadd.f32 0.0, %v4280
  %v4282 = vpop.f32.mrf.mxu0
  %v4283 = vpop.f32.mrf.mxu0
  %v4284 = vadd.f32 0.0, %v4283
  %v4285 = vpop.f32.mrf.mxu0
  %4286 = vmatprep.mubr.bf16.mxu0 %v2607
  %4287 = vmatmul.mubr.bf16.gmra.mxu0 %v2606
  %v4288 = vpop.f32.mrf.mxu0
  %v4289 = vadd.f32 0.0, %v4288
  %v4290 = vpop.f32.mrf.mxu0
  %v4291 = vpop.f32.mrf.mxu0
  %v4292 = vadd.f32 0.0, %v4291
  %v4293 = vpop.f32.mrf.mxu0
  %4294 = vmatprep.mubr.bf16.mxu0 %v2623
  %4295 = vmatmul.mubr.bf16.gmra.mxu0 %v2622
  %v4296 = vpop.f32.mrf.mxu0
  %v4297 = vadd.f32 0.0, %v4296
  %v4298 = vpop.f32.mrf.mxu0
  %v4299 = vpop.f32.mrf.mxu0
  %v4300 = vadd.f32 0.0, %v4299
  %v4301 = vpop.f32.mrf.mxu0
  %4302 = vmatprep.mubr.bf16.mxu0 %v2639
  %4303 = vmatmul.mubr.bf16.gmra.mxu0 %v2638
  %v4304 = vpop.f32.mrf.mxu0
  %v4305 = vadd.f32 0.0, %v4304
  %v4306 = vpop.f32.mrf.mxu0
  %v4307 = vpop.f32.mrf.mxu0
  %v4308 = vadd.f32 0.0, %v4307
  %v4309 = vpop.f32.mrf.mxu0
  %4310 = vmatprep.mubr.bf16.mxu0 %v2655
  %4311 = vmatmul.mubr.bf16.gmra.mxu0 %v2654
  %v4312 = vpop.f32.mrf.mxu0
  %v4313 = vadd.f32 0.0, %v4312
  %v4314 = vpop.f32.mrf.mxu0
  %v4315 = vpop.f32.mrf.mxu0
  %v4316 = vadd.f32 0.0, %v4315
  %v4317 = vpop.f32.mrf.mxu0
  %4318 = vmatprep.mubr.bf16.mxu0 %v2671
  %4319 = vmatmul.mubr.bf16.gmra.mxu0 %v2670
  %v4320 = vpop.f32.mrf.mxu0
  %v4321 = vadd.f32 0.0, %v4320
  %v4322 = vpop.f32.mrf.mxu0
  %v4323 = vpop.f32.mrf.mxu0
  %v4324 = vadd.f32 0.0, %v4323
  %v4325 = vpop.f32.mrf.mxu0
  %4326 = vmatprep.mubr.bf16.mxu0 %v2687
  %4327 = vmatmul.mubr.bf16.gmra.mxu0 %v2686
  %v4328 = vpop.f32.mrf.mxu0
  %v4329 = vadd.f32 0.0, %v4328
  %v4330 = vpop.f32.mrf.mxu0
  %v4331 = vpop.f32.mrf.mxu0
  %v4332 = vadd.f32 0.0, %v4331
  %v4333 = vpop.f32.mrf.mxu0
  %4334 = vmatprep.mubr.bf16.mxu0 %v2703
  %4335 = vmatmul.mubr.bf16.gmra.mxu0 %v2702
  %v4336 = vpop.f32.mrf.mxu0
  %v4337 = vadd.f32 0.0, %v4336
  %v4338 = vpop.f32.mrf.mxu0
  %v4339 = vpop.f32.mrf.mxu0
  %v4340 = vadd.f32 0.0, %v4339
  %v4341 = vpop.f32.mrf.mxu0
  %4342 = vmatprep.mubr.bf16.mxu0 %v2719
  %4343 = vmatmul.mubr.bf16.gmra.mxu0 %v2718
  %v4344 = vpop.f32.mrf.mxu0
  %v4345 = vadd.f32 0.0, %v4344
  %v4346 = vpop.f32.mrf.mxu0
  %v4347 = vpop.f32.mrf.mxu0
  %v4348 = vadd.f32 0.0, %v4347
  %v4349 = vpop.f32.mrf.mxu0
  %4350 = vmatprep.mubr.bf16.mxu0 %v2735
  %4351 = vmatmul.mubr.bf16.gmra.mxu0 %v2734
  %v4352 = vpop.f32.mrf.mxu0
  %v4353 = vadd.f32 0.0, %v4352
  %v4354 = vpop.f32.mrf.mxu0
  %v4355 = vpop.f32.mrf.mxu0
  %v4356 = vadd.f32 0.0, %v4355
  %v4357 = vpop.f32.mrf.mxu0
  %4358 = vmatprep.mubr.bf16.mxu0 %v2751
  %4359 = vmatmul.mubr.bf16.gmra.mxu0 %v2750
  %v4360 = vpop.f32.mrf.mxu0
  %v4361 = vadd.f32 0.0, %v4360
  %v4362 = vpop.f32.mrf.mxu0
  %v4363 = vpop.f32.mrf.mxu0
  %v4364 = vadd.f32 0.0, %v4363
  %v4365 = vpop.f32.mrf.mxu0
  %4366 = vmatprep.mubr.bf16.mxu0 %v2767
  %4367 = vmatmul.mubr.bf16.gmra.mxu0 %v2766
  %v4368 = vpop.f32.mrf.mxu0
  %v4369 = vadd.f32 0.0, %v4368
  %v4370 = vpop.f32.mrf.mxu0
  %v4371 = vpop.f32.mrf.mxu0
  %v4372 = vadd.f32 0.0, %v4371
  %v4373 = vpop.f32.mrf.mxu0
  %4374 = vmatprep.mubr.bf16.mxu0 %v2783
  %4375 = vmatmul.mubr.bf16.gmra.mxu0 %v2782
  %v4376 = vpop.f32.mrf.mxu0
  %v4377 = vadd.f32 0.0, %v4376
  %v4378 = vpop.f32.mrf.mxu0
  %v4379 = vpop.f32.mrf.mxu0
  %v4380 = vadd.f32 0.0, %v4379
  %v4381 = vpop.f32.mrf.mxu0
  %4382 = vmatprep.mubr.bf16.mxu0 %v2799
  %4383 = vmatmul.mubr.bf16.gmra.mxu0 %v2798
  %v4384 = vpop.f32.mrf.mxu0
  %v4385 = vadd.f32 0.0, %v4384
  %v4386 = vpop.f32.mrf.mxu0
  %v4387 = vpop.f32.mrf.mxu0
  %v4388 = vadd.f32 0.0, %v4387
  %v4389 = vpop.f32.mrf.mxu0
  %4390 = vmatprep.mubr.bf16.mxu0 %v2815
  %4391 = vmatmul.mubr.bf16.gmra.mxu0 %v2814
  %v4392 = vpop.f32.mrf.mxu0
  %v4393 = vadd.f32 0.0, %v4392
  %v4394 = vpop.f32.mrf.mxu0
  %v4395 = vpop.f32.mrf.mxu0
  %v4396 = vadd.f32 0.0, %v4395
  %v4397 = vpop.f32.mrf.mxu0
  %4398 = vdwg.mxu0
  %4399 = vmatprep.subr.bf16.mxu0 0
  %4400 = vmatpush1.bf16.msra.mxu0 %v3877
  %4401 = vmatprep.subr.bf16.mxu0 0
  %4402 = vmatpush1.bf16.msra.mxu0 %v3876
  %4403 = vmatprep.subr.bf16.mxu0 0
  %4404 = vmatpush1.bf16.msra.mxu0 %v3875
  %4405 = vmatprep.subr.bf16.mxu0 0
  %4406 = vmatpush1.bf16.msra.mxu0 %v3874
  %4407 = vmatprep.subr.bf16.mxu0 0
  %4408 = vmatpush1.bf16.msra.mxu0 %v3873
  %4409 = vmatprep.subr.bf16.mxu0 0
  %4410 = vmatpush1.bf16.msra.mxu0 %v3872
  %4411 = vmatprep.subr.bf16.mxu0 0
  %4412 = vmatpush1.bf16.msra.mxu0 %v3871
  %4413 = vmatprep.subr.bf16.mxu0 0
  %4414 = vmatpush1.bf16.msra.mxu0 %v3870
  %4415 = vmatprep.subr.bf16.mxu0 0
  %4416 = vmatpush2.bf16.msra.mxu0 %v3885
  %4417 = vmatprep.subr.bf16.mxu0 0
  %4418 = vmatpush2.bf16.msra.mxu0 %v3884
  %4419 = vmatprep.subr.bf16.mxu0 0
  %4420 = vmatpush2.bf16.msra.mxu0 %v3883
  %4421 = vmatprep.subr.bf16.mxu0 0
  %4422 = vmatpush2.bf16.msra.mxu0 %v3882
  %4423 = vmatprep.subr.bf16.mxu0 0
  %4424 = vmatpush2.bf16.msra.mxu0 %v3881
  %4425 = vmatprep.subr.bf16.mxu0 0
  %4426 = vmatpush2.bf16.msra.mxu0 %v3880
  %4427 = vmatprep.subr.bf16.mxu0 0
  %4428 = vmatpush2.bf16.msra.mxu0 %v3879
  %4429 = vmatprep.subr.bf16.mxu0 0
  %4430 = vmatpush2.bf16.msra.mxu0 %v3878
  %4431 = vmatprep.mubr.bf16.mxu0 %v2321
  %4432 = vmatmul.mubr.bf16.gmra.mxu0 %v2320
  %v4433 = vpop.f32.mrf.mxu0
  %v4434 = vadd.f32 %v4145, %v4433
  %v4435 = vpop.f32.mrf.mxu0
  %v4436 = vpop.f32.mrf.mxu0
  %v4437 = vadd.f32 %v4148, %v4436
  %v4438 = vpop.f32.mrf.mxu0
  %4439 = vmatprep.mubr.bf16.mxu0 %v2337
  %4440 = vmatmul.mubr.bf16.gmra.mxu0 %v2336
  %v4441 = vpop.f32.mrf.mxu0
  %v4442 = vadd.f32 %v4153, %v4441
  %v4443 = vpop.f32.mrf.mxu0
  %v4444 = vpop.f32.mrf.mxu0
  %v4445 = vadd.f32 %v4156, %v4444
  %v4446 = vpop.f32.mrf.mxu0
  %4447 = vmatprep.mubr.bf16.mxu0 %v2353
  %4448 = vmatmul.mubr.bf16.gmra.mxu0 %v2352
  %v4449 = vpop.f32.mrf.mxu0
  %v4450 = vadd.f32 %v4161, %v4449
  %v4451 = vpop.f32.mrf.mxu0
  %v4452 = vpop.f32.mrf.mxu0
  %v4453 = vadd.f32 %v4164, %v4452
  %v4454 = vpop.f32.mrf.mxu0
  %4455 = vmatprep.mubr.bf16.mxu0 %v2369
  %4456 = vmatmul.mubr.bf16.gmra.mxu0 %v2368
  %v4457 = vpop.f32.mrf.mxu0
  %v4458 = vadd.f32 %v4169, %v4457
  %v4459 = vpop.f32.mrf.mxu0
  %v4460 = vpop.f32.mrf.mxu0
  %v4461 = vadd.f32 %v4172, %v4460
  %v4462 = vpop.f32.mrf.mxu0
  %4463 = vmatprep.mubr.bf16.mxu0 %v2385
  %4464 = vmatmul.mubr.bf16.gmra.mxu0 %v2384
  %v4465 = vpop.f32.mrf.mxu0
  %v4466 = vadd.f32 %v4177, %v4465
  %v4467 = vpop.f32.mrf.mxu0
  %v4468 = vpop.f32.mrf.mxu0
  %v4469 = vadd.f32 %v4180, %v4468
  %v4470 = vpop.f32.mrf.mxu0
  %4471 = vmatprep.mubr.bf16.mxu0 %v2401
  %4472 = vmatmul.mubr.bf16.gmra.mxu0 %v2400
  %v4473 = vpop.f32.mrf.mxu0
  %v4474 = vadd.f32 %v4185, %v4473
  %v4475 = vpop.f32.mrf.mxu0
  %v4476 = vpop.f32.mrf.mxu0
  %v4477 = vadd.f32 %v4188, %v4476
  %v4478 = vpop.f32.mrf.mxu0
  %4479 = vmatprep.mubr.bf16.mxu0 %v2417
  %4480 = vmatmul.mubr.bf16.gmra.mxu0 %v2416
  %v4481 = vpop.f32.mrf.mxu0
  %v4482 = vadd.f32 %v4193, %v4481
  %v4483 = vpop.f32.mrf.mxu0
  %v4484 = vpop.f32.mrf.mxu0
  %v4485 = vadd.f32 %v4196, %v4484
  %v4486 = vpop.f32.mrf.mxu0
  %4487 = vmatprep.mubr.bf16.mxu0 %v2433
  %4488 = vmatmul.mubr.bf16.gmra.mxu0 %v2432
  %v4489 = vpop.f32.mrf.mxu0
  %v4490 = vadd.f32 %v4201, %v4489
  %v4491 = vpop.f32.mrf.mxu0
  %v4492 = vpop.f32.mrf.mxu0
  %v4493 = vadd.f32 %v4204, %v4492
  %v4494 = vpop.f32.mrf.mxu0
  %4495 = vmatprep.mubr.bf16.mxu0 %v2449
  %4496 = vmatmul.mubr.bf16.gmra.mxu0 %v2448
  %v4497 = vpop.f32.mrf.mxu0
  %v4498 = vadd.f32 %v4209, %v4497
  %v4499 = vpop.f32.mrf.mxu0
  %v4500 = vpop.f32.mrf.mxu0
  %v4501 = vadd.f32 %v4212, %v4500
  %v4502 = vpop.f32.mrf.mxu0
  %4503 = vmatprep.mubr.bf16.mxu0 %v2465
  %4504 = vmatmul.mubr.bf16.gmra.mxu0 %v2464
  %v4505 = vpop.f32.mrf.mxu0
  %v4506 = vadd.f32 %v4217, %v4505
  %v4507 = vpop.f32.mrf.mxu0
  %v4508 = vpop.f32.mrf.mxu0
  %v4509 = vadd.f32 %v4220, %v4508
  %v4510 = vpop.f32.mrf.mxu0
  %4511 = vmatprep.mubr.bf16.mxu0 %v2481
  %4512 = vmatmul.mubr.bf16.gmra.mxu0 %v2480
  %v4513 = vpop.f32.mrf.mxu0
  %v4514 = vadd.f32 %v4225, %v4513
  %v4515 = vpop.f32.mrf.mxu0
  %v4516 = vpop.f32.mrf.mxu0
  %v4517 = vadd.f32 %v4228, %v4516
  %v4518 = vpop.f32.mrf.mxu0
  %4519 = vmatprep.mubr.bf16.mxu0 %v2497
  %4520 = vmatmul.mubr.bf16.gmra.mxu0 %v2496
  %v4521 = vpop.f32.mrf.mxu0
  %v4522 = vadd.f32 %v4233, %v4521
  %v4523 = vpop.f32.mrf.mxu0
  %v4524 = vpop.f32.mrf.mxu0
  %v4525 = vadd.f32 %v4236, %v4524
  %v4526 = vpop.f32.mrf.mxu0
  %4527 = vmatprep.mubr.bf16.mxu0 %v2513
  %4528 = vmatmul.mubr.bf16.gmra.mxu0 %v2512
  %v4529 = vpop.f32.mrf.mxu0
  %v4530 = vadd.f32 %v4241, %v4529
  %v4531 = vpop.f32.mrf.mxu0
  %v4532 = vpop.f32.mrf.mxu0
  %v4533 = vadd.f32 %v4244, %v4532
  %v4534 = vpop.f32.mrf.mxu0
  %4535 = vmatprep.mubr.bf16.mxu0 %v2529
  %4536 = vmatmul.mubr.bf16.gmra.mxu0 %v2528
  %v4537 = vpop.f32.mrf.mxu0
  %v4538 = vadd.f32 %v4249, %v4537
  %v4539 = vpop.f32.mrf.mxu0
  %v4540 = vpop.f32.mrf.mxu0
  %v4541 = vadd.f32 %v4252, %v4540
  %v4542 = vpop.f32.mrf.mxu0
  %4543 = vmatprep.mubr.bf16.mxu0 %v2545
  %4544 = vmatmul.mubr.bf16.gmra.mxu0 %v2544
  %v4545 = vpop.f32.mrf.mxu0
  %v4546 = vadd.f32 %v4257, %v4545
  %v4547 = vpop.f32.mrf.mxu0
  %v4548 = vpop.f32.mrf.mxu0
  %v4549 = vadd.f32 %v4260, %v4548
  %v4550 = vpop.f32.mrf.mxu0
  %4551 = vmatprep.mubr.bf16.mxu0 %v2561
  %4552 = vmatmul.mubr.bf16.gmra.mxu0 %v2560
  %v4553 = vpop.f32.mrf.mxu0
  %v4554 = vadd.f32 %v4265, %v4553
  %v4555 = vpop.f32.mrf.mxu0
  %v4556 = vpop.f32.mrf.mxu0
  %v4557 = vadd.f32 %v4268, %v4556
  %v4558 = vpop.f32.mrf.mxu0
  %4559 = vmatprep.mubr.bf16.mxu0 %v2577
  %4560 = vmatmul.mubr.bf16.gmra.mxu0 %v2576
  %v4561 = vpop.f32.mrf.mxu0
  %v4562 = vadd.f32 %v4273, %v4561
  %v4563 = vpop.f32.mrf.mxu0
  %v4564 = vpop.f32.mrf.mxu0
  %v4565 = vadd.f32 %v4276, %v4564
  %v4566 = vpop.f32.mrf.mxu0
  %4567 = vmatprep.mubr.bf16.mxu0 %v2593
  %4568 = vmatmul.mubr.bf16.gmra.mxu0 %v2592
  %v4569 = vpop.f32.mrf.mxu0
  %v4570 = vadd.f32 %v4281, %v4569
  %v4571 = vpop.f32.mrf.mxu0
  %v4572 = vpop.f32.mrf.mxu0
  %v4573 = vadd.f32 %v4284, %v4572
  %v4574 = vpop.f32.mrf.mxu0
  %4575 = vmatprep.mubr.bf16.mxu0 %v2609
  %4576 = vmatmul.mubr.bf16.gmra.mxu0 %v2608
  %v4577 = vpop.f32.mrf.mxu0
  %v4578 = vadd.f32 %v4289, %v4577
  %v4579 = vpop.f32.mrf.mxu0
  %v4580 = vpop.f32.mrf.mxu0
  %v4581 = vadd.f32 %v4292, %v4580
  %v4582 = vpop.f32.mrf.mxu0
  %4583 = vmatprep.mubr.bf16.mxu0 %v2625
  %4584 = vmatmul.mubr.bf16.gmra.mxu0 %v2624
  %v4585 = vpop.f32.mrf.mxu0
  %v4586 = vadd.f32 %v4297, %v4585
  %v4587 = vpop.f32.mrf.mxu0
  %v4588 = vpop.f32.mrf.mxu0
  %v4589 = vadd.f32 %v4300, %v4588
  %v4590 = vpop.f32.mrf.mxu0
  %4591 = vmatprep.mubr.bf16.mxu0 %v2641
  %4592 = vmatmul.mubr.bf16.gmra.mxu0 %v2640
  %v4593 = vpop.f32.mrf.mxu0
  %v4594 = vadd.f32 %v4305, %v4593
  %v4595 = vpop.f32.mrf.mxu0
  %v4596 = vpop.f32.mrf.mxu0
  %v4597 = vadd.f32 %v4308, %v4596
  %v4598 = vpop.f32.mrf.mxu0
  %4599 = vmatprep.mubr.bf16.mxu0 %v2657
  %4600 = vmatmul.mubr.bf16.gmra.mxu0 %v2656
  %v4601 = vpop.f32.mrf.mxu0
  %v4602 = vadd.f32 %v4313, %v4601
  %v4603 = vpop.f32.mrf.mxu0
  %v4604 = vpop.f32.mrf.mxu0
  %v4605 = vadd.f32 %v4316, %v4604
  %v4606 = vpop.f32.mrf.mxu0
  %4607 = vmatprep.mubr.bf16.mxu0 %v2673
  %4608 = vmatmul.mubr.bf16.gmra.mxu0 %v2672
  %v4609 = vpop.f32.mrf.mxu0
  %v4610 = vadd.f32 %v4321, %v4609
  %v4611 = vpop.f32.mrf.mxu0
  %v4612 = vpop.f32.mrf.mxu0
  %v4613 = vadd.f32 %v4324, %v4612
  %v4614 = vpop.f32.mrf.mxu0
  %4615 = vmatprep.mubr.bf16.mxu0 %v2689
  %4616 = vmatmul.mubr.bf16.gmra.mxu0 %v2688
  %v4617 = vpop.f32.mrf.mxu0
  %v4618 = vadd.f32 %v4329, %v4617
  %v4619 = vpop.f32.mrf.mxu0
  %v4620 = vpop.f32.mrf.mxu0
  %v4621 = vadd.f32 %v4332, %v4620
  %v4622 = vpop.f32.mrf.mxu0
  %4623 = vmatprep.mubr.bf16.mxu0 %v2705
  %4624 = vmatmul.mubr.bf16.gmra.mxu0 %v2704
  %v4625 = vpop.f32.mrf.mxu0
  %v4626 = vadd.f32 %v4337, %v4625
  %v4627 = vpop.f32.mrf.mxu0
  %v4628 = vpop.f32.mrf.mxu0
  %v4629 = vadd.f32 %v4340, %v4628
  %v4630 = vpop.f32.mrf.mxu0
  %4631 = vmatprep.mubr.bf16.mxu0 %v2721
  %4632 = vmatmul.mubr.bf16.gmra.mxu0 %v2720
  %v4633 = vpop.f32.mrf.mxu0
  %v4634 = vadd.f32 %v4345, %v4633
  %v4635 = vpop.f32.mrf.mxu0
  %v4636 = vpop.f32.mrf.mxu0
  %v4637 = vadd.f32 %v4348, %v4636
  %v4638 = vpop.f32.mrf.mxu0
  %4639 = vmatprep.mubr.bf16.mxu0 %v2737
  %4640 = vmatmul.mubr.bf16.gmra.mxu0 %v2736
  %v4641 = vpop.f32.mrf.mxu0
  %v4642 = vadd.f32 %v4353, %v4641
  %v4643 = vpop.f32.mrf.mxu0
  %v4644 = vpop.f32.mrf.mxu0
  %v4645 = vadd.f32 %v4356, %v4644
  %v4646 = vpop.f32.mrf.mxu0
  %4647 = vmatprep.mubr.bf16.mxu0 %v2753
  %4648 = vmatmul.mubr.bf16.gmra.mxu0 %v2752
  %v4649 = vpop.f32.mrf.mxu0
  %v4650 = vadd.f32 %v4361, %v4649
  %v4651 = vpop.f32.mrf.mxu0
  %v4652 = vpop.f32.mrf.mxu0
  %v4653 = vadd.f32 %v4364, %v4652
  %v4654 = vpop.f32.mrf.mxu0
  %4655 = vmatprep.mubr.bf16.mxu0 %v2769
  %4656 = vmatmul.mubr.bf16.gmra.mxu0 %v2768
  %v4657 = vpop.f32.mrf.mxu0
  %v4658 = vadd.f32 %v4369, %v4657
  %v4659 = vpop.f32.mrf.mxu0
  %v4660 = vpop.f32.mrf.mxu0
  %v4661 = vadd.f32 %v4372, %v4660
  %v4662 = vpop.f32.mrf.mxu0
  %4663 = vmatprep.mubr.bf16.mxu0 %v2785
  %4664 = vmatmul.mubr.bf16.gmra.mxu0 %v2784
  %v4665 = vpop.f32.mrf.mxu0
  %v4666 = vadd.f32 %v4377, %v4665
  %v4667 = vpop.f32.mrf.mxu0
  %v4668 = vpop.f32.mrf.mxu0
  %v4669 = vadd.f32 %v4380, %v4668
  %v4670 = vpop.f32.mrf.mxu0
  %4671 = vmatprep.mubr.bf16.mxu0 %v2801
  %4672 = vmatmul.mubr.bf16.gmra.mxu0 %v2800
  %v4673 = vpop.f32.mrf.mxu0
  %v4674 = vadd.f32 %v4385, %v4673
  %v4675 = vpop.f32.mrf.mxu0
  %v4676 = vpop.f32.mrf.mxu0
  %v4677 = vadd.f32 %v4388, %v4676
  %v4678 = vpop.f32.mrf.mxu0
  %4679 = vmatprep.mubr.bf16.mxu0 %v2817
  %4680 = vmatmul.mubr.bf16.gmra.mxu0 %v2816
  %v4681 = vpop.f32.mrf.mxu0
  %v4682 = vadd.f32 %v4393, %v4681
  %v4683 = vpop.f32.mrf.mxu0
  %v4684 = vpop.f32.mrf.mxu0
  %v4685 = vadd.f32 %v4396, %v4684
  %v4686 = vpop.f32.mrf.mxu0
  %4687 = vdwg.mxu0
  %4688 = vmatprep.subr.bf16.mxu0 0
  %4689 = vmatpush1.bf16.msra.mxu0 %v3893
  %4690 = vmatprep.subr.bf16.mxu0 0
  %4691 = vmatpush1.bf16.msra.mxu0 %v3892
  %4692 = vmatprep.subr.bf16.mxu0 0
  %4693 = vmatpush1.bf16.msra.mxu0 %v3891
  %4694 = vmatprep.subr.bf16.mxu0 0
  %4695 = vmatpush1.bf16.msra.mxu0 %v3890
  %4696 = vmatprep.subr.bf16.mxu0 0
  %4697 = vmatpush1.bf16.msra.mxu0 %v3889
  %4698 = vmatprep.subr.bf16.mxu0 0
  %4699 = vmatpush1.bf16.msra.mxu0 %v3888
  %4700 = vmatprep.subr.bf16.mxu0 0
  %4701 = vmatpush1.bf16.msra.mxu0 %v3887
  %4702 = vmatprep.subr.bf16.mxu0 0
  %4703 = vmatpush1.bf16.msra.mxu0 %v3886
  %4704 = vmatprep.subr.bf16.mxu0 0
  %4705 = vmatpush2.bf16.msra.mxu0 %v3901
  %4706 = vmatprep.subr.bf16.mxu0 0
  %4707 = vmatpush2.bf16.msra.mxu0 %v3900
  %4708 = vmatprep.subr.bf16.mxu0 0
  %4709 = vmatpush2.bf16.msra.mxu0 %v3899
  %4710 = vmatprep.subr.bf16.mxu0 0
  %4711 = vmatpush2.bf16.msra.mxu0 %v3898
  %4712 = vmatprep.subr.bf16.mxu0 0
  %4713 = vmatpush2.bf16.msra.mxu0 %v3897
  %4714 = vmatprep.subr.bf16.mxu0 0
  %4715 = vmatpush2.bf16.msra.mxu0 %v3896
  %4716 = vmatprep.subr.bf16.mxu0 0
  %4717 = vmatpush2.bf16.msra.mxu0 %v3895
  %4718 = vmatprep.subr.bf16.mxu0 0
  %4719 = vmatpush2.bf16.msra.mxu0 %v3894
  %4720 = vmatprep.mubr.bf16.mxu0 %v2323
  %4721 = vmatmul.mubr.bf16.gmra.mxu0 %v2322
  %v4722 = vpop.f32.mrf.mxu0
  %v4723 = vadd.f32 %v4434, %v4722
  %v4724 = vpop.f32.mrf.mxu0
  %v4725 = vpop.f32.mrf.mxu0
  %v4726 = vadd.f32 %v4437, %v4725
  %v4727 = vpop.f32.mrf.mxu0
  %4728 = vmatprep.mubr.bf16.mxu0 %v2339
  %4729 = vmatmul.mubr.bf16.gmra.mxu0 %v2338
  %v4730 = vpop.f32.mrf.mxu0
  %v4731 = vadd.f32 %v4442, %v4730
  %v4732 = vpop.f32.mrf.mxu0
  %v4733 = vpop.f32.mrf.mxu0
  %v4734 = vadd.f32 %v4445, %v4733
  %v4735 = vpop.f32.mrf.mxu0
  %4736 = vmatprep.mubr.bf16.mxu0 %v2355
  %4737 = vmatmul.mubr.bf16.gmra.mxu0 %v2354
  %v4738 = vpop.f32.mrf.mxu0
  %v4739 = vadd.f32 %v4450, %v4738
  %v4740 = vpop.f32.mrf.mxu0
  %v4741 = vpop.f32.mrf.mxu0
  %v4742 = vadd.f32 %v4453, %v4741
  %v4743 = vpop.f32.mrf.mxu0
  %4744 = vmatprep.mubr.bf16.mxu0 %v2371
  %4745 = vmatmul.mubr.bf16.gmra.mxu0 %v2370
  %v4746 = vpop.f32.mrf.mxu0
  %v4747 = vadd.f32 %v4458, %v4746
  %v4748 = vpop.f32.mrf.mxu0
  %v4749 = vpop.f32.mrf.mxu0
  %v4750 = vadd.f32 %v4461, %v4749
  %v4751 = vpop.f32.mrf.mxu0
  %4752 = vmatprep.mubr.bf16.mxu0 %v2387
  %4753 = vmatmul.mubr.bf16.gmra.mxu0 %v2386
  %v4754 = vpop.f32.mrf.mxu0
  %v4755 = vadd.f32 %v4466, %v4754
  %v4756 = vpop.f32.mrf.mxu0
  %v4757 = vpop.f32.mrf.mxu0
  %v4758 = vadd.f32 %v4469, %v4757
  %v4759 = vpop.f32.mrf.mxu0
  %4760 = vmatprep.mubr.bf16.mxu0 %v2403
  %4761 = vmatmul.mubr.bf16.gmra.mxu0 %v2402
  %v4762 = vpop.f32.mrf.mxu0
  %v4763 = vadd.f32 %v4474, %v4762
  %v4764 = vpop.f32.mrf.mxu0
  %v4765 = vpop.f32.mrf.mxu0
  %v4766 = vadd.f32 %v4477, %v4765
  %v4767 = vpop.f32.mrf.mxu0
  %4768 = vmatprep.mubr.bf16.mxu0 %v2419
  %4769 = vmatmul.mubr.bf16.gmra.mxu0 %v2418
  %v4770 = vpop.f32.mrf.mxu0
  %v4771 = vadd.f32 %v4482, %v4770
  %v4772 = vpop.f32.mrf.mxu0
  %v4773 = vpop.f32.mrf.mxu0
  %v4774 = vadd.f32 %v4485, %v4773
  %v4775 = vpop.f32.mrf.mxu0
  %4776 = vmatprep.mubr.bf16.mxu0 %v2435
  %4777 = vmatmul.mubr.bf16.gmra.mxu0 %v2434
  %v4778 = vpop.f32.mrf.mxu0
  %v4779 = vadd.f32 %v4490, %v4778
  %v4780 = vpop.f32.mrf.mxu0
  %v4781 = vpop.f32.mrf.mxu0
  %v4782 = vadd.f32 %v4493, %v4781
  %v4783 = vpop.f32.mrf.mxu0
  %4784 = vmatprep.mubr.bf16.mxu0 %v2451
  %4785 = vmatmul.mubr.bf16.gmra.mxu0 %v2450
  %v4786 = vpop.f32.mrf.mxu0
  %v4787 = vadd.f32 %v4498, %v4786
  %v4788 = vpop.f32.mrf.mxu0
  %v4789 = vpop.f32.mrf.mxu0
  %v4790 = vadd.f32 %v4501, %v4789
  %v4791 = vpop.f32.mrf.mxu0
  %4792 = vmatprep.mubr.bf16.mxu0 %v2467
  %4793 = vmatmul.mubr.bf16.gmra.mxu0 %v2466
  %v4794 = vpop.f32.mrf.mxu0
  %v4795 = vadd.f32 %v4506, %v4794
  %v4796 = vpop.f32.mrf.mxu0
  %v4797 = vpop.f32.mrf.mxu0
  %v4798 = vadd.f32 %v4509, %v4797
  %v4799 = vpop.f32.mrf.mxu0
  %4800 = vmatprep.mubr.bf16.mxu0 %v2483
  %4801 = vmatmul.mubr.bf16.gmra.mxu0 %v2482
  %v4802 = vpop.f32.mrf.mxu0
  %v4803 = vadd.f32 %v4514, %v4802
  %v4804 = vpop.f32.mrf.mxu0
  %v4805 = vpop.f32.mrf.mxu0
  %v4806 = vadd.f32 %v4517, %v4805
  %v4807 = vpop.f32.mrf.mxu0
  %4808 = vmatprep.mubr.bf16.mxu0 %v2499
  %4809 = vmatmul.mubr.bf16.gmra.mxu0 %v2498
  %v4810 = vpop.f32.mrf.mxu0
  %v4811 = vadd.f32 %v4522, %v4810
  %v4812 = vpop.f32.mrf.mxu0
  %v4813 = vpop.f32.mrf.mxu0
  %v4814 = vadd.f32 %v4525, %v4813
  %v4815 = vpop.f32.mrf.mxu0
  %4816 = vmatprep.mubr.bf16.mxu0 %v2515
  %4817 = vmatmul.mubr.bf16.gmra.mxu0 %v2514
  %v4818 = vpop.f32.mrf.mxu0
  %v4819 = vadd.f32 %v4530, %v4818
  %v4820 = vpop.f32.mrf.mxu0
  %v4821 = vpop.f32.mrf.mxu0
  %v4822 = vadd.f32 %v4533, %v4821
  %v4823 = vpop.f32.mrf.mxu0
  %4824 = vmatprep.mubr.bf16.mxu0 %v2531
  %4825 = vmatmul.mubr.bf16.gmra.mxu0 %v2530
  %v4826 = vpop.f32.mrf.mxu0
  %v4827 = vadd.f32 %v4538, %v4826
  %v4828 = vpop.f32.mrf.mxu0
  %v4829 = vpop.f32.mrf.mxu0
  %v4830 = vadd.f32 %v4541, %v4829
  %v4831 = vpop.f32.mrf.mxu0
  %4832 = vmatprep.mubr.bf16.mxu0 %v2547
  %4833 = vmatmul.mubr.bf16.gmra.mxu0 %v2546
  %v4834 = vpop.f32.mrf.mxu0
  %v4835 = vadd.f32 %v4546, %v4834
  %v4836 = vpop.f32.mrf.mxu0
  %v4837 = vpop.f32.mrf.mxu0
  %v4838 = vadd.f32 %v4549, %v4837
  %v4839 = vpop.f32.mrf.mxu0
  %4840 = vmatprep.mubr.bf16.mxu0 %v2563
  %4841 = vmatmul.mubr.bf16.gmra.mxu0 %v2562
  %v4842 = vpop.f32.mrf.mxu0
  %v4843 = vadd.f32 %v4554, %v4842
  %v4844 = vpop.f32.mrf.mxu0
  %v4845 = vpop.f32.mrf.mxu0
  %v4846 = vadd.f32 %v4557, %v4845
  %v4847 = vpop.f32.mrf.mxu0
  %4848 = vmatprep.mubr.bf16.mxu0 %v2579
  %4849 = vmatmul.mubr.bf16.gmra.mxu0 %v2578
  %v4850 = vpop.f32.mrf.mxu0
  %v4851 = vadd.f32 %v4562, %v4850
  %v4852 = vpop.f32.mrf.mxu0
  %v4853 = vpop.f32.mrf.mxu0
  %v4854 = vadd.f32 %v4565, %v4853
  %v4855 = vpop.f32.mrf.mxu0
  %4856 = vmatprep.mubr.bf16.mxu0 %v2595
  %4857 = vmatmul.mubr.bf16.gmra.mxu0 %v2594
  %v4858 = vpop.f32.mrf.mxu0
  %v4859 = vadd.f32 %v4570, %v4858
  %v4860 = vpop.f32.mrf.mxu0
  %v4861 = vpop.f32.mrf.mxu0
  %v4862 = vadd.f32 %v4573, %v4861
  %v4863 = vpop.f32.mrf.mxu0
  %4864 = vmatprep.mubr.bf16.mxu0 %v2611
  %4865 = vmatmul.mubr.bf16.gmra.mxu0 %v2610
  %v4866 = vpop.f32.mrf.mxu0
  %v4867 = vadd.f32 %v4578, %v4866
  %v4868 = vpop.f32.mrf.mxu0
  %v4869 = vpop.f32.mrf.mxu0
  %v4870 = vadd.f32 %v4581, %v4869
  %v4871 = vpop.f32.mrf.mxu0
  %4872 = vmatprep.mubr.bf16.mxu0 %v2627
  %4873 = vmatmul.mubr.bf16.gmra.mxu0 %v2626
  %v4874 = vpop.f32.mrf.mxu0
  %v4875 = vadd.f32 %v4586, %v4874
  %v4876 = vpop.f32.mrf.mxu0
  %v4877 = vpop.f32.mrf.mxu0
  %v4878 = vadd.f32 %v4589, %v4877
  %v4879 = vpop.f32.mrf.mxu0
  %4880 = vmatprep.mubr.bf16.mxu0 %v2643
  %4881 = vmatmul.mubr.bf16.gmra.mxu0 %v2642
  %v4882 = vpop.f32.mrf.mxu0
  %v4883 = vadd.f32 %v4594, %v4882
  %v4884 = vpop.f32.mrf.mxu0
  %v4885 = vpop.f32.mrf.mxu0
  %v4886 = vadd.f32 %v4597, %v4885
  %v4887 = vpop.f32.mrf.mxu0
  %4888 = vmatprep.mubr.bf16.mxu0 %v2659
  %4889 = vmatmul.mubr.bf16.gmra.mxu0 %v2658
  %v4890 = vpop.f32.mrf.mxu0
  %v4891 = vadd.f32 %v4602, %v4890
  %v4892 = vpop.f32.mrf.mxu0
  %v4893 = vpop.f32.mrf.mxu0
  %v4894 = vadd.f32 %v4605, %v4893
  %v4895 = vpop.f32.mrf.mxu0
  %4896 = vmatprep.mubr.bf16.mxu0 %v2675
  %4897 = vmatmul.mubr.bf16.gmra.mxu0 %v2674
  %v4898 = vpop.f32.mrf.mxu0
  %v4899 = vadd.f32 %v4610, %v4898
  %v4900 = vpop.f32.mrf.mxu0
  %v4901 = vpop.f32.mrf.mxu0
  %v4902 = vadd.f32 %v4613, %v4901
  %v4903 = vpop.f32.mrf.mxu0
  %4904 = vmatprep.mubr.bf16.mxu0 %v2691
  %4905 = vmatmul.mubr.bf16.gmra.mxu0 %v2690
  %v4906 = vpop.f32.mrf.mxu0
  %v4907 = vadd.f32 %v4618, %v4906
  %v4908 = vpop.f32.mrf.mxu0
  %v4909 = vpop.f32.mrf.mxu0
  %v4910 = vadd.f32 %v4621, %v4909
  %v4911 = vpop.f32.mrf.mxu0
  %4912 = vmatprep.mubr.bf16.mxu0 %v2707
  %4913 = vmatmul.mubr.bf16.gmra.mxu0 %v2706
  %v4914 = vpop.f32.mrf.mxu0
  %v4915 = vadd.f32 %v4626, %v4914
  %v4916 = vpop.f32.mrf.mxu0
  %v4917 = vpop.f32.mrf.mxu0
  %v4918 = vadd.f32 %v4629, %v4917
  %v4919 = vpop.f32.mrf.mxu0
  %4920 = vmatprep.mubr.bf16.mxu0 %v2723
  %4921 = vmatmul.mubr.bf16.gmra.mxu0 %v2722
  %v4922 = vpop.f32.mrf.mxu0
  %v4923 = vadd.f32 %v4634, %v4922
  %v4924 = vpop.f32.mrf.mxu0
  %v4925 = vpop.f32.mrf.mxu0
  %v4926 = vadd.f32 %v4637, %v4925
  %v4927 = vpop.f32.mrf.mxu0
  %4928 = vmatprep.mubr.bf16.mxu0 %v2739
  %4929 = vmatmul.mubr.bf16.gmra.mxu0 %v2738
  %v4930 = vpop.f32.mrf.mxu0
  %v4931 = vadd.f32 %v4642, %v4930
  %v4932 = vpop.f32.mrf.mxu0
  %v4933 = vpop.f32.mrf.mxu0
  %v4934 = vadd.f32 %v4645, %v4933
  %v4935 = vpop.f32.mrf.mxu0
  %4936 = vmatprep.mubr.bf16.mxu0 %v2755
  %4937 = vmatmul.mubr.bf16.gmra.mxu0 %v2754
  %v4938 = vpop.f32.mrf.mxu0
  %v4939 = vadd.f32 %v4650, %v4938
  %v4940 = vpop.f32.mrf.mxu0
  %v4941 = vpop.f32.mrf.mxu0
  %v4942 = vadd.f32 %v4653, %v4941
  %v4943 = vpop.f32.mrf.mxu0
  %4944 = vmatprep.mubr.bf16.mxu0 %v2771
  %4945 = vmatmul.mubr.bf16.gmra.mxu0 %v2770
  %v4946 = vpop.f32.mrf.mxu0
  %v4947 = vadd.f32 %v4658, %v4946
  %v4948 = vpop.f32.mrf.mxu0
  %v4949 = vpop.f32.mrf.mxu0
  %v4950 = vadd.f32 %v4661, %v4949
  %v4951 = vpop.f32.mrf.mxu0
  %4952 = vmatprep.mubr.bf16.mxu0 %v2787
  %4953 = vmatmul.mubr.bf16.gmra.mxu0 %v2786
  %v4954 = vpop.f32.mrf.mxu0
  %v4955 = vadd.f32 %v4666, %v4954
  %v4956 = vpop.f32.mrf.mxu0
  %v4957 = vpop.f32.mrf.mxu0
  %v4958 = vadd.f32 %v4669, %v4957
  %v4959 = vpop.f32.mrf.mxu0
  %4960 = vmatprep.mubr.bf16.mxu0 %v2803
  %4961 = vmatmul.mubr.bf16.gmra.mxu0 %v2802
  %v4962 = vpop.f32.mrf.mxu0
  %v4963 = vadd.f32 %v4674, %v4962
  %v4964 = vpop.f32.mrf.mxu0
  %v4965 = vpop.f32.mrf.mxu0
  %v4966 = vadd.f32 %v4677, %v4965
  %v4967 = vpop.f32.mrf.mxu0
  %4968 = vmatprep.mubr.bf16.mxu0 %v2819
  %4969 = vmatmul.mubr.bf16.gmra.mxu0 %v2818
  %v4970 = vpop.f32.mrf.mxu0
  %v4971 = vadd.f32 %v4682, %v4970
  %v4972 = vpop.f32.mrf.mxu0
  %v4973 = vpop.f32.mrf.mxu0
  %v4974 = vadd.f32 %v4685, %v4973
  %v4975 = vpop.f32.mrf.mxu0
  %4976 = vdwg.mxu0
  %4977 = vmatprep.subr.bf16.mxu0 0
  %4978 = vmatpush1.bf16.msra.mxu0 %v3909
  %4979 = vmatprep.subr.bf16.mxu0 0
  %4980 = vmatpush1.bf16.msra.mxu0 %v3908
  %4981 = vmatprep.subr.bf16.mxu0 0
  %4982 = vmatpush1.bf16.msra.mxu0 %v3907
  %4983 = vmatprep.subr.bf16.mxu0 0
  %4984 = vmatpush1.bf16.msra.mxu0 %v3906
  %4985 = vmatprep.subr.bf16.mxu0 0
  %4986 = vmatpush1.bf16.msra.mxu0 %v3905
  %4987 = vmatprep.subr.bf16.mxu0 0
  %4988 = vmatpush1.bf16.msra.mxu0 %v3904
  %4989 = vmatprep.subr.bf16.mxu0 0
  %4990 = vmatpush1.bf16.msra.mxu0 %v3903
  %4991 = vmatprep.subr.bf16.mxu0 0
  %4992 = vmatpush1.bf16.msra.mxu0 %v3902
  %4993 = vmatprep.subr.bf16.mxu0 0
  %4994 = vmatpush2.bf16.msra.mxu0 %v3917
  %4995 = vmatprep.subr.bf16.mxu0 0
  %4996 = vmatpush2.bf16.msra.mxu0 %v3916
  %4997 = vmatprep.subr.bf16.mxu0 0
  %4998 = vmatpush2.bf16.msra.mxu0 %v3915
  %4999 = vmatprep.subr.bf16.mxu0 0
  %5000 = vmatpush2.bf16.msra.mxu0 %v3914
  %5001 = vmatprep.subr.bf16.mxu0 0
  %5002 = vmatpush2.bf16.msra.mxu0 %v3913
  %5003 = vmatprep.subr.bf16.mxu0 0
  %5004 = vmatpush2.bf16.msra.mxu0 %v3912
  %5005 = vmatprep.subr.bf16.mxu0 0
  %5006 = vmatpush2.bf16.msra.mxu0 %v3911
  %5007 = vmatprep.subr.bf16.mxu0 0
  %5008 = vmatpush2.bf16.msra.mxu0 %v3910
  %5009 = vmatprep.mubr.bf16.mxu0 %v2325
  %5010 = vmatmul.mubr.bf16.gmra.mxu0 %v2324
  %v5011 = vpop.f32.mrf.mxu0
  %v5012 = vadd.f32 %v4723, %v5011
  %v5013 = vpop.f32.mrf.mxu0
  %v5014 = vpop.f32.mrf.mxu0
  %v5015 = vadd.f32 %v4726, %v5014
  %v5016 = vpop.f32.mrf.mxu0
  %5017 = vmatprep.mubr.bf16.mxu0 %v2341
  %5018 = vmatmul.mubr.bf16.gmra.mxu0 %v2340
  %v5019 = vpop.f32.mrf.mxu0
  %v5020 = vadd.f32 %v4731, %v5019
  %v5021 = vpop.f32.mrf.mxu0
  %v5022 = vpop.f32.mrf.mxu0
  %v5023 = vadd.f32 %v4734, %v5022
  %v5024 = vpop.f32.mrf.mxu0
  %5025 = vmatprep.mubr.bf16.mxu0 %v2357
  %5026 = vmatmul.mubr.bf16.gmra.mxu0 %v2356
  %v5027 = vpop.f32.mrf.mxu0
  %v5028 = vadd.f32 %v4739, %v5027
  %v5029 = vpop.f32.mrf.mxu0
  %v5030 = vpop.f32.mrf.mxu0
  %v5031 = vadd.f32 %v4742, %v5030
  %v5032 = vpop.f32.mrf.mxu0
  %5033 = vmatprep.mubr.bf16.mxu0 %v2373
  %5034 = vmatmul.mubr.bf16.gmra.mxu0 %v2372
  %v5035 = vpop.f32.mrf.mxu0
  %v5036 = vadd.f32 %v4747, %v5035
  %v5037 = vpop.f32.mrf.mxu0
  %v5038 = vpop.f32.mrf.mxu0
  %v5039 = vadd.f32 %v4750, %v5038
  %v5040 = vpop.f32.mrf.mxu0
  %5041 = vmatprep.mubr.bf16.mxu0 %v2389
  %5042 = vmatmul.mubr.bf16.gmra.mxu0 %v2388
  %v5043 = vpop.f32.mrf.mxu0
  %v5044 = vadd.f32 %v4755, %v5043
  %v5045 = vpop.f32.mrf.mxu0
  %v5046 = vpop.f32.mrf.mxu0
  %v5047 = vadd.f32 %v4758, %v5046
  %v5048 = vpop.f32.mrf.mxu0
  %5049 = vmatprep.mubr.bf16.mxu0 %v2405
  %5050 = vmatmul.mubr.bf16.gmra.mxu0 %v2404
  %v5051 = vpop.f32.mrf.mxu0
  %v5052 = vadd.f32 %v4763, %v5051
  %v5053 = vpop.f32.mrf.mxu0
  %v5054 = vpop.f32.mrf.mxu0
  %v5055 = vadd.f32 %v4766, %v5054
  %v5056 = vpop.f32.mrf.mxu0
  %5057 = vmatprep.mubr.bf16.mxu0 %v2421
  %5058 = vmatmul.mubr.bf16.gmra.mxu0 %v2420
  %v5059 = vpop.f32.mrf.mxu0
  %v5060 = vadd.f32 %v4771, %v5059
  %v5061 = vpop.f32.mrf.mxu0
  %v5062 = vpop.f32.mrf.mxu0
  %v5063 = vadd.f32 %v4774, %v5062
  %v5064 = vpop.f32.mrf.mxu0
  %5065 = vmatprep.mubr.bf16.mxu0 %v2437
  %5066 = vmatmul.mubr.bf16.gmra.mxu0 %v2436
  %v5067 = vpop.f32.mrf.mxu0
  %v5068 = vadd.f32 %v4779, %v5067
  %v5069 = vpop.f32.mrf.mxu0
  %v5070 = vpop.f32.mrf.mxu0
  %v5071 = vadd.f32 %v4782, %v5070
  %v5072 = vpop.f32.mrf.mxu0
  %5073 = vmatprep.mubr.bf16.mxu0 %v2453
  %5074 = vmatmul.mubr.bf16.gmra.mxu0 %v2452
  %v5075 = vpop.f32.mrf.mxu0
  %v5076 = vadd.f32 %v4787, %v5075
  %v5077 = vpop.f32.mrf.mxu0
  %v5078 = vpop.f32.mrf.mxu0
  %v5079 = vadd.f32 %v4790, %v5078
  %v5080 = vpop.f32.mrf.mxu0
  %5081 = vmatprep.mubr.bf16.mxu0 %v2469
  %5082 = vmatmul.mubr.bf16.gmra.mxu0 %v2468
  %v5083 = vpop.f32.mrf.mxu0
  %v5084 = vadd.f32 %v4795, %v5083
  %v5085 = vpop.f32.mrf.mxu0
  %v5086 = vpop.f32.mrf.mxu0
  %v5087 = vadd.f32 %v4798, %v5086
  %v5088 = vpop.f32.mrf.mxu0
  %5089 = vmatprep.mubr.bf16.mxu0 %v2485
  %5090 = vmatmul.mubr.bf16.gmra.mxu0 %v2484
  %v5091 = vpop.f32.mrf.mxu0
  %v5092 = vadd.f32 %v4803, %v5091
  %v5093 = vpop.f32.mrf.mxu0
  %v5094 = vpop.f32.mrf.mxu0
  %v5095 = vadd.f32 %v4806, %v5094
  %v5096 = vpop.f32.mrf.mxu0
  %5097 = vmatprep.mubr.bf16.mxu0 %v2501
  %5098 = vmatmul.mubr.bf16.gmra.mxu0 %v2500
  %v5099 = vpop.f32.mrf.mxu0
  %v5100 = vadd.f32 %v4811, %v5099
  %v5101 = vpop.f32.mrf.mxu0
  %v5102 = vpop.f32.mrf.mxu0
  %v5103 = vadd.f32 %v4814, %v5102
  %v5104 = vpop.f32.mrf.mxu0
  %5105 = vmatprep.mubr.bf16.mxu0 %v2517
  %5106 = vmatmul.mubr.bf16.gmra.mxu0 %v2516
  %v5107 = vpop.f32.mrf.mxu0
  %v5108 = vadd.f32 %v4819, %v5107
  %v5109 = vpop.f32.mrf.mxu0
  %v5110 = vpop.f32.mrf.mxu0
  %v5111 = vadd.f32 %v4822, %v5110
  %v5112 = vpop.f32.mrf.mxu0
  %5113 = vmatprep.mubr.bf16.mxu0 %v2533
  %5114 = vmatmul.mubr.bf16.gmra.mxu0 %v2532
  %v5115 = vpop.f32.mrf.mxu0
  %v5116 = vadd.f32 %v4827, %v5115
  %v5117 = vpop.f32.mrf.mxu0
  %v5118 = vpop.f32.mrf.mxu0
  %v5119 = vadd.f32 %v4830, %v5118
  %v5120 = vpop.f32.mrf.mxu0
  %5121 = vmatprep.mubr.bf16.mxu0 %v2549
  %5122 = vmatmul.mubr.bf16.gmra.mxu0 %v2548
  %v5123 = vpop.f32.mrf.mxu0
  %v5124 = vadd.f32 %v4835, %v5123
  %v5125 = vpop.f32.mrf.mxu0
  %v5126 = vpop.f32.mrf.mxu0
  %v5127 = vadd.f32 %v4838, %v5126
  %v5128 = vpop.f32.mrf.mxu0
  %5129 = vmatprep.mubr.bf16.mxu0 %v2565
  %5130 = vmatmul.mubr.bf16.gmra.mxu0 %v2564
  %v5131 = vpop.f32.mrf.mxu0
  %v5132 = vadd.f32 %v4843, %v5131
  %v5133 = vpop.f32.mrf.mxu0
  %v5134 = vpop.f32.mrf.mxu0
  %v5135 = vadd.f32 %v4846, %v5134
  %v5136 = vpop.f32.mrf.mxu0
  %5137 = vmatprep.mubr.bf16.mxu0 %v2581
  %5138 = vmatmul.mubr.bf16.gmra.mxu0 %v2580
  %v5139 = vpop.f32.mrf.mxu0
  %v5140 = vadd.f32 %v4851, %v5139
  %v5141 = vpop.f32.mrf.mxu0
  %v5142 = vpop.f32.mrf.mxu0
  %v5143 = vadd.f32 %v4854, %v5142
  %v5144 = vpop.f32.mrf.mxu0
  %5145 = vmatprep.mubr.bf16.mxu0 %v2597
  %5146 = vmatmul.mubr.bf16.gmra.mxu0 %v2596
  %v5147 = vpop.f32.mrf.mxu0
  %v5148 = vadd.f32 %v4859, %v5147
  %v5149 = vpop.f32.mrf.mxu0
  %v5150 = vpop.f32.mrf.mxu0
  %v5151 = vadd.f32 %v4862, %v5150
  %v5152 = vpop.f32.mrf.mxu0
  %5153 = vmatprep.mubr.bf16.mxu0 %v2613
  %5154 = vmatmul.mubr.bf16.gmra.mxu0 %v2612
  %v5155 = vpop.f32.mrf.mxu0
  %v5156 = vadd.f32 %v4867, %v5155
  %v5157 = vpop.f32.mrf.mxu0
  %v5158 = vpop.f32.mrf.mxu0
  %v5159 = vadd.f32 %v4870, %v5158
  %v5160 = vpop.f32.mrf.mxu0
  %5161 = vmatprep.mubr.bf16.mxu0 %v2629
  %5162 = vmatmul.mubr.bf16.gmra.mxu0 %v2628
  %v5163 = vpop.f32.mrf.mxu0
  %v5164 = vadd.f32 %v4875, %v5163
  %v5165 = vpop.f32.mrf.mxu0
  %v5166 = vpop.f32.mrf.mxu0
  %v5167 = vadd.f32 %v4878, %v5166
  %v5168 = vpop.f32.mrf.mxu0
  %5169 = vmatprep.mubr.bf16.mxu0 %v2645
  %5170 = vmatmul.mubr.bf16.gmra.mxu0 %v2644
  %v5171 = vpop.f32.mrf.mxu0
  %v5172 = vadd.f32 %v4883, %v5171
  %v5173 = vpop.f32.mrf.mxu0
  %v5174 = vpop.f32.mrf.mxu0
  %v5175 = vadd.f32 %v4886, %v5174
  %v5176 = vpop.f32.mrf.mxu0
  %5177 = vmatprep.mubr.bf16.mxu0 %v2661
  %5178 = vmatmul.mubr.bf16.gmra.mxu0 %v2660
  %v5179 = vpop.f32.mrf.mxu0
  %v5180 = vadd.f32 %v4891, %v5179
  %v5181 = vpop.f32.mrf.mxu0
  %v5182 = vpop.f32.mrf.mxu0
  %v5183 = vadd.f32 %v4894, %v5182
  %v5184 = vpop.f32.mrf.mxu0
  %5185 = vmatprep.mubr.bf16.mxu0 %v2677
  %5186 = vmatmul.mubr.bf16.gmra.mxu0 %v2676
  %v5187 = vpop.f32.mrf.mxu0
  %v5188 = vadd.f32 %v4899, %v5187
  %v5189 = vpop.f32.mrf.mxu0
  %v5190 = vpop.f32.mrf.mxu0
  %v5191 = vadd.f32 %v4902, %v5190
  %v5192 = vpop.f32.mrf.mxu0
  %5193 = vmatprep.mubr.bf16.mxu0 %v2693
  %5194 = vmatmul.mubr.bf16.gmra.mxu0 %v2692
  %v5195 = vpop.f32.mrf.mxu0
  %v5196 = vadd.f32 %v4907, %v5195
  %v5197 = vpop.f32.mrf.mxu0
  %v5198 = vpop.f32.mrf.mxu0
  %v5199 = vadd.f32 %v4910, %v5198
  %v5200 = vpop.f32.mrf.mxu0
  %5201 = vmatprep.mubr.bf16.mxu0 %v2709
  %5202 = vmatmul.mubr.bf16.gmra.mxu0 %v2708
  %v5203 = vpop.f32.mrf.mxu0
  %v5204 = vadd.f32 %v4915, %v5203
  %v5205 = vpop.f32.mrf.mxu0
  %v5206 = vpop.f32.mrf.mxu0
  %v5207 = vadd.f32 %v4918, %v5206
  %v5208 = vpop.f32.mrf.mxu0
  %5209 = vmatprep.mubr.bf16.mxu0 %v2725
  %5210 = vmatmul.mubr.bf16.gmra.mxu0 %v2724
  %v5211 = vpop.f32.mrf.mxu0
  %v5212 = vadd.f32 %v4923, %v5211
  %v5213 = vpop.f32.mrf.mxu0
  %v5214 = vpop.f32.mrf.mxu0
  %v5215 = vadd.f32 %v4926, %v5214
  %v5216 = vpop.f32.mrf.mxu0
  %5217 = vmatprep.mubr.bf16.mxu0 %v2741
  %5218 = vmatmul.mubr.bf16.gmra.mxu0 %v2740
  %v5219 = vpop.f32.mrf.mxu0
  %v5220 = vadd.f32 %v4931, %v5219
  %v5221 = vpop.f32.mrf.mxu0
  %v5222 = vpop.f32.mrf.mxu0
  %v5223 = vadd.f32 %v4934, %v5222
  %v5224 = vpop.f32.mrf.mxu0
  %5225 = vmatprep.mubr.bf16.mxu0 %v2757
  %5226 = vmatmul.mubr.bf16.gmra.mxu0 %v2756
  %v5227 = vpop.f32.mrf.mxu0
  %v5228 = vadd.f32 %v4939, %v5227
  %v5229 = vpop.f32.mrf.mxu0
  %v5230 = vpop.f32.mrf.mxu0
  %v5231 = vadd.f32 %v4942, %v5230
  %v5232 = vpop.f32.mrf.mxu0
  %5233 = vmatprep.mubr.bf16.mxu0 %v2773
  %5234 = vmatmul.mubr.bf16.gmra.mxu0 %v2772
  %v5235 = vpop.f32.mrf.mxu0
  %v5236 = vadd.f32 %v4947, %v5235
  %v5237 = vpop.f32.mrf.mxu0
  %v5238 = vpop.f32.mrf.mxu0
  %v5239 = vadd.f32 %v4950, %v5238
  %v5240 = vpop.f32.mrf.mxu0
  %5241 = vmatprep.mubr.bf16.mxu0 %v2789
  %5242 = vmatmul.mubr.bf16.gmra.mxu0 %v2788
  %v5243 = vpop.f32.mrf.mxu0
  %v5244 = vadd.f32 %v4955, %v5243
  %v5245 = vpop.f32.mrf.mxu0
  %v5246 = vpop.f32.mrf.mxu0
  %v5247 = vadd.f32 %v4958, %v5246
  %v5248 = vpop.f32.mrf.mxu0
  %5249 = vmatprep.mubr.bf16.mxu0 %v2805
  %5250 = vmatmul.mubr.bf16.gmra.mxu0 %v2804
  %v5251 = vpop.f32.mrf.mxu0
  %v5252 = vadd.f32 %v4963, %v5251
  %v5253 = vpop.f32.mrf.mxu0
  %v5254 = vpop.f32.mrf.mxu0
  %v5255 = vadd.f32 %v4966, %v5254
  %v5256 = vpop.f32.mrf.mxu0
  %5257 = vmatprep.mubr.bf16.mxu0 %v2821
  %5258 = vmatmul.mubr.bf16.gmra.mxu0 %v2820
  %v5259 = vpop.f32.mrf.mxu0
  %v5260 = vadd.f32 %v4971, %v5259
  %v5261 = vpop.f32.mrf.mxu0
  %v5262 = vpop.f32.mrf.mxu0
  %v5263 = vadd.f32 %v4974, %v5262
  %v5264 = vpop.f32.mrf.mxu0
  %5265 = vdwg.mxu0
  %5266 = vmatprep.subr.bf16.mxu0 0
  %5267 = vmatpush1.bf16.msra.mxu0 %v3925
  %5268 = vmatprep.subr.bf16.mxu0 0
  %5269 = vmatpush1.bf16.msra.mxu0 %v3924
  %5270 = vmatprep.subr.bf16.mxu0 0
  %5271 = vmatpush1.bf16.msra.mxu0 %v3923
  %5272 = vmatprep.subr.bf16.mxu0 0
  %5273 = vmatpush1.bf16.msra.mxu0 %v3922
  %5274 = vmatprep.subr.bf16.mxu0 0
  %5275 = vmatpush1.bf16.msra.mxu0 %v3921
  %5276 = vmatprep.subr.bf16.mxu0 0
  %5277 = vmatpush1.bf16.msra.mxu0 %v3920
  %5278 = vmatprep.subr.bf16.mxu0 0
  %5279 = vmatpush1.bf16.msra.mxu0 %v3919
  %5280 = vmatprep.subr.bf16.mxu0 0
  %5281 = vmatpush1.bf16.msra.mxu0 %v3918
  %5282 = vmatprep.subr.bf16.mxu0 0
  %5283 = vmatpush2.bf16.msra.mxu0 %v3933
  %5284 = vmatprep.subr.bf16.mxu0 0
  %5285 = vmatpush2.bf16.msra.mxu0 %v3932
  %5286 = vmatprep.subr.bf16.mxu0 0
  %5287 = vmatpush2.bf16.msra.mxu0 %v3931
  %5288 = vmatprep.subr.bf16.mxu0 0
  %5289 = vmatpush2.bf16.msra.mxu0 %v3930
  %5290 = vmatprep.subr.bf16.mxu0 0
  %5291 = vmatpush2.bf16.msra.mxu0 %v3929
  %5292 = vmatprep.subr.bf16.mxu0 0
  %5293 = vmatpush2.bf16.msra.mxu0 %v3928
  %5294 = vmatprep.subr.bf16.mxu0 0
  %5295 = vmatpush2.bf16.msra.mxu0 %v3927
  %5296 = vmatprep.subr.bf16.mxu0 0
  %5297 = vmatpush2.bf16.msra.mxu0 %v3926
  %5298 = vmatprep.mubr.bf16.mxu0 %v2327
  %5299 = vmatmul.mubr.bf16.gmra.mxu0 %v2326
  %v5300 = vpop.f32.mrf.mxu0
  %v5301 = vadd.f32 %v5012, %v5300
  %v5302 = vpop.f32.mrf.mxu0
  %v5303 = vpop.f32.mrf.mxu0
  %v5304 = vadd.f32 %v5015, %v5303
  %v5305 = vpop.f32.mrf.mxu0
  %5306 = vmatprep.mubr.bf16.mxu0 %v2343
  %5307 = vmatmul.mubr.bf16.gmra.mxu0 %v2342
  %v5308 = vpop.f32.mrf.mxu0
  %v5309 = vadd.f32 %v5020, %v5308
  %v5310 = vpop.f32.mrf.mxu0
  %v5311 = vpop.f32.mrf.mxu0
  %v5312 = vadd.f32 %v5023, %v5311
  %v5313 = vpop.f32.mrf.mxu0
  %5314 = vmatprep.mubr.bf16.mxu0 %v2359
  %5315 = vmatmul.mubr.bf16.gmra.mxu0 %v2358
  %v5316 = vpop.f32.mrf.mxu0
  %v5317 = vadd.f32 %v5028, %v5316
  %v5318 = vpop.f32.mrf.mxu0
  %v5319 = vpop.f32.mrf.mxu0
  %v5320 = vadd.f32 %v5031, %v5319
  %v5321 = vpop.f32.mrf.mxu0
  %5322 = vmatprep.mubr.bf16.mxu0 %v2375
  %5323 = vmatmul.mubr.bf16.gmra.mxu0 %v2374
  %v5324 = vpop.f32.mrf.mxu0
  %v5325 = vadd.f32 %v5036, %v5324
  %v5326 = vpop.f32.mrf.mxu0
  %v5327 = vpop.f32.mrf.mxu0
  %v5328 = vadd.f32 %v5039, %v5327
  %v5329 = vpop.f32.mrf.mxu0
  %5330 = vmatprep.mubr.bf16.mxu0 %v2391
  %5331 = vmatmul.mubr.bf16.gmra.mxu0 %v2390
  %v5332 = vpop.f32.mrf.mxu0
  %v5333 = vadd.f32 %v5044, %v5332
  %v5334 = vpop.f32.mrf.mxu0
  %v5335 = vpop.f32.mrf.mxu0
  %v5336 = vadd.f32 %v5047, %v5335
  %v5337 = vpop.f32.mrf.mxu0
  %5338 = vmatprep.mubr.bf16.mxu0 %v2407
  %5339 = vmatmul.mubr.bf16.gmra.mxu0 %v2406
  %v5340 = vpop.f32.mrf.mxu0
  %v5341 = vadd.f32 %v5052, %v5340
  %v5342 = vpop.f32.mrf.mxu0
  %v5343 = vpop.f32.mrf.mxu0
  %v5344 = vadd.f32 %v5055, %v5343
  %v5345 = vpop.f32.mrf.mxu0
  %5346 = vmatprep.mubr.bf16.mxu0 %v2423
  %5347 = vmatmul.mubr.bf16.gmra.mxu0 %v2422
  %v5348 = vpop.f32.mrf.mxu0
  %v5349 = vadd.f32 %v5060, %v5348
  %v5350 = vpop.f32.mrf.mxu0
  %v5351 = vpop.f32.mrf.mxu0
  %v5352 = vadd.f32 %v5063, %v5351
  %v5353 = vpop.f32.mrf.mxu0
  %5354 = vmatprep.mubr.bf16.mxu0 %v2439
  %5355 = vmatmul.mubr.bf16.gmra.mxu0 %v2438
  %v5356 = vpop.f32.mrf.mxu0
  %v5357 = vadd.f32 %v5068, %v5356
  %v5358 = vpop.f32.mrf.mxu0
  %v5359 = vpop.f32.mrf.mxu0
  %v5360 = vadd.f32 %v5071, %v5359
  %v5361 = vpop.f32.mrf.mxu0
  %5362 = vmatprep.mubr.bf16.mxu0 %v2455
  %5363 = vmatmul.mubr.bf16.gmra.mxu0 %v2454
  %v5364 = vpop.f32.mrf.mxu0
  %v5365 = vadd.f32 %v5076, %v5364
  %v5366 = vpop.f32.mrf.mxu0
  %v5367 = vpop.f32.mrf.mxu0
  %v5368 = vadd.f32 %v5079, %v5367
  %v5369 = vpop.f32.mrf.mxu0
  %5370 = vmatprep.mubr.bf16.mxu0 %v2471
  %5371 = vmatmul.mubr.bf16.gmra.mxu0 %v2470
  %v5372 = vpop.f32.mrf.mxu0
  %v5373 = vadd.f32 %v5084, %v5372
  %v5374 = vpop.f32.mrf.mxu0
  %v5375 = vpop.f32.mrf.mxu0
  %v5376 = vadd.f32 %v5087, %v5375
  %v5377 = vpop.f32.mrf.mxu0
  %5378 = vmatprep.mubr.bf16.mxu0 %v2487
  %5379 = vmatmul.mubr.bf16.gmra.mxu0 %v2486
  %v5380 = vpop.f32.mrf.mxu0
  %v5381 = vadd.f32 %v5092, %v5380
  %v5382 = vpop.f32.mrf.mxu0
  %v5383 = vpop.f32.mrf.mxu0
  %v5384 = vadd.f32 %v5095, %v5383
  %v5385 = vpop.f32.mrf.mxu0
  %5386 = vmatprep.mubr.bf16.mxu0 %v2503
  %5387 = vmatmul.mubr.bf16.gmra.mxu0 %v2502
  %v5388 = vpop.f32.mrf.mxu0
  %v5389 = vadd.f32 %v5100, %v5388
  %v5390 = vpop.f32.mrf.mxu0
  %v5391 = vpop.f32.mrf.mxu0
  %v5392 = vadd.f32 %v5103, %v5391
  %v5393 = vpop.f32.mrf.mxu0
  %5394 = vmatprep.mubr.bf16.mxu0 %v2519
  %5395 = vmatmul.mubr.bf16.gmra.mxu0 %v2518
  %v5396 = vpop.f32.mrf.mxu0
  %v5397 = vadd.f32 %v5108, %v5396
  %v5398 = vpop.f32.mrf.mxu0
  %v5399 = vpop.f32.mrf.mxu0
  %v5400 = vadd.f32 %v5111, %v5399
  %v5401 = vpop.f32.mrf.mxu0
  %5402 = vmatprep.mubr.bf16.mxu0 %v2535
  %5403 = vmatmul.mubr.bf16.gmra.mxu0 %v2534
  %v5404 = vpop.f32.mrf.mxu0
  %v5405 = vadd.f32 %v5116, %v5404
  %v5406 = vpop.f32.mrf.mxu0
  %v5407 = vpop.f32.mrf.mxu0
  %v5408 = vadd.f32 %v5119, %v5407
  %v5409 = vpop.f32.mrf.mxu0
  %5410 = vmatprep.mubr.bf16.mxu0 %v2551
  %5411 = vmatmul.mubr.bf16.gmra.mxu0 %v2550
  %v5412 = vpop.f32.mrf.mxu0
  %v5413 = vadd.f32 %v5124, %v5412
  %v5414 = vpop.f32.mrf.mxu0
  %v5415 = vpop.f32.mrf.mxu0
  %v5416 = vadd.f32 %v5127, %v5415
  %v5417 = vpop.f32.mrf.mxu0
  %5418 = vmatprep.mubr.bf16.mxu0 %v2567
  %5419 = vmatmul.mubr.bf16.gmra.mxu0 %v2566
  %v5420 = vpop.f32.mrf.mxu0
  %v5421 = vadd.f32 %v5132, %v5420
  %v5422 = vpop.f32.mrf.mxu0
  %v5423 = vpop.f32.mrf.mxu0
  %v5424 = vadd.f32 %v5135, %v5423
  %v5425 = vpop.f32.mrf.mxu0
  %5426 = vmatprep.mubr.bf16.mxu0 %v2583
  %5427 = vmatmul.mubr.bf16.gmra.mxu0 %v2582
  %v5428 = vpop.f32.mrf.mxu0
  %v5429 = vadd.f32 %v5140, %v5428
  %v5430 = vpop.f32.mrf.mxu0
  %v5431 = vpop.f32.mrf.mxu0
  %v5432 = vadd.f32 %v5143, %v5431
  %v5433 = vpop.f32.mrf.mxu0
  %5434 = vmatprep.mubr.bf16.mxu0 %v2599
  %5435 = vmatmul.mubr.bf16.gmra.mxu0 %v2598
  %v5436 = vpop.f32.mrf.mxu0
  %v5437 = vadd.f32 %v5148, %v5436
  %v5438 = vpop.f32.mrf.mxu0
  %v5439 = vpop.f32.mrf.mxu0
  %v5440 = vadd.f32 %v5151, %v5439
  %v5441 = vpop.f32.mrf.mxu0
  %5442 = vmatprep.mubr.bf16.mxu0 %v2615
  %5443 = vmatmul.mubr.bf16.gmra.mxu0 %v2614
  %v5444 = vpop.f32.mrf.mxu0
  %v5445 = vadd.f32 %v5156, %v5444
  %v5446 = vpop.f32.mrf.mxu0
  %v5447 = vpop.f32.mrf.mxu0
  %v5448 = vadd.f32 %v5159, %v5447
  %v5449 = vpop.f32.mrf.mxu0
  %5450 = vmatprep.mubr.bf16.mxu0 %v2631
  %5451 = vmatmul.mubr.bf16.gmra.mxu0 %v2630
  %v5452 = vpop.f32.mrf.mxu0
  %v5453 = vadd.f32 %v5164, %v5452
  %v5454 = vpop.f32.mrf.mxu0
  %v5455 = vpop.f32.mrf.mxu0
  %v5456 = vadd.f32 %v5167, %v5455
  %v5457 = vpop.f32.mrf.mxu0
  %5458 = vmatprep.mubr.bf16.mxu0 %v2647
  %5459 = vmatmul.mubr.bf16.gmra.mxu0 %v2646
  %v5460 = vpop.f32.mrf.mxu0
  %v5461 = vadd.f32 %v5172, %v5460
  %v5462 = vpop.f32.mrf.mxu0
  %v5463 = vpop.f32.mrf.mxu0
  %v5464 = vadd.f32 %v5175, %v5463
  %v5465 = vpop.f32.mrf.mxu0
  %5466 = vmatprep.mubr.bf16.mxu0 %v2663
  %5467 = vmatmul.mubr.bf16.gmra.mxu0 %v2662
  %v5468 = vpop.f32.mrf.mxu0
  %v5469 = vadd.f32 %v5180, %v5468
  %v5470 = vpop.f32.mrf.mxu0
  %v5471 = vpop.f32.mrf.mxu0
  %v5472 = vadd.f32 %v5183, %v5471
  %v5473 = vpop.f32.mrf.mxu0
  %5474 = vmatprep.mubr.bf16.mxu0 %v2679
  %5475 = vmatmul.mubr.bf16.gmra.mxu0 %v2678
  %v5476 = vpop.f32.mrf.mxu0
  %v5477 = vadd.f32 %v5188, %v5476
  %v5478 = vpop.f32.mrf.mxu0
  %v5479 = vpop.f32.mrf.mxu0
  %v5480 = vadd.f32 %v5191, %v5479
  %v5481 = vpop.f32.mrf.mxu0
  %5482 = vmatprep.mubr.bf16.mxu0 %v2695
  %5483 = vmatmul.mubr.bf16.gmra.mxu0 %v2694
  %v5484 = vpop.f32.mrf.mxu0
  %v5485 = vadd.f32 %v5196, %v5484
  %v5486 = vpop.f32.mrf.mxu0
  %v5487 = vpop.f32.mrf.mxu0
  %v5488 = vadd.f32 %v5199, %v5487
  %v5489 = vpop.f32.mrf.mxu0
  %5490 = vmatprep.mubr.bf16.mxu0 %v2711
  %5491 = vmatmul.mubr.bf16.gmra.mxu0 %v2710
  %v5492 = vpop.f32.mrf.mxu0
  %v5493 = vadd.f32 %v5204, %v5492
  %v5494 = vpop.f32.mrf.mxu0
  %v5495 = vpop.f32.mrf.mxu0
  %v5496 = vadd.f32 %v5207, %v5495
  %v5497 = vpop.f32.mrf.mxu0
  %5498 = vmatprep.mubr.bf16.mxu0 %v2727
  %5499 = vmatmul.mubr.bf16.gmra.mxu0 %v2726
  %v5500 = vpop.f32.mrf.mxu0
  %v5501 = vadd.f32 %v5212, %v5500
  %v5502 = vpop.f32.mrf.mxu0
  %v5503 = vpop.f32.mrf.mxu0
  %v5504 = vadd.f32 %v5215, %v5503
  %v5505 = vpop.f32.mrf.mxu0
  %5506 = vmatprep.mubr.bf16.mxu0 %v2743
  %5507 = vmatmul.mubr.bf16.gmra.mxu0 %v2742
  %v5508 = vpop.f32.mrf.mxu0
  %v5509 = vadd.f32 %v5220, %v5508
  %v5510 = vpop.f32.mrf.mxu0
  %v5511 = vpop.f32.mrf.mxu0
  %v5512 = vadd.f32 %v5223, %v5511
  %v5513 = vpop.f32.mrf.mxu0
  %5514 = vmatprep.mubr.bf16.mxu0 %v2759
  %5515 = vmatmul.mubr.bf16.gmra.mxu0 %v2758
  %v5516 = vpop.f32.mrf.mxu0
  %v5517 = vadd.f32 %v5228, %v5516
  %v5518 = vpop.f32.mrf.mxu0
  %v5519 = vpop.f32.mrf.mxu0
  %v5520 = vadd.f32 %v5231, %v5519
  %v5521 = vpop.f32.mrf.mxu0
  %5522 = vmatprep.mubr.bf16.mxu0 %v2775
  %5523 = vmatmul.mubr.bf16.gmra.mxu0 %v2774
  %v5524 = vpop.f32.mrf.mxu0
  %v5525 = vadd.f32 %v5236, %v5524
  %v5526 = vpop.f32.mrf.mxu0
  %v5527 = vpop.f32.mrf.mxu0
  %v5528 = vadd.f32 %v5239, %v5527
  %v5529 = vpop.f32.mrf.mxu0
  %5530 = vmatprep.mubr.bf16.mxu0 %v2791
  %5531 = vmatmul.mubr.bf16.gmra.mxu0 %v2790
  %v5532 = vpop.f32.mrf.mxu0
  %v5533 = vadd.f32 %v5244, %v5532
  %v5534 = vpop.f32.mrf.mxu0
  %v5535 = vpop.f32.mrf.mxu0
  %v5536 = vadd.f32 %v5247, %v5535
  %v5537 = vpop.f32.mrf.mxu0
  %5538 = vmatprep.mubr.bf16.mxu0 %v2807
  %5539 = vmatmul.mubr.bf16.gmra.mxu0 %v2806
  %v5540 = vpop.f32.mrf.mxu0
  %v5541 = vadd.f32 %v5252, %v5540
  %v5542 = vpop.f32.mrf.mxu0
  %v5543 = vpop.f32.mrf.mxu0
  %v5544 = vadd.f32 %v5255, %v5543
  %v5545 = vpop.f32.mrf.mxu0
  %5546 = vmatprep.mubr.bf16.mxu0 %v2823
  %5547 = vmatmul.mubr.bf16.gmra.mxu0 %v2822
  %v5548 = vpop.f32.mrf.mxu0
  %v5549 = vadd.f32 %v5260, %v5548
  %v5550 = vpop.f32.mrf.mxu0
  %v5551 = vpop.f32.mrf.mxu0
  %v5552 = vadd.f32 %v5263, %v5551
  %v5553 = vpop.f32.mrf.mxu0
  %5554 = vdwg.mxu0
  %5555 = vmatprep.subr.bf16.mxu0 0
  %5556 = vmatpush1.bf16.msra.mxu0 %v3941
  %5557 = vmatprep.subr.bf16.mxu0 0
  %5558 = vmatpush1.bf16.msra.mxu0 %v3940
  %5559 = vmatprep.subr.bf16.mxu0 0
  %5560 = vmatpush1.bf16.msra.mxu0 %v3939
  %5561 = vmatprep.subr.bf16.mxu0 0
  %5562 = vmatpush1.bf16.msra.mxu0 %v3938
  %5563 = vmatprep.subr.bf16.mxu0 0
  %5564 = vmatpush1.bf16.msra.mxu0 %v3937
  %5565 = vmatprep.subr.bf16.mxu0 0
  %5566 = vmatpush1.bf16.msra.mxu0 %v3936
  %5567 = vmatprep.subr.bf16.mxu0 0
  %5568 = vmatpush1.bf16.msra.mxu0 %v3935
  %5569 = vmatprep.subr.bf16.mxu0 0
  %5570 = vmatpush1.bf16.msra.mxu0 %v3934
  %5571 = vmatprep.subr.bf16.mxu0 0
  %5572 = vmatpush2.bf16.msra.mxu0 %v3949
  %5573 = vmatprep.subr.bf16.mxu0 0
  %5574 = vmatpush2.bf16.msra.mxu0 %v3948
  %5575 = vmatprep.subr.bf16.mxu0 0
  %5576 = vmatpush2.bf16.msra.mxu0 %v3947
  %5577 = vmatprep.subr.bf16.mxu0 0
  %5578 = vmatpush2.bf16.msra.mxu0 %v3946
  %5579 = vmatprep.subr.bf16.mxu0 0
  %5580 = vmatpush2.bf16.msra.mxu0 %v3945
  %5581 = vmatprep.subr.bf16.mxu0 0
  %5582 = vmatpush2.bf16.msra.mxu0 %v3944
  %5583 = vmatprep.subr.bf16.mxu0 0
  %5584 = vmatpush2.bf16.msra.mxu0 %v3943
  %5585 = vmatprep.subr.bf16.mxu0 0
  %5586 = vmatpush2.bf16.msra.mxu0 %v3942
  %5587 = vmatprep.mubr.bf16.mxu0 %v2329
  %5588 = vmatmul.mubr.bf16.gmra.mxu0 %v2328
  %v5589 = vpop.f32.mrf.mxu0
  %v5590 = vadd.f32 %v5301, %v5589
  %v5591 = vpop.f32.mrf.mxu0
  %v5592 = vpop.f32.mrf.mxu0
  %v5593 = vadd.f32 %v5304, %v5592
  %v5594 = vpop.f32.mrf.mxu0
  %5595 = vmatprep.mubr.bf16.mxu0 %v2345
  %5596 = vmatmul.mubr.bf16.gmra.mxu0 %v2344
  %v5597 = vpop.f32.mrf.mxu0
  %v5598 = vadd.f32 %v5309, %v5597
  %v5599 = vpop.f32.mrf.mxu0
  %v5600 = vpop.f32.mrf.mxu0
  %v5601 = vadd.f32 %v5312, %v5600
  %v5602 = vpop.f32.mrf.mxu0
  %5603 = vmatprep.mubr.bf16.mxu0 %v2361
  %5604 = vmatmul.mubr.bf16.gmra.mxu0 %v2360
  %v5605 = vpop.f32.mrf.mxu0
  %v5606 = vadd.f32 %v5317, %v5605
  %v5607 = vpop.f32.mrf.mxu0
  %v5608 = vpop.f32.mrf.mxu0
  %v5609 = vadd.f32 %v5320, %v5608
  %v5610 = vpop.f32.mrf.mxu0
  %5611 = vmatprep.mubr.bf16.mxu0 %v2377
  %5612 = vmatmul.mubr.bf16.gmra.mxu0 %v2376
  %v5613 = vpop.f32.mrf.mxu0
  %v5614 = vadd.f32 %v5325, %v5613
  %v5615 = vpop.f32.mrf.mxu0
  %v5616 = vpop.f32.mrf.mxu0
  %v5617 = vadd.f32 %v5328, %v5616
  %v5618 = vpop.f32.mrf.mxu0
  %5619 = vmatprep.mubr.bf16.mxu0 %v2393
  %5620 = vmatmul.mubr.bf16.gmra.mxu0 %v2392
  %v5621 = vpop.f32.mrf.mxu0
  %v5622 = vadd.f32 %v5333, %v5621
  %v5623 = vpop.f32.mrf.mxu0
  %v5624 = vpop.f32.mrf.mxu0
  %v5625 = vadd.f32 %v5336, %v5624
  %v5626 = vpop.f32.mrf.mxu0
  %5627 = vmatprep.mubr.bf16.mxu0 %v2409
  %5628 = vmatmul.mubr.bf16.gmra.mxu0 %v2408
  %v5629 = vpop.f32.mrf.mxu0
  %v5630 = vadd.f32 %v5341, %v5629
  %v5631 = vpop.f32.mrf.mxu0
  %v5632 = vpop.f32.mrf.mxu0
  %v5633 = vadd.f32 %v5344, %v5632
  %v5634 = vpop.f32.mrf.mxu0
  %5635 = vmatprep.mubr.bf16.mxu0 %v2425
  %5636 = vmatmul.mubr.bf16.gmra.mxu0 %v2424
  %v5637 = vpop.f32.mrf.mxu0
  %v5638 = vadd.f32 %v5349, %v5637
  %v5639 = vpop.f32.mrf.mxu0
  %v5640 = vpop.f32.mrf.mxu0
  %v5641 = vadd.f32 %v5352, %v5640
  %v5642 = vpop.f32.mrf.mxu0
  %5643 = vmatprep.mubr.bf16.mxu0 %v2441
  %5644 = vmatmul.mubr.bf16.gmra.mxu0 %v2440
  %v5645 = vpop.f32.mrf.mxu0
  %v5646 = vadd.f32 %v5357, %v5645
  %v5647 = vpop.f32.mrf.mxu0
  %v5648 = vpop.f32.mrf.mxu0
  %v5649 = vadd.f32 %v5360, %v5648
  %v5650 = vpop.f32.mrf.mxu0
  %5651 = vmatprep.mubr.bf16.mxu0 %v2457
  %5652 = vmatmul.mubr.bf16.gmra.mxu0 %v2456
  %v5653 = vpop.f32.mrf.mxu0
  %v5654 = vadd.f32 %v5365, %v5653
  %v5655 = vpop.f32.mrf.mxu0
  %v5656 = vpop.f32.mrf.mxu0
  %v5657 = vadd.f32 %v5368, %v5656
  %v5658 = vpop.f32.mrf.mxu0
  %5659 = vmatprep.mubr.bf16.mxu0 %v2473
  %5660 = vmatmul.mubr.bf16.gmra.mxu0 %v2472
  %v5661 = vpop.f32.mrf.mxu0
  %v5662 = vadd.f32 %v5373, %v5661
  %v5663 = vpop.f32.mrf.mxu0
  %v5664 = vpop.f32.mrf.mxu0
  %v5665 = vadd.f32 %v5376, %v5664
  %v5666 = vpop.f32.mrf.mxu0
  %5667 = vmatprep.mubr.bf16.mxu0 %v2489
  %5668 = vmatmul.mubr.bf16.gmra.mxu0 %v2488
  %v5669 = vpop.f32.mrf.mxu0
  %v5670 = vadd.f32 %v5381, %v5669
  %v5671 = vpop.f32.mrf.mxu0
  %v5672 = vpop.f32.mrf.mxu0
  %v5673 = vadd.f32 %v5384, %v5672
  %v5674 = vpop.f32.mrf.mxu0
  %5675 = vmatprep.mubr.bf16.mxu0 %v2505
  %5676 = vmatmul.mubr.bf16.gmra.mxu0 %v2504
  %v5677 = vpop.f32.mrf.mxu0
  %v5678 = vadd.f32 %v5389, %v5677
  %v5679 = vpop.f32.mrf.mxu0
  %v5680 = vpop.f32.mrf.mxu0
  %v5681 = vadd.f32 %v5392, %v5680
  %v5682 = vpop.f32.mrf.mxu0
  %5683 = vmatprep.mubr.bf16.mxu0 %v2521
  %5684 = vmatmul.mubr.bf16.gmra.mxu0 %v2520
  %v5685 = vpop.f32.mrf.mxu0
  %v5686 = vadd.f32 %v5397, %v5685
  %v5687 = vpop.f32.mrf.mxu0
  %v5688 = vpop.f32.mrf.mxu0
  %v5689 = vadd.f32 %v5400, %v5688
  %v5690 = vpop.f32.mrf.mxu0
  %5691 = vmatprep.mubr.bf16.mxu0 %v2537
  %5692 = vmatmul.mubr.bf16.gmra.mxu0 %v2536
  %v5693 = vpop.f32.mrf.mxu0
  %v5694 = vadd.f32 %v5405, %v5693
  %v5695 = vpop.f32.mrf.mxu0
  %v5696 = vpop.f32.mrf.mxu0
  %v5697 = vadd.f32 %v5408, %v5696
  %v5698 = vpop.f32.mrf.mxu0
  %5699 = vmatprep.mubr.bf16.mxu0 %v2553
  %5700 = vmatmul.mubr.bf16.gmra.mxu0 %v2552
  %v5701 = vpop.f32.mrf.mxu0
  %v5702 = vadd.f32 %v5413, %v5701
  %v5703 = vpop.f32.mrf.mxu0
  %v5704 = vpop.f32.mrf.mxu0
  %v5705 = vadd.f32 %v5416, %v5704
  %v5706 = vpop.f32.mrf.mxu0
  %5707 = vmatprep.mubr.bf16.mxu0 %v2569
  %5708 = vmatmul.mubr.bf16.gmra.mxu0 %v2568
  %v5709 = vpop.f32.mrf.mxu0
  %v5710 = vadd.f32 %v5421, %v5709
  %v5711 = vpop.f32.mrf.mxu0
  %v5712 = vpop.f32.mrf.mxu0
  %v5713 = vadd.f32 %v5424, %v5712
  %v5714 = vpop.f32.mrf.mxu0
  %5715 = vmatprep.mubr.bf16.mxu0 %v2585
  %5716 = vmatmul.mubr.bf16.gmra.mxu0 %v2584
  %v5717 = vpop.f32.mrf.mxu0
  %v5718 = vadd.f32 %v5429, %v5717
  %v5719 = vpop.f32.mrf.mxu0
  %v5720 = vpop.f32.mrf.mxu0
  %v5721 = vadd.f32 %v5432, %v5720
  %v5722 = vpop.f32.mrf.mxu0
  %5723 = vmatprep.mubr.bf16.mxu0 %v2601
  %5724 = vmatmul.mubr.bf16.gmra.mxu0 %v2600
  %v5725 = vpop.f32.mrf.mxu0
  %v5726 = vadd.f32 %v5437, %v5725
  %v5727 = vpop.f32.mrf.mxu0
  %v5728 = vpop.f32.mrf.mxu0
  %v5729 = vadd.f32 %v5440, %v5728
  %v5730 = vpop.f32.mrf.mxu0
  %5731 = vmatprep.mubr.bf16.mxu0 %v2617
  %5732 = vmatmul.mubr.bf16.gmra.mxu0 %v2616
  %v5733 = vpop.f32.mrf.mxu0
  %v5734 = vadd.f32 %v5445, %v5733
  %v5735 = vpop.f32.mrf.mxu0
  %v5736 = vpop.f32.mrf.mxu0
  %v5737 = vadd.f32 %v5448, %v5736
  %v5738 = vpop.f32.mrf.mxu0
  %5739 = vmatprep.mubr.bf16.mxu0 %v2633
  %5740 = vmatmul.mubr.bf16.gmra.mxu0 %v2632
  %v5741 = vpop.f32.mrf.mxu0
  %v5742 = vadd.f32 %v5453, %v5741
  %v5743 = vpop.f32.mrf.mxu0
  %v5744 = vpop.f32.mrf.mxu0
  %v5745 = vadd.f32 %v5456, %v5744
  %v5746 = vpop.f32.mrf.mxu0
  %5747 = vmatprep.mubr.bf16.mxu0 %v2649
  %5748 = vmatmul.mubr.bf16.gmra.mxu0 %v2648
  %v5749 = vpop.f32.mrf.mxu0
  %v5750 = vadd.f32 %v5461, %v5749
  %v5751 = vpop.f32.mrf.mxu0
  %v5752 = vpop.f32.mrf.mxu0
  %v5753 = vadd.f32 %v5464, %v5752
  %v5754 = vpop.f32.mrf.mxu0
  %5755 = vmatprep.mubr.bf16.mxu0 %v2665
  %5756 = vmatmul.mubr.bf16.gmra.mxu0 %v2664
  %v5757 = vpop.f32.mrf.mxu0
  %v5758 = vadd.f32 %v5469, %v5757
  %v5759 = vpop.f32.mrf.mxu0
  %v5760 = vpop.f32.mrf.mxu0
  %v5761 = vadd.f32 %v5472, %v5760
  %v5762 = vpop.f32.mrf.mxu0
  %5763 = vmatprep.mubr.bf16.mxu0 %v2681
  %5764 = vmatmul.mubr.bf16.gmra.mxu0 %v2680
  %v5765 = vpop.f32.mrf.mxu0
  %v5766 = vadd.f32 %v5477, %v5765
  %v5767 = vpop.f32.mrf.mxu0
  %v5768 = vpop.f32.mrf.mxu0
  %v5769 = vadd.f32 %v5480, %v5768
  %v5770 = vpop.f32.mrf.mxu0
  %5771 = vmatprep.mubr.bf16.mxu0 %v2697
  %5772 = vmatmul.mubr.bf16.gmra.mxu0 %v2696
  %v5773 = vpop.f32.mrf.mxu0
  %v5774 = vadd.f32 %v5485, %v5773
  %v5775 = vpop.f32.mrf.mxu0
  %v5776 = vpop.f32.mrf.mxu0
  %v5777 = vadd.f32 %v5488, %v5776
  %v5778 = vpop.f32.mrf.mxu0
  %5779 = vmatprep.mubr.bf16.mxu0 %v2713
  %5780 = vmatmul.mubr.bf16.gmra.mxu0 %v2712
  %v5781 = vpop.f32.mrf.mxu0
  %v5782 = vadd.f32 %v5493, %v5781
  %v5783 = vpop.f32.mrf.mxu0
  %v5784 = vpop.f32.mrf.mxu0
  %v5785 = vadd.f32 %v5496, %v5784
  %v5786 = vpop.f32.mrf.mxu0
  %5787 = vmatprep.mubr.bf16.mxu0 %v2729
  %5788 = vmatmul.mubr.bf16.gmra.mxu0 %v2728
  %v5789 = vpop.f32.mrf.mxu0
  %v5790 = vadd.f32 %v5501, %v5789
  %v5791 = vpop.f32.mrf.mxu0
  %v5792 = vpop.f32.mrf.mxu0
  %v5793 = vadd.f32 %v5504, %v5792
  %v5794 = vpop.f32.mrf.mxu0
  %5795 = vmatprep.mubr.bf16.mxu0 %v2745
  %5796 = vmatmul.mubr.bf16.gmra.mxu0 %v2744
  %v5797 = vpop.f32.mrf.mxu0
  %v5798 = vadd.f32 %v5509, %v5797
  %v5799 = vpop.f32.mrf.mxu0
  %v5800 = vpop.f32.mrf.mxu0
  %v5801 = vadd.f32 %v5512, %v5800
  %v5802 = vpop.f32.mrf.mxu0
  %5803 = vmatprep.mubr.bf16.mxu0 %v2761
  %5804 = vmatmul.mubr.bf16.gmra.mxu0 %v2760
  %v5805 = vpop.f32.mrf.mxu0
  %v5806 = vadd.f32 %v5517, %v5805
  %v5807 = vpop.f32.mrf.mxu0
  %v5808 = vpop.f32.mrf.mxu0
  %v5809 = vadd.f32 %v5520, %v5808
  %v5810 = vpop.f32.mrf.mxu0
  %5811 = vmatprep.mubr.bf16.mxu0 %v2777
  %5812 = vmatmul.mubr.bf16.gmra.mxu0 %v2776
  %v5813 = vpop.f32.mrf.mxu0
  %v5814 = vadd.f32 %v5525, %v5813
  %v5815 = vpop.f32.mrf.mxu0
  %v5816 = vpop.f32.mrf.mxu0
  %v5817 = vadd.f32 %v5528, %v5816
  %v5818 = vpop.f32.mrf.mxu0
  %5819 = vmatprep.mubr.bf16.mxu0 %v2793
  %5820 = vmatmul.mubr.bf16.gmra.mxu0 %v2792
  %v5821 = vpop.f32.mrf.mxu0
  %v5822 = vadd.f32 %v5533, %v5821
  %v5823 = vpop.f32.mrf.mxu0
  %v5824 = vpop.f32.mrf.mxu0
  %v5825 = vadd.f32 %v5536, %v5824
  %v5826 = vpop.f32.mrf.mxu0
  %5827 = vmatprep.mubr.bf16.mxu0 %v2809
  %5828 = vmatmul.mubr.bf16.gmra.mxu0 %v2808
  %v5829 = vpop.f32.mrf.mxu0
  %v5830 = vadd.f32 %v5541, %v5829
  %v5831 = vpop.f32.mrf.mxu0
  %v5832 = vpop.f32.mrf.mxu0
  %v5833 = vadd.f32 %v5544, %v5832
  %v5834 = vpop.f32.mrf.mxu0
  %5835 = vmatprep.mubr.bf16.mxu0 %v2825
  %5836 = vmatmul.mubr.bf16.gmra.mxu0 %v2824
  %v5837 = vpop.f32.mrf.mxu0
  %v5838 = vadd.f32 %v5549, %v5837
  %v5839 = vpop.f32.mrf.mxu0
  %v5840 = vpop.f32.mrf.mxu0
  %v5841 = vadd.f32 %v5552, %v5840
  %v5842 = vpop.f32.mrf.mxu0
  %5843 = vdwg.mxu0
  %5844 = vmatprep.subr.bf16.mxu0 0
  %5845 = vmatpush1.bf16.msra.mxu0 %v3957
  %5846 = vmatprep.subr.bf16.mxu0 0
  %5847 = vmatpush1.bf16.msra.mxu0 %v3956
  %5848 = vmatprep.subr.bf16.mxu0 0
  %5849 = vmatpush1.bf16.msra.mxu0 %v3955
  %5850 = vmatprep.subr.bf16.mxu0 0
  %5851 = vmatpush1.bf16.msra.mxu0 %v3954
  %5852 = vmatprep.subr.bf16.mxu0 0
  %5853 = vmatpush1.bf16.msra.mxu0 %v3953
  %5854 = vmatprep.subr.bf16.mxu0 0
  %5855 = vmatpush1.bf16.msra.mxu0 %v3952
  %5856 = vmatprep.subr.bf16.mxu0 0
  %5857 = vmatpush1.bf16.msra.mxu0 %v3951
  %5858 = vmatprep.subr.bf16.mxu0 0
  %5859 = vmatpush1.bf16.msra.mxu0 %v3950
  %5860 = vmatprep.subr.bf16.mxu0 0
  %5861 = vmatpush2.bf16.msra.mxu0 %v3965
  %5862 = vmatprep.subr.bf16.mxu0 0
  %5863 = vmatpush2.bf16.msra.mxu0 %v3964
  %5864 = vmatprep.subr.bf16.mxu0 0
  %5865 = vmatpush2.bf16.msra.mxu0 %v3963
  %5866 = vmatprep.subr.bf16.mxu0 0
  %5867 = vmatpush2.bf16.msra.mxu0 %v3962
  %5868 = vmatprep.subr.bf16.mxu0 0
  %5869 = vmatpush2.bf16.msra.mxu0 %v3961
  %5870 = vmatprep.subr.bf16.mxu0 0
  %5871 = vmatpush2.bf16.msra.mxu0 %v3960
  %5872 = vmatprep.subr.bf16.mxu0 0
  %5873 = vmatpush2.bf16.msra.mxu0 %v3959
  %5874 = vmatprep.subr.bf16.mxu0 0
  %5875 = vmatpush2.bf16.msra.mxu0 %v3958
  %5876 = vmatprep.mubr.bf16.mxu0 %v2331
  %5877 = vmatmul.mubr.bf16.gmra.mxu0 %v2330
  %v5878 = vpop.f32.mrf.mxu0
  %v5879 = vadd.f32 %v5590, %v5878
  %v5880 = vpop.f32.mrf.mxu0
  %v5881 = vpop.f32.mrf.mxu0
  %v5882 = vadd.f32 %v5593, %v5881
  %v5883 = vpop.f32.mrf.mxu0
  %5884 = vmatprep.mubr.bf16.mxu0 %v2347
  %5885 = vmatmul.mubr.bf16.gmra.mxu0 %v2346
  %v5886 = vpop.f32.mrf.mxu0
  %v5887 = vadd.f32 %v5598, %v5886
  %v5888 = vpop.f32.mrf.mxu0
  %v5889 = vpop.f32.mrf.mxu0
  %v5890 = vadd.f32 %v5601, %v5889
  %v5891 = vpop.f32.mrf.mxu0
  %5892 = vmatprep.mubr.bf16.mxu0 %v2363
  %5893 = vmatmul.mubr.bf16.gmra.mxu0 %v2362
  %v5894 = vpop.f32.mrf.mxu0
  %v5895 = vadd.f32 %v5606, %v5894
  %v5896 = vpop.f32.mrf.mxu0
  %v5897 = vpop.f32.mrf.mxu0
  %v5898 = vadd.f32 %v5609, %v5897
  %v5899 = vpop.f32.mrf.mxu0
  %5900 = vmatprep.mubr.bf16.mxu0 %v2379
  %5901 = vmatmul.mubr.bf16.gmra.mxu0 %v2378
  %v5902 = vpop.f32.mrf.mxu0
  %v5903 = vadd.f32 %v5614, %v5902
  %v5904 = vpop.f32.mrf.mxu0
  %v5905 = vpop.f32.mrf.mxu0
  %v5906 = vadd.f32 %v5617, %v5905
  %v5907 = vpop.f32.mrf.mxu0
  %5908 = vmatprep.mubr.bf16.mxu0 %v2395
  %5909 = vmatmul.mubr.bf16.gmra.mxu0 %v2394
  %v5910 = vpop.f32.mrf.mxu0
  %v5911 = vadd.f32 %v5622, %v5910
  %v5912 = vpop.f32.mrf.mxu0
  %v5913 = vpop.f32.mrf.mxu0
  %v5914 = vadd.f32 %v5625, %v5913
  %v5915 = vpop.f32.mrf.mxu0
  %5916 = vmatprep.mubr.bf16.mxu0 %v2411
  %5917 = vmatmul.mubr.bf16.gmra.mxu0 %v2410
  %v5918 = vpop.f32.mrf.mxu0
  %v5919 = vadd.f32 %v5630, %v5918
  %v5920 = vpop.f32.mrf.mxu0
  %v5921 = vpop.f32.mrf.mxu0
  %v5922 = vadd.f32 %v5633, %v5921
  %v5923 = vpop.f32.mrf.mxu0
  %5924 = vmatprep.mubr.bf16.mxu0 %v2427
  %5925 = vmatmul.mubr.bf16.gmra.mxu0 %v2426
  %v5926 = vpop.f32.mrf.mxu0
  %v5927 = vadd.f32 %v5638, %v5926
  %v5928 = vpop.f32.mrf.mxu0
  %v5929 = vpop.f32.mrf.mxu0
  %v5930 = vadd.f32 %v5641, %v5929
  %v5931 = vpop.f32.mrf.mxu0
  %5932 = vmatprep.mubr.bf16.mxu0 %v2443
  %5933 = vmatmul.mubr.bf16.gmra.mxu0 %v2442
  %v5934 = vpop.f32.mrf.mxu0
  %v5935 = vadd.f32 %v5646, %v5934
  %v5936 = vpop.f32.mrf.mxu0
  %v5937 = vpop.f32.mrf.mxu0
  %v5938 = vadd.f32 %v5649, %v5937
  %v5939 = vpop.f32.mrf.mxu0
  %5940 = vmatprep.mubr.bf16.mxu0 %v2459
  %5941 = vmatmul.mubr.bf16.gmra.mxu0 %v2458
  %v5942 = vpop.f32.mrf.mxu0
  %v5943 = vadd.f32 %v5654, %v5942
  %v5944 = vpop.f32.mrf.mxu0
  %v5945 = vpop.f32.mrf.mxu0
  %v5946 = vadd.f32 %v5657, %v5945
  %v5947 = vpop.f32.mrf.mxu0
  %5948 = vmatprep.mubr.bf16.mxu0 %v2475
  %5949 = vmatmul.mubr.bf16.gmra.mxu0 %v2474
  %v5950 = vpop.f32.mrf.mxu0
  %v5951 = vadd.f32 %v5662, %v5950
  %v5952 = vpop.f32.mrf.mxu0
  %v5953 = vpop.f32.mrf.mxu0
  %v5954 = vadd.f32 %v5665, %v5953
  %v5955 = vpop.f32.mrf.mxu0
  %5956 = vmatprep.mubr.bf16.mxu0 %v2491
  %5957 = vmatmul.mubr.bf16.gmra.mxu0 %v2490
  %v5958 = vpop.f32.mrf.mxu0
  %v5959 = vadd.f32 %v5670, %v5958
  %v5960 = vpop.f32.mrf.mxu0
  %v5961 = vpop.f32.mrf.mxu0
  %v5962 = vadd.f32 %v5673, %v5961
  %v5963 = vpop.f32.mrf.mxu0
  %5964 = vmatprep.mubr.bf16.mxu0 %v2507
  %5965 = vmatmul.mubr.bf16.gmra.mxu0 %v2506
  %v5966 = vpop.f32.mrf.mxu0
  %v5967 = vadd.f32 %v5678, %v5966
  %v5968 = vpop.f32.mrf.mxu0
  %v5969 = vpop.f32.mrf.mxu0
  %v5970 = vadd.f32 %v5681, %v5969
  %v5971 = vpop.f32.mrf.mxu0
  %5972 = vmatprep.mubr.bf16.mxu0 %v2523
  %5973 = vmatmul.mubr.bf16.gmra.mxu0 %v2522
  %v5974 = vpop.f32.mrf.mxu0
  %v5975 = vadd.f32 %v5686, %v5974
  %v5976 = vpop.f32.mrf.mxu0
  %v5977 = vpop.f32.mrf.mxu0
  %v5978 = vadd.f32 %v5689, %v5977
  %v5979 = vpop.f32.mrf.mxu0
  %5980 = vmatprep.mubr.bf16.mxu0 %v2539
  %5981 = vmatmul.mubr.bf16.gmra.mxu0 %v2538
  %v5982 = vpop.f32.mrf.mxu0
  %v5983 = vadd.f32 %v5694, %v5982
  %v5984 = vpop.f32.mrf.mxu0
  %v5985 = vpop.f32.mrf.mxu0
  %v5986 = vadd.f32 %v5697, %v5985
  %v5987 = vpop.f32.mrf.mxu0
  %5988 = vmatprep.mubr.bf16.mxu0 %v2555
  %5989 = vmatmul.mubr.bf16.gmra.mxu0 %v2554
  %v5990 = vpop.f32.mrf.mxu0
  %v5991 = vadd.f32 %v5702, %v5990
  %v5992 = vpop.f32.mrf.mxu0
  %v5993 = vpop.f32.mrf.mxu0
  %v5994 = vadd.f32 %v5705, %v5993
  %v5995 = vpop.f32.mrf.mxu0
  %5996 = vmatprep.mubr.bf16.mxu0 %v2571
  %5997 = vmatmul.mubr.bf16.gmra.mxu0 %v2570
  %v5998 = vpop.f32.mrf.mxu0
  %v5999 = vadd.f32 %v5710, %v5998
  %v6000 = vpop.f32.mrf.mxu0
  %v6001 = vpop.f32.mrf.mxu0
  %v6002 = vadd.f32 %v5713, %v6001
  %v6003 = vpop.f32.mrf.mxu0
  %6004 = vmatprep.mubr.bf16.mxu0 %v2587
  %6005 = vmatmul.mubr.bf16.gmra.mxu0 %v2586
  %v6006 = vpop.f32.mrf.mxu0
  %v6007 = vadd.f32 %v5718, %v6006
  %v6008 = vpop.f32.mrf.mxu0
  %v6009 = vpop.f32.mrf.mxu0
  %v6010 = vadd.f32 %v5721, %v6009
  %v6011 = vpop.f32.mrf.mxu0
  %6012 = vmatprep.mubr.bf16.mxu0 %v2603
  %6013 = vmatmul.mubr.bf16.gmra.mxu0 %v2602
  %v6014 = vpop.f32.mrf.mxu0
  %v6015 = vadd.f32 %v5726, %v6014
  %v6016 = vpop.f32.mrf.mxu0
  %v6017 = vpop.f32.mrf.mxu0
  %v6018 = vadd.f32 %v5729, %v6017
  %v6019 = vpop.f32.mrf.mxu0
  %6020 = vmatprep.mubr.bf16.mxu0 %v2619
  %6021 = vmatmul.mubr.bf16.gmra.mxu0 %v2618
  %v6022 = vpop.f32.mrf.mxu0
  %v6023 = vadd.f32 %v5734, %v6022
  %v6024 = vpop.f32.mrf.mxu0
  %v6025 = vpop.f32.mrf.mxu0
  %v6026 = vadd.f32 %v5737, %v6025
  %v6027 = vpop.f32.mrf.mxu0
  %6028 = vmatprep.mubr.bf16.mxu0 %v2635
  %6029 = vmatmul.mubr.bf16.gmra.mxu0 %v2634
  %v6030 = vpop.f32.mrf.mxu0
  %v6031 = vadd.f32 %v5742, %v6030
  %v6032 = vpop.f32.mrf.mxu0
  %v6033 = vpop.f32.mrf.mxu0
  %v6034 = vadd.f32 %v5745, %v6033
  %v6035 = vpop.f32.mrf.mxu0
  %6036 = vmatprep.mubr.bf16.mxu0 %v2651
  %6037 = vmatmul.mubr.bf16.gmra.mxu0 %v2650
  %v6038 = vpop.f32.mrf.mxu0
  %v6039 = vadd.f32 %v5750, %v6038
  %v6040 = vpop.f32.mrf.mxu0
  %v6041 = vpop.f32.mrf.mxu0
  %v6042 = vadd.f32 %v5753, %v6041
  %v6043 = vpop.f32.mrf.mxu0
  %6044 = vmatprep.mubr.bf16.mxu0 %v2667
  %6045 = vmatmul.mubr.bf16.gmra.mxu0 %v2666
  %v6046 = vpop.f32.mrf.mxu0
  %v6047 = vadd.f32 %v5758, %v6046
  %v6048 = vpop.f32.mrf.mxu0
  %v6049 = vpop.f32.mrf.mxu0
  %v6050 = vadd.f32 %v5761, %v6049
  %v6051 = vpop.f32.mrf.mxu0
  %6052 = vmatprep.mubr.bf16.mxu0 %v2683
  %6053 = vmatmul.mubr.bf16.gmra.mxu0 %v2682
  %v6054 = vpop.f32.mrf.mxu0
  %v6055 = vadd.f32 %v5766, %v6054
  %v6056 = vpop.f32.mrf.mxu0
  %v6057 = vpop.f32.mrf.mxu0
  %v6058 = vadd.f32 %v5769, %v6057
  %v6059 = vpop.f32.mrf.mxu0
  %6060 = vmatprep.mubr.bf16.mxu0 %v2699
  %6061 = vmatmul.mubr.bf16.gmra.mxu0 %v2698
  %v6062 = vpop.f32.mrf.mxu0
  %v6063 = vadd.f32 %v5774, %v6062
  %v6064 = vpop.f32.mrf.mxu0
  %v6065 = vpop.f32.mrf.mxu0
  %v6066 = vadd.f32 %v5777, %v6065
  %v6067 = vpop.f32.mrf.mxu0
  %6068 = vmatprep.mubr.bf16.mxu0 %v2715
  %6069 = vmatmul.mubr.bf16.gmra.mxu0 %v2714
  %v6070 = vpop.f32.mrf.mxu0
  %v6071 = vadd.f32 %v5782, %v6070
  %v6072 = vpop.f32.mrf.mxu0
  %v6073 = vpop.f32.mrf.mxu0
  %v6074 = vadd.f32 %v5785, %v6073
  %v6075 = vpop.f32.mrf.mxu0
  %6076 = vmatprep.mubr.bf16.mxu0 %v2731
  %6077 = vmatmul.mubr.bf16.gmra.mxu0 %v2730
  %v6078 = vpop.f32.mrf.mxu0
  %v6079 = vadd.f32 %v5790, %v6078
  %v6080 = vpop.f32.mrf.mxu0
  %v6081 = vpop.f32.mrf.mxu0
  %v6082 = vadd.f32 %v5793, %v6081
  %v6083 = vpop.f32.mrf.mxu0
  %6084 = vmatprep.mubr.bf16.mxu0 %v2747
  %6085 = vmatmul.mubr.bf16.gmra.mxu0 %v2746
  %v6086 = vpop.f32.mrf.mxu0
  %v6087 = vadd.f32 %v5798, %v6086
  %v6088 = vpop.f32.mrf.mxu0
  %v6089 = vpop.f32.mrf.mxu0
  %v6090 = vadd.f32 %v5801, %v6089
  %v6091 = vpop.f32.mrf.mxu0
  %6092 = vmatprep.mubr.bf16.mxu0 %v2763
  %6093 = vmatmul.mubr.bf16.gmra.mxu0 %v2762
  %v6094 = vpop.f32.mrf.mxu0
  %v6095 = vadd.f32 %v5806, %v6094
  %v6096 = vpop.f32.mrf.mxu0
  %v6097 = vpop.f32.mrf.mxu0
  %v6098 = vadd.f32 %v5809, %v6097
  %v6099 = vpop.f32.mrf.mxu0
  %6100 = vmatprep.mubr.bf16.mxu0 %v2779
  %6101 = vmatmul.mubr.bf16.gmra.mxu0 %v2778
  %v6102 = vpop.f32.mrf.mxu0
  %v6103 = vadd.f32 %v5814, %v6102
  %v6104 = vpop.f32.mrf.mxu0
  %v6105 = vpop.f32.mrf.mxu0
  %v6106 = vadd.f32 %v5817, %v6105
  %v6107 = vpop.f32.mrf.mxu0
  %6108 = vmatprep.mubr.bf16.mxu0 %v2795
  %6109 = vmatmul.mubr.bf16.gmra.mxu0 %v2794
  %v6110 = vpop.f32.mrf.mxu0
  %v6111 = vadd.f32 %v5822, %v6110
  %v6112 = vpop.f32.mrf.mxu0
  %v6113 = vpop.f32.mrf.mxu0
  %v6114 = vadd.f32 %v5825, %v6113
  %v6115 = vpop.f32.mrf.mxu0
  %6116 = vmatprep.mubr.bf16.mxu0 %v2811
  %6117 = vmatmul.mubr.bf16.gmra.mxu0 %v2810
  %v6118 = vpop.f32.mrf.mxu0
  %v6119 = vadd.f32 %v5830, %v6118
  %v6120 = vpop.f32.mrf.mxu0
  %v6121 = vpop.f32.mrf.mxu0
  %v6122 = vadd.f32 %v5833, %v6121
  %v6123 = vpop.f32.mrf.mxu0
  %6124 = vmatprep.mubr.bf16.mxu0 %v2827
  %6125 = vmatmul.mubr.bf16.gmra.mxu0 %v2826
  %v6126 = vpop.f32.mrf.mxu0
  %v6127 = vadd.f32 %v5838, %v6126
  %v6128 = vpop.f32.mrf.mxu0
  %v6129 = vpop.f32.mrf.mxu0
  %v6130 = vadd.f32 %v5841, %v6129
  %v6131 = vpop.f32.mrf.mxu0
  %6132 = vdwg.mxu0
  %6133 = vmatprep.subr.bf16.mxu0 0
  %6134 = vmatpush1.bf16.msra.mxu0 %v3973
  %6135 = vmatprep.subr.bf16.mxu0 0
  %6136 = vmatpush1.bf16.msra.mxu0 %v3972
  %6137 = vmatprep.subr.bf16.mxu0 0
  %6138 = vmatpush1.bf16.msra.mxu0 %v3971
  %6139 = vmatprep.subr.bf16.mxu0 0
  %6140 = vmatpush1.bf16.msra.mxu0 %v3970
  %6141 = vmatprep.subr.bf16.mxu0 0
  %6142 = vmatpush1.bf16.msra.mxu0 %v3969
  %6143 = vmatprep.subr.bf16.mxu0 0
  %6144 = vmatpush1.bf16.msra.mxu0 %v3968
  %6145 = vmatprep.subr.bf16.mxu0 0
  %6146 = vmatpush1.bf16.msra.mxu0 %v3967
  %6147 = vmatprep.subr.bf16.mxu0 0
  %6148 = vmatpush1.bf16.msra.mxu0 %v3966
  %6149 = vmatprep.subr.bf16.mxu0 0
  %6150 = vmatpush2.bf16.msra.mxu0 %v3981
  %6151 = vmatprep.subr.bf16.mxu0 0
  %6152 = vmatpush2.bf16.msra.mxu0 %v3980
  %6153 = vmatprep.subr.bf16.mxu0 0
  %6154 = vmatpush2.bf16.msra.mxu0 %v3979
  %6155 = vmatprep.subr.bf16.mxu0 0
  %6156 = vmatpush2.bf16.msra.mxu0 %v3978
  %6157 = vmatprep.subr.bf16.mxu0 0
  %6158 = vmatpush2.bf16.msra.mxu0 %v3977
  %6159 = vmatprep.subr.bf16.mxu0 0
  %6160 = vmatpush2.bf16.msra.mxu0 %v3976
  %6161 = vmatprep.subr.bf16.mxu0 0
  %6162 = vmatpush2.bf16.msra.mxu0 %v3975
  %6163 = vmatprep.subr.bf16.mxu0 0
  %6164 = vmatpush2.bf16.msra.mxu0 %v3974
  %6165 = vmatprep.mubr.bf16.mxu0 %v2333
  %6166 = vmatmul.mubr.bf16.gmra.mxu0 %v2332
  %v6167 = vpop.f32.mrf.mxu0
  %v6168 = vadd.f32 %v5879, %v6167
  %v6169 = vpop.f32.mrf.mxu0
  %v6170 = vpop.f32.mrf.mxu0
  %v6171 = vadd.f32 %v5882, %v6170
  %v6172 = vpop.f32.mrf.mxu0
  %6173 = vmatprep.mubr.bf16.mxu0 %v2349
  %6174 = vmatmul.mubr.bf16.gmra.mxu0 %v2348
  %v6175 = vpop.f32.mrf.mxu0
  %v6176 = vadd.f32 %v5887, %v6175
  %v6177 = vpop.f32.mrf.mxu0
  %v6178 = vpop.f32.mrf.mxu0
  %v6179 = vadd.f32 %v5890, %v6178
  %v6180 = vpop.f32.mrf.mxu0
  %6181 = vmatprep.mubr.bf16.mxu0 %v2365
  %6182 = vmatmul.mubr.bf16.gmra.mxu0 %v2364
  %v6183 = vpop.f32.mrf.mxu0
  %v6184 = vadd.f32 %v5895, %v6183
  %v6185 = vpop.f32.mrf.mxu0
  %v6186 = vpop.f32.mrf.mxu0
  %v6187 = vadd.f32 %v5898, %v6186
  %v6188 = vpop.f32.mrf.mxu0
  %6189 = vmatprep.mubr.bf16.mxu0 %v2381
  %6190 = vmatmul.mubr.bf16.gmra.mxu0 %v2380
  %v6191 = vpop.f32.mrf.mxu0
  %v6192 = vadd.f32 %v5903, %v6191
  %v6193 = vpop.f32.mrf.mxu0
  %v6194 = vpop.f32.mrf.mxu0
  %v6195 = vadd.f32 %v5906, %v6194
  %v6196 = vpop.f32.mrf.mxu0
  %6197 = vmatprep.mubr.bf16.mxu0 %v2397
  %6198 = vmatmul.mubr.bf16.gmra.mxu0 %v2396
  %v6199 = vpop.f32.mrf.mxu0
  %v6200 = vadd.f32 %v5911, %v6199
  %v6201 = vpop.f32.mrf.mxu0
  %v6202 = vpop.f32.mrf.mxu0
  %v6203 = vadd.f32 %v5914, %v6202
  %v6204 = vpop.f32.mrf.mxu0
  %6205 = vmatprep.mubr.bf16.mxu0 %v2413
  %6206 = vmatmul.mubr.bf16.gmra.mxu0 %v2412
  %v6207 = vpop.f32.mrf.mxu0
  %v6208 = vadd.f32 %v5919, %v6207
  %v6209 = vpop.f32.mrf.mxu0
  %v6210 = vpop.f32.mrf.mxu0
  %v6211 = vadd.f32 %v5922, %v6210
  %v6212 = vpop.f32.mrf.mxu0
  %6213 = vmatprep.mubr.bf16.mxu0 %v2429
  %6214 = vmatmul.mubr.bf16.gmra.mxu0 %v2428
  %v6215 = vpop.f32.mrf.mxu0
  %v6216 = vadd.f32 %v5927, %v6215
  %v6217 = vpop.f32.mrf.mxu0
  %v6218 = vpop.f32.mrf.mxu0
  %v6219 = vadd.f32 %v5930, %v6218
  %v6220 = vpop.f32.mrf.mxu0
  %6221 = vmatprep.mubr.bf16.mxu0 %v2445
  %6222 = vmatmul.mubr.bf16.gmra.mxu0 %v2444
  %v6223 = vpop.f32.mrf.mxu0
  %v6224 = vadd.f32 %v5935, %v6223
  %v6225 = vpop.f32.mrf.mxu0
  %v6226 = vpop.f32.mrf.mxu0
  %v6227 = vadd.f32 %v5938, %v6226
  %v6228 = vpop.f32.mrf.mxu0
  %6229 = vmatprep.mubr.bf16.mxu0 %v2461
  %6230 = vmatmul.mubr.bf16.gmra.mxu0 %v2460
  %v6231 = vpop.f32.mrf.mxu0
  %v6232 = vadd.f32 %v5943, %v6231
  %v6233 = vpop.f32.mrf.mxu0
  %v6234 = vpop.f32.mrf.mxu0
  %v6235 = vadd.f32 %v5946, %v6234
  %v6236 = vpop.f32.mrf.mxu0
  %6237 = vmatprep.mubr.bf16.mxu0 %v2477
  %6238 = vmatmul.mubr.bf16.gmra.mxu0 %v2476
  %v6239 = vpop.f32.mrf.mxu0
  %v6240 = vadd.f32 %v5951, %v6239
  %v6241 = vpop.f32.mrf.mxu0
  %v6242 = vpop.f32.mrf.mxu0
  %v6243 = vadd.f32 %v5954, %v6242
  %v6244 = vpop.f32.mrf.mxu0
  %6245 = vmatprep.mubr.bf16.mxu0 %v2493
  %6246 = vmatmul.mubr.bf16.gmra.mxu0 %v2492
  %v6247 = vpop.f32.mrf.mxu0
  %v6248 = vadd.f32 %v5959, %v6247
  %v6249 = vpop.f32.mrf.mxu0
  %v6250 = vpop.f32.mrf.mxu0
  %v6251 = vadd.f32 %v5962, %v6250
  %v6252 = vpop.f32.mrf.mxu0
  %6253 = vmatprep.mubr.bf16.mxu0 %v2509
  %6254 = vmatmul.mubr.bf16.gmra.mxu0 %v2508
  %v6255 = vpop.f32.mrf.mxu0
  %v6256 = vadd.f32 %v5967, %v6255
  %v6257 = vpop.f32.mrf.mxu0
  %v6258 = vpop.f32.mrf.mxu0
  %v6259 = vadd.f32 %v5970, %v6258
  %v6260 = vpop.f32.mrf.mxu0
  %6261 = vmatprep.mubr.bf16.mxu0 %v2525
  %6262 = vmatmul.mubr.bf16.gmra.mxu0 %v2524
  %v6263 = vpop.f32.mrf.mxu0
  %v6264 = vadd.f32 %v5975, %v6263
  %v6265 = vpop.f32.mrf.mxu0
  %v6266 = vpop.f32.mrf.mxu0
  %v6267 = vadd.f32 %v5978, %v6266
  %v6268 = vpop.f32.mrf.mxu0
  %6269 = vmatprep.mubr.bf16.mxu0 %v2541
  %6270 = vmatmul.mubr.bf16.gmra.mxu0 %v2540
  %v6271 = vpop.f32.mrf.mxu0
  %v6272 = vadd.f32 %v5983, %v6271
  %v6273 = vpop.f32.mrf.mxu0
  %v6274 = vpop.f32.mrf.mxu0
  %v6275 = vadd.f32 %v5986, %v6274
  %v6276 = vpop.f32.mrf.mxu0
  %6277 = vmatprep.mubr.bf16.mxu0 %v2557
  %6278 = vmatmul.mubr.bf16.gmra.mxu0 %v2556
  %v6279 = vpop.f32.mrf.mxu0
  %v6280 = vadd.f32 %v5991, %v6279
  %v6281 = vpop.f32.mrf.mxu0
  %v6282 = vpop.f32.mrf.mxu0
  %v6283 = vadd.f32 %v5994, %v6282
  %v6284 = vpop.f32.mrf.mxu0
  %6285 = vmatprep.mubr.bf16.mxu0 %v2573
  %6286 = vmatmul.mubr.bf16.gmra.mxu0 %v2572
  %v6287 = vpop.f32.mrf.mxu0
  %v6288 = vadd.f32 %v5999, %v6287
  %v6289 = vpop.f32.mrf.mxu0
  %v6290 = vpop.f32.mrf.mxu0
  %v6291 = vadd.f32 %v6002, %v6290
  %v6292 = vpop.f32.mrf.mxu0
  %6293 = vmatprep.mubr.bf16.mxu0 %v2589
  %6294 = vmatmul.mubr.bf16.gmra.mxu0 %v2588
  %v6295 = vpop.f32.mrf.mxu0
  %v6296 = vadd.f32 %v6007, %v6295
  %v6297 = vpop.f32.mrf.mxu0
  %v6298 = vpop.f32.mrf.mxu0
  %v6299 = vadd.f32 %v6010, %v6298
  %v6300 = vpop.f32.mrf.mxu0
  %6301 = vmatprep.mubr.bf16.mxu0 %v2605
  %6302 = vmatmul.mubr.bf16.gmra.mxu0 %v2604
  %v6303 = vpop.f32.mrf.mxu0
  %v6304 = vadd.f32 %v6015, %v6303
  %v6305 = vpop.f32.mrf.mxu0
  %v6306 = vpop.f32.mrf.mxu0
  %v6307 = vadd.f32 %v6018, %v6306
  %v6308 = vpop.f32.mrf.mxu0
  %6309 = vmatprep.mubr.bf16.mxu0 %v2621
  %6310 = vmatmul.mubr.bf16.gmra.mxu0 %v2620
  %v6311 = vpop.f32.mrf.mxu0
  %v6312 = vadd.f32 %v6023, %v6311
  %v6313 = vpop.f32.mrf.mxu0
  %v6314 = vpop.f32.mrf.mxu0
  %v6315 = vadd.f32 %v6026, %v6314
  %v6316 = vpop.f32.mrf.mxu0
  %6317 = vmatprep.mubr.bf16.mxu0 %v2637
  %6318 = vmatmul.mubr.bf16.gmra.mxu0 %v2636
  %v6319 = vpop.f32.mrf.mxu0
  %v6320 = vadd.f32 %v6031, %v6319
  %v6321 = vpop.f32.mrf.mxu0
  %v6322 = vpop.f32.mrf.mxu0
  %v6323 = vadd.f32 %v6034, %v6322
  %v6324 = vpop.f32.mrf.mxu0
  %6325 = vmatprep.mubr.bf16.mxu0 %v2653
  %6326 = vmatmul.mubr.bf16.gmra.mxu0 %v2652
  %v6327 = vpop.f32.mrf.mxu0
  %v6328 = vadd.f32 %v6039, %v6327
  %v6329 = vpop.f32.mrf.mxu0
  %v6330 = vpop.f32.mrf.mxu0
  %v6331 = vadd.f32 %v6042, %v6330
  %v6332 = vpop.f32.mrf.mxu0
  %6333 = vmatprep.mubr.bf16.mxu0 %v2669
  %6334 = vmatmul.mubr.bf16.gmra.mxu0 %v2668
  %v6335 = vpop.f32.mrf.mxu0
  %v6336 = vadd.f32 %v6047, %v6335
  %v6337 = vpop.f32.mrf.mxu0
  %v6338 = vpop.f32.mrf.mxu0
  %v6339 = vadd.f32 %v6050, %v6338
  %v6340 = vpop.f32.mrf.mxu0
  %6341 = vmatprep.mubr.bf16.mxu0 %v2685
  %6342 = vmatmul.mubr.bf16.gmra.mxu0 %v2684
  %v6343 = vpop.f32.mrf.mxu0
  %v6344 = vadd.f32 %v6055, %v6343
  %v6345 = vpop.f32.mrf.mxu0
  %v6346 = vpop.f32.mrf.mxu0
  %v6347 = vadd.f32 %v6058, %v6346
  %v6348 = vpop.f32.mrf.mxu0
  %6349 = vmatprep.mubr.bf16.mxu0 %v2701
  %6350 = vmatmul.mubr.bf16.gmra.mxu0 %v2700
  %v6351 = vpop.f32.mrf.mxu0
  %v6352 = vadd.f32 %v6063, %v6351
  %v6353 = vpop.f32.mrf.mxu0
  %v6354 = vpop.f32.mrf.mxu0
  %v6355 = vadd.f32 %v6066, %v6354
  %v6356 = vpop.f32.mrf.mxu0
  %6357 = vmatprep.mubr.bf16.mxu0 %v2717
  %6358 = vmatmul.mubr.bf16.gmra.mxu0 %v2716
  %v6359 = vpop.f32.mrf.mxu0
  %v6360 = vadd.f32 %v6071, %v6359
  %v6361 = vpop.f32.mrf.mxu0
  %v6362 = vpop.f32.mrf.mxu0
  %v6363 = vadd.f32 %v6074, %v6362
  %v6364 = vpop.f32.mrf.mxu0
  %6365 = vmatprep.mubr.bf16.mxu0 %v2733
  %6366 = vmatmul.mubr.bf16.gmra.mxu0 %v2732
  %v6367 = vpop.f32.mrf.mxu0
  %v6368 = vadd.f32 %v6079, %v6367
  %v6369 = vpop.f32.mrf.mxu0
  %v6370 = vpop.f32.mrf.mxu0
  %v6371 = vadd.f32 %v6082, %v6370
  %v6372 = vpop.f32.mrf.mxu0
  %6373 = vmatprep.mubr.bf16.mxu0 %v2749
  %6374 = vmatmul.mubr.bf16.gmra.mxu0 %v2748
  %v6375 = vpop.f32.mrf.mxu0
  %v6376 = vadd.f32 %v6087, %v6375
  %v6377 = vpop.f32.mrf.mxu0
  %v6378 = vpop.f32.mrf.mxu0
  %v6379 = vadd.f32 %v6090, %v6378
  %v6380 = vpop.f32.mrf.mxu0
  %6381 = vmatprep.mubr.bf16.mxu0 %v2765
  %6382 = vmatmul.mubr.bf16.gmra.mxu0 %v2764
  %v6383 = vpop.f32.mrf.mxu0
  %v6384 = vadd.f32 %v6095, %v6383
  %v6385 = vpop.f32.mrf.mxu0
  %v6386 = vpop.f32.mrf.mxu0
  %v6387 = vadd.f32 %v6098, %v6386
  %v6388 = vpop.f32.mrf.mxu0
  %6389 = vmatprep.mubr.bf16.mxu0 %v2781
  %6390 = vmatmul.mubr.bf16.gmra.mxu0 %v2780
  %v6391 = vpop.f32.mrf.mxu0
  %v6392 = vadd.f32 %v6103, %v6391
  %v6393 = vpop.f32.mrf.mxu0
  %v6394 = vpop.f32.mrf.mxu0
  %v6395 = vadd.f32 %v6106, %v6394
  %v6396 = vpop.f32.mrf.mxu0
  %6397 = vmatprep.mubr.bf16.mxu0 %v2797
  %6398 = vmatmul.mubr.bf16.gmra.mxu0 %v2796
  %v6399 = vpop.f32.mrf.mxu0
  %v6400 = vadd.f32 %v6111, %v6399
  %v6401 = vpop.f32.mrf.mxu0
  %v6402 = vpop.f32.mrf.mxu0
  %v6403 = vadd.f32 %v6114, %v6402
  %v6404 = vpop.f32.mrf.mxu0
  %6405 = vmatprep.mubr.bf16.mxu0 %v2813
  %6406 = vmatmul.mubr.bf16.gmra.mxu0 %v2812
  %v6407 = vpop.f32.mrf.mxu0
  %v6408 = vadd.f32 %v6119, %v6407
  %v6409 = vpop.f32.mrf.mxu0
  %v6410 = vpop.f32.mrf.mxu0
  %v6411 = vadd.f32 %v6122, %v6410
  %v6412 = vpop.f32.mrf.mxu0
  %6413 = vmatprep.mubr.bf16.mxu0 %v2829
  %6414 = vmatmul.mubr.bf16.gmra.mxu0 %v2828
  %v6415 = vpop.f32.mrf.mxu0
  %v6416 = vadd.f32 %v6127, %v6415
  %v6417 = vpop.f32.mrf.mxu0
  %v6418 = vpop.f32.mrf.mxu0
  %v6419 = vadd.f32 %v6130, %v6418
  %v6420 = vpop.f32.mrf.mxu0
  %6421 = vdwg.mxu0
  %6422 = vst [vmem:[%s2] sm:$0xff] %v6168
  %6423 = vst [vmem:[%s2 + $0x8] sm:$0xff] %v6171
  %6424 = vst [vmem:[%s2 + $0x10] sm:$0xff] %v6176
  %6425 = vst [vmem:[%s2 + $0x18] sm:$0xff] %v6179
  %6426 = vst [vmem:[%s2 + $0x20] sm:$0xff] %v6184
  %6427 = vst [vmem:[%s2 + $0x28] sm:$0xff] %v6187
  %6428 = vst [vmem:[%s2 + $0x30] sm:$0xff] %v6192
  %6429 = vst [vmem:[%s2 + $0x38] sm:$0xff] %v6195
  %6430 = vst [vmem:[%s2 + $0x40] sm:$0xff] %v6200
  %6431 = vst [vmem:[%s2 + $0x48] sm:$0xff] %v6203
  %6432 = vst [vmem:[%s2 + $0x50] sm:$0xff] %v6208
  %6433 = vst [vmem:[%s2 + $0x58] sm:$0xff] %v6211
  %6434 = vst [vmem:[%s2 + $0x60] sm:$0xff] %v6216
  %6435 = vst [vmem:[%s2 + $0x68] sm:$0xff] %v6219
  %6436 = vst [vmem:[%s2 + $0x70] sm:$0xff] %v6224
  %6437 = vst [vmem:[%s2 + $0x78] sm:$0xff] %v6227
  %6438 = vst [vmem:[%s2 + $0x80] sm:$0xff] %v6232
  %6439 = vst [vmem:[%s2 + $0x88] sm:$0xff] %v6235
  %6440 = vst [vmem:[%s2 + $0x90] sm:$0xff] %v6240
  %6441 = vst [vmem:[%s2 + $0x98] sm:$0xff] %v6243
  %6442 = vst [vmem:[%s2 + $0xa0] sm:$0xff] %v6248
  %6443 = vst [vmem:[%s2 + $0xa8] sm:$0xff] %v6251
  %6444 = vst [vmem:[%s2 + $0xb0] sm:$0xff] %v6256
  %6445 = vst [vmem:[%s2 + $0xb8] sm:$0xff] %v6259
  %6446 = vst [vmem:[%s2 + $0xc0] sm:$0xff] %v6264
  %6447 = vst [vmem:[%s2 + $0xc8] sm:$0xff] %v6267
  %6448 = vst [vmem:[%s2 + $0xd0] sm:$0xff] %v6272
  %6449 = vst [vmem:[%s2 + $0xd8] sm:$0xff] %v6275
  %6450 = vst [vmem:[%s2 + $0xe0] sm:$0xff] %v6280
  %6451 = vst [vmem:[%s2 + $0xe8] sm:$0xff] %v6283
  %6452 = vst [vmem:[%s2 + $0xf0] sm:$0xff] %v6288
  %6453 = vst [vmem:[%s2 + $0xf8] sm:$0xff] %v6291
  %6454 = vst [vmem:[%s2 + $0x100] sm:$0xff] %v6296
  %6455 = vst [vmem:[%s2 + $0x108] sm:$0xff] %v6299
  %6456 = vst [vmem:[%s2 + $0x110] sm:$0xff] %v6304
  %6457 = vst [vmem:[%s2 + $0x118] sm:$0xff] %v6307
  %6458 = vst [vmem:[%s2 + $0x120] sm:$0xff] %v6312
  %6459 = vst [vmem:[%s2 + $0x128] sm:$0xff] %v6315
  %6460 = vst [vmem:[%s2 + $0x130] sm:$0xff] %v6320
  %6461 = vst [vmem:[%s2 + $0x138] sm:$0xff] %v6323
  %6462 = vst [vmem:[%s2 + $0x140] sm:$0xff] %v6328
  %6463 = vst [vmem:[%s2 + $0x148] sm:$0xff] %v6331
  %6464 = vst [vmem:[%s2 + $0x150] sm:$0xff] %v6336
  %6465 = vst [vmem:[%s2 + $0x158] sm:$0xff] %v6339
  %6466 = vst [vmem:[%s2 + $0x160] sm:$0xff] %v6344
  %6467 = vst [vmem:[%s2 + $0x168] sm:$0xff] %v6347
  %6468 = vst [vmem:[%s2 + $0x170] sm:$0xff] %v6352
  %6469 = vst [vmem:[%s2 + $0x178] sm:$0xff] %v6355
  %6470 = vst [vmem:[%s2 + $0x180] sm:$0xff] %v6360
  %6471 = vst [vmem:[%s2 + $0x188] sm:$0xff] %v6363
  %6472 = vst [vmem:[%s2 + $0x190] sm:$0xff] %v6368
  %6473 = vst [vmem:[%s2 + $0x198] sm:$0xff] %v6371
  %6474 = vst [vmem:[%s2 + $0x1a0] sm:$0xff] %v6376
  %6475 = vst [vmem:[%s2 + $0x1a8] sm:$0xff] %v6379
  %6476 = vst [vmem:[%s2 + $0x1b0] sm:$0xff] %v6384
  %6477 = vst [vmem:[%s2 + $0x1b8] sm:$0xff] %v6387
  %6478 = vst [vmem:[%s2 + $0x1c0] sm:$0xff] %v6392
  %6479 = vst [vmem:[%s2 + $0x1c8] sm:$0xff] %v6395
  %6480 = vst [vmem:[%s2 + $0x1d0] sm:$0xff] %v6400
  %6481 = vst [vmem:[%s2 + $0x1d8] sm:$0xff] %v6403
  %6482 = vst [vmem:[%s2 + $0x1e0] sm:$0xff] %v6408
  %6483 = vst [vmem:[%s2 + $0x1e8] sm:$0xff] %v6411
  %6484 = vst [vmem:[%s2 + $0x1f0] sm:$0xff] %v6416
  %6485 = vst [vmem:[%s2 + $0x1f8] sm:$0xff] %v6419
  %v6486 = vadd.f32 %v6168, %v6171
  %v6487 = vadd.f32 %v6486, %v6176
  %v6488 = vadd.f32 %v6487, %v6179
  %v6489 = vadd.f32 %v6488, %v6184
  %v6490 = vadd.f32 %v6489, %v6187
  %v6491 = vadd.f32 %v6490, %v6192
  %v6492 = vadd.f32 %v6491, %v6195
  %v6493 = vadd.f32 %v6492, %v6200
  %v6494 = vadd.f32 %v6493, %v6203
  %v6495 = vadd.f32 %v6494, %v6208
  %v6496 = vadd.f32 %v6495, %v6211
  %v6497 = vadd.f32 %v6496, %v6216
  %v6498 = vadd.f32 %v6497, %v6219
  %v6499 = vadd.f32 %v6498, %v6224
  %v6500 = vadd.f32 %v6499, %v6227
  %v6501 = vadd.f32 %v6500, %v6232
  %v6502 = vadd.f32 %v6501, %v6235
  %v6503 = vadd.f32 %v6502, %v6240
  %v6504 = vadd.f32 %v6503, %v6243
  %v6505 = vadd.f32 %v6504, %v6248
  %v6506 = vadd.f32 %v6505, %v6251
  %v6507 = vadd.f32 %v6506, %v6256
  %v6508 = vadd.f32 %v6507, %v6259
  %v6509 = vadd.f32 %v6508, %v6264
  %v6510 = vadd.f32 %v6509, %v6267
  %v6511 = vadd.f32 %v6510, %v6272
  %v6512 = vadd.f32 %v6511, %v6275
  %v6513 = vadd.f32 %v6512, %v6280
  %v6514 = vadd.f32 %v6513, %v6283
  %v6515 = vadd.f32 %v6514, %v6288
  %v6516 = vadd.f32 %v6515, %v6291
  %v6517 = vadd.f32 %v6516, %v6296
  %v6518 = vadd.f32 %v6517, %v6299
  %v6519 = vadd.f32 %v6518, %v6304
  %v6520 = vadd.f32 %v6519, %v6307
  %v6521 = vadd.f32 %v6520, %v6312
  %v6522 = vadd.f32 %v6521, %v6315
  %v6523 = vadd.f32 %v6522, %v6320
  %v6524 = vadd.f32 %v6523, %v6323
  %v6525 = vadd.f32 %v6524, %v6328
  %v6526 = vadd.f32 %v6525, %v6331
  %v6527 = vadd.f32 %v6526, %v6336
  %v6528 = vadd.f32 %v6527, %v6339
  %v6529 = vadd.f32 %v6528, %v6344
  %v6530 = vadd.f32 %v6529, %v6347
  %v6531 = vadd.f32 %v6530, %v6352
  %v6532 = vadd.f32 %v6531, %v6355
  %v6533 = vadd.f32 %v6532, %v6360
  %v6534 = vadd.f32 %v6533, %v6363
  %v6535 = vadd.f32 %v6534, %v6368
  %v6536 = vadd.f32 %v6535, %v6371
  %v6537 = vadd.f32 %v6536, %v6376
  %v6538 = vadd.f32 %v6537, %v6379
  %v6539 = vadd.f32 %v6538, %v6384
  %v6540 = vadd.f32 %v6539, %v6387
  %v6541 = vadd.f32 %v6540, %v6392
  %v6542 = vadd.f32 %v6541, %v6395
  %v6543 = vadd.f32 %v6542, %v6400
  %v6544 = vadd.f32 %v6543, %v6403
  %v6545 = vadd.f32 %v6544, %v6408
  %v6546 = vadd.f32 %v6545, %v6411
  %v6547 = vadd.f32 %v6546, %v6416
  %v6548 = vadd.f32 %v6547, %v6419
  %v6549 = vrot.slane %v6548, 4
  %v6550 = vadd.f32 %v6548, %v6549
  %v6551 = vrot.slane %v6550, 2
  %v6552 = vadd.f32 %v6550, %v6551
  %v6553 = vrot.slane %v6552, 1
  %v6554 = vadd.f32 %v6552, %v6553
  %v6555 = vmul.f32 %v6168, %v6168
  %v6556 = vmul.f32 %v6171, %v6171
  %v6557 = vmul.f32 %v6176, %v6176
  %v6558 = vmul.f32 %v6179, %v6179
  %v6559 = vmul.f32 %v6184, %v6184
  %v6560 = vmul.f32 %v6187, %v6187
  %v6561 = vmul.f32 %v6192, %v6192
  %v6562 = vmul.f32 %v6195, %v6195
  %v6563 = vmul.f32 %v6200, %v6200
  %v6564 = vmul.f32 %v6203, %v6203
  %v6565 = vmul.f32 %v6208, %v6208
  %v6566 = vmul.f32 %v6211, %v6211
  %v6567 = vmul.f32 %v6216, %v6216
  %v6568 = vmul.f32 %v6219, %v6219
  %v6569 = vmul.f32 %v6224, %v6224
  %v6570 = vmul.f32 %v6227, %v6227
  %v6571 = vmul.f32 %v6232, %v6232
  %v6572 = vmul.f32 %v6235, %v6235
  %v6573 = vmul.f32 %v6240, %v6240
  %v6574 = vmul.f32 %v6243, %v6243
  %v6575 = vmul.f32 %v6248, %v6248
  %v6576 = vmul.f32 %v6251, %v6251
  %v6577 = vmul.f32 %v6256, %v6256
  %v6578 = vmul.f32 %v6259, %v6259
  %v6579 = vmul.f32 %v6264, %v6264
  %v6580 = vmul.f32 %v6267, %v6267
  %v6581 = vmul.f32 %v6272, %v6272
  %v6582 = vmul.f32 %v6275, %v6275
  %v6583 = vmul.f32 %v6280, %v6280
  %v6584 = vmul.f32 %v6283, %v6283
  %v6585 = vmul.f32 %v6288, %v6288
  %v6586 = vmul.f32 %v6291, %v6291
  %v6587 = vmul.f32 %v6296, %v6296
  %v6588 = vmul.f32 %v6299, %v6299
  %v6589 = vmul.f32 %v6304, %v6304
  %v6590 = vmul.f32 %v6307, %v6307
  %v6591 = vmul.f32 %v6312, %v6312
  %v6592 = vmul.f32 %v6315, %v6315
  %v6593 = vmul.f32 %v6320, %v6320
  %v6594 = vmul.f32 %v6323, %v6323
  %v6595 = vmul.f32 %v6328, %v6328
  %v6596 = vmul.f32 %v6331, %v6331
  %v6597 = vmul.f32 %v6336, %v6336
  %v6598 = vmul.f32 %v6339, %v6339
  %v6599 = vmul.f32 %v6344, %v6344
  %v6600 = vmul.f32 %v6347, %v6347
  %v6601 = vmul.f32 %v6352, %v6352
  %v6602 = vmul.f32 %v6355, %v6355
  %v6603 = vmul.f32 %v6360, %v6360
  %v6604 = vmul.f32 %v6363, %v6363
  %v6605 = vmul.f32 %v6368, %v6368
  %v6606 = vmul.f32 %v6371, %v6371
  %v6607 = vmul.f32 %v6376, %v6376
  %v6608 = vmul.f32 %v6379, %v6379
  %v6609 = vmul.f32 %v6384, %v6384
  %v6610 = vmul.f32 %v6387, %v6387
  %v6611 = vmul.f32 %v6392, %v6392
  %v6612 = vmul.f32 %v6395, %v6395
  %v6613 = vmul.f32 %v6400, %v6400
  %v6614 = vmul.f32 %v6403, %v6403
  %v6615 = vmul.f32 %v6408, %v6408
  %v6616 = vmul.f32 %v6411, %v6411
  %v6617 = vmul.f32 %v6416, %v6416
  %v6618 = vmul.f32 %v6419, %v6419
  %v6619 = vadd.f32 %v6555, %v6556
  %v6620 = vadd.f32 %v6619, %v6557
  %v6621 = vadd.f32 %v6620, %v6558
  %v6622 = vadd.f32 %v6621, %v6559
  %v6623 = vadd.f32 %v6622, %v6560
  %v6624 = vadd.f32 %v6623, %v6561
  %v6625 = vadd.f32 %v6624, %v6562
  %v6626 = vadd.f32 %v6625, %v6563
  %v6627 = vadd.f32 %v6626, %v6564
  %v6628 = vadd.f32 %v6627, %v6565
  %v6629 = vadd.f32 %v6628, %v6566
  %v6630 = vadd.f32 %v6629, %v6567
  %v6631 = vadd.f32 %v6630, %v6568
  %v6632 = vadd.f32 %v6631, %v6569
  %v6633 = vadd.f32 %v6632, %v6570
  %v6634 = vadd.f32 %v6633, %v6571
  %v6635 = vadd.f32 %v6634, %v6572
  %v6636 = vadd.f32 %v6635, %v6573
  %v6637 = vadd.f32 %v6636, %v6574
  %v6638 = vadd.f32 %v6637, %v6575
  %v6639 = vadd.f32 %v6638, %v6576
  %v6640 = vadd.f32 %v6639, %v6577
  %v6641 = vadd.f32 %v6640, %v6578
  %v6642 = vadd.f32 %v6641, %v6579
  %v6643 = vadd.f32 %v6642, %v6580
  %v6644 = vadd.f32 %v6643, %v6581
  %v6645 = vadd.f32 %v6644, %v6582
  %v6646 = vadd.f32 %v6645, %v6583
  %v6647 = vadd.f32 %v6646, %v6584
  %v6648 = vadd.f32 %v6647, %v6585
  %v6649 = vadd.f32 %v6648, %v6586
  %v6650 = vadd.f32 %v6649, %v6587
  %v6651 = vadd.f32 %v6650, %v6588
  %v6652 = vadd.f32 %v6651, %v6589
  %v6653 = vadd.f32 %v6652, %v6590
  %v6654 = vadd.f32 %v6653, %v6591
  %v6655 = vadd.f32 %v6654, %v6592
  %v6656 = vadd.f32 %v6655, %v6593
  %v6657 = vadd.f32 %v6656, %v6594
  %v6658 = vadd.f32 %v6657, %v6595
  %v6659 = vadd.f32 %v6658, %v6596
  %v6660 = vadd.f32 %v6659, %v6597
  %v6661 = vadd.f32 %v6660, %v6598
  %v6662 = vadd.f32 %v6661, %v6599
  %v6663 = vadd.f32 %v6662, %v6600
  %v6664 = vadd.f32 %v6663, %v6601
  %v6665 = vadd.f32 %v6664, %v6602
  %v6666 = vadd.f32 %v6665, %v6603
  %v6667 = vadd.f32 %v6666, %v6604
  %v6668 = vadd.f32 %v6667, %v6605
  %v6669 = vadd.f32 %v6668, %v6606
  %v6670 = vadd.f32 %v6669, %v6607
  %v6671 = vadd.f32 %v6670, %v6608
  %v6672 = vadd.f32 %v6671, %v6609
  %v6673 = vadd.f32 %v6672, %v6610
  %v6674 = vadd.f32 %v6673, %v6611
  %v6675 = vadd.f32 %v6674, %v6612
  %v6676 = vadd.f32 %v6675, %v6613
  %v6677 = vadd.f32 %v6676, %v6614
  %v6678 = vadd.f32 %v6677, %v6615
  %v6679 = vadd.f32 %v6678, %v6616
  %v6680 = vadd.f32 %v6679, %v6617
  %v6681 = vadd.f32 %v6680, %v6618
  %v6682 = vrot.slane %v6681, 4
  %v6683 = vadd.f32 %v6681, %v6682
  %v6684 = vrot.slane %v6683, 2
  %v6685 = vadd.f32 %v6683, %v6684
  %v6686 = vrot.slane %v6685, 1
  %v6687 = vadd.f32 %v6685, %v6686
  %vm6688 = vcmask 1040384
  %v6689 = vsel %vm6688, %v6554, %v6687
  %6690 = vst [vmem:[%s3] sm:$0x3] %v6689
  // Predicated region
  $region10: #{discriminator_forward.9} parent=0 // pred_check
    _
  $region11: #{discriminator_forward.9} parent=0 // pred_check_branch
    %6692 = sbr.rel (0) target = $region13
  $region12: #{discriminator_forward.9} parent=0 // pred_region
    _
  $region13: #{discriminator_forward.9} parent=0 // pred_fallthru
    _
  // Predicated region
  $region14: #{discriminator_forward.9} parent=0 // pred_check
    _
  $region15: #{discriminator_forward.9} parent=0 // pred_check_branch
    %6694 = sbr.rel (0) target = $region17
  $region16: #{discriminator_forward.9} parent=0 // pred_region
    _
  $region17: #{discriminator_forward.9} parent=0 // pred_fallthru
    _
  // Predicated region
  $region18: #{discriminator_forward.9} parent=0 // pred_check
    _
  $region19: #{discriminator_forward.9} parent=0 // pred_check_branch
    %6696 = sbr.rel (0) target = $region21
  $region20: #{discriminator_forward.9} parent=0 // pred_region
    _
  $region21: #{discriminator_forward.9} parent=0 // pred_fallthru
    _
  // Predicated region
  $region22: #{discriminator_forward.9} parent=0 // pred_check
    _
  $region23: #{discriminator_forward.9} parent=0 // pred_check_branch
    %6698 = sbr.rel (0) target = $region25
  $region24: #{discriminator_forward.9} parent=0 // pred_region
    _
  $region25: #{discriminator_forward.9} parent=0 // pred_fallthru
    _

// kernel: discriminator_forward.12
$region0: #{discriminator_forward.12}
  #allocation0 [shape = 'u32[]', space=smem, size = 0x4, offset = 0x4, fixed_abs, tag = 'smem constant byte address 0x4 - core index']
  #allocation1 [shape = 'u32[144,128]{1,0:T(1,128)}', space=vmem, size = 0x12000, scoped, tag = 'internal scratch']
  %s0 = inlined_call_operand.vmem [shape: f32[128,128], index: 0, kind: input, shape index: {}]
  %s1 = inlined_call_operand.vmem [shape: f32[2,128], index: 1, kind: input, shape index: {}]
  %s2 = inlined_call_operand.vmem [shape: bf16[128,128], index: 2, kind: output, shape index: {}]
  %s3 = sld [smem:[#allocation0]]
  $region18: #{discriminator_forward.12} parent=0
    _
  %s5 = ssub.s32 1, %s3
  %s6 = scalar_select 0, %s5, %s3
  // Predicated region
  $region2: #{discriminator_forward.12} parent=0 // pred_check
    _
  $region3: #{discriminator_forward.12} parent=0 // pred_check_branch
    %8 = sbr.rel (0) target = $region5
  $region4: #{discriminator_forward.12} parent=0 // pred_region
    _
  $region5: #{discriminator_forward.12} parent=0 // pred_fallthru
    _
  // Predicated region
  $region6: #{discriminator_forward.12} parent=0 // pred_check
    _
  $region7: #{discriminator_forward.12} parent=0 // pred_check_branch
    %10 = sbr.rel (0) target = $region9
  $region8: #{discriminator_forward.12} parent=0 // pred_region
    _
  $region9: #{discriminator_forward.12} parent=0 // pred_fallthru
    _
  %v11 = vld [vmem:[%s0] sm:$0xff]
  %v12 = vld [vmem:[%s0 + $0x8] sm:$0xff]
  %v13 = vld [vmem:[%s0 + $0x10] sm:$0xff]
  %v14 = vld [vmem:[%s0 + $0x18] sm:$0xff]
  %v15 = vld [vmem:[%s0 + $0x20] sm:$0xff]
  %v16 = vld [vmem:[%s0 + $0x28] sm:$0xff]
  %v17 = vld [vmem:[%s0 + $0x30] sm:$0xff]
  %v18 = vld [vmem:[%s0 + $0x38] sm:$0xff]
  %v19 = vld [vmem:[%s0 + $0x40] sm:$0xff]
  %v20 = vld [vmem:[%s0 + $0x48] sm:$0xff]
  %v21 = vld [vmem:[%s0 + $0x50] sm:$0xff]
  %v22 = vld [vmem:[%s0 + $0x58] sm:$0xff]
  %v23 = vld [vmem:[%s0 + $0x60] sm:$0xff]
  %v24 = vld [vmem:[%s0 + $0x68] sm:$0xff]
  %v25 = vld [vmem:[%s0 + $0x70] sm:$0xff]
  %v26 = vld [vmem:[%s0 + $0x78] sm:$0xff]
  %v27 = vld [vmem:[%s1] sm:$0x1]
  %v28 = vld [vmem:[%s1 + $0x1] sm:$0x1]
  %v29 = vlaneseq
  %v30 = vshrl.u32 %v29, 7
  %v31 = vsub.s32 0, %v30
  %v32 = vrot.slane %v27, %v31
  %v33 = vmul.f32 %v11, %v32
  %v34 = vmul.f32 %v12, %v32
  %v35 = vmul.f32 %v13, %v32
  %v36 = vmul.f32 %v14, %v32
  %v37 = vmul.f32 %v15, %v32
  %v38 = vmul.f32 %v16, %v32
  %v39 = vmul.f32 %v17, %v32
  %v40 = vmul.f32 %v18, %v32
  %v41 = vmul.f32 %v19, %v32
  %v42 = vmul.f32 %v20, %v32
  %v43 = vmul.f32 %v21, %v32
  %v44 = vmul.f32 %v22, %v32
  %v45 = vmul.f32 %v23, %v32
  %v46 = vmul.f32 %v24, %v32
  %v47 = vmul.f32 %v25, %v32
  %v48 = vmul.f32 %v26, %v32
  %v49 = vlaneseq
  %v50 = vshrl.u32 %v49, 7
  %v51 = vsub.s32 0, %v50
  %v52 = vrot.slane %v28, %v51
  %v53 = vadd.f32 %v33, %v52
  %v54 = vadd.f32 %v34, %v52
  %v55 = vadd.f32 %v35, %v52
  %v56 = vadd.f32 %v36, %v52
  %v57 = vadd.f32 %v37, %v52
  %v58 = vadd.f32 %v38, %v52
  %v59 = vadd.f32 %v39, %v52
  %v60 = vadd.f32 %v40, %v52
  %v61 = vadd.f32 %v41, %v52
  %v62 = vadd.f32 %v42, %v52
  %v63 = vadd.f32 %v43, %v52
  %v64 = vadd.f32 %v44, %v52
  %v65 = vadd.f32 %v45, %v52
  %v66 = vadd.f32 %v46, %v52
  %v67 = vadd.f32 %v47, %v52
  %v68 = vadd.f32 %v48, %v52
  %vm69 = vcmp.gt.f32.partialorder %v53, 0.0
  %vm70 = vcmp.gt.f32.partialorder %v54, 0.0
  %vm71 = vcmp.gt.f32.partialorder %v55, 0.0
  %vm72 = vcmp.gt.f32.partialorder %v56, 0.0
  %vm73 = vcmp.gt.f32.partialorder %v57, 0.0
  %vm74 = vcmp.gt.f32.partialorder %v58, 0.0
  %vm75 = vcmp.gt.f32.partialorder %v59, 0.0
  %vm76 = vcmp.gt.f32.partialorder %v60, 0.0
  %vm77 = vcmp.gt.f32.partialorder %v61, 0.0
  %vm78 = vcmp.gt.f32.partialorder %v62, 0.0
  %vm79 = vcmp.gt.f32.partialorder %v63, 0.0
  %vm80 = vcmp.gt.f32.partialorder %v64, 0.0
  %vm81 = vcmp.gt.f32.partialorder %v65, 0.0
  %vm82 = vcmp.gt.f32.partialorder %v66, 0.0
  %vm83 = vcmp.gt.f32.partialorder %v67, 0.0
  %vm84 = vcmp.gt.f32.partialorder %v68, 0.0
  %v85 = vmul.f32 %v53, 0.2
  %v86 = vmul.f32 %v54, 0.2
  %v87 = vmul.f32 %v55, 0.2
  %v88 = vmul.f32 %v56, 0.2
  %v89 = vmul.f32 %v57, 0.2
  %v90 = vmul.f32 %v58, 0.2
  %v91 = vmul.f32 %v59, 0.2
  %v92 = vmul.f32 %v60, 0.2
  %v93 = vmul.f32 %v61, 0.2
  %v94 = vmul.f32 %v62, 0.2
  %v95 = vmul.f32 %v63, 0.2
  %v96 = vmul.f32 %v64, 0.2
  %v97 = vmul.f32 %v65, 0.2
  %v98 = vmul.f32 %v66, 0.2
  %v99 = vmul.f32 %v67, 0.2
  %v100 = vmul.f32 %v68, 0.2
  %v101 = vsel %vm69, %v53, %v85
  %v102 = vsel %vm70, %v54, %v86
  %v103 = vsel %vm71, %v55, %v87
  %v104 = vsel %vm72, %v56, %v88
  %v105 = vsel %vm73, %v57, %v89
  %v106 = vsel %vm74, %v58, %v90
  %v107 = vsel %vm75, %v59, %v91
  %v108 = vsel %vm76, %v60, %v92
  %v109 = vsel %vm77, %v61, %v93
  %v110 = vsel %vm78, %v62, %v94
  %v111 = vsel %vm79, %v63, %v95
  %v112 = vsel %vm80, %v64, %v96
  %v113 = vsel %vm81, %v65, %v97
  %v114 = vsel %vm82, %v66, %v98
  %v115 = vsel %vm83, %v67, %v99
  %v116 = vsel %vm84, %v68, %v100
  %v117 = vpack.c.bf16 %v102, %v101
  %v118 = vpack.c.bf16 %v104, %v103
  %v119 = vpack.c.bf16 %v106, %v105
  %v120 = vpack.c.bf16 %v108, %v107
  %v121 = vpack.c.bf16 %v110, %v109
  %v122 = vpack.c.bf16 %v112, %v111
  %v123 = vpack.c.bf16 %v114, %v113
  %v124 = vpack.c.bf16 %v116, %v115
  %v133 = vunpack.c.l.b16 %v117
  %v134 = vunpack.c.h.b16 %v117
  %v135 = vunpack.c.l.b16 %v118
  %v136 = vunpack.c.h.b16 %v118
  %v137 = vunpack.c.l.b16 %v119
  %v138 = vunpack.c.h.b16 %v119
  %v139 = vunpack.c.l.b16 %v120
  %v140 = vunpack.c.h.b16 %v120
  %v141 = vunpack.c.l.b16 %v121
  %v142 = vunpack.c.h.b16 %v121
  %v143 = vunpack.c.l.b16 %v122
  %v144 = vunpack.c.h.b16 %v122
  %v145 = vunpack.c.l.b16 %v123
  %v146 = vunpack.c.h.b16 %v123
  %v147 = vunpack.c.l.b16 %v124
  %v148 = vunpack.c.h.b16 %v124
  %v149 = vpack.c.b16 %v133, %v133
  %v150 = vpack.c.b16 %v134, %v134
  %v151 = vpack.c.b16 %v135, %v135
  %v152 = vpack.c.b16 %v136, %v136
  %v153 = vpack.c.b16 %v137, %v137
  %v154 = vpack.c.b16 %v138, %v138
  %v155 = vpack.c.b16 %v139, %v139
  %v156 = vpack.c.b16 %v140, %v140
  %v157 = vpack.c.b16 %v141, %v141
  %v158 = vpack.c.b16 %v142, %v142
  %v159 = vpack.c.b16 %v143, %v143
  %v160 = vpack.c.b16 %v144, %v144
  %v161 = vpack.c.b16 %v145, %v145
  %v162 = vpack.c.b16 %v146, %v146
  %v163 = vpack.c.b16 %v147, %v147
  %v164 = vpack.c.b16 %v148, %v148
  %181 = vst [vmem:[%s2] sm:$0xf] %v149
  %182 = vst [vmem:[%s2 + $0x4] sm:$0xf] %v150
  %183 = vst [vmem:[%s2 + $0x8] sm:$0xf] %v151
  %184 = vst [vmem:[%s2 + $0xc] sm:$0xf] %v152
  %185 = vst [vmem:[%s2 + $0x10] sm:$0xf] %v153
  %186 = vst [vmem:[%s2 + $0x14] sm:$0xf] %v154
  %187 = vst [vmem:[%s2 + $0x18] sm:$0xf] %v155
  %188 = vst [vmem:[%s2 + $0x1c] sm:$0xf] %v156
  %189 = vst [vmem:[%s2 + $0x20] sm:$0xf] %v157
  %190 = vst [vmem:[%s2 + $0x24] sm:$0xf] %v158
  %191 = vst [vmem:[%s2 + $0x28] sm:$0xf] %v159
  %192 = vst [vmem:[%s2 + $0x2c] sm:$0xf] %v160
  %193 = vst [vmem:[%s2 + $0x30] sm:$0xf] %v161
  %194 = vst [vmem:[%s2 + $0x34] sm:$0xf] %v162
  %195 = vst [vmem:[%s2 + $0x38] sm:$0xf] %v163
  %196 = vst [vmem:[%s2 + $0x3c] sm:$0xf] %v164
  // Predicated region
  $region10: #{discriminator_forward.12} parent=0 // pred_check
    _
  $region11: #{discriminator_forward.12} parent=0 // pred_check_branch
    %198 = sbr.rel (0) target = $region13
  $region12: #{discriminator_forward.12} parent=0 // pred_region
    _
  $region13: #{discriminator_forward.12} parent=0 // pred_fallthru
    _
  // Predicated region
  $region14: #{discriminator_forward.12} parent=0 // pred_check
    _
  $region15: #{discriminator_forward.12} parent=0 // pred_check_branch
    %200 = sbr.rel (0) target = $region17
  $region16: #{discriminator_forward.12} parent=0 // pred_region
    _
  $region17: #{discriminator_forward.12} parent=0 // pred_fallthru
    _

// kernel: discriminator_forward.11
$region0: #{discriminator_forward.11}
  #allocation0 [shape = 'u32[]', space=smem, size = 0x4, offset = 0x4, fixed_abs, tag = 'smem constant byte address 0x4 - core index']
  #allocation1 [shape = 'u32[144,128]{1,0:T(1,128)}', space=vmem, size = 0x12000, scoped, tag = 'internal scratch']
  %s0 = inlined_call_operand.vmem [shape: bf16[128,2048], index: 0, kind: input, shape index: {}]
  %s1 = inlined_call_operand.vmem [shape: bf16[2048,128], index: 1, kind: input, shape index: {}]
  %s2 = inlined_call_operand.vmem [shape: f32[128,128], index: 2, kind: output, shape index: {0}]
  %s3 = inlined_call_operand.vmem [shape: f32[1,2,128], index: 3, kind: output, shape index: {1}]
  %4 = xla_tuple %s2, %s3
  %s5 = sld [smem:[#allocation0]]
  $region26: #{discriminator_forward.11} parent=0
    _
  %s7 = ssub.s32 1, %s5
  %s8 = scalar_select 0, %s7, %s5
  // Predicated region
  $region2: #{discriminator_forward.11} parent=0 // pred_check
    _
  $region3: #{discriminator_forward.11} parent=0 // pred_check_branch
    %10 = sbr.rel (0) target = $region5
  $region4: #{discriminator_forward.11} parent=0 // pred_region
    _
  $region5: #{discriminator_forward.11} parent=0 // pred_fallthru
    _
  // Predicated region
  $region6: #{discriminator_forward.11} parent=0 // pred_check
    _
  $region7: #{discriminator_forward.11} parent=0 // pred_check_branch
    %12 = sbr.rel (0) target = $region9
  $region8: #{discriminator_forward.11} parent=0 // pred_region
    _
  $region9: #{discriminator_forward.11} parent=0 // pred_fallthru
    _
  %v14 = vld [vmem:[%s0] sm:$0xff]
  %v15 = vld [vmem:[%s0 + $0x8] sm:$0xff]
  %v16 = vld [vmem:[%s0 + $0x10] sm:$0xff]
  %v17 = vld [vmem:[%s0 + $0x18] sm:$0xff]
  %v18 = vld [vmem:[%s0 + $0x20] sm:$0xff]
  %v19 = vld [vmem:[%s0 + $0x28] sm:$0xff]
  %v20 = vld [vmem:[%s0 + $0x30] sm:$0xff]
  %v21 = vld [vmem:[%s0 + $0x38] sm:$0xff]
  %v22 = vld [vmem:[%s0 + $0x40] sm:$0xff]
  %v23 = vld [vmem:[%s0 + $0x48] sm:$0xff]
  %v24 = vld [vmem:[%s0 + $0x50] sm:$0xff]
  %v25 = vld [vmem:[%s0 + $0x58] sm:$0xff]
  %v26 = vld [vmem:[%s0 + $0x60] sm:$0xff]
  %v27 = vld [vmem:[%s0 + $0x68] sm:$0xff]
  %v28 = vld [vmem:[%s0 + $0x70] sm:$0xff]
  %v29 = vld [vmem:[%s0 + $0x78] sm:$0xff]
  %v30 = vld [vmem:[%s0 + $0x80] sm:$0xff]
  %v31 = vld [vmem:[%s0 + $0x88] sm:$0xff]
  %v32 = vld [vmem:[%s0 + $0x90] sm:$0xff]
  %v33 = vld [vmem:[%s0 + $0x98] sm:$0xff]
  %v34 = vld [vmem:[%s0 + $0xa0] sm:$0xff]
  %v35 = vld [vmem:[%s0 + $0xa8] sm:$0xff]
  %v36 = vld [vmem:[%s0 + $0xb0] sm:$0xff]
  %v37 = vld [vmem:[%s0 + $0xb8] sm:$0xff]
  %v38 = vld [vmem:[%s0 + $0xc0] sm:$0xff]
  %v39 = vld [vmem:[%s0 + $0xc8] sm:$0xff]
  %v40 = vld [vmem:[%s0 + $0xd0] sm:$0xff]
  %v41 = vld [vmem:[%s0 + $0xd8] sm:$0xff]
  %v42 = vld [vmem:[%s0 + $0xe0] sm:$0xff]
  %v43 = vld [vmem:[%s0 + $0xe8] sm:$0xff]
  %v44 = vld [vmem:[%s0 + $0xf0] sm:$0xff]
  %v45 = vld [vmem:[%s0 + $0xf8] sm:$0xff]
  %v46 = vld [vmem:[%s0 + $0x100] sm:$0xff]
  %v47 = vld [vmem:[%s0 + $0x108] sm:$0xff]
  %v48 = vld [vmem:[%s0 + $0x110] sm:$0xff]
  %v49 = vld [vmem:[%s0 + $0x118] sm:$0xff]
  %v50 = vld [vmem:[%s0 + $0x120] sm:$0xff]
  %v51 = vld [vmem:[%s0 + $0x128] sm:$0xff]
  %v52 = vld [vmem:[%s0 + $0x130] sm:$0xff]
  %v53 = vld [vmem:[%s0 + $0x138] sm:$0xff]
  %v54 = vld [vmem:[%s0 + $0x140] sm:$0xff]
  %v55 = vld [vmem:[%s0 + $0x148] sm:$0xff]
  %v56 = vld [vmem:[%s0 + $0x150] sm:$0xff]
  %v57 = vld [vmem:[%s0 + $0x158] sm:$0xff]
  %v58 = vld [vmem:[%s0 + $0x160] sm:$0xff]
  %v59 = vld [vmem:[%s0 + $0x168] sm:$0xff]
  %v60 = vld [vmem:[%s0 + $0x170] sm:$0xff]
  %v61 = vld [vmem:[%s0 + $0x178] sm:$0xff]
  %v62 = vld [vmem:[%s0 + $0x180] sm:$0xff]
  %v63 = vld [vmem:[%s0 + $0x188] sm:$0xff]
  %v64 = vld [vmem:[%s0 + $0x190] sm:$0xff]
  %v65 = vld [vmem:[%s0 + $0x198] sm:$0xff]
  %v66 = vld [vmem:[%s0 + $0x1a0] sm:$0xff]
  %v67 = vld [vmem:[%s0 + $0x1a8] sm:$0xff]
  %v68 = vld [vmem:[%s0 + $0x1b0] sm:$0xff]
  %v69 = vld [vmem:[%s0 + $0x1b8] sm:$0xff]
  %v70 = vld [vmem:[%s0 + $0x1c0] sm:$0xff]
  %v71 = vld [vmem:[%s0 + $0x1c8] sm:$0xff]
  %v72 = vld [vmem:[%s0 + $0x1d0] sm:$0xff]
  %v73 = vld [vmem:[%s0 + $0x1d8] sm:$0xff]
  %v74 = vld [vmem:[%s0 + $0x1e0] sm:$0xff]
  %v75 = vld [vmem:[%s0 + $0x1e8] sm:$0xff]
  %v76 = vld [vmem:[%s0 + $0x1f0] sm:$0xff]
  %v77 = vld [vmem:[%s0 + $0x1f8] sm:$0xff]
  %v78 = vld [vmem:[%s0 + $0x200] sm:$0xff]
  %v79 = vld [vmem:[%s0 + $0x208] sm:$0xff]
  %v80 = vld [vmem:[%s0 + $0x210] sm:$0xff]
  %v81 = vld [vmem:[%s0 + $0x218] sm:$0xff]
  %v82 = vld [vmem:[%s0 + $0x220] sm:$0xff]
  %v83 = vld [vmem:[%s0 + $0x228] sm:$0xff]
  %v84 = vld [vmem:[%s0 + $0x230] sm:$0xff]
  %v85 = vld [vmem:[%s0 + $0x238] sm:$0xff]
  %v86 = vld [vmem:[%s0 + $0x240] sm:$0xff]
  %v87 = vld [vmem:[%s0 + $0x248] sm:$0xff]
  %v88 = vld [vmem:[%s0 + $0x250] sm:$0xff]
  %v89 = vld [vmem:[%s0 + $0x258] sm:$0xff]
  %v90 = vld [vmem:[%s0 + $0x260] sm:$0xff]
  %v91 = vld [vmem:[%s0 + $0x268] sm:$0xff]
  %v92 = vld [vmem:[%s0 + $0x270] sm:$0xff]
  %v93 = vld [vmem:[%s0 + $0x278] sm:$0xff]
  %v94 = vld [vmem:[%s0 + $0x280] sm:$0xff]
  %v95 = vld [vmem:[%s0 + $0x288] sm:$0xff]
  %v96 = vld [vmem:[%s0 + $0x290] sm:$0xff]
  %v97 = vld [vmem:[%s0 + $0x298] sm:$0xff]
  %v98 = vld [vmem:[%s0 + $0x2a0] sm:$0xff]
  %v99 = vld [vmem:[%s0 + $0x2a8] sm:$0xff]
  %v100 = vld [vmem:[%s0 + $0x2b0] sm:$0xff]
  %v101 = vld [vmem:[%s0 + $0x2b8] sm:$0xff]
  %v102 = vld [vmem:[%s0 + $0x2c0] sm:$0xff]
  %v103 = vld [vmem:[%s0 + $0x2c8] sm:$0xff]
  %v104 = vld [vmem:[%s0 + $0x2d0] sm:$0xff]
  %v105 = vld [vmem:[%s0 + $0x2d8] sm:$0xff]
  %v106 = vld [vmem:[%s0 + $0x2e0] sm:$0xff]
  %v107 = vld [vmem:[%s0 + $0x2e8] sm:$0xff]
  %v108 = vld [vmem:[%s0 + $0x2f0] sm:$0xff]
  %v109 = vld [vmem:[%s0 + $0x2f8] sm:$0xff]
  %v110 = vld [vmem:[%s0 + $0x300] sm:$0xff]
  %v111 = vld [vmem:[%s0 + $0x308] sm:$0xff]
  %v112 = vld [vmem:[%s0 + $0x310] sm:$0xff]
  %v113 = vld [vmem:[%s0 + $0x318] sm:$0xff]
  %v114 = vld [vmem:[%s0 + $0x320] sm:$0xff]
  %v115 = vld [vmem:[%s0 + $0x328] sm:$0xff]
  %v116 = vld [vmem:[%s0 + $0x330] sm:$0xff]
  %v117 = vld [vmem:[%s0 + $0x338] sm:$0xff]
  %v118 = vld [vmem:[%s0 + $0x340] sm:$0xff]
  %v119 = vld [vmem:[%s0 + $0x348] sm:$0xff]
  %v120 = vld [vmem:[%s0 + $0x350] sm:$0xff]
  %v121 = vld [vmem:[%s0 + $0x358] sm:$0xff]
  %v122 = vld [vmem:[%s0 + $0x360] sm:$0xff]
  %v123 = vld [vmem:[%s0 + $0x368] sm:$0xff]
  %v124 = vld [vmem:[%s0 + $0x370] sm:$0xff]
  %v125 = vld [vmem:[%s0 + $0x378] sm:$0xff]
  %v126 = vld [vmem:[%s0 + $0x380] sm:$0xff]
  %v127 = vld [vmem:[%s0 + $0x388] sm:$0xff]
  %v128 = vld [vmem:[%s0 + $0x390] sm:$0xff]
  %v129 = vld [vmem:[%s0 + $0x398] sm:$0xff]
  %v130 = vld [vmem:[%s0 + $0x3a0] sm:$0xff]
  %v131 = vld [vmem:[%s0 + $0x3a8] sm:$0xff]
  %v132 = vld [vmem:[%s0 + $0x3b0] sm:$0xff]
  %v133 = vld [vmem:[%s0 + $0x3b8] sm:$0xff]
  %v134 = vld [vmem:[%s0 + $0x3c0] sm:$0xff]
  %v135 = vld [vmem:[%s0 + $0x3c8] sm:$0xff]
  %v136 = vld [vmem:[%s0 + $0x3d0] sm:$0xff]
  %v137 = vld [vmem:[%s0 + $0x3d8] sm:$0xff]
  %v138 = vld [vmem:[%s0 + $0x3e0] sm:$0xff]
  %v139 = vld [vmem:[%s0 + $0x3e8] sm:$0xff]
  %v140 = vld [vmem:[%s0 + $0x3f0] sm:$0xff]
  %v141 = vld [vmem:[%s0 + $0x3f8] sm:$0xff]
  %v142 = vld [vmem:[%s1] sm:$0xf]
  %v143 = vld [vmem:[%s1 + $0x4] sm:$0xf]
  %v144 = vld [vmem:[%s1 + $0x8] sm:$0xf]
  %v145 = vld [vmem:[%s1 + $0xc] sm:$0xf]
  %v146 = vld [vmem:[%s1 + $0x10] sm:$0xf]
  %v147 = vld [vmem:[%s1 + $0x14] sm:$0xf]
  %v148 = vld [vmem:[%s1 + $0x18] sm:$0xf]
  %v149 = vld [vmem:[%s1 + $0x1c] sm:$0xf]
  %v150 = vld [vmem:[%s1 + $0x20] sm:$0xf]
  %v151 = vld [vmem:[%s1 + $0x24] sm:$0xf]
  %v152 = vld [vmem:[%s1 + $0x28] sm:$0xf]
  %v153 = vld [vmem:[%s1 + $0x2c] sm:$0xf]
  %v154 = vld [vmem:[%s1 + $0x30] sm:$0xf]
  %v155 = vld [vmem:[%s1 + $0x34] sm:$0xf]
  %v156 = vld [vmem:[%s1 + $0x38] sm:$0xf]
  %v157 = vld [vmem:[%s1 + $0x3c] sm:$0xf]
  %v158 = vld [vmem:[%s1 + $0x40] sm:$0xf]
  %v159 = vld [vmem:[%s1 + $0x44] sm:$0xf]
  %v160 = vld [vmem:[%s1 + $0x48] sm:$0xf]
  %v161 = vld [vmem:[%s1 + $0x4c] sm:$0xf]
  %v162 = vld [vmem:[%s1 + $0x50] sm:$0xf]
  %v163 = vld [vmem:[%s1 + $0x54] sm:$0xf]
  %v164 = vld [vmem:[%s1 + $0x58] sm:$0xf]
  %v165 = vld [vmem:[%s1 + $0x5c] sm:$0xf]
  %v166 = vld [vmem:[%s1 + $0x60] sm:$0xf]
  %v167 = vld [vmem:[%s1 + $0x64] sm:$0xf]
  %v168 = vld [vmem:[%s1 + $0x68] sm:$0xf]
  %v169 = vld [vmem:[%s1 + $0x6c] sm:$0xf]
  %v170 = vld [vmem:[%s1 + $0x70] sm:$0xf]
  %v171 = vld [vmem:[%s1 + $0x74] sm:$0xf]
  %v172 = vld [vmem:[%s1 + $0x78] sm:$0xf]
  %v173 = vld [vmem:[%s1 + $0x7c] sm:$0xf]
  %v174 = vld [vmem:[%s1 + $0x80] sm:$0xf]
  %v175 = vld [vmem:[%s1 + $0x84] sm:$0xf]
  %v176 = vld [vmem:[%s1 + $0x88] sm:$0xf]
  %v177 = vld [vmem:[%s1 + $0x8c] sm:$0xf]
  %v178 = vld [vmem:[%s1 + $0x90] sm:$0xf]
  %v179 = vld [vmem:[%s1 + $0x94] sm:$0xf]
  %v180 = vld [vmem:[%s1 + $0x98] sm:$0xf]
  %v181 = vld [vmem:[%s1 + $0x9c] sm:$0xf]
  %v182 = vld [vmem:[%s1 + $0xa0] sm:$0xf]
  %v183 = vld [vmem:[%s1 + $0xa4] sm:$0xf]
  %v184 = vld [vmem:[%s1 + $0xa8] sm:$0xf]
  %v185 = vld [vmem:[%s1 + $0xac] sm:$0xf]
  %v186 = vld [vmem:[%s1 + $0xb0] sm:$0xf]
  %v187 = vld [vmem:[%s1 + $0xb4] sm:$0xf]
  %v188 = vld [vmem:[%s1 + $0xb8] sm:$0xf]
  %v189 = vld [vmem:[%s1 + $0xbc] sm:$0xf]
  %v190 = vld [vmem:[%s1 + $0xc0] sm:$0xf]
  %v191 = vld [vmem:[%s1 + $0xc4] sm:$0xf]
  %v192 = vld [vmem:[%s1 + $0xc8] sm:$0xf]
  %v193 = vld [vmem:[%s1 + $0xcc] sm:$0xf]
  %v194 = vld [vmem:[%s1 + $0xd0] sm:$0xf]
  %v195 = vld [vmem:[%s1 + $0xd4] sm:$0xf]
  %v196 = vld [vmem:[%s1 + $0xd8] sm:$0xf]
  %v197 = vld [vmem:[%s1 + $0xdc] sm:$0xf]
  %v198 = vld [vmem:[%s1 + $0xe0] sm:$0xf]
  %v199 = vld [vmem:[%s1 + $0xe4] sm:$0xf]
  %v200 = vld [vmem:[%s1 + $0xe8] sm:$0xf]
  %v201 = vld [vmem:[%s1 + $0xec] sm:$0xf]
  %v202 = vld [vmem:[%s1 + $0xf0] sm:$0xf]
  %v203 = vld [vmem:[%s1 + $0xf4] sm:$0xf]
  %v204 = vld [vmem:[%s1 + $0xf8] sm:$0xf]
  %v205 = vld [vmem:[%s1 + $0xfc] sm:$0xf]
  %v206 = vld [vmem:[%s1 + $0x100] sm:$0xf]
  %v207 = vld [vmem:[%s1 + $0x104] sm:$0xf]
  %v208 = vld [vmem:[%s1 + $0x108] sm:$0xf]
  %v209 = vld [vmem:[%s1 + $0x10c] sm:$0xf]
  %v210 = vld [vmem:[%s1 + $0x110] sm:$0xf]
  %v211 = vld [vmem:[%s1 + $0x114] sm:$0xf]
  %v212 = vld [vmem:[%s1 + $0x118] sm:$0xf]
  %v213 = vld [vmem:[%s1 + $0x11c] sm:$0xf]
  %v214 = vld [vmem:[%s1 + $0x120] sm:$0xf]
  %v215 = vld [vmem:[%s1 + $0x124] sm:$0xf]
  %v216 = vld [vmem:[%s1 + $0x128] sm:$0xf]
  %v217 = vld [vmem:[%s1 + $0x12c] sm:$0xf]
  %v218 = vld [vmem:[%s1 + $0x130] sm:$0xf]
  %v219 = vld [vmem:[%s1 + $0x134] sm:$0xf]
  %v220 = vld [vmem:[%s1 + $0x138] sm:$0xf]
  %v221 = vld [vmem:[%s1 + $0x13c] sm:$0xf]
  %v222 = vld [vmem:[%s1 + $0x140] sm:$0xf]
  %v223 = vld [vmem:[%s1 + $0x144] sm:$0xf]
  %v224 = vld [vmem:[%s1 + $0x148] sm:$0xf]
  %v225 = vld [vmem:[%s1 + $0x14c] sm:$0xf]
  %v226 = vld [vmem:[%s1 + $0x150] sm:$0xf]
  %v227 = vld [vmem:[%s1 + $0x154] sm:$0xf]
  %v228 = vld [vmem:[%s1 + $0x158] sm:$0xf]
  %v229 = vld [vmem:[%s1 + $0x15c] sm:$0xf]
  %v230 = vld [vmem:[%s1 + $0x160] sm:$0xf]
  %v231 = vld [vmem:[%s1 + $0x164] sm:$0xf]
  %v232 = vld [vmem:[%s1 + $0x168] sm:$0xf]
  %v233 = vld [vmem:[%s1 + $0x16c] sm:$0xf]
  %v234 = vld [vmem:[%s1 + $0x170] sm:$0xf]
  %v235 = vld [vmem:[%s1 + $0x174] sm:$0xf]
  %v236 = vld [vmem:[%s1 + $0x178] sm:$0xf]
  %v237 = vld [vmem:[%s1 + $0x17c] sm:$0xf]
  %v238 = vld [vmem:[%s1 + $0x180] sm:$0xf]
  %v239 = vld [vmem:[%s1 + $0x184] sm:$0xf]
  %v240 = vld [vmem:[%s1 + $0x188] sm:$0xf]
  %v241 = vld [vmem:[%s1 + $0x18c] sm:$0xf]
  %v242 = vld [vmem:[%s1 + $0x190] sm:$0xf]
  %v243 = vld [vmem:[%s1 + $0x194] sm:$0xf]
  %v244 = vld [vmem:[%s1 + $0x198] sm:$0xf]
  %v245 = vld [vmem:[%s1 + $0x19c] sm:$0xf]
  %v246 = vld [vmem:[%s1 + $0x1a0] sm:$0xf]
  %v247 = vld [vmem:[%s1 + $0x1a4] sm:$0xf]
  %v248 = vld [vmem:[%s1 + $0x1a8] sm:$0xf]
  %v249 = vld [vmem:[%s1 + $0x1ac] sm:$0xf]
  %v250 = vld [vmem:[%s1 + $0x1b0] sm:$0xf]
  %v251 = vld [vmem:[%s1 + $0x1b4] sm:$0xf]
  %v252 = vld [vmem:[%s1 + $0x1b8] sm:$0xf]
  %v253 = vld [vmem:[%s1 + $0x1bc] sm:$0xf]
  %v254 = vld [vmem:[%s1 + $0x1c0] sm:$0xf]
  %v255 = vld [vmem:[%s1 + $0x1c4] sm:$0xf]
  %v256 = vld [vmem:[%s1 + $0x1c8] sm:$0xf]
  %v257 = vld [vmem:[%s1 + $0x1cc] sm:$0xf]
  %v258 = vld [vmem:[%s1 + $0x1d0] sm:$0xf]
  %v259 = vld [vmem:[%s1 + $0x1d4] sm:$0xf]
  %v260 = vld [vmem:[%s1 + $0x1d8] sm:$0xf]
  %v261 = vld [vmem:[%s1 + $0x1dc] sm:$0xf]
  %v262 = vld [vmem:[%s1 + $0x1e0] sm:$0xf]
  %v263 = vld [vmem:[%s1 + $0x1e4] sm:$0xf]
  %v264 = vld [vmem:[%s1 + $0x1e8] sm:$0xf]
  %v265 = vld [vmem:[%s1 + $0x1ec] sm:$0xf]
  %v266 = vld [vmem:[%s1 + $0x1f0] sm:$0xf]
  %v267 = vld [vmem:[%s1 + $0x1f4] sm:$0xf]
  %v268 = vld [vmem:[%s1 + $0x1f8] sm:$0xf]
  %v269 = vld [vmem:[%s1 + $0x1fc] sm:$0xf]
  %v270 = vld [vmem:[%s1 + $0x200] sm:$0xf]
  %v271 = vld [vmem:[%s1 + $0x204] sm:$0xf]
  %v272 = vld [vmem:[%s1 + $0x208] sm:$0xf]
  %v273 = vld [vmem:[%s1 + $0x20c] sm:$0xf]
  %v274 = vld [vmem:[%s1 + $0x210] sm:$0xf]
  %v275 = vld [vmem:[%s1 + $0x214] sm:$0xf]
  %v276 = vld [vmem:[%s1 + $0x218] sm:$0xf]
  %v277 = vld [vmem:[%s1 + $0x21c] sm:$0xf]
  %v278 = vld [vmem:[%s1 + $0x220] sm:$0xf]
  %v279 = vld [vmem:[%s1 + $0x224] sm:$0xf]
  %v280 = vld [vmem:[%s1 + $0x228] sm:$0xf]
  %v281 = vld [vmem:[%s1 + $0x22c] sm:$0xf]
  %v282 = vld [vmem:[%s1 + $0x230] sm:$0xf]
  %v283 = vld [vmem:[%s1 + $0x234] sm:$0xf]
  %v284 = vld [vmem:[%s1 + $0x238] sm:$0xf]
  %v285 = vld [vmem:[%s1 + $0x23c] sm:$0xf]
  %v286 = vld [vmem:[%s1 + $0x240] sm:$0xf]
  %v287 = vld [vmem:[%s1 + $0x244] sm:$0xf]
  %v288 = vld [vmem:[%s1 + $0x248] sm:$0xf]
  %v289 = vld [vmem:[%s1 + $0x24c] sm:$0xf]
  %v290 = vld [vmem:[%s1 + $0x250] sm:$0xf]
  %v291 = vld [vmem:[%s1 + $0x254] sm:$0xf]
  %v292 = vld [vmem:[%s1 + $0x258] sm:$0xf]
  %v293 = vld [vmem:[%s1 + $0x25c] sm:$0xf]
  %v294 = vld [vmem:[%s1 + $0x260] sm:$0xf]
  %v295 = vld [vmem:[%s1 + $0x264] sm:$0xf]
  %v296 = vld [vmem:[%s1 + $0x268] sm:$0xf]
  %v297 = vld [vmem:[%s1 + $0x26c] sm:$0xf]
  %v298 = vld [vmem:[%s1 + $0x270] sm:$0xf]
  %v299 = vld [vmem:[%s1 + $0x274] sm:$0xf]
  %v300 = vld [vmem:[%s1 + $0x278] sm:$0xf]
  %v301 = vld [vmem:[%s1 + $0x27c] sm:$0xf]
  %v302 = vld [vmem:[%s1 + $0x280] sm:$0xf]
  %v303 = vld [vmem:[%s1 + $0x284] sm:$0xf]
  %v304 = vld [vmem:[%s1 + $0x288] sm:$0xf]
  %v305 = vld [vmem:[%s1 + $0x28c] sm:$0xf]
  %v306 = vld [vmem:[%s1 + $0x290] sm:$0xf]
  %v307 = vld [vmem:[%s1 + $0x294] sm:$0xf]
  %v308 = vld [vmem:[%s1 + $0x298] sm:$0xf]
  %v309 = vld [vmem:[%s1 + $0x29c] sm:$0xf]
  %v310 = vld [vmem:[%s1 + $0x2a0] sm:$0xf]
  %v311 = vld [vmem:[%s1 + $0x2a4] sm:$0xf]
  %v312 = vld [vmem:[%s1 + $0x2a8] sm:$0xf]
  %v313 = vld [vmem:[%s1 + $0x2ac] sm:$0xf]
  %v314 = vld [vmem:[%s1 + $0x2b0] sm:$0xf]
  %v315 = vld [vmem:[%s1 + $0x2b4] sm:$0xf]
  %v316 = vld [vmem:[%s1 + $0x2b8] sm:$0xf]
  %v317 = vld [vmem:[%s1 + $0x2bc] sm:$0xf]
  %v318 = vld [vmem:[%s1 + $0x2c0] sm:$0xf]
  %v319 = vld [vmem:[%s1 + $0x2c4] sm:$0xf]
  %v320 = vld [vmem:[%s1 + $0x2c8] sm:$0xf]
  %v321 = vld [vmem:[%s1 + $0x2cc] sm:$0xf]
  %v322 = vld [vmem:[%s1 + $0x2d0] sm:$0xf]
  %v323 = vld [vmem:[%s1 + $0x2d4] sm:$0xf]
  %v324 = vld [vmem:[%s1 + $0x2d8] sm:$0xf]
  %v325 = vld [vmem:[%s1 + $0x2dc] sm:$0xf]
  %v326 = vld [vmem:[%s1 + $0x2e0] sm:$0xf]
  %v327 = vld [vmem:[%s1 + $0x2e4] sm:$0xf]
  %v328 = vld [vmem:[%s1 + $0x2e8] sm:$0xf]
  %v329 = vld [vmem:[%s1 + $0x2ec] sm:$0xf]
  %v330 = vld [vmem:[%s1 + $0x2f0] sm:$0xf]
  %v331 = vld [vmem:[%s1 + $0x2f4] sm:$0xf]
  %v332 = vld [vmem:[%s1 + $0x2f8] sm:$0xf]
  %v333 = vld [vmem:[%s1 + $0x2fc] sm:$0xf]
  %v334 = vld [vmem:[%s1 + $0x300] sm:$0xf]
  %v335 = vld [vmem:[%s1 + $0x304] sm:$0xf]
  %v336 = vld [vmem:[%s1 + $0x308] sm:$0xf]
  %v337 = vld [vmem:[%s1 + $0x30c] sm:$0xf]
  %v338 = vld [vmem:[%s1 + $0x310] sm:$0xf]
  %v339 = vld [vmem:[%s1 + $0x314] sm:$0xf]
  %v340 = vld [vmem:[%s1 + $0x318] sm:$0xf]
  %v341 = vld [vmem:[%s1 + $0x31c] sm:$0xf]
  %v342 = vld [vmem:[%s1 + $0x320] sm:$0xf]
  %v343 = vld [vmem:[%s1 + $0x324] sm:$0xf]
  %v344 = vld [vmem:[%s1 + $0x328] sm:$0xf]
  %v345 = vld [vmem:[%s1 + $0x32c] sm:$0xf]
  %v346 = vld [vmem:[%s1 + $0x330] sm:$0xf]
  %v347 = vld [vmem:[%s1 + $0x334] sm:$0xf]
  %v348 = vld [vmem:[%s1 + $0x338] sm:$0xf]
  %v349 = vld [vmem:[%s1 + $0x33c] sm:$0xf]
  %v350 = vld [vmem:[%s1 + $0x340] sm:$0xf]
  %v351 = vld [vmem:[%s1 + $0x344] sm:$0xf]
  %v352 = vld [vmem:[%s1 + $0x348] sm:$0xf]
  %v353 = vld [vmem:[%s1 + $0x34c] sm:$0xf]
  %v354 = vld [vmem:[%s1 + $0x350] sm:$0xf]
  %v355 = vld [vmem:[%s1 + $0x354] sm:$0xf]
  %v356 = vld [vmem:[%s1 + $0x358] sm:$0xf]
  %v357 = vld [vmem:[%s1 + $0x35c] sm:$0xf]
  %v358 = vld [vmem:[%s1 + $0x360] sm:$0xf]
  %v359 = vld [vmem:[%s1 + $0x364] sm:$0xf]
  %v360 = vld [vmem:[%s1 + $0x368] sm:$0xf]
  %v361 = vld [vmem:[%s1 + $0x36c] sm:$0xf]
  %v362 = vld [vmem:[%s1 + $0x370] sm:$0xf]
  %v363 = vld [vmem:[%s1 + $0x374] sm:$0xf]
  %v364 = vld [vmem:[%s1 + $0x378] sm:$0xf]
  %v365 = vld [vmem:[%s1 + $0x37c] sm:$0xf]
  %v366 = vld [vmem:[%s1 + $0x380] sm:$0xf]
  %v367 = vld [vmem:[%s1 + $0x384] sm:$0xf]
  %v368 = vld [vmem:[%s1 + $0x388] sm:$0xf]
  %v369 = vld [vmem:[%s1 + $0x38c] sm:$0xf]
  %v370 = vld [vmem:[%s1 + $0x390] sm:$0xf]
  %v371 = vld [vmem:[%s1 + $0x394] sm:$0xf]
  %v372 = vld [vmem:[%s1 + $0x398] sm:$0xf]
  %v373 = vld [vmem:[%s1 + $0x39c] sm:$0xf]
  %v374 = vld [vmem:[%s1 + $0x3a0] sm:$0xf]
  %v375 = vld [vmem:[%s1 + $0x3a4] sm:$0xf]
  %v376 = vld [vmem:[%s1 + $0x3a8] sm:$0xf]
  %v377 = vld [vmem:[%s1 + $0x3ac] sm:$0xf]
  %v378 = vld [vmem:[%s1 + $0x3b0] sm:$0xf]
  %v379 = vld [vmem:[%s1 + $0x3b4] sm:$0xf]
  %v380 = vld [vmem:[%s1 + $0x3b8] sm:$0xf]
  %v381 = vld [vmem:[%s1 + $0x3bc] sm:$0xf]
  %v382 = vld [vmem:[%s1 + $0x3c0] sm:$0xf]
  %v383 = vld [vmem:[%s1 + $0x3c4] sm:$0xf]
  %v384 = vld [vmem:[%s1 + $0x3c8] sm:$0xf]
  %v385 = vld [vmem:[%s1 + $0x3cc] sm:$0xf]
  %v386 = vld [vmem:[%s1 + $0x3d0] sm:$0xf]
  %v387 = vld [vmem:[%s1 + $0x3d4] sm:$0xf]
  %v388 = vld [vmem:[%s1 + $0x3d8] sm:$0xf]
  %v389 = vld [vmem:[%s1 + $0x3dc] sm:$0xf]
  %v390 = vld [vmem:[%s1 + $0x3e0] sm:$0xf]
  %v391 = vld [vmem:[%s1 + $0x3e4] sm:$0xf]
  %v392 = vld [vmem:[%s1 + $0x3e8] sm:$0xf]
  %v393 = vld [vmem:[%s1 + $0x3ec] sm:$0xf]
  %v394 = vld [vmem:[%s1 + $0x3f0] sm:$0xf]
  %v395 = vld [vmem:[%s1 + $0x3f4] sm:$0xf]
  %v396 = vld [vmem:[%s1 + $0x3f8] sm:$0xf]
  %v397 = vld [vmem:[%s1 + $0x3fc] sm:$0xf]
  %v526 = vunpack.c.l.b16 %v14
  %v527 = vunpack.c.h.b16 %v14
  %v528 = vunpack.c.l.b16 %v15
  %v529 = vunpack.c.h.b16 %v15
  %v530 = vunpack.c.l.b16 %v16
  %v531 = vunpack.c.h.b16 %v16
  %v532 = vunpack.c.l.b16 %v17
  %v533 = vunpack.c.h.b16 %v17
  %v534 = vunpack.c.l.b16 %v18
  %v535 = vunpack.c.h.b16 %v18
  %v536 = vunpack.c.l.b16 %v19
  %v537 = vunpack.c.h.b16 %v19
  %v538 = vunpack.c.l.b16 %v20
  %v539 = vunpack.c.h.b16 %v20
  %v540 = vunpack.c.l.b16 %v21
  %v541 = vunpack.c.h.b16 %v21
  %v542 = vunpack.c.l.b16 %v22
  %v543 = vunpack.c.h.b16 %v22
  %v544 = vunpack.c.l.b16 %v23
  %v545 = vunpack.c.h.b16 %v23
  %v546 = vunpack.c.l.b16 %v24
  %v547 = vunpack.c.h.b16 %v24
  %v548 = vunpack.c.l.b16 %v25
  %v549 = vunpack.c.h.b16 %v25
  %v550 = vunpack.c.l.b16 %v26
  %v551 = vunpack.c.h.b16 %v26
  %v552 = vunpack.c.l.b16 %v27
  %v553 = vunpack.c.h.b16 %v27
  %v554 = vunpack.c.l.b16 %v28
  %v555 = vunpack.c.h.b16 %v28
  %v556 = vunpack.c.l.b16 %v29
  %v557 = vunpack.c.h.b16 %v29
  %v558 = vunpack.c.l.b16 %v30
  %v559 = vunpack.c.h.b16 %v30
  %v560 = vunpack.c.l.b16 %v31
  %v561 = vunpack.c.h.b16 %v31
  %v562 = vunpack.c.l.b16 %v32
  %v563 = vunpack.c.h.b16 %v32
  %v564 = vunpack.c.l.b16 %v33
  %v565 = vunpack.c.h.b16 %v33
  %v566 = vunpack.c.l.b16 %v34
  %v567 = vunpack.c.h.b16 %v34
  %v568 = vunpack.c.l.b16 %v35
  %v569 = vunpack.c.h.b16 %v35
  %v570 = vunpack.c.l.b16 %v36
  %v571 = vunpack.c.h.b16 %v36
  %v572 = vunpack.c.l.b16 %v37
  %v573 = vunpack.c.h.b16 %v37
  %v574 = vunpack.c.l.b16 %v38
  %v575 = vunpack.c.h.b16 %v38
  %v576 = vunpack.c.l.b16 %v39
  %v577 = vunpack.c.h.b16 %v39
  %v578 = vunpack.c.l.b16 %v40
  %v579 = vunpack.c.h.b16 %v40
  %v580 = vunpack.c.l.b16 %v41
  %v581 = vunpack.c.h.b16 %v41
  %v582 = vunpack.c.l.b16 %v42
  %v583 = vunpack.c.h.b16 %v42
  %v584 = vunpack.c.l.b16 %v43
  %v585 = vunpack.c.h.b16 %v43
  %v586 = vunpack.c.l.b16 %v44
  %v587 = vunpack.c.h.b16 %v44
  %v588 = vunpack.c.l.b16 %v45
  %v589 = vunpack.c.h.b16 %v45
  %v590 = vunpack.c.l.b16 %v46
  %v591 = vunpack.c.h.b16 %v46
  %v592 = vunpack.c.l.b16 %v47
  %v593 = vunpack.c.h.b16 %v47
  %v594 = vunpack.c.l.b16 %v48
  %v595 = vunpack.c.h.b16 %v48
  %v596 = vunpack.c.l.b16 %v49
  %v597 = vunpack.c.h.b16 %v49
  %v598 = vunpack.c.l.b16 %v50
  %v599 = vunpack.c.h.b16 %v50
  %v600 = vunpack.c.l.b16 %v51
  %v601 = vunpack.c.h.b16 %v51
  %v602 = vunpack.c.l.b16 %v52
  %v603 = vunpack.c.h.b16 %v52
  %v604 = vunpack.c.l.b16 %v53
  %v605 = vunpack.c.h.b16 %v53
  %v606 = vunpack.c.l.b16 %v54
  %v607 = vunpack.c.h.b16 %v54
  %v608 = vunpack.c.l.b16 %v55
  %v609 = vunpack.c.h.b16 %v55
  %v610 = vunpack.c.l.b16 %v56
  %v611 = vunpack.c.h.b16 %v56
  %v612 = vunpack.c.l.b16 %v57
  %v613 = vunpack.c.h.b16 %v57
  %v614 = vunpack.c.l.b16 %v58
  %v615 = vunpack.c.h.b16 %v58
  %v616 = vunpack.c.l.b16 %v59
  %v617 = vunpack.c.h.b16 %v59
  %v618 = vunpack.c.l.b16 %v60
  %v619 = vunpack.c.h.b16 %v60
  %v620 = vunpack.c.l.b16 %v61
  %v621 = vunpack.c.h.b16 %v61
  %v622 = vunpack.c.l.b16 %v62
  %v623 = vunpack.c.h.b16 %v62
  %v624 = vunpack.c.l.b16 %v63
  %v625 = vunpack.c.h.b16 %v63
  %v626 = vunpack.c.l.b16 %v64
  %v627 = vunpack.c.h.b16 %v64
  %v628 = vunpack.c.l.b16 %v65
  %v629 = vunpack.c.h.b16 %v65
  %v630 = vunpack.c.l.b16 %v66
  %v631 = vunpack.c.h.b16 %v66
  %v632 = vunpack.c.l.b16 %v67
  %v633 = vunpack.c.h.b16 %v67
  %v634 = vunpack.c.l.b16 %v68
  %v635 = vunpack.c.h.b16 %v68
  %v636 = vunpack.c.l.b16 %v69
  %v637 = vunpack.c.h.b16 %v69
  %v638 = vunpack.c.l.b16 %v70
  %v639 = vunpack.c.h.b16 %v70
  %v640 = vunpack.c.l.b16 %v71
  %v641 = vunpack.c.h.b16 %v71
  %v642 = vunpack.c.l.b16 %v72
  %v643 = vunpack.c.h.b16 %v72
  %v644 = vunpack.c.l.b16 %v73
  %v645 = vunpack.c.h.b16 %v73
  %v646 = vunpack.c.l.b16 %v74
  %v647 = vunpack.c.h.b16 %v74
  %v648 = vunpack.c.l.b16 %v75
  %v649 = vunpack.c.h.b16 %v75
  %v650 = vunpack.c.l.b16 %v76
  %v651 = vunpack.c.h.b16 %v76
  %v652 = vunpack.c.l.b16 %v77
  %v653 = vunpack.c.h.b16 %v77
  %v654 = vunpack.c.l.b16 %v78
  %v655 = vunpack.c.h.b16 %v78
  %v656 = vunpack.c.l.b16 %v79
  %v657 = vunpack.c.h.b16 %v79
  %v658 = vunpack.c.l.b16 %v80
  %v659 = vunpack.c.h.b16 %v80
  %v660 = vunpack.c.l.b16 %v81
  %v661 = vunpack.c.h.b16 %v81
  %v662 = vunpack.c.l.b16 %v82
  %v663 = vunpack.c.h.b16 %v82
  %v664 = vunpack.c.l.b16 %v83
  %v665 = vunpack.c.h.b16 %v83
  %v666 = vunpack.c.l.b16 %v84
  %v667 = vunpack.c.h.b16 %v84
  %v668 = vunpack.c.l.b16 %v85
  %v669 = vunpack.c.h.b16 %v85
  %v670 = vunpack.c.l.b16 %v86
  %v671 = vunpack.c.h.b16 %v86
  %v672 = vunpack.c.l.b16 %v87
  %v673 = vunpack.c.h.b16 %v87
  %v674 = vunpack.c.l.b16 %v88
  %v675 = vunpack.c.h.b16 %v88
  %v676 = vunpack.c.l.b16 %v89
  %v677 = vunpack.c.h.b16 %v89
  %v678 = vunpack.c.l.b16 %v90
  %v679 = vunpack.c.h.b16 %v90
  %v680 = vunpack.c.l.b16 %v91
  %v681 = vunpack.c.h.b16 %v91
  %v682 = vunpack.c.l.b16 %v92
  %v683 = vunpack.c.h.b16 %v92
  %v684 = vunpack.c.l.b16 %v93
  %v685 = vunpack.c.h.b16 %v93
  %v686 = vunpack.c.l.b16 %v94
  %v687 = vunpack.c.h.b16 %v94
  %v688 = vunpack.c.l.b16 %v95
  %v689 = vunpack.c.h.b16 %v95
  %v690 = vunpack.c.l.b16 %v96
  %v691 = vunpack.c.h.b16 %v96
  %v692 = vunpack.c.l.b16 %v97
  %v693 = vunpack.c.h.b16 %v97
  %v694 = vunpack.c.l.b16 %v98
  %v695 = vunpack.c.h.b16 %v98
  %v696 = vunpack.c.l.b16 %v99
  %v697 = vunpack.c.h.b16 %v99
  %v698 = vunpack.c.l.b16 %v100
  %v699 = vunpack.c.h.b16 %v100
  %v700 = vunpack.c.l.b16 %v101
  %v701 = vunpack.c.h.b16 %v101
  %v702 = vunpack.c.l.b16 %v102
  %v703 = vunpack.c.h.b16 %v102
  %v704 = vunpack.c.l.b16 %v103
  %v705 = vunpack.c.h.b16 %v103
  %v706 = vunpack.c.l.b16 %v104
  %v707 = vunpack.c.h.b16 %v104
  %v708 = vunpack.c.l.b16 %v105
  %v709 = vunpack.c.h.b16 %v105
  %v710 = vunpack.c.l.b16 %v106
  %v711 = vunpack.c.h.b16 %v106
  %v712 = vunpack.c.l.b16 %v107
  %v713 = vunpack.c.h.b16 %v107
  %v714 = vunpack.c.l.b16 %v108
  %v715 = vunpack.c.h.b16 %v108
  %v716 = vunpack.c.l.b16 %v109
  %v717 = vunpack.c.h.b16 %v109
  %v718 = vunpack.c.l.b16 %v110
  %v719 = vunpack.c.h.b16 %v110
  %v720 = vunpack.c.l.b16 %v111
  %v721 = vunpack.c.h.b16 %v111
  %v722 = vunpack.c.l.b16 %v112
  %v723 = vunpack.c.h.b16 %v112
  %v724 = vunpack.c.l.b16 %v113
  %v725 = vunpack.c.h.b16 %v113
  %v726 = vunpack.c.l.b16 %v114
  %v727 = vunpack.c.h.b16 %v114
  %v728 = vunpack.c.l.b16 %v115
  %v729 = vunpack.c.h.b16 %v115
  %v730 = vunpack.c.l.b16 %v116
  %v731 = vunpack.c.h.b16 %v116
  %v732 = vunpack.c.l.b16 %v117
  %v733 = vunpack.c.h.b16 %v117
  %v734 = vunpack.c.l.b16 %v118
  %v735 = vunpack.c.h.b16 %v118
  %v736 = vunpack.c.l.b16 %v119
  %v737 = vunpack.c.h.b16 %v119
  %v738 = vunpack.c.l.b16 %v120
  %v739 = vunpack.c.h.b16 %v120
  %v740 = vunpack.c.l.b16 %v121
  %v741 = vunpack.c.h.b16 %v121
  %v742 = vunpack.c.l.b16 %v122
  %v743 = vunpack.c.h.b16 %v122
  %v744 = vunpack.c.l.b16 %v123
  %v745 = vunpack.c.h.b16 %v123
  %v746 = vunpack.c.l.b16 %v124
  %v747 = vunpack.c.h.b16 %v124
  %v748 = vunpack.c.l.b16 %v125
  %v749 = vunpack.c.h.b16 %v125
  %v750 = vunpack.c.l.b16 %v126
  %v751 = vunpack.c.h.b16 %v126
  %v752 = vunpack.c.l.b16 %v127
  %v753 = vunpack.c.h.b16 %v127
  %v754 = vunpack.c.l.b16 %v128
  %v755 = vunpack.c.h.b16 %v128
  %v756 = vunpack.c.l.b16 %v129
  %v757 = vunpack.c.h.b16 %v129
  %v758 = vunpack.c.l.b16 %v130
  %v759 = vunpack.c.h.b16 %v130
  %v760 = vunpack.c.l.b16 %v131
  %v761 = vunpack.c.h.b16 %v131
  %v762 = vunpack.c.l.b16 %v132
  %v763 = vunpack.c.h.b16 %v132
  %v764 = vunpack.c.l.b16 %v133
  %v765 = vunpack.c.h.b16 %v133
  %v766 = vunpack.c.l.b16 %v134
  %v767 = vunpack.c.h.b16 %v134
  %v768 = vunpack.c.l.b16 %v135
  %v769 = vunpack.c.h.b16 %v135
  %v770 = vunpack.c.l.b16 %v136
  %v771 = vunpack.c.h.b16 %v136
  %v772 = vunpack.c.l.b16 %v137
  %v773 = vunpack.c.h.b16 %v137
  %v774 = vunpack.c.l.b16 %v138
  %v775 = vunpack.c.h.b16 %v138
  %v776 = vunpack.c.l.b16 %v139
  %v777 = vunpack.c.h.b16 %v139
  %v778 = vunpack.c.l.b16 %v140
  %v779 = vunpack.c.h.b16 %v140
  %v780 = vunpack.c.l.b16 %v141
  %v781 = vunpack.c.h.b16 %v141
  %v782 = vpack.c.b16 %v542, %v526
  %v783 = vpack.c.b16 %v543, %v527
  %v784 = vpack.c.b16 %v544, %v528
  %v785 = vpack.c.b16 %v545, %v529
  %v786 = vpack.c.b16 %v546, %v530
  %v787 = vpack.c.b16 %v547, %v531
  %v788 = vpack.c.b16 %v548, %v532
  %v789 = vpack.c.b16 %v549, %v533
  %v790 = vpack.c.b16 %v550, %v534
  %v791 = vpack.c.b16 %v551, %v535
  %v792 = vpack.c.b16 %v552, %v536
  %v793 = vpack.c.b16 %v553, %v537
  %v794 = vpack.c.b16 %v554, %v538
  %v795 = vpack.c.b16 %v555, %v539
  %v796 = vpack.c.b16 %v556, %v540
  %v797 = vpack.c.b16 %v557, %v541
  %v798 = vpack.c.b16 %v574, %v558
  %v799 = vpack.c.b16 %v575, %v559
  %v800 = vpack.c.b16 %v576, %v560
  %v801 = vpack.c.b16 %v577, %v561
  %v802 = vpack.c.b16 %v578, %v562
  %v803 = vpack.c.b16 %v579, %v563
  %v804 = vpack.c.b16 %v580, %v564
  %v805 = vpack.c.b16 %v581, %v565
  %v806 = vpack.c.b16 %v582, %v566
  %v807 = vpack.c.b16 %v583, %v567
  %v808 = vpack.c.b16 %v584, %v568
  %v809 = vpack.c.b16 %v585, %v569
  %v810 = vpack.c.b16 %v586, %v570
  %v811 = vpack.c.b16 %v587, %v571
  %v812 = vpack.c.b16 %v588, %v572
  %v813 = vpack.c.b16 %v589, %v573
  %v814 = vpack.c.b16 %v606, %v590
  %v815 = vpack.c.b16 %v607, %v591
  %v816 = vpack.c.b16 %v608, %v592
  %v817 = vpack.c.b16 %v609, %v593
  %v818 = vpack.c.b16 %v610, %v594
  %v819 = vpack.c.b16 %v611, %v595
  %v820 = vpack.c.b16 %v612, %v596
  %v821 = vpack.c.b16 %v613, %v597
  %v822 = vpack.c.b16 %v614, %v598
  %v823 = vpack.c.b16 %v615, %v599
  %v824 = vpack.c.b16 %v616, %v600
  %v825 = vpack.c.b16 %v617, %v601
  %v826 = vpack.c.b16 %v618, %v602
  %v827 = vpack.c.b16 %v619, %v603
  %v828 = vpack.c.b16 %v620, %v604
  %v829 = vpack.c.b16 %v621, %v605
  %v830 = vpack.c.b16 %v638, %v622
  %v831 = vpack.c.b16 %v639, %v623
  %v832 = vpack.c.b16 %v640, %v624
  %v833 = vpack.c.b16 %v641, %v625
  %v834 = vpack.c.b16 %v642, %v626
  %v835 = vpack.c.b16 %v643, %v627
  %v836 = vpack.c.b16 %v644, %v628
  %v837 = vpack.c.b16 %v645, %v629
  %v838 = vpack.c.b16 %v646, %v630
  %v839 = vpack.c.b16 %v647, %v631
  %v840 = vpack.c.b16 %v648, %v632
  %v841 = vpack.c.b16 %v649, %v633
  %v842 = vpack.c.b16 %v650, %v634
  %v843 = vpack.c.b16 %v651, %v635
  %v844 = vpack.c.b16 %v652, %v636
  %v845 = vpack.c.b16 %v653, %v637
  %v846 = vpack.c.b16 %v670, %v654
  %v847 = vpack.c.b16 %v671, %v655
  %v848 = vpack.c.b16 %v672, %v656
  %v849 = vpack.c.b16 %v673, %v657
  %v850 = vpack.c.b16 %v674, %v658
  %v851 = vpack.c.b16 %v675, %v659
  %v852 = vpack.c.b16 %v676, %v660
  %v853 = vpack.c.b16 %v677, %v661
  %v854 = vpack.c.b16 %v678, %v662
  %v855 = vpack.c.b16 %v679, %v663
  %v856 = vpack.c.b16 %v680, %v664
  %v857 = vpack.c.b16 %v681, %v665
  %v858 = vpack.c.b16 %v682, %v666
  %v859 = vpack.c.b16 %v683, %v667
  %v860 = vpack.c.b16 %v684, %v668
  %v861 = vpack.c.b16 %v685, %v669
  %v862 = vpack.c.b16 %v702, %v686
  %v863 = vpack.c.b16 %v703, %v687
  %v864 = vpack.c.b16 %v704, %v688
  %v865 = vpack.c.b16 %v705, %v689
  %v866 = vpack.c.b16 %v706, %v690
  %v867 = vpack.c.b16 %v707, %v691
  %v868 = vpack.c.b16 %v708, %v692
  %v869 = vpack.c.b16 %v709, %v693
  %v870 = vpack.c.b16 %v710, %v694
  %v871 = vpack.c.b16 %v711, %v695
  %v872 = vpack.c.b16 %v712, %v696
  %v873 = vpack.c.b16 %v713, %v697
  %v874 = vpack.c.b16 %v714, %v698
  %v875 = vpack.c.b16 %v715, %v699
  %v876 = vpack.c.b16 %v716, %v700
  %v877 = vpack.c.b16 %v717, %v701
  %v878 = vpack.c.b16 %v734, %v718
  %v879 = vpack.c.b16 %v735, %v719
  %v880 = vpack.c.b16 %v736, %v720
  %v881 = vpack.c.b16 %v737, %v721
  %v882 = vpack.c.b16 %v738, %v722
  %v883 = vpack.c.b16 %v739, %v723
  %v884 = vpack.c.b16 %v740, %v724
  %v885 = vpack.c.b16 %v741, %v725
  %v886 = vpack.c.b16 %v742, %v726
  %v887 = vpack.c.b16 %v743, %v727
  %v888 = vpack.c.b16 %v744, %v728
  %v889 = vpack.c.b16 %v745, %v729
  %v890 = vpack.c.b16 %v746, %v730
  %v891 = vpack.c.b16 %v747, %v731
  %v892 = vpack.c.b16 %v748, %v732
  %v893 = vpack.c.b16 %v749, %v733
  %v894 = vpack.c.b16 %v766, %v750
  %v895 = vpack.c.b16 %v767, %v751
  %v896 = vpack.c.b16 %v768, %v752
  %v897 = vpack.c.b16 %v769, %v753
  %v898 = vpack.c.b16 %v770, %v754
  %v899 = vpack.c.b16 %v771, %v755
  %v900 = vpack.c.b16 %v772, %v756
  %v901 = vpack.c.b16 %v773, %v757
  %v902 = vpack.c.b16 %v774, %v758
  %v903 = vpack.c.b16 %v775, %v759
  %v904 = vpack.c.b16 %v776, %v760
  %v905 = vpack.c.b16 %v777, %v761
  %v906 = vpack.c.b16 %v778, %v762
  %v907 = vpack.c.b16 %v779, %v763
  %v908 = vpack.c.b16 %v780, %v764
  %v909 = vpack.c.b16 %v781, %v765
  %v1294 = vunpack.c.l.b16 %v142
  %v1295 = vunpack.c.l.b16 %v143
  %v1296 = vunpack.c.l.b16 %v144
  %v1297 = vunpack.c.l.b16 %v145
  %v1298 = vunpack.c.l.b16 %v146
  %v1299 = vunpack.c.l.b16 %v147
  %v1300 = vunpack.c.l.b16 %v148
  %v1301 = vunpack.c.l.b16 %v149
  %v1302 = vunpack.c.l.b16 %v150
  %v1303 = vunpack.c.l.b16 %v151
  %v1304 = vunpack.c.l.b16 %v152
  %v1305 = vunpack.c.l.b16 %v153
  %v1306 = vunpack.c.l.b16 %v154
  %v1307 = vunpack.c.l.b16 %v155
  %v1308 = vunpack.c.l.b16 %v156
  %v1309 = vunpack.c.l.b16 %v157
  %v1310 = vunpack.c.l.b16 %v158
  %v1311 = vunpack.c.l.b16 %v159
  %v1312 = vunpack.c.l.b16 %v160
  %v1313 = vunpack.c.l.b16 %v161
  %v1314 = vunpack.c.l.b16 %v162
  %v1315 = vunpack.c.l.b16 %v163
  %v1316 = vunpack.c.l.b16 %v164
  %v1317 = vunpack.c.l.b16 %v165
  %v1318 = vunpack.c.l.b16 %v166
  %v1319 = vunpack.c.l.b16 %v167
  %v1320 = vunpack.c.l.b16 %v168
  %v1321 = vunpack.c.l.b16 %v169
  %v1322 = vunpack.c.l.b16 %v170
  %v1323 = vunpack.c.l.b16 %v171
  %v1324 = vunpack.c.l.b16 %v172
  %v1325 = vunpack.c.l.b16 %v173
  %v1326 = vunpack.c.l.b16 %v174
  %v1327 = vunpack.c.l.b16 %v175
  %v1328 = vunpack.c.l.b16 %v176
  %v1329 = vunpack.c.l.b16 %v177
  %v1330 = vunpack.c.l.b16 %v178
  %v1331 = vunpack.c.l.b16 %v179
  %v1332 = vunpack.c.l.b16 %v180
  %v1333 = vunpack.c.l.b16 %v181
  %v1334 = vunpack.c.l.b16 %v182
  %v1335 = vunpack.c.l.b16 %v183
  %v1336 = vunpack.c.l.b16 %v184
  %v1337 = vunpack.c.l.b16 %v185
  %v1338 = vunpack.c.l.b16 %v186
  %v1339 = vunpack.c.l.b16 %v187
  %v1340 = vunpack.c.l.b16 %v188
  %v1341 = vunpack.c.l.b16 %v189
  %v1342 = vunpack.c.l.b16 %v190
  %v1343 = vunpack.c.l.b16 %v191
  %v1344 = vunpack.c.l.b16 %v192
  %v1345 = vunpack.c.l.b16 %v193
  %v1346 = vunpack.c.l.b16 %v194
  %v1347 = vunpack.c.l.b16 %v195
  %v1348 = vunpack.c.l.b16 %v196
  %v1349 = vunpack.c.l.b16 %v197
  %v1350 = vunpack.c.l.b16 %v198
  %v1351 = vunpack.c.l.b16 %v199
  %v1352 = vunpack.c.l.b16 %v200
  %v1353 = vunpack.c.l.b16 %v201
  %v1354 = vunpack.c.l.b16 %v202
  %v1355 = vunpack.c.l.b16 %v203
  %v1356 = vunpack.c.l.b16 %v204
  %v1357 = vunpack.c.l.b16 %v205
  %v1358 = vunpack.c.l.b16 %v206
  %v1359 = vunpack.c.l.b16 %v207
  %v1360 = vunpack.c.l.b16 %v208
  %v1361 = vunpack.c.l.b16 %v209
  %v1362 = vunpack.c.l.b16 %v210
  %v1363 = vunpack.c.l.b16 %v211
  %v1364 = vunpack.c.l.b16 %v212
  %v1365 = vunpack.c.l.b16 %v213
  %v1366 = vunpack.c.l.b16 %v214
  %v1367 = vunpack.c.l.b16 %v215
  %v1368 = vunpack.c.l.b16 %v216
  %v1369 = vunpack.c.l.b16 %v217
  %v1370 = vunpack.c.l.b16 %v218
  %v1371 = vunpack.c.l.b16 %v219
  %v1372 = vunpack.c.l.b16 %v220
  %v1373 = vunpack.c.l.b16 %v221
  %v1374 = vunpack.c.l.b16 %v222
  %v1375 = vunpack.c.l.b16 %v223
  %v1376 = vunpack.c.l.b16 %v224
  %v1377 = vunpack.c.l.b16 %v225
  %v1378 = vunpack.c.l.b16 %v226
  %v1379 = vunpack.c.l.b16 %v227
  %v1380 = vunpack.c.l.b16 %v228
  %v1381 = vunpack.c.l.b16 %v229
  %v1382 = vunpack.c.l.b16 %v230
  %v1383 = vunpack.c.l.b16 %v231
  %v1384 = vunpack.c.l.b16 %v232
  %v1385 = vunpack.c.l.b16 %v233
  %v1386 = vunpack.c.l.b16 %v234
  %v1387 = vunpack.c.l.b16 %v235
  %v1388 = vunpack.c.l.b16 %v236
  %v1389 = vunpack.c.l.b16 %v237
  %v1390 = vunpack.c.l.b16 %v238
  %v1391 = vunpack.c.l.b16 %v239
  %v1392 = vunpack.c.l.b16 %v240
  %v1393 = vunpack.c.l.b16 %v241
  %v1394 = vunpack.c.l.b16 %v242
  %v1395 = vunpack.c.l.b16 %v243
  %v1396 = vunpack.c.l.b16 %v244
  %v1397 = vunpack.c.l.b16 %v245
  %v1398 = vunpack.c.l.b16 %v246
  %v1399 = vunpack.c.l.b16 %v247
  %v1400 = vunpack.c.l.b16 %v248
  %v1401 = vunpack.c.l.b16 %v249
  %v1402 = vunpack.c.l.b16 %v250
  %v1403 = vunpack.c.l.b16 %v251
  %v1404 = vunpack.c.l.b16 %v252
  %v1405 = vunpack.c.l.b16 %v253
  %v1406 = vunpack.c.l.b16 %v254
  %v1407 = vunpack.c.l.b16 %v255
  %v1408 = vunpack.c.l.b16 %v256
  %v1409 = vunpack.c.l.b16 %v257
  %v1410 = vunpack.c.l.b16 %v258
  %v1411 = vunpack.c.l.b16 %v259
  %v1412 = vunpack.c.l.b16 %v260
  %v1413 = vunpack.c.l.b16 %v261
  %v1414 = vunpack.c.l.b16 %v262
  %v1415 = vunpack.c.l.b16 %v263
  %v1416 = vunpack.c.l.b16 %v264
  %v1417 = vunpack.c.l.b16 %v265
  %v1418 = vunpack.c.l.b16 %v266
  %v1419 = vunpack.c.l.b16 %v267
  %v1420 = vunpack.c.l.b16 %v268
  %v1421 = vunpack.c.l.b16 %v269
  %v1422 = vunpack.c.l.b16 %v270
  %v1423 = vunpack.c.l.b16 %v271
  %v1424 = vunpack.c.l.b16 %v272
  %v1425 = vunpack.c.l.b16 %v273
  %v1426 = vunpack.c.l.b16 %v274
  %v1427 = vunpack.c.l.b16 %v275
  %v1428 = vunpack.c.l.b16 %v276
  %v1429 = vunpack.c.l.b16 %v277
  %v1430 = vunpack.c.l.b16 %v278
  %v1431 = vunpack.c.l.b16 %v279
  %v1432 = vunpack.c.l.b16 %v280
  %v1433 = vunpack.c.l.b16 %v281
  %v1434 = vunpack.c.l.b16 %v282
  %v1435 = vunpack.c.l.b16 %v283
  %v1436 = vunpack.c.l.b16 %v284
  %v1437 = vunpack.c.l.b16 %v285
  %v1438 = vunpack.c.l.b16 %v286
  %v1439 = vunpack.c.l.b16 %v287
  %v1440 = vunpack.c.l.b16 %v288
  %v1441 = vunpack.c.l.b16 %v289
  %v1442 = vunpack.c.l.b16 %v290
  %v1443 = vunpack.c.l.b16 %v291
  %v1444 = vunpack.c.l.b16 %v292
  %v1445 = vunpack.c.l.b16 %v293
  %v1446 = vunpack.c.l.b16 %v294
  %v1447 = vunpack.c.l.b16 %v295
  %v1448 = vunpack.c.l.b16 %v296
  %v1449 = vunpack.c.l.b16 %v297
  %v1450 = vunpack.c.l.b16 %v298
  %v1451 = vunpack.c.l.b16 %v299
  %v1452 = vunpack.c.l.b16 %v300
  %v1453 = vunpack.c.l.b16 %v301
  %v1454 = vunpack.c.l.b16 %v302
  %v1455 = vunpack.c.l.b16 %v303
  %v1456 = vunpack.c.l.b16 %v304
  %v1457 = vunpack.c.l.b16 %v305
  %v1458 = vunpack.c.l.b16 %v306
  %v1459 = vunpack.c.l.b16 %v307
  %v1460 = vunpack.c.l.b16 %v308
  %v1461 = vunpack.c.l.b16 %v309
  %v1462 = vunpack.c.l.b16 %v310
  %v1463 = vunpack.c.l.b16 %v311
  %v1464 = vunpack.c.l.b16 %v312
  %v1465 = vunpack.c.l.b16 %v313
  %v1466 = vunpack.c.l.b16 %v314
  %v1467 = vunpack.c.l.b16 %v315
  %v1468 = vunpack.c.l.b16 %v316
  %v1469 = vunpack.c.l.b16 %v317
  %v1470 = vunpack.c.l.b16 %v318
  %v1471 = vunpack.c.l.b16 %v319
  %v1472 = vunpack.c.l.b16 %v320
  %v1473 = vunpack.c.l.b16 %v321
  %v1474 = vunpack.c.l.b16 %v322
  %v1475 = vunpack.c.l.b16 %v323
  %v1476 = vunpack.c.l.b16 %v324
  %v1477 = vunpack.c.l.b16 %v325
  %v1478 = vunpack.c.l.b16 %v326
  %v1479 = vunpack.c.l.b16 %v327
  %v1480 = vunpack.c.l.b16 %v328
  %v1481 = vunpack.c.l.b16 %v329
  %v1482 = vunpack.c.l.b16 %v330
  %v1483 = vunpack.c.l.b16 %v331
  %v1484 = vunpack.c.l.b16 %v332
  %v1485 = vunpack.c.l.b16 %v333
  %v1486 = vunpack.c.l.b16 %v334
  %v1487 = vunpack.c.l.b16 %v335
  %v1488 = vunpack.c.l.b16 %v336
  %v1489 = vunpack.c.l.b16 %v337
  %v1490 = vunpack.c.l.b16 %v338
  %v1491 = vunpack.c.l.b16 %v339
  %v1492 = vunpack.c.l.b16 %v340
  %v1493 = vunpack.c.l.b16 %v341
  %v1494 = vunpack.c.l.b16 %v342
  %v1495 = vunpack.c.l.b16 %v343
  %v1496 = vunpack.c.l.b16 %v344
  %v1497 = vunpack.c.l.b16 %v345
  %v1498 = vunpack.c.l.b16 %v346
  %v1499 = vunpack.c.l.b16 %v347
  %v1500 = vunpack.c.l.b16 %v348
  %v1501 = vunpack.c.l.b16 %v349
  %v1502 = vunpack.c.l.b16 %v350
  %v1503 = vunpack.c.l.b16 %v351
  %v1504 = vunpack.c.l.b16 %v352
  %v1505 = vunpack.c.l.b16 %v353
  %v1506 = vunpack.c.l.b16 %v354
  %v1507 = vunpack.c.l.b16 %v355
  %v1508 = vunpack.c.l.b16 %v356
  %v1509 = vunpack.c.l.b16 %v357
  %v1510 = vunpack.c.l.b16 %v358
  %v1511 = vunpack.c.l.b16 %v359
  %v1512 = vunpack.c.l.b16 %v360
  %v1513 = vunpack.c.l.b16 %v361
  %v1514 = vunpack.c.l.b16 %v362
  %v1515 = vunpack.c.l.b16 %v363
  %v1516 = vunpack.c.l.b16 %v364
  %v1517 = vunpack.c.l.b16 %v365
  %v1518 = vunpack.c.l.b16 %v366
  %v1519 = vunpack.c.l.b16 %v367
  %v1520 = vunpack.c.l.b16 %v368
  %v1521 = vunpack.c.l.b16 %v369
  %v1522 = vunpack.c.l.b16 %v370
  %v1523 = vunpack.c.l.b16 %v371
  %v1524 = vunpack.c.l.b16 %v372
  %v1525 = vunpack.c.l.b16 %v373
  %v1526 = vunpack.c.l.b16 %v374
  %v1527 = vunpack.c.l.b16 %v375
  %v1528 = vunpack.c.l.b16 %v376
  %v1529 = vunpack.c.l.b16 %v377
  %v1530 = vunpack.c.l.b16 %v378
  %v1531 = vunpack.c.l.b16 %v379
  %v1532 = vunpack.c.l.b16 %v380
  %v1533 = vunpack.c.l.b16 %v381
  %v1534 = vunpack.c.l.b16 %v382
  %v1535 = vunpack.c.l.b16 %v383
  %v1536 = vunpack.c.l.b16 %v384
  %v1537 = vunpack.c.l.b16 %v385
  %v1538 = vunpack.c.l.b16 %v386
  %v1539 = vunpack.c.l.b16 %v387
  %v1540 = vunpack.c.l.b16 %v388
  %v1541 = vunpack.c.l.b16 %v389
  %v1542 = vunpack.c.l.b16 %v390
  %v1543 = vunpack.c.l.b16 %v391
  %v1544 = vunpack.c.l.b16 %v392
  %v1545 = vunpack.c.l.b16 %v393
  %v1546 = vunpack.c.l.b16 %v394
  %v1547 = vunpack.c.l.b16 %v395
  %v1548 = vunpack.c.l.b16 %v396
  %v1549 = vunpack.c.l.b16 %v397
  %v1550 = vpack.c.b16 %v1295, %v1294
  %v1551 = vpack.c.b16 %v1297, %v1296
  %v1552 = vpack.c.b16 %v1299, %v1298
  %v1553 = vpack.c.b16 %v1301, %v1300
  %v1554 = vpack.c.b16 %v1303, %v1302
  %v1555 = vpack.c.b16 %v1305, %v1304
  %v1556 = vpack.c.b16 %v1307, %v1306
  %v1557 = vpack.c.b16 %v1309, %v1308
  %v1558 = vpack.c.b16 %v1311, %v1310
  %v1559 = vpack.c.b16 %v1313, %v1312
  %v1560 = vpack.c.b16 %v1315, %v1314
  %v1561 = vpack.c.b16 %v1317, %v1316
  %v1562 = vpack.c.b16 %v1319, %v1318
  %v1563 = vpack.c.b16 %v1321, %v1320
  %v1564 = vpack.c.b16 %v1323, %v1322
  %v1565 = vpack.c.b16 %v1325, %v1324
  %v1566 = vpack.c.b16 %v1327, %v1326
  %v1567 = vpack.c.b16 %v1329, %v1328
  %v1568 = vpack.c.b16 %v1331, %v1330
  %v1569 = vpack.c.b16 %v1333, %v1332
  %v1570 = vpack.c.b16 %v1335, %v1334
  %v1571 = vpack.c.b16 %v1337, %v1336
  %v1572 = vpack.c.b16 %v1339, %v1338
  %v1573 = vpack.c.b16 %v1341, %v1340
  %v1574 = vpack.c.b16 %v1343, %v1342
  %v1575 = vpack.c.b16 %v1345, %v1344
  %v1576 = vpack.c.b16 %v1347, %v1346
  %v1577 = vpack.c.b16 %v1349, %v1348
  %v1578 = vpack.c.b16 %v1351, %v1350
  %v1579 = vpack.c.b16 %v1353, %v1352
  %v1580 = vpack.c.b16 %v1355, %v1354
  %v1581 = vpack.c.b16 %v1357, %v1356
  %v1582 = vpack.c.b16 %v1359, %v1358
  %v1583 = vpack.c.b16 %v1361, %v1360
  %v1584 = vpack.c.b16 %v1363, %v1362
  %v1585 = vpack.c.b16 %v1365, %v1364
  %v1586 = vpack.c.b16 %v1367, %v1366
  %v1587 = vpack.c.b16 %v1369, %v1368
  %v1588 = vpack.c.b16 %v1371, %v1370
  %v1589 = vpack.c.b16 %v1373, %v1372
  %v1590 = vpack.c.b16 %v1375, %v1374
  %v1591 = vpack.c.b16 %v1377, %v1376
  %v1592 = vpack.c.b16 %v1379, %v1378
  %v1593 = vpack.c.b16 %v1381, %v1380
  %v1594 = vpack.c.b16 %v1383, %v1382
  %v1595 = vpack.c.b16 %v1385, %v1384
  %v1596 = vpack.c.b16 %v1387, %v1386
  %v1597 = vpack.c.b16 %v1389, %v1388
  %v1598 = vpack.c.b16 %v1391, %v1390
  %v1599 = vpack.c.b16 %v1393, %v1392
  %v1600 = vpack.c.b16 %v1395, %v1394
  %v1601 = vpack.c.b16 %v1397, %v1396
  %v1602 = vpack.c.b16 %v1399, %v1398
  %v1603 = vpack.c.b16 %v1401, %v1400
  %v1604 = vpack.c.b16 %v1403, %v1402
  %v1605 = vpack.c.b16 %v1405, %v1404
  %v1606 = vpack.c.b16 %v1407, %v1406
  %v1607 = vpack.c.b16 %v1409, %v1408
  %v1608 = vpack.c.b16 %v1411, %v1410
  %v1609 = vpack.c.b16 %v1413, %v1412
  %v1610 = vpack.c.b16 %v1415, %v1414
  %v1611 = vpack.c.b16 %v1417, %v1416
  %v1612 = vpack.c.b16 %v1419, %v1418
  %v1613 = vpack.c.b16 %v1421, %v1420
  %v1614 = vpack.c.b16 %v1423, %v1422
  %v1615 = vpack.c.b16 %v1425, %v1424
  %v1616 = vpack.c.b16 %v1427, %v1426
  %v1617 = vpack.c.b16 %v1429, %v1428
  %v1618 = vpack.c.b16 %v1431, %v1430
  %v1619 = vpack.c.b16 %v1433, %v1432
  %v1620 = vpack.c.b16 %v1435, %v1434
  %v1621 = vpack.c.b16 %v1437, %v1436
  %v1622 = vpack.c.b16 %v1439, %v1438
  %v1623 = vpack.c.b16 %v1441, %v1440
  %v1624 = vpack.c.b16 %v1443, %v1442
  %v1625 = vpack.c.b16 %v1445, %v1444
  %v1626 = vpack.c.b16 %v1447, %v1446
  %v1627 = vpack.c.b16 %v1449, %v1448
  %v1628 = vpack.c.b16 %v1451, %v1450
  %v1629 = vpack.c.b16 %v1453, %v1452
  %v1630 = vpack.c.b16 %v1455, %v1454
  %v1631 = vpack.c.b16 %v1457, %v1456
  %v1632 = vpack.c.b16 %v1459, %v1458
  %v1633 = vpack.c.b16 %v1461, %v1460
  %v1634 = vpack.c.b16 %v1463, %v1462
  %v1635 = vpack.c.b16 %v1465, %v1464
  %v1636 = vpack.c.b16 %v1467, %v1466
  %v1637 = vpack.c.b16 %v1469, %v1468
  %v1638 = vpack.c.b16 %v1471, %v1470
  %v1639 = vpack.c.b16 %v1473, %v1472
  %v1640 = vpack.c.b16 %v1475, %v1474
  %v1641 = vpack.c.b16 %v1477, %v1476
  %v1642 = vpack.c.b16 %v1479, %v1478
  %v1643 = vpack.c.b16 %v1481, %v1480
  %v1644 = vpack.c.b16 %v1483, %v1482
  %v1645 = vpack.c.b16 %v1485, %v1484
  %v1646 = vpack.c.b16 %v1487, %v1486
  %v1647 = vpack.c.b16 %v1489, %v1488
  %v1648 = vpack.c.b16 %v1491, %v1490
  %v1649 = vpack.c.b16 %v1493, %v1492
  %v1650 = vpack.c.b16 %v1495, %v1494
  %v1651 = vpack.c.b16 %v1497, %v1496
  %v1652 = vpack.c.b16 %v1499, %v1498
  %v1653 = vpack.c.b16 %v1501, %v1500
  %v1654 = vpack.c.b16 %v1503, %v1502
  %v1655 = vpack.c.b16 %v1505, %v1504
  %v1656 = vpack.c.b16 %v1507, %v1506
  %v1657 = vpack.c.b16 %v1509, %v1508
  %v1658 = vpack.c.b16 %v1511, %v1510
  %v1659 = vpack.c.b16 %v1513, %v1512
  %v1660 = vpack.c.b16 %v1515, %v1514
  %v1661 = vpack.c.b16 %v1517, %v1516
  %v1662 = vpack.c.b16 %v1519, %v1518
  %v1663 = vpack.c.b16 %v1521, %v1520
  %v1664 = vpack.c.b16 %v1523, %v1522
  %v1665 = vpack.c.b16 %v1525, %v1524
  %v1666 = vpack.c.b16 %v1527, %v1526
  %v1667 = vpack.c.b16 %v1529, %v1528
  %v1668 = vpack.c.b16 %v1531, %v1530
  %v1669 = vpack.c.b16 %v1533, %v1532
  %v1670 = vpack.c.b16 %v1535, %v1534
  %v1671 = vpack.c.b16 %v1537, %v1536
  %v1672 = vpack.c.b16 %v1539, %v1538
  %v1673 = vpack.c.b16 %v1541, %v1540
  %v1674 = vpack.c.b16 %v1543, %v1542
  %v1675 = vpack.c.b16 %v1545, %v1544
  %v1676 = vpack.c.b16 %v1547, %v1546
  %v1677 = vpack.c.b16 %v1549, %v1548
  %1806 = vmatprep.subr.bf16.mxu0 0
  %1807 = vmatpush1.bf16.msra.mxu0 %v1557
  %1808 = vmatprep.subr.bf16.mxu0 0
  %1809 = vmatpush1.bf16.msra.mxu0 %v1556
  %1810 = vmatprep.subr.bf16.mxu0 0
  %1811 = vmatpush1.bf16.msra.mxu0 %v1555
  %1812 = vmatprep.subr.bf16.mxu0 0
  %1813 = vmatpush1.bf16.msra.mxu0 %v1554
  %1814 = vmatprep.subr.bf16.mxu0 0
  %1815 = vmatpush1.bf16.msra.mxu0 %v1553
  %1816 = vmatprep.subr.bf16.mxu0 0
  %1817 = vmatpush1.bf16.msra.mxu0 %v1552
  %1818 = vmatprep.subr.bf16.mxu0 0
  %1819 = vmatpush1.bf16.msra.mxu0 %v1551
  %1820 = vmatprep.subr.bf16.mxu0 0
  %1821 = vmatpush1.bf16.msra.mxu0 %v1550
  %1822 = vmatprep.subr.bf16.mxu0 0
  %1823 = vmatpush2.bf16.msra.mxu0 %v1565
  %1824 = vmatprep.subr.bf16.mxu0 0
  %1825 = vmatpush2.bf16.msra.mxu0 %v1564
  %1826 = vmatprep.subr.bf16.mxu0 0
  %1827 = vmatpush2.bf16.msra.mxu0 %v1563
  %1828 = vmatprep.subr.bf16.mxu0 0
  %1829 = vmatpush2.bf16.msra.mxu0 %v1562
  %1830 = vmatprep.subr.bf16.mxu0 0
  %1831 = vmatpush2.bf16.msra.mxu0 %v1561
  %1832 = vmatprep.subr.bf16.mxu0 0
  %1833 = vmatpush2.bf16.msra.mxu0 %v1560
  %1834 = vmatprep.subr.bf16.mxu0 0
  %1835 = vmatpush2.bf16.msra.mxu0 %v1559
  %1836 = vmatprep.subr.bf16.mxu0 0
  %1837 = vmatpush2.bf16.msra.mxu0 %v1558
  %1838 = vmatprep.mubr.bf16.mxu0 %v783
  %1839 = vmatmul.mubr.bf16.gmra.mxu0 %v782
  %v1840 = vpop.f32.mrf.mxu0
  %v1841 = vadd.f32 0.0, %v1840
  %v1842 = vpop.f32.mrf.mxu0
  %v1843 = vpop.f32.mrf.mxu0
  %v1844 = vadd.f32 0.0, %v1843
  %v1845 = vpop.f32.mrf.mxu0
  %1846 = vmatprep.mubr.bf16.mxu0 %v799
  %1847 = vmatmul.mubr.bf16.gmra.mxu0 %v798
  %v1848 = vpop.f32.mrf.mxu0
  %v1849 = vadd.f32 0.0, %v1848
  %v1850 = vpop.f32.mrf.mxu0
  %v1851 = vpop.f32.mrf.mxu0
  %v1852 = vadd.f32 0.0, %v1851
  %v1853 = vpop.f32.mrf.mxu0
  %1854 = vmatprep.mubr.bf16.mxu0 %v815
  %1855 = vmatmul.mubr.bf16.gmra.mxu0 %v814
  %v1856 = vpop.f32.mrf.mxu0
  %v1857 = vadd.f32 0.0, %v1856
  %v1858 = vpop.f32.mrf.mxu0
  %v1859 = vpop.f32.mrf.mxu0
  %v1860 = vadd.f32 0.0, %v1859
  %v1861 = vpop.f32.mrf.mxu0
  %1862 = vmatprep.mubr.bf16.mxu0 %v831
  %1863 = vmatmul.mubr.bf16.gmra.mxu0 %v830
  %v1864 = vpop.f32.mrf.mxu0
  %v1865 = vadd.f32 0.0, %v1864
  %v1866 = vpop.f32.mrf.mxu0
  %v1867 = vpop.f32.mrf.mxu0
  %v1868 = vadd.f32 0.0, %v1867
  %v1869 = vpop.f32.mrf.mxu0
  %1870 = vmatprep.mubr.bf16.mxu0 %v847
  %1871 = vmatmul.mubr.bf16.gmra.mxu0 %v846
  %v1872 = vpop.f32.mrf.mxu0
  %v1873 = vadd.f32 0.0, %v1872
  %v1874 = vpop.f32.mrf.mxu0
  %v1875 = vpop.f32.mrf.mxu0
  %v1876 = vadd.f32 0.0, %v1875
  %v1877 = vpop.f32.mrf.mxu0
  %1878 = vmatprep.mubr.bf16.mxu0 %v863
  %1879 = vmatmul.mubr.bf16.gmra.mxu0 %v862
  %v1880 = vpop.f32.mrf.mxu0
  %v1881 = vadd.f32 0.0, %v1880
  %v1882 = vpop.f32.mrf.mxu0
  %v1883 = vpop.f32.mrf.mxu0
  %v1884 = vadd.f32 0.0, %v1883
  %v1885 = vpop.f32.mrf.mxu0
  %1886 = vmatprep.mubr.bf16.mxu0 %v879
  %1887 = vmatmul.mubr.bf16.gmra.mxu0 %v878
  %v1888 = vpop.f32.mrf.mxu0
  %v1889 = vadd.f32 0.0, %v1888
  %v1890 = vpop.f32.mrf.mxu0
  %v1891 = vpop.f32.mrf.mxu0
  %v1892 = vadd.f32 0.0, %v1891
  %v1893 = vpop.f32.mrf.mxu0
  %1894 = vmatprep.mubr.bf16.mxu0 %v895
  %1895 = vmatmul.mubr.bf16.gmra.mxu0 %v894
  %v1896 = vpop.f32.mrf.mxu0
  %v1897 = vadd.f32 0.0, %v1896
  %v1898 = vpop.f32.mrf.mxu0
  %v1899 = vpop.f32.mrf.mxu0
  %v1900 = vadd.f32 0.0, %v1899
  %v1901 = vpop.f32.mrf.mxu0
  %1902 = vdwg.mxu0
  %1903 = vmatprep.subr.bf16.mxu0 0
  %1904 = vmatpush1.bf16.msra.mxu0 %v1573
  %1905 = vmatprep.subr.bf16.mxu0 0
  %1906 = vmatpush1.bf16.msra.mxu0 %v1572
  %1907 = vmatprep.subr.bf16.mxu0 0
  %1908 = vmatpush1.bf16.msra.mxu0 %v1571
  %1909 = vmatprep.subr.bf16.mxu0 0
  %1910 = vmatpush1.bf16.msra.mxu0 %v1570
  %1911 = vmatprep.subr.bf16.mxu0 0
  %1912 = vmatpush1.bf16.msra.mxu0 %v1569
  %1913 = vmatprep.subr.bf16.mxu0 0
  %1914 = vmatpush1.bf16.msra.mxu0 %v1568
  %1915 = vmatprep.subr.bf16.mxu0 0
  %1916 = vmatpush1.bf16.msra.mxu0 %v1567
  %1917 = vmatprep.subr.bf16.mxu0 0
  %1918 = vmatpush1.bf16.msra.mxu0 %v1566
  %1919 = vmatprep.subr.bf16.mxu0 0
  %1920 = vmatpush2.bf16.msra.mxu0 %v1581
  %1921 = vmatprep.subr.bf16.mxu0 0
  %1922 = vmatpush2.bf16.msra.mxu0 %v1580
  %1923 = vmatprep.subr.bf16.mxu0 0
  %1924 = vmatpush2.bf16.msra.mxu0 %v1579
  %1925 = vmatprep.subr.bf16.mxu0 0
  %1926 = vmatpush2.bf16.msra.mxu0 %v1578
  %1927 = vmatprep.subr.bf16.mxu0 0
  %1928 = vmatpush2.bf16.msra.mxu0 %v1577
  %1929 = vmatprep.subr.bf16.mxu0 0
  %1930 = vmatpush2.bf16.msra.mxu0 %v1576
  %1931 = vmatprep.subr.bf16.mxu0 0
  %1932 = vmatpush2.bf16.msra.mxu0 %v1575
  %1933 = vmatprep.subr.bf16.mxu0 0
  %1934 = vmatpush2.bf16.msra.mxu0 %v1574
  %1935 = vmatprep.mubr.bf16.mxu0 %v785
  %1936 = vmatmul.mubr.bf16.gmra.mxu0 %v784
  %v1937 = vpop.f32.mrf.mxu0
  %v1938 = vadd.f32 %v1841, %v1937
  %v1939 = vpop.f32.mrf.mxu0
  %v1940 = vpop.f32.mrf.mxu0
  %v1941 = vadd.f32 %v1844, %v1940
  %v1942 = vpop.f32.mrf.mxu0
  %1943 = vmatprep.mubr.bf16.mxu0 %v801
  %1944 = vmatmul.mubr.bf16.gmra.mxu0 %v800
  %v1945 = vpop.f32.mrf.mxu0
  %v1946 = vadd.f32 %v1849, %v1945
  %v1947 = vpop.f32.mrf.mxu0
  %v1948 = vpop.f32.mrf.mxu0
  %v1949 = vadd.f32 %v1852, %v1948
  %v1950 = vpop.f32.mrf.mxu0
  %1951 = vmatprep.mubr.bf16.mxu0 %v817
  %1952 = vmatmul.mubr.bf16.gmra.mxu0 %v816
  %v1953 = vpop.f32.mrf.mxu0
  %v1954 = vadd.f32 %v1857, %v1953
  %v1955 = vpop.f32.mrf.mxu0
  %v1956 = vpop.f32.mrf.mxu0
  %v1957 = vadd.f32 %v1860, %v1956
  %v1958 = vpop.f32.mrf.mxu0
  %1959 = vmatprep.mubr.bf16.mxu0 %v833
  %1960 = vmatmul.mubr.bf16.gmra.mxu0 %v832
  %v1961 = vpop.f32.mrf.mxu0
  %v1962 = vadd.f32 %v1865, %v1961
  %v1963 = vpop.f32.mrf.mxu0
  %v1964 = vpop.f32.mrf.mxu0
  %v1965 = vadd.f32 %v1868, %v1964
  %v1966 = vpop.f32.mrf.mxu0
  %1967 = vmatprep.mubr.bf16.mxu0 %v849
  %1968 = vmatmul.mubr.bf16.gmra.mxu0 %v848
  %v1969 = vpop.f32.mrf.mxu0
  %v1970 = vadd.f32 %v1873, %v1969
  %v1971 = vpop.f32.mrf.mxu0
  %v1972 = vpop.f32.mrf.mxu0
  %v1973 = vadd.f32 %v1876, %v1972
  %v1974 = vpop.f32.mrf.mxu0
  %1975 = vmatprep.mubr.bf16.mxu0 %v865
  %1976 = vmatmul.mubr.bf16.gmra.mxu0 %v864
  %v1977 = vpop.f32.mrf.mxu0
  %v1978 = vadd.f32 %v1881, %v1977
  %v1979 = vpop.f32.mrf.mxu0
  %v1980 = vpop.f32.mrf.mxu0
  %v1981 = vadd.f32 %v1884, %v1980
  %v1982 = vpop.f32.mrf.mxu0
  %1983 = vmatprep.mubr.bf16.mxu0 %v881
  %1984 = vmatmul.mubr.bf16.gmra.mxu0 %v880
  %v1985 = vpop.f32.mrf.mxu0
  %v1986 = vadd.f32 %v1889, %v1985
  %v1987 = vpop.f32.mrf.mxu0
  %v1988 = vpop.f32.mrf.mxu0
  %v1989 = vadd.f32 %v1892, %v1988
  %v1990 = vpop.f32.mrf.mxu0
  %1991 = vmatprep.mubr.bf16.mxu0 %v897
  %1992 = vmatmul.mubr.bf16.gmra.mxu0 %v896
  %v1993 = vpop.f32.mrf.mxu0
  %v1994 = vadd.f32 %v1897, %v1993
  %v1995 = vpop.f32.mrf.mxu0
  %v1996 = vpop.f32.mrf.mxu0
  %v1997 = vadd.f32 %v1900, %v1996
  %v1998 = vpop.f32.mrf.mxu0
  %1999 = vdwg.mxu0
  %2000 = vmatprep.subr.bf16.mxu0 0
  %2001 = vmatpush1.bf16.msra.mxu0 %v1589
  %2002 = vmatprep.subr.bf16.mxu0 0
  %2003 = vmatpush1.bf16.msra.mxu0 %v1588
  %2004 = vmatprep.subr.bf16.mxu0 0
  %2005 = vmatpush1.bf16.msra.mxu0 %v1587
  %2006 = vmatprep.subr.bf16.mxu0 0
  %2007 = vmatpush1.bf16.msra.mxu0 %v1586
  %2008 = vmatprep.subr.bf16.mxu0 0
  %2009 = vmatpush1.bf16.msra.mxu0 %v1585
  %2010 = vmatprep.subr.bf16.mxu0 0
  %2011 = vmatpush1.bf16.msra.mxu0 %v1584
  %2012 = vmatprep.subr.bf16.mxu0 0
  %2013 = vmatpush1.bf16.msra.mxu0 %v1583
  %2014 = vmatprep.subr.bf16.mxu0 0
  %2015 = vmatpush1.bf16.msra.mxu0 %v1582
  %2016 = vmatprep.subr.bf16.mxu0 0
  %2017 = vmatpush2.bf16.msra.mxu0 %v1597
  %2018 = vmatprep.subr.bf16.mxu0 0
  %2019 = vmatpush2.bf16.msra.mxu0 %v1596
  %2020 = vmatprep.subr.bf16.mxu0 0
  %2021 = vmatpush2.bf16.msra.mxu0 %v1595
  %2022 = vmatprep.subr.bf16.mxu0 0
  %2023 = vmatpush2.bf16.msra.mxu0 %v1594
  %2024 = vmatprep.subr.bf16.mxu0 0
  %2025 = vmatpush2.bf16.msra.mxu0 %v1593
  %2026 = vmatprep.subr.bf16.mxu0 0
  %2027 = vmatpush2.bf16.msra.mxu0 %v1592
  %2028 = vmatprep.subr.bf16.mxu0 0
  %2029 = vmatpush2.bf16.msra.mxu0 %v1591
  %2030 = vmatprep.subr.bf16.mxu0 0
  %2031 = vmatpush2.bf16.msra.mxu0 %v1590
  %2032 = vmatprep.mubr.bf16.mxu0 %v787
  %2033 = vmatmul.mubr.bf16.gmra.mxu0 %v786
  %v2034 = vpop.f32.mrf.mxu0
  %v2035 = vadd.f32 %v1938, %v2034
  %v2036 = vpop.f32.mrf.mxu0
  %v2037 = vpop.f32.mrf.mxu0
  %v2038 = vadd.f32 %v1941, %v2037
  %v2039 = vpop.f32.mrf.mxu0
  %2040 = vmatprep.mubr.bf16.mxu0 %v803
  %2041 = vmatmul.mubr.bf16.gmra.mxu0 %v802
  %v2042 = vpop.f32.mrf.mxu0
  %v2043 = vadd.f32 %v1946, %v2042
  %v2044 = vpop.f32.mrf.mxu0
  %v2045 = vpop.f32.mrf.mxu0
  %v2046 = vadd.f32 %v1949, %v2045
  %v2047 = vpop.f32.mrf.mxu0
  %2048 = vmatprep.mubr.bf16.mxu0 %v819
  %2049 = vmatmul.mubr.bf16.gmra.mxu0 %v818
  %v2050 = vpop.f32.mrf.mxu0
  %v2051 = vadd.f32 %v1954, %v2050
  %v2052 = vpop.f32.mrf.mxu0
  %v2053 = vpop.f32.mrf.mxu0
  %v2054 = vadd.f32 %v1957, %v2053
  %v2055 = vpop.f32.mrf.mxu0
  %2056 = vmatprep.mubr.bf16.mxu0 %v835
  %2057 = vmatmul.mubr.bf16.gmra.mxu0 %v834
  %v2058 = vpop.f32.mrf.mxu0
  %v2059 = vadd.f32 %v1962, %v2058
  %v2060 = vpop.f32.mrf.mxu0
  %v2061 = vpop.f32.mrf.mxu0
  %v2062 = vadd.f32 %v1965, %v2061
  %v2063 = vpop.f32.mrf.mxu0
  %2064 = vmatprep.mubr.bf16.mxu0 %v851
  %2065 = vmatmul.mubr.bf16.gmra.mxu0 %v850
  %v2066 = vpop.f32.mrf.mxu0
  %v2067 = vadd.f32 %v1970, %v2066
  %v2068 = vpop.f32.mrf.mxu0
  %v2069 = vpop.f32.mrf.mxu0
  %v2070 = vadd.f32 %v1973, %v2069
  %v2071 = vpop.f32.mrf.mxu0
  %2072 = vmatprep.mubr.bf16.mxu0 %v867
  %2073 = vmatmul.mubr.bf16.gmra.mxu0 %v866
  %v2074 = vpop.f32.mrf.mxu0
  %v2075 = vadd.f32 %v1978, %v2074
  %v2076 = vpop.f32.mrf.mxu0
  %v2077 = vpop.f32.mrf.mxu0
  %v2078 = vadd.f32 %v1981, %v2077
  %v2079 = vpop.f32.mrf.mxu0
  %2080 = vmatprep.mubr.bf16.mxu0 %v883
  %2081 = vmatmul.mubr.bf16.gmra.mxu0 %v882
  %v2082 = vpop.f32.mrf.mxu0
  %v2083 = vadd.f32 %v1986, %v2082
  %v2084 = vpop.f32.mrf.mxu0
  %v2085 = vpop.f32.mrf.mxu0
  %v2086 = vadd.f32 %v1989, %v2085
  %v2087 = vpop.f32.mrf.mxu0
  %2088 = vmatprep.mubr.bf16.mxu0 %v899
  %2089 = vmatmul.mubr.bf16.gmra.mxu0 %v898
  %v2090 = vpop.f32.mrf.mxu0
  %v2091 = vadd.f32 %v1994, %v2090
  %v2092 = vpop.f32.mrf.mxu0
  %v2093 = vpop.f32.mrf.mxu0
  %v2094 = vadd.f32 %v1997, %v2093
  %v2095 = vpop.f32.mrf.mxu0
  %2096 = vdwg.mxu0
  %2097 = vmatprep.subr.bf16.mxu0 0
  %2098 = vmatpush1.bf16.msra.mxu0 %v1605
  %2099 = vmatprep.subr.bf16.mxu0 0
  %2100 = vmatpush1.bf16.msra.mxu0 %v1604
  %2101 = vmatprep.subr.bf16.mxu0 0
  %2102 = vmatpush1.bf16.msra.mxu0 %v1603
  %2103 = vmatprep.subr.bf16.mxu0 0
  %2104 = vmatpush1.bf16.msra.mxu0 %v1602
  %2105 = vmatprep.subr.bf16.mxu0 0
  %2106 = vmatpush1.bf16.msra.mxu0 %v1601
  %2107 = vmatprep.subr.bf16.mxu0 0
  %2108 = vmatpush1.bf16.msra.mxu0 %v1600
  %2109 = vmatprep.subr.bf16.mxu0 0
  %2110 = vmatpush1.bf16.msra.mxu0 %v1599
  %2111 = vmatprep.subr.bf16.mxu0 0
  %2112 = vmatpush1.bf16.msra.mxu0 %v1598
  %2113 = vmatprep.subr.bf16.mxu0 0
  %2114 = vmatpush2.bf16.msra.mxu0 %v1613
  %2115 = vmatprep.subr.bf16.mxu0 0
  %2116 = vmatpush2.bf16.msra.mxu0 %v1612
  %2117 = vmatprep.subr.bf16.mxu0 0
  %2118 = vmatpush2.bf16.msra.mxu0 %v1611
  %2119 = vmatprep.subr.bf16.mxu0 0
  %2120 = vmatpush2.bf16.msra.mxu0 %v1610
  %2121 = vmatprep.subr.bf16.mxu0 0
  %2122 = vmatpush2.bf16.msra.mxu0 %v1609
  %2123 = vmatprep.subr.bf16.mxu0 0
  %2124 = vmatpush2.bf16.msra.mxu0 %v1608
  %2125 = vmatprep.subr.bf16.mxu0 0
  %2126 = vmatpush2.bf16.msra.mxu0 %v1607
  %2127 = vmatprep.subr.bf16.mxu0 0
  %2128 = vmatpush2.bf16.msra.mxu0 %v1606
  %2129 = vmatprep.mubr.bf16.mxu0 %v789
  %2130 = vmatmul.mubr.bf16.gmra.mxu0 %v788
  %v2131 = vpop.f32.mrf.mxu0
  %v2132 = vadd.f32 %v2035, %v2131
  %v2133 = vpop.f32.mrf.mxu0
  %v2134 = vpop.f32.mrf.mxu0
  %v2135 = vadd.f32 %v2038, %v2134
  %v2136 = vpop.f32.mrf.mxu0
  %2137 = vmatprep.mubr.bf16.mxu0 %v805
  %2138 = vmatmul.mubr.bf16.gmra.mxu0 %v804
  %v2139 = vpop.f32.mrf.mxu0
  %v2140 = vadd.f32 %v2043, %v2139
  %v2141 = vpop.f32.mrf.mxu0
  %v2142 = vpop.f32.mrf.mxu0
  %v2143 = vadd.f32 %v2046, %v2142
  %v2144 = vpop.f32.mrf.mxu0
  %2145 = vmatprep.mubr.bf16.mxu0 %v821
  %2146 = vmatmul.mubr.bf16.gmra.mxu0 %v820
  %v2147 = vpop.f32.mrf.mxu0
  %v2148 = vadd.f32 %v2051, %v2147
  %v2149 = vpop.f32.mrf.mxu0
  %v2150 = vpop.f32.mrf.mxu0
  %v2151 = vadd.f32 %v2054, %v2150
  %v2152 = vpop.f32.mrf.mxu0
  %2153 = vmatprep.mubr.bf16.mxu0 %v837
  %2154 = vmatmul.mubr.bf16.gmra.mxu0 %v836
  %v2155 = vpop.f32.mrf.mxu0
  %v2156 = vadd.f32 %v2059, %v2155
  %v2157 = vpop.f32.mrf.mxu0
  %v2158 = vpop.f32.mrf.mxu0
  %v2159 = vadd.f32 %v2062, %v2158
  %v2160 = vpop.f32.mrf.mxu0
  %2161 = vmatprep.mubr.bf16.mxu0 %v853
  %2162 = vmatmul.mubr.bf16.gmra.mxu0 %v852
  %v2163 = vpop.f32.mrf.mxu0
  %v2164 = vadd.f32 %v2067, %v2163
  %v2165 = vpop.f32.mrf.mxu0
  %v2166 = vpop.f32.mrf.mxu0
  %v2167 = vadd.f32 %v2070, %v2166
  %v2168 = vpop.f32.mrf.mxu0
  %2169 = vmatprep.mubr.bf16.mxu0 %v869
  %2170 = vmatmul.mubr.bf16.gmra.mxu0 %v868
  %v2171 = vpop.f32.mrf.mxu0
  %v2172 = vadd.f32 %v2075, %v2171
  %v2173 = vpop.f32.mrf.mxu0
  %v2174 = vpop.f32.mrf.mxu0
  %v2175 = vadd.f32 %v2078, %v2174
  %v2176 = vpop.f32.mrf.mxu0
  %2177 = vmatprep.mubr.bf16.mxu0 %v885
  %2178 = vmatmul.mubr.bf16.gmra.mxu0 %v884
  %v2179 = vpop.f32.mrf.mxu0
  %v2180 = vadd.f32 %v2083, %v2179
  %v2181 = vpop.f32.mrf.mxu0
  %v2182 = vpop.f32.mrf.mxu0
  %v2183 = vadd.f32 %v2086, %v2182
  %v2184 = vpop.f32.mrf.mxu0
  %2185 = vmatprep.mubr.bf16.mxu0 %v901
  %2186 = vmatmul.mubr.bf16.gmra.mxu0 %v900
  %v2187 = vpop.f32.mrf.mxu0
  %v2188 = vadd.f32 %v2091, %v2187
  %v2189 = vpop.f32.mrf.mxu0
  %v2190 = vpop.f32.mrf.mxu0
  %v2191 = vadd.f32 %v2094, %v2190
  %v2192 = vpop.f32.mrf.mxu0
  %2193 = vdwg.mxu0
  %2194 = vmatprep.subr.bf16.mxu0 0
  %2195 = vmatpush1.bf16.msra.mxu0 %v1621
  %2196 = vmatprep.subr.bf16.mxu0 0
  %2197 = vmatpush1.bf16.msra.mxu0 %v1620
  %2198 = vmatprep.subr.bf16.mxu0 0
  %2199 = vmatpush1.bf16.msra.mxu0 %v1619
  %2200 = vmatprep.subr.bf16.mxu0 0
  %2201 = vmatpush1.bf16.msra.mxu0 %v1618
  %2202 = vmatprep.subr.bf16.mxu0 0
  %2203 = vmatpush1.bf16.msra.mxu0 %v1617
  %2204 = vmatprep.subr.bf16.mxu0 0
  %2205 = vmatpush1.bf16.msra.mxu0 %v1616
  %2206 = vmatprep.subr.bf16.mxu0 0
  %2207 = vmatpush1.bf16.msra.mxu0 %v1615
  %2208 = vmatprep.subr.bf16.mxu0 0
  %2209 = vmatpush1.bf16.msra.mxu0 %v1614
  %2210 = vmatprep.subr.bf16.mxu0 0
  %2211 = vmatpush2.bf16.msra.mxu0 %v1629
  %2212 = vmatprep.subr.bf16.mxu0 0
  %2213 = vmatpush2.bf16.msra.mxu0 %v1628
  %2214 = vmatprep.subr.bf16.mxu0 0
  %2215 = vmatpush2.bf16.msra.mxu0 %v1627
  %2216 = vmatprep.subr.bf16.mxu0 0
  %2217 = vmatpush2.bf16.msra.mxu0 %v1626
  %2218 = vmatprep.subr.bf16.mxu0 0
  %2219 = vmatpush2.bf16.msra.mxu0 %v1625
  %2220 = vmatprep.subr.bf16.mxu0 0
  %2221 = vmatpush2.bf16.msra.mxu0 %v1624
  %2222 = vmatprep.subr.bf16.mxu0 0
  %2223 = vmatpush2.bf16.msra.mxu0 %v1623
  %2224 = vmatprep.subr.bf16.mxu0 0
  %2225 = vmatpush2.bf16.msra.mxu0 %v1622
  %2226 = vmatprep.mubr.bf16.mxu0 %v791
  %2227 = vmatmul.mubr.bf16.gmra.mxu0 %v790
  %v2228 = vpop.f32.mrf.mxu0
  %v2229 = vadd.f32 %v2132, %v2228
  %v2230 = vpop.f32.mrf.mxu0
  %v2231 = vpop.f32.mrf.mxu0
  %v2232 = vadd.f32 %v2135, %v2231
  %v2233 = vpop.f32.mrf.mxu0
  %2234 = vmatprep.mubr.bf16.mxu0 %v807
  %2235 = vmatmul.mubr.bf16.gmra.mxu0 %v806
  %v2236 = vpop.f32.mrf.mxu0
  %v2237 = vadd.f32 %v2140, %v2236
  %v2238 = vpop.f32.mrf.mxu0
  %v2239 = vpop.f32.mrf.mxu0
  %v2240 = vadd.f32 %v2143, %v2239
  %v2241 = vpop.f32.mrf.mxu0
  %2242 = vmatprep.mubr.bf16.mxu0 %v823
  %2243 = vmatmul.mubr.bf16.gmra.mxu0 %v822
  %v2244 = vpop.f32.mrf.mxu0
  %v2245 = vadd.f32 %v2148, %v2244
  %v2246 = vpop.f32.mrf.mxu0
  %v2247 = vpop.f32.mrf.mxu0
  %v2248 = vadd.f32 %v2151, %v2247
  %v2249 = vpop.f32.mrf.mxu0
  %2250 = vmatprep.mubr.bf16.mxu0 %v839
  %2251 = vmatmul.mubr.bf16.gmra.mxu0 %v838
  %v2252 = vpop.f32.mrf.mxu0
  %v2253 = vadd.f32 %v2156, %v2252
  %v2254 = vpop.f32.mrf.mxu0
  %v2255 = vpop.f32.mrf.mxu0
  %v2256 = vadd.f32 %v2159, %v2255
  %v2257 = vpop.f32.mrf.mxu0
  %2258 = vmatprep.mubr.bf16.mxu0 %v855
  %2259 = vmatmul.mubr.bf16.gmra.mxu0 %v854
  %v2260 = vpop.f32.mrf.mxu0
  %v2261 = vadd.f32 %v2164, %v2260
  %v2262 = vpop.f32.mrf.mxu0
  %v2263 = vpop.f32.mrf.mxu0
  %v2264 = vadd.f32 %v2167, %v2263
  %v2265 = vpop.f32.mrf.mxu0
  %2266 = vmatprep.mubr.bf16.mxu0 %v871
  %2267 = vmatmul.mubr.bf16.gmra.mxu0 %v870
  %v2268 = vpop.f32.mrf.mxu0
  %v2269 = vadd.f32 %v2172, %v2268
  %v2270 = vpop.f32.mrf.mxu0
  %v2271 = vpop.f32.mrf.mxu0
  %v2272 = vadd.f32 %v2175, %v2271
  %v2273 = vpop.f32.mrf.mxu0
  %2274 = vmatprep.mubr.bf16.mxu0 %v887
  %2275 = vmatmul.mubr.bf16.gmra.mxu0 %v886
  %v2276 = vpop.f32.mrf.mxu0
  %v2277 = vadd.f32 %v2180, %v2276
  %v2278 = vpop.f32.mrf.mxu0
  %v2279 = vpop.f32.mrf.mxu0
  %v2280 = vadd.f32 %v2183, %v2279
  %v2281 = vpop.f32.mrf.mxu0
  %2282 = vmatprep.mubr.bf16.mxu0 %v903
  %2283 = vmatmul.mubr.bf16.gmra.mxu0 %v902
  %v2284 = vpop.f32.mrf.mxu0
  %v2285 = vadd.f32 %v2188, %v2284
  %v2286 = vpop.f32.mrf.mxu0
  %v2287 = vpop.f32.mrf.mxu0
  %v2288 = vadd.f32 %v2191, %v2287
  %v2289 = vpop.f32.mrf.mxu0
  %2290 = vdwg.mxu0
  %2291 = vmatprep.subr.bf16.mxu0 0
  %2292 = vmatpush1.bf16.msra.mxu0 %v1637
  %2293 = vmatprep.subr.bf16.mxu0 0
  %2294 = vmatpush1.bf16.msra.mxu0 %v1636
  %2295 = vmatprep.subr.bf16.mxu0 0
  %2296 = vmatpush1.bf16.msra.mxu0 %v1635
  %2297 = vmatprep.subr.bf16.mxu0 0
  %2298 = vmatpush1.bf16.msra.mxu0 %v1634
  %2299 = vmatprep.subr.bf16.mxu0 0
  %2300 = vmatpush1.bf16.msra.mxu0 %v1633
  %2301 = vmatprep.subr.bf16.mxu0 0
  %2302 = vmatpush1.bf16.msra.mxu0 %v1632
  %2303 = vmatprep.subr.bf16.mxu0 0
  %2304 = vmatpush1.bf16.msra.mxu0 %v1631
  %2305 = vmatprep.subr.bf16.mxu0 0
  %2306 = vmatpush1.bf16.msra.mxu0 %v1630
  %2307 = vmatprep.subr.bf16.mxu0 0
  %2308 = vmatpush2.bf16.msra.mxu0 %v1645
  %2309 = vmatprep.subr.bf16.mxu0 0
  %2310 = vmatpush2.bf16.msra.mxu0 %v1644
  %2311 = vmatprep.subr.bf16.mxu0 0
  %2312 = vmatpush2.bf16.msra.mxu0 %v1643
  %2313 = vmatprep.subr.bf16.mxu0 0
  %2314 = vmatpush2.bf16.msra.mxu0 %v1642
  %2315 = vmatprep.subr.bf16.mxu0 0
  %2316 = vmatpush2.bf16.msra.mxu0 %v1641
  %2317 = vmatprep.subr.bf16.mxu0 0
  %2318 = vmatpush2.bf16.msra.mxu0 %v1640
  %2319 = vmatprep.subr.bf16.mxu0 0
  %2320 = vmatpush2.bf16.msra.mxu0 %v1639
  %2321 = vmatprep.subr.bf16.mxu0 0
  %2322 = vmatpush2.bf16.msra.mxu0 %v1638
  %2323 = vmatprep.mubr.bf16.mxu0 %v793
  %2324 = vmatmul.mubr.bf16.gmra.mxu0 %v792
  %v2325 = vpop.f32.mrf.mxu0
  %v2326 = vadd.f32 %v2229, %v2325
  %v2327 = vpop.f32.mrf.mxu0
  %v2328 = vpop.f32.mrf.mxu0
  %v2329 = vadd.f32 %v2232, %v2328
  %v2330 = vpop.f32.mrf.mxu0
  %2331 = vmatprep.mubr.bf16.mxu0 %v809
  %2332 = vmatmul.mubr.bf16.gmra.mxu0 %v808
  %v2333 = vpop.f32.mrf.mxu0
  %v2334 = vadd.f32 %v2237, %v2333
  %v2335 = vpop.f32.mrf.mxu0
  %v2336 = vpop.f32.mrf.mxu0
  %v2337 = vadd.f32 %v2240, %v2336
  %v2338 = vpop.f32.mrf.mxu0
  %2339 = vmatprep.mubr.bf16.mxu0 %v825
  %2340 = vmatmul.mubr.bf16.gmra.mxu0 %v824
  %v2341 = vpop.f32.mrf.mxu0
  %v2342 = vadd.f32 %v2245, %v2341
  %v2343 = vpop.f32.mrf.mxu0
  %v2344 = vpop.f32.mrf.mxu0
  %v2345 = vadd.f32 %v2248, %v2344
  %v2346 = vpop.f32.mrf.mxu0
  %2347 = vmatprep.mubr.bf16.mxu0 %v841
  %2348 = vmatmul.mubr.bf16.gmra.mxu0 %v840
  %v2349 = vpop.f32.mrf.mxu0
  %v2350 = vadd.f32 %v2253, %v2349
  %v2351 = vpop.f32.mrf.mxu0
  %v2352 = vpop.f32.mrf.mxu0
  %v2353 = vadd.f32 %v2256, %v2352
  %v2354 = vpop.f32.mrf.mxu0
  %2355 = vmatprep.mubr.bf16.mxu0 %v857
  %2356 = vmatmul.mubr.bf16.gmra.mxu0 %v856
  %v2357 = vpop.f32.mrf.mxu0
  %v2358 = vadd.f32 %v2261, %v2357
  %v2359 = vpop.f32.mrf.mxu0
  %v2360 = vpop.f32.mrf.mxu0
  %v2361 = vadd.f32 %v2264, %v2360
  %v2362 = vpop.f32.mrf.mxu0
  %2363 = vmatprep.mubr.bf16.mxu0 %v873
  %2364 = vmatmul.mubr.bf16.gmra.mxu0 %v872
  %v2365 = vpop.f32.mrf.mxu0
  %v2366 = vadd.f32 %v2269, %v2365
  %v2367 = vpop.f32.mrf.mxu0
  %v2368 = vpop.f32.mrf.mxu0
  %v2369 = vadd.f32 %v2272, %v2368
  %v2370 = vpop.f32.mrf.mxu0
  %2371 = vmatprep.mubr.bf16.mxu0 %v889
  %2372 = vmatmul.mubr.bf16.gmra.mxu0 %v888
  %v2373 = vpop.f32.mrf.mxu0
  %v2374 = vadd.f32 %v2277, %v2373
  %v2375 = vpop.f32.mrf.mxu0
  %v2376 = vpop.f32.mrf.mxu0
  %v2377 = vadd.f32 %v2280, %v2376
  %v2378 = vpop.f32.mrf.mxu0
  %2379 = vmatprep.mubr.bf16.mxu0 %v905
  %2380 = vmatmul.mubr.bf16.gmra.mxu0 %v904
  %v2381 = vpop.f32.mrf.mxu0
  %v2382 = vadd.f32 %v2285, %v2381
  %v2383 = vpop.f32.mrf.mxu0
  %v2384 = vpop.f32.mrf.mxu0
  %v2385 = vadd.f32 %v2288, %v2384
  %v2386 = vpop.f32.mrf.mxu0
  %2387 = vdwg.mxu0
  %2388 = vmatprep.subr.bf16.mxu0 0
  %2389 = vmatpush1.bf16.msra.mxu0 %v1653
  %2390 = vmatprep.subr.bf16.mxu0 0
  %2391 = vmatpush1.bf16.msra.mxu0 %v1652
  %2392 = vmatprep.subr.bf16.mxu0 0
  %2393 = vmatpush1.bf16.msra.mxu0 %v1651
  %2394 = vmatprep.subr.bf16.mxu0 0
  %2395 = vmatpush1.bf16.msra.mxu0 %v1650
  %2396 = vmatprep.subr.bf16.mxu0 0
  %2397 = vmatpush1.bf16.msra.mxu0 %v1649
  %2398 = vmatprep.subr.bf16.mxu0 0
  %2399 = vmatpush1.bf16.msra.mxu0 %v1648
  %2400 = vmatprep.subr.bf16.mxu0 0
  %2401 = vmatpush1.bf16.msra.mxu0 %v1647
  %2402 = vmatprep.subr.bf16.mxu0 0
  %2403 = vmatpush1.bf16.msra.mxu0 %v1646
  %2404 = vmatprep.subr.bf16.mxu0 0
  %2405 = vmatpush2.bf16.msra.mxu0 %v1661
  %2406 = vmatprep.subr.bf16.mxu0 0
  %2407 = vmatpush2.bf16.msra.mxu0 %v1660
  %2408 = vmatprep.subr.bf16.mxu0 0
  %2409 = vmatpush2.bf16.msra.mxu0 %v1659
  %2410 = vmatprep.subr.bf16.mxu0 0
  %2411 = vmatpush2.bf16.msra.mxu0 %v1658
  %2412 = vmatprep.subr.bf16.mxu0 0
  %2413 = vmatpush2.bf16.msra.mxu0 %v1657
  %2414 = vmatprep.subr.bf16.mxu0 0
  %2415 = vmatpush2.bf16.msra.mxu0 %v1656
  %2416 = vmatprep.subr.bf16.mxu0 0
  %2417 = vmatpush2.bf16.msra.mxu0 %v1655
  %2418 = vmatprep.subr.bf16.mxu0 0
  %2419 = vmatpush2.bf16.msra.mxu0 %v1654
  %2420 = vmatprep.mubr.bf16.mxu0 %v795
  %2421 = vmatmul.mubr.bf16.gmra.mxu0 %v794
  %v2422 = vpop.f32.mrf.mxu0
  %v2423 = vadd.f32 %v2326, %v2422
  %v2424 = vpop.f32.mrf.mxu0
  %v2425 = vpop.f32.mrf.mxu0
  %v2426 = vadd.f32 %v2329, %v2425
  %v2427 = vpop.f32.mrf.mxu0
  %2428 = vmatprep.mubr.bf16.mxu0 %v811
  %2429 = vmatmul.mubr.bf16.gmra.mxu0 %v810
  %v2430 = vpop.f32.mrf.mxu0
  %v2431 = vadd.f32 %v2334, %v2430
  %v2432 = vpop.f32.mrf.mxu0
  %v2433 = vpop.f32.mrf.mxu0
  %v2434 = vadd.f32 %v2337, %v2433
  %v2435 = vpop.f32.mrf.mxu0
  %2436 = vmatprep.mubr.bf16.mxu0 %v827
  %2437 = vmatmul.mubr.bf16.gmra.mxu0 %v826
  %v2438 = vpop.f32.mrf.mxu0
  %v2439 = vadd.f32 %v2342, %v2438
  %v2440 = vpop.f32.mrf.mxu0
  %v2441 = vpop.f32.mrf.mxu0
  %v2442 = vadd.f32 %v2345, %v2441
  %v2443 = vpop.f32.mrf.mxu0
  %2444 = vmatprep.mubr.bf16.mxu0 %v843
  %2445 = vmatmul.mubr.bf16.gmra.mxu0 %v842
  %v2446 = vpop.f32.mrf.mxu0
  %v2447 = vadd.f32 %v2350, %v2446
  %v2448 = vpop.f32.mrf.mxu0
  %v2449 = vpop.f32.mrf.mxu0
  %v2450 = vadd.f32 %v2353, %v2449
  %v2451 = vpop.f32.mrf.mxu0
  %2452 = vmatprep.mubr.bf16.mxu0 %v859
  %2453 = vmatmul.mubr.bf16.gmra.mxu0 %v858
  %v2454 = vpop.f32.mrf.mxu0
  %v2455 = vadd.f32 %v2358, %v2454
  %v2456 = vpop.f32.mrf.mxu0
  %v2457 = vpop.f32.mrf.mxu0
  %v2458 = vadd.f32 %v2361, %v2457
  %v2459 = vpop.f32.mrf.mxu0
  %2460 = vmatprep.mubr.bf16.mxu0 %v875
  %2461 = vmatmul.mubr.bf16.gmra.mxu0 %v874
  %v2462 = vpop.f32.mrf.mxu0
  %v2463 = vadd.f32 %v2366, %v2462
  %v2464 = vpop.f32.mrf.mxu0
  %v2465 = vpop.f32.mrf.mxu0
  %v2466 = vadd.f32 %v2369, %v2465
  %v2467 = vpop.f32.mrf.mxu0
  %2468 = vmatprep.mubr.bf16.mxu0 %v891
  %2469 = vmatmul.mubr.bf16.gmra.mxu0 %v890
  %v2470 = vpop.f32.mrf.mxu0
  %v2471 = vadd.f32 %v2374, %v2470
  %v2472 = vpop.f32.mrf.mxu0
  %v2473 = vpop.f32.mrf.mxu0
  %v2474 = vadd.f32 %v2377, %v2473
  %v2475 = vpop.f32.mrf.mxu0
  %2476 = vmatprep.mubr.bf16.mxu0 %v907
  %2477 = vmatmul.mubr.bf16.gmra.mxu0 %v906
  %v2478 = vpop.f32.mrf.mxu0
  %v2479 = vadd.f32 %v2382, %v2478
  %v2480 = vpop.f32.mrf.mxu0
  %v2481 = vpop.f32.mrf.mxu0
  %v2482 = vadd.f32 %v2385, %v2481
  %v2483 = vpop.f32.mrf.mxu0
  %2484 = vdwg.mxu0
  %2485 = vmatprep.subr.bf16.mxu0 0
  %2486 = vmatpush1.bf16.msra.mxu0 %v1669
  %2487 = vmatprep.subr.bf16.mxu0 0
  %2488 = vmatpush1.bf16.msra.mxu0 %v1668
  %2489 = vmatprep.subr.bf16.mxu0 0
  %2490 = vmatpush1.bf16.msra.mxu0 %v1667
  %2491 = vmatprep.subr.bf16.mxu0 0
  %2492 = vmatpush1.bf16.msra.mxu0 %v1666
  %2493 = vmatprep.subr.bf16.mxu0 0
  %2494 = vmatpush1.bf16.msra.mxu0 %v1665
  %2495 = vmatprep.subr.bf16.mxu0 0
  %2496 = vmatpush1.bf16.msra.mxu0 %v1664
  %2497 = vmatprep.subr.bf16.mxu0 0
  %2498 = vmatpush1.bf16.msra.mxu0 %v1663
  %2499 = vmatprep.subr.bf16.mxu0 0
  %2500 = vmatpush1.bf16.msra.mxu0 %v1662
  %2501 = vmatprep.subr.bf16.mxu0 0
  %2502 = vmatpush2.bf16.msra.mxu0 %v1677
  %2503 = vmatprep.subr.bf16.mxu0 0
  %2504 = vmatpush2.bf16.msra.mxu0 %v1676
  %2505 = vmatprep.subr.bf16.mxu0 0
  %2506 = vmatpush2.bf16.msra.mxu0 %v1675
  %2507 = vmatprep.subr.bf16.mxu0 0
  %2508 = vmatpush2.bf16.msra.mxu0 %v1674
  %2509 = vmatprep.subr.bf16.mxu0 0
  %2510 = vmatpush2.bf16.msra.mxu0 %v1673
  %2511 = vmatprep.subr.bf16.mxu0 0
  %2512 = vmatpush2.bf16.msra.mxu0 %v1672
  %2513 = vmatprep.subr.bf16.mxu0 0
  %2514 = vmatpush2.bf16.msra.mxu0 %v1671
  %2515 = vmatprep.subr.bf16.mxu0 0
  %2516 = vmatpush2.bf16.msra.mxu0 %v1670
  %2517 = vmatprep.mubr.bf16.mxu0 %v797
  %2518 = vmatmul.mubr.bf16.gmra.mxu0 %v796
  %v2519 = vpop.f32.mrf.mxu0
  %v2520 = vadd.f32 %v2423, %v2519
  %v2521 = vpop.f32.mrf.mxu0
  %v2522 = vpop.f32.mrf.mxu0
  %v2523 = vadd.f32 %v2426, %v2522
  %v2524 = vpop.f32.mrf.mxu0
  %2525 = vmatprep.mubr.bf16.mxu0 %v813
  %2526 = vmatmul.mubr.bf16.gmra.mxu0 %v812
  %v2527 = vpop.f32.mrf.mxu0
  %v2528 = vadd.f32 %v2431, %v2527
  %v2529 = vpop.f32.mrf.mxu0
  %v2530 = vpop.f32.mrf.mxu0
  %v2531 = vadd.f32 %v2434, %v2530
  %v2532 = vpop.f32.mrf.mxu0
  %2533 = vmatprep.mubr.bf16.mxu0 %v829
  %2534 = vmatmul.mubr.bf16.gmra.mxu0 %v828
  %v2535 = vpop.f32.mrf.mxu0
  %v2536 = vadd.f32 %v2439, %v2535
  %v2537 = vpop.f32.mrf.mxu0
  %v2538 = vpop.f32.mrf.mxu0
  %v2539 = vadd.f32 %v2442, %v2538
  %v2540 = vpop.f32.mrf.mxu0
  %2541 = vmatprep.mubr.bf16.mxu0 %v845
  %2542 = vmatmul.mubr.bf16.gmra.mxu0 %v844
  %v2543 = vpop.f32.mrf.mxu0
  %v2544 = vadd.f32 %v2447, %v2543
  %v2545 = vpop.f32.mrf.mxu0
  %v2546 = vpop.f32.mrf.mxu0
  %v2547 = vadd.f32 %v2450, %v2546
  %v2548 = vpop.f32.mrf.mxu0
  %2549 = vmatprep.mubr.bf16.mxu0 %v861
  %2550 = vmatmul.mubr.bf16.gmra.mxu0 %v860
  %v2551 = vpop.f32.mrf.mxu0
  %v2552 = vadd.f32 %v2455, %v2551
  %v2553 = vpop.f32.mrf.mxu0
  %v2554 = vpop.f32.mrf.mxu0
  %v2555 = vadd.f32 %v2458, %v2554
  %v2556 = vpop.f32.mrf.mxu0
  %2557 = vmatprep.mubr.bf16.mxu0 %v877
  %2558 = vmatmul.mubr.bf16.gmra.mxu0 %v876
  %v2559 = vpop.f32.mrf.mxu0
  %v2560 = vadd.f32 %v2463, %v2559
  %v2561 = vpop.f32.mrf.mxu0
  %v2562 = vpop.f32.mrf.mxu0
  %v2563 = vadd.f32 %v2466, %v2562
  %v2564 = vpop.f32.mrf.mxu0
  %2565 = vmatprep.mubr.bf16.mxu0 %v893
  %2566 = vmatmul.mubr.bf16.gmra.mxu0 %v892
  %v2567 = vpop.f32.mrf.mxu0
  %v2568 = vadd.f32 %v2471, %v2567
  %v2569 = vpop.f32.mrf.mxu0
  %v2570 = vpop.f32.mrf.mxu0
  %v2571 = vadd.f32 %v2474, %v2570
  %v2572 = vpop.f32.mrf.mxu0
  %2573 = vmatprep.mubr.bf16.mxu0 %v909
  %2574 = vmatmul.mubr.bf16.gmra.mxu0 %v908
  %v2575 = vpop.f32.mrf.mxu0
  %v2576 = vadd.f32 %v2479, %v2575
  %v2577 = vpop.f32.mrf.mxu0
  %v2578 = vpop.f32.mrf.mxu0
  %v2579 = vadd.f32 %v2482, %v2578
  %v2580 = vpop.f32.mrf.mxu0
  %2581 = vdwg.mxu0
  %2582 = vst [vmem:[%s2] sm:$0xff] %v2520
  %2583 = vst [vmem:[%s2 + $0x8] sm:$0xff] %v2523
  %2584 = vst [vmem:[%s2 + $0x10] sm:$0xff] %v2528
  %2585 = vst [vmem:[%s2 + $0x18] sm:$0xff] %v2531
  %2586 = vst [vmem:[%s2 + $0x20] sm:$0xff] %v2536
  %2587 = vst [vmem:[%s2 + $0x28] sm:$0xff] %v2539
  %2588 = vst [vmem:[%s2 + $0x30] sm:$0xff] %v2544
  %2589 = vst [vmem:[%s2 + $0x38] sm:$0xff] %v2547
  %2590 = vst [vmem:[%s2 + $0x40] sm:$0xff] %v2552
  %2591 = vst [vmem:[%s2 + $0x48] sm:$0xff] %v2555
  %2592 = vst [vmem:[%s2 + $0x50] sm:$0xff] %v2560
  %2593 = vst [vmem:[%s2 + $0x58] sm:$0xff] %v2563
  %2594 = vst [vmem:[%s2 + $0x60] sm:$0xff] %v2568
  %2595 = vst [vmem:[%s2 + $0x68] sm:$0xff] %v2571
  %2596 = vst [vmem:[%s2 + $0x70] sm:$0xff] %v2576
  %2597 = vst [vmem:[%s2 + $0x78] sm:$0xff] %v2579
  %v2598 = vadd.f32 %v2520, %v2523
  %v2599 = vadd.f32 %v2598, %v2528
  %v2600 = vadd.f32 %v2599, %v2531
  %v2601 = vadd.f32 %v2600, %v2536
  %v2602 = vadd.f32 %v2601, %v2539
  %v2603 = vadd.f32 %v2602, %v2544
  %v2604 = vadd.f32 %v2603, %v2547
  %v2605 = vadd.f32 %v2604, %v2552
  %v2606 = vadd.f32 %v2605, %v2555
  %v2607 = vadd.f32 %v2606, %v2560
  %v2608 = vadd.f32 %v2607, %v2563
  %v2609 = vadd.f32 %v2608, %v2568
  %v2610 = vadd.f32 %v2609, %v2571
  %v2611 = vadd.f32 %v2610, %v2576
  %v2612 = vadd.f32 %v2611, %v2579
  %v2613 = vrot.slane %v2612, 4
  %v2614 = vadd.f32 %v2612, %v2613
  %v2615 = vrot.slane %v2614, 2
  %v2616 = vadd.f32 %v2614, %v2615
  %v2617 = vrot.slane %v2616, 1
  %v2618 = vadd.f32 %v2616, %v2617
  %v2619 = vmul.f32 %v2520, %v2520
  %v2620 = vmul.f32 %v2523, %v2523
  %v2621 = vmul.f32 %v2528, %v2528
  %v2622 = vmul.f32 %v2531, %v2531
  %v2623 = vmul.f32 %v2536, %v2536
  %v2624 = vmul.f32 %v2539, %v2539
  %v2625 = vmul.f32 %v2544, %v2544
  %v2626 = vmul.f32 %v2547, %v2547
  %v2627 = vmul.f32 %v2552, %v2552
  %v2628 = vmul.f32 %v2555, %v2555
  %v2629 = vmul.f32 %v2560, %v2560
  %v2630 = vmul.f32 %v2563, %v2563
  %v2631 = vmul.f32 %v2568, %v2568
  %v2632 = vmul.f32 %v2571, %v2571
  %v2633 = vmul.f32 %v2576, %v2576
  %v2634 = vmul.f32 %v2579, %v2579
  %v2635 = vadd.f32 %v2619, %v2620
  %v2636 = vadd.f32 %v2635, %v2621
  %v2637 = vadd.f32 %v2636, %v2622
  %v2638 = vadd.f32 %v2637, %v2623
  %v2639 = vadd.f32 %v2638, %v2624
  %v2640 = vadd.f32 %v2639, %v2625
  %v2641 = vadd.f32 %v2640, %v2626
  %v2642 = vadd.f32 %v2641, %v2627
  %v2643 = vadd.f32 %v2642, %v2628
  %v2644 = vadd.f32 %v2643, %v2629
  %v2645 = vadd.f32 %v2644, %v2630
  %v2646 = vadd.f32 %v2645, %v2631
  %v2647 = vadd.f32 %v2646, %v2632
  %v2648 = vadd.f32 %v2647, %v2633
  %v2649 = vadd.f32 %v2648, %v2634
  %v2650 = vrot.slane %v2649, 4
  %v2651 = vadd.f32 %v2649, %v2650
  %v2652 = vrot.slane %v2651, 2
  %v2653 = vadd.f32 %v2651, %v2652
  %v2654 = vrot.slane %v2653, 1
  %v2655 = vadd.f32 %v2653, %v2654
  %vm2656 = vcmask 1040384
  %v2657 = vsel %vm2656, %v2618, %v2655
  %2658 = vst [vmem:[%s3] sm:$0x3] %v2657
  // Predicated region
  $region10: #{discriminator_forward.11} parent=0 // pred_check
    _
  $region11: #{discriminator_forward.11} parent=0 // pred_check_branch
    %2660 = sbr.rel (0) target = $region13
  $region12: #{discriminator_forward.11} parent=0 // pred_region
    _
  $region13: #{discriminator_forward.11} parent=0 // pred_fallthru
    _
  // Predicated region
  $region14: #{discriminator_forward.11} parent=0 // pred_check
    _
  $region15: #{discriminator_forward.11} parent=0 // pred_check_branch
    %2662 = sbr.rel (0) target = $region17
  $region16: #{discriminator_forward.11} parent=0 // pred_region
    _
  $region17: #{discriminator_forward.11} parent=0 // pred_fallthru
    _
  // Predicated region
  $region18: #{discriminator_forward.11} parent=0 // pred_check
    _
  $region19: #{discriminator_forward.11} parent=0 // pred_check_branch
    %2664 = sbr.rel (0) target = $region21
  $region20: #{discriminator_forward.11} parent=0 // pred_region
    _
  $region21: #{discriminator_forward.11} parent=0 // pred_fallthru
    _
  // Predicated region
  $region22: #{discriminator_forward.11} parent=0 // pred_check
    _
  $region23: #{discriminator_forward.11} parent=0 // pred_check_branch
    %2666 = sbr.rel (0) target = $region25
  $region24: #{discriminator_forward.11} parent=0 // pred_region
    _
  $region25: #{discriminator_forward.11} parent=0 // pred_fallthru
    _

// kernel: discriminator_forward.14
$region0: #{discriminator_forward.14}
  #allocation0 [shape = 'u32[]', space=smem, size = 0x4, offset = 0x4, fixed_abs, tag = 'smem constant byte address 0x4 - core index']
  #allocation1 [shape = 'u32[144,128]{1,0:T(1,128)}', space=vmem, size = 0x12000, scoped, tag = 'internal scratch']
  %s0 = inlined_call_operand.vmem [shape: f32[32,128], index: 0, kind: input, shape index: {}]
  %s1 = inlined_call_operand.vmem [shape: f32[2,128], index: 1, kind: input, shape index: {}]
  %s2 = inlined_call_operand.vmem [shape: bf16[32,128], index: 2, kind: output, shape index: {}]
  %s3 = sld [smem:[#allocation0]]
  $region18: #{discriminator_forward.14} parent=0
    _
  %s5 = ssub.s32 1, %s3
  %s6 = scalar_select 0, %s5, %s3
  // Predicated region
  $region2: #{discriminator_forward.14} parent=0 // pred_check
    _
  $region3: #{discriminator_forward.14} parent=0 // pred_check_branch
    %8 = sbr.rel (0) target = $region5
  $region4: #{discriminator_forward.14} parent=0 // pred_region
    _
  $region5: #{discriminator_forward.14} parent=0 // pred_fallthru
    _
  // Predicated region
  $region6: #{discriminator_forward.14} parent=0 // pred_check
    _
  $region7: #{discriminator_forward.14} parent=0 // pred_check_branch
    %10 = sbr.rel (0) target = $region9
  $region8: #{discriminator_forward.14} parent=0 // pred_region
    _
  $region9: #{discriminator_forward.14} parent=0 // pred_fallthru
    _
  %v11 = vld [vmem:[%s0] sm:$0xff]
  %v12 = vld [vmem:[%s0 + $0x8] sm:$0xff]
  %v13 = vld [vmem:[%s0 + $0x10] sm:$0xff]
  %v14 = vld [vmem:[%s0 + $0x18] sm:$0xff]
  %v15 = vld [vmem:[%s1] sm:$0x1]
  %v16 = vld [vmem:[%s1 + $0x1] sm:$0x1]
  %v17 = vlaneseq
  %v18 = vshrl.u32 %v17, 7
  %v19 = vsub.s32 0, %v18
  %v20 = vrot.slane %v15, %v19
  %v21 = vmul.f32 %v11, %v20
  %v22 = vmul.f32 %v12, %v20
  %v23 = vmul.f32 %v13, %v20
  %v24 = vmul.f32 %v14, %v20
  %v25 = vlaneseq
  %v26 = vshrl.u32 %v25, 7
  %v27 = vsub.s32 0, %v26
  %v28 = vrot.slane %v16, %v27
  %v29 = vadd.f32 %v21, %v28
  %v30 = vadd.f32 %v22, %v28
  %v31 = vadd.f32 %v23, %v28
  %v32 = vadd.f32 %v24, %v28
  %vm33 = vcmp.gt.f32.partialorder %v29, 0.0
  %vm34 = vcmp.gt.f32.partialorder %v30, 0.0
  %vm35 = vcmp.gt.f32.partialorder %v31, 0.0
  %vm36 = vcmp.gt.f32.partialorder %v32, 0.0
  %v37 = vmul.f32 %v29, 0.2
  %v38 = vmul.f32 %v30, 0.2
  %v39 = vmul.f32 %v31, 0.2
  %v40 = vmul.f32 %v32, 0.2
  %v41 = vsel %vm33, %v29, %v37
  %v42 = vsel %vm34, %v30, %v38
  %v43 = vsel %vm35, %v31, %v39
  %v44 = vsel %vm36, %v32, %v40
  %v45 = vpack.c.bf16 %v42, %v41
  %v46 = vpack.c.bf16 %v44, %v43
  %v49 = vunpack.c.l.b16 %v45
  %v50 = vunpack.c.h.b16 %v45
  %v51 = vunpack.c.l.b16 %v46
  %v52 = vunpack.c.h.b16 %v46
  %v53 = vpack.c.b16 %v49, %v49
  %v54 = vpack.c.b16 %v50, %v50
  %v55 = vpack.c.b16 %v51, %v51
  %v56 = vpack.c.b16 %v52, %v52
  %61 = vst [vmem:[%s2] sm:$0xf] %v53
  %62 = vst [vmem:[%s2 + $0x4] sm:$0xf] %v54
  %63 = vst [vmem:[%s2 + $0x8] sm:$0xf] %v55
  %64 = vst [vmem:[%s2 + $0xc] sm:$0xf] %v56
  // Predicated region
  $region10: #{discriminator_forward.14} parent=0 // pred_check
    _
  $region11: #{discriminator_forward.14} parent=0 // pred_check_branch
    %66 = sbr.rel (0) target = $region13
  $region12: #{discriminator_forward.14} parent=0 // pred_region
    _
  $region13: #{discriminator_forward.14} parent=0 // pred_fallthru
    _
  // Predicated region
  $region14: #{discriminator_forward.14} parent=0 // pred_check
    _
  $region15: #{discriminator_forward.14} parent=0 // pred_check_branch
    %68 = sbr.rel (0) target = $region17
  $region16: #{discriminator_forward.14} parent=0 // pred_region
    _
  $region17: #{discriminator_forward.14} parent=0 // pred_fallthru
    _

// kernel: discriminator_forward.13
$region0: #{discriminator_forward.13}
  #allocation0 [shape = 'u32[]', space=smem, size = 0x4, offset = 0x4, fixed_abs, tag = 'smem constant byte address 0x4 - core index']
  #allocation1 [shape = 'u32[144,128]{1,0:T(1,128)}', space=vmem, size = 0x12000, scoped, tag = 'internal scratch']
  %s0 = inlined_call_operand.vmem [shape: bf16[32,2048], index: 0, kind: input, shape index: {}]
  %s1 = inlined_call_operand.vmem [shape: bf16[2048,128], index: 1, kind: input, shape index: {}]
  %s2 = inlined_call_operand.vmem [shape: f32[32,128], index: 2, kind: output, shape index: {0}]
  %s3 = inlined_call_operand.vmem [shape: f32[1,2,128], index: 3, kind: output, shape index: {1}]
  %4 = xla_tuple %s2, %s3
  %s5 = sld [smem:[#allocation0]]
  $region26: #{discriminator_forward.13} parent=0
    _
  %s7 = ssub.s32 1, %s5
  %s8 = scalar_select 0, %s7, %s5
  // Predicated region
  $region2: #{discriminator_forward.13} parent=0 // pred_check
    _
  $region3: #{discriminator_forward.13} parent=0 // pred_check_branch
    %10 = sbr.rel (0) target = $region5
  $region4: #{discriminator_forward.13} parent=0 // pred_region
    _
  $region5: #{discriminator_forward.13} parent=0 // pred_fallthru
    _
  // Predicated region
  $region6: #{discriminator_forward.13} parent=0 // pred_check
    _
  $region7: #{discriminator_forward.13} parent=0 // pred_check_branch
    %12 = sbr.rel (0) target = $region9
  $region8: #{discriminator_forward.13} parent=0 // pred_region
    _
  $region9: #{discriminator_forward.13} parent=0 // pred_fallthru
    _
  %v14 = vld [vmem:[%s0] sm:$0xff]
  %v15 = vld [vmem:[%s0 + $0x8] sm:$0xff]
  %v16 = vld [vmem:[%s0 + $0x10] sm:$0xff]
  %v17 = vld [vmem:[%s0 + $0x18] sm:$0xff]
  %v18 = vld [vmem:[%s0 + $0x20] sm:$0xff]
  %v19 = vld [vmem:[%s0 + $0x28] sm:$0xff]
  %v20 = vld [vmem:[%s0 + $0x30] sm:$0xff]
  %v21 = vld [vmem:[%s0 + $0x38] sm:$0xff]
  %v22 = vld [vmem:[%s0 + $0x40] sm:$0xff]
  %v23 = vld [vmem:[%s0 + $0x48] sm:$0xff]
  %v24 = vld [vmem:[%s0 + $0x50] sm:$0xff]
  %v25 = vld [vmem:[%s0 + $0x58] sm:$0xff]
  %v26 = vld [vmem:[%s0 + $0x60] sm:$0xff]
  %v27 = vld [vmem:[%s0 + $0x68] sm:$0xff]
  %v28 = vld [vmem:[%s0 + $0x70] sm:$0xff]
  %v29 = vld [vmem:[%s0 + $0x78] sm:$0xff]
  %v30 = vld [vmem:[%s0 + $0x80] sm:$0xff]
  %v31 = vld [vmem:[%s0 + $0x88] sm:$0xff]
  %v32 = vld [vmem:[%s0 + $0x90] sm:$0xff]
  %v33 = vld [vmem:[%s0 + $0x98] sm:$0xff]
  %v34 = vld [vmem:[%s0 + $0xa0] sm:$0xff]
  %v35 = vld [vmem:[%s0 + $0xa8] sm:$0xff]
  %v36 = vld [vmem:[%s0 + $0xb0] sm:$0xff]
  %v37 = vld [vmem:[%s0 + $0xb8] sm:$0xff]
  %v38 = vld [vmem:[%s0 + $0xc0] sm:$0xff]
  %v39 = vld [vmem:[%s0 + $0xc8] sm:$0xff]
  %v40 = vld [vmem:[%s0 + $0xd0] sm:$0xff]
  %v41 = vld [vmem:[%s0 + $0xd8] sm:$0xff]
  %v42 = vld [vmem:[%s0 + $0xe0] sm:$0xff]
  %v43 = vld [vmem:[%s0 + $0xe8] sm:$0xff]
  %v44 = vld [vmem:[%s0 + $0xf0] sm:$0xff]
  %v45 = vld [vmem:[%s0 + $0xf8] sm:$0xff]
  %v46 = vld [vmem:[%s1] sm:$0xf]
  %v47 = vld [vmem:[%s1 + $0x4] sm:$0xf]
  %v48 = vld [vmem:[%s1 + $0x8] sm:$0xf]
  %v49 = vld [vmem:[%s1 + $0xc] sm:$0xf]
  %v50 = vld [vmem:[%s1 + $0x10] sm:$0xf]
  %v51 = vld [vmem:[%s1 + $0x14] sm:$0xf]
  %v52 = vld [vmem:[%s1 + $0x18] sm:$0xf]
  %v53 = vld [vmem:[%s1 + $0x1c] sm:$0xf]
  %v54 = vld [vmem:[%s1 + $0x20] sm:$0xf]
  %v55 = vld [vmem:[%s1 + $0x24] sm:$0xf]
  %v56 = vld [vmem:[%s1 + $0x28] sm:$0xf]
  %v57 = vld [vmem:[%s1 + $0x2c] sm:$0xf]
  %v58 = vld [vmem:[%s1 + $0x30] sm:$0xf]
  %v59 = vld [vmem:[%s1 + $0x34] sm:$0xf]
  %v60 = vld [vmem:[%s1 + $0x38] sm:$0xf]
  %v61 = vld [vmem:[%s1 + $0x3c] sm:$0xf]
  %v62 = vld [vmem:[%s1 + $0x40] sm:$0xf]
  %v63 = vld [vmem:[%s1 + $0x44] sm:$0xf]
  %v64 = vld [vmem:[%s1 + $0x48] sm:$0xf]
  %v65 = vld [vmem:[%s1 + $0x4c] sm:$0xf]
  %v66 = vld [vmem:[%s1 + $0x50] sm:$0xf]
  %v67 = vld [vmem:[%s1 + $0x54] sm:$0xf]
  %v68 = vld [vmem:[%s1 + $0x58] sm:$0xf]
  %v69 = vld [vmem:[%s1 + $0x5c] sm:$0xf]
  %v70 = vld [vmem:[%s1 + $0x60] sm:$0xf]
  %v71 = vld [vmem:[%s1 + $0x64] sm:$0xf]
  %v72 = vld [vmem:[%s1 + $0x68] sm:$0xf]
  %v73 = vld [vmem:[%s1 + $0x6c] sm:$0xf]
  %v74 = vld [vmem:[%s1 + $0x70] sm:$0xf]
  %v75 = vld [vmem:[%s1 + $0x74] sm:$0xf]
  %v76 = vld [vmem:[%s1 + $0x78] sm:$0xf]
  %v77 = vld [vmem:[%s1 + $0x7c] sm:$0xf]
  %v78 = vld [vmem:[%s1 + $0x80] sm:$0xf]
  %v79 = vld [vmem:[%s1 + $0x84] sm:$0xf]
  %v80 = vld [vmem:[%s1 + $0x88] sm:$0xf]
  %v81 = vld [vmem:[%s1 + $0x8c] sm:$0xf]
  %v82 = vld [vmem:[%s1 + $0x90] sm:$0xf]
  %v83 = vld [vmem:[%s1 + $0x94] sm:$0xf]
  %v84 = vld [vmem:[%s1 + $0x98] sm:$0xf]
  %v85 = vld [vmem:[%s1 + $0x9c] sm:$0xf]
  %v86 = vld [vmem:[%s1 + $0xa0] sm:$0xf]
  %v87 = vld [vmem:[%s1 + $0xa4] sm:$0xf]
  %v88 = vld [vmem:[%s1 + $0xa8] sm:$0xf]
  %v89 = vld [vmem:[%s1 + $0xac] sm:$0xf]
  %v90 = vld [vmem:[%s1 + $0xb0] sm:$0xf]
  %v91 = vld [vmem:[%s1 + $0xb4] sm:$0xf]
  %v92 = vld [vmem:[%s1 + $0xb8] sm:$0xf]
  %v93 = vld [vmem:[%s1 + $0xbc] sm:$0xf]
  %v94 = vld [vmem:[%s1 + $0xc0] sm:$0xf]
  %v95 = vld [vmem:[%s1 + $0xc4] sm:$0xf]
  %v96 = vld [vmem:[%s1 + $0xc8] sm:$0xf]
  %v97 = vld [vmem:[%s1 + $0xcc] sm:$0xf]
  %v98 = vld [vmem:[%s1 + $0xd0] sm:$0xf]
  %v99 = vld [vmem:[%s1 + $0xd4] sm:$0xf]
  %v100 = vld [vmem:[%s1 + $0xd8] sm:$0xf]
  %v101 = vld [vmem:[%s1 + $0xdc] sm:$0xf]
  %v102 = vld [vmem:[%s1 + $0xe0] sm:$0xf]
  %v103 = vld [vmem:[%s1 + $0xe4] sm:$0xf]
  %v104 = vld [vmem:[%s1 + $0xe8] sm:$0xf]
  %v105 = vld [vmem:[%s1 + $0xec] sm:$0xf]
  %v106 = vld [vmem:[%s1 + $0xf0] sm:$0xf]
  %v107 = vld [vmem:[%s1 + $0xf4] sm:$0xf]
  %v108 = vld [vmem:[%s1 + $0xf8] sm:$0xf]
  %v109 = vld [vmem:[%s1 + $0xfc] sm:$0xf]
  %v110 = vld [vmem:[%s1 + $0x100] sm:$0xf]
  %v111 = vld [vmem:[%s1 + $0x104] sm:$0xf]
  %v112 = vld [vmem:[%s1 + $0x108] sm:$0xf]
  %v113 = vld [vmem:[%s1 + $0x10c] sm:$0xf]
  %v114 = vld [vmem:[%s1 + $0x110] sm:$0xf]
  %v115 = vld [vmem:[%s1 + $0x114] sm:$0xf]
  %v116 = vld [vmem:[%s1 + $0x118] sm:$0xf]
  %v117 = vld [vmem:[%s1 + $0x11c] sm:$0xf]
  %v118 = vld [vmem:[%s1 + $0x120] sm:$0xf]
  %v119 = vld [vmem:[%s1 + $0x124] sm:$0xf]
  %v120 = vld [vmem:[%s1 + $0x128] sm:$0xf]
  %v121 = vld [vmem:[%s1 + $0x12c] sm:$0xf]
  %v122 = vld [vmem:[%s1 + $0x130] sm:$0xf]
  %v123 = vld [vmem:[%s1 + $0x134] sm:$0xf]
  %v124 = vld [vmem:[%s1 + $0x138] sm:$0xf]
  %v125 = vld [vmem:[%s1 + $0x13c] sm:$0xf]
  %v126 = vld [vmem:[%s1 + $0x140] sm:$0xf]
  %v127 = vld [vmem:[%s1 + $0x144] sm:$0xf]
  %v128 = vld [vmem:[%s1 + $0x148] sm:$0xf]
  %v129 = vld [vmem:[%s1 + $0x14c] sm:$0xf]
  %v130 = vld [vmem:[%s1 + $0x150] sm:$0xf]
  %v131 = vld [vmem:[%s1 + $0x154] sm:$0xf]
  %v132 = vld [vmem:[%s1 + $0x158] sm:$0xf]
  %v133 = vld [vmem:[%s1 + $0x15c] sm:$0xf]
  %v134 = vld [vmem:[%s1 + $0x160] sm:$0xf]
  %v135 = vld [vmem:[%s1 + $0x164] sm:$0xf]
  %v136 = vld [vmem:[%s1 + $0x168] sm:$0xf]
  %v137 = vld [vmem:[%s1 + $0x16c] sm:$0xf]
  %v138 = vld [vmem:[%s1 + $0x170] sm:$0xf]
  %v139 = vld [vmem:[%s1 + $0x174] sm:$0xf]
  %v140 = vld [vmem:[%s1 + $0x178] sm:$0xf]
  %v141 = vld [vmem:[%s1 + $0x17c] sm:$0xf]
  %v142 = vld [vmem:[%s1 + $0x180] sm:$0xf]
  %v143 = vld [vmem:[%s1 + $0x184] sm:$0xf]
  %v144 = vld [vmem:[%s1 + $0x188] sm:$0xf]
  %v145 = vld [vmem:[%s1 + $0x18c] sm:$0xf]
  %v146 = vld [vmem:[%s1 + $0x190] sm:$0xf]
  %v147 = vld [vmem:[%s1 + $0x194] sm:$0xf]
  %v148 = vld [vmem:[%s1 + $0x198] sm:$0xf]
  %v149 = vld [vmem:[%s1 + $0x19c] sm:$0xf]
  %v150 = vld [vmem:[%s1 + $0x1a0] sm:$0xf]
  %v151 = vld [vmem:[%s1 + $0x1a4] sm:$0xf]
  %v152 = vld [vmem:[%s1 + $0x1a8] sm:$0xf]
  %v153 = vld [vmem:[%s1 + $0x1ac] sm:$0xf]
  %v154 = vld [vmem:[%s1 + $0x1b0] sm:$0xf]
  %v155 = vld [vmem:[%s1 + $0x1b4] sm:$0xf]
  %v156 = vld [vmem:[%s1 + $0x1b8] sm:$0xf]
  %v157 = vld [vmem:[%s1 + $0x1bc] sm:$0xf]
  %v158 = vld [vmem:[%s1 + $0x1c0] sm:$0xf]
  %v159 = vld [vmem:[%s1 + $0x1c4] sm:$0xf]
  %v160 = vld [vmem:[%s1 + $0x1c8] sm:$0xf]
  %v161 = vld [vmem:[%s1 + $0x1cc] sm:$0xf]
  %v162 = vld [vmem:[%s1 + $0x1d0] sm:$0xf]
  %v163 = vld [vmem:[%s1 + $0x1d4] sm:$0xf]
  %v164 = vld [vmem:[%s1 + $0x1d8] sm:$0xf]
  %v165 = vld [vmem:[%s1 + $0x1dc] sm:$0xf]
  %v166 = vld [vmem:[%s1 + $0x1e0] sm:$0xf]
  %v167 = vld [vmem:[%s1 + $0x1e4] sm:$0xf]
  %v168 = vld [vmem:[%s1 + $0x1e8] sm:$0xf]
  %v169 = vld [vmem:[%s1 + $0x1ec] sm:$0xf]
  %v170 = vld [vmem:[%s1 + $0x1f0] sm:$0xf]
  %v171 = vld [vmem:[%s1 + $0x1f4] sm:$0xf]
  %v172 = vld [vmem:[%s1 + $0x1f8] sm:$0xf]
  %v173 = vld [vmem:[%s1 + $0x1fc] sm:$0xf]
  %v174 = vld [vmem:[%s1 + $0x200] sm:$0xf]
  %v175 = vld [vmem:[%s1 + $0x204] sm:$0xf]
  %v176 = vld [vmem:[%s1 + $0x208] sm:$0xf]
  %v177 = vld [vmem:[%s1 + $0x20c] sm:$0xf]
  %v178 = vld [vmem:[%s1 + $0x210] sm:$0xf]
  %v179 = vld [vmem:[%s1 + $0x214] sm:$0xf]
  %v180 = vld [vmem:[%s1 + $0x218] sm:$0xf]
  %v181 = vld [vmem:[%s1 + $0x21c] sm:$0xf]
  %v182 = vld [vmem:[%s1 + $0x220] sm:$0xf]
  %v183 = vld [vmem:[%s1 + $0x224] sm:$0xf]
  %v184 = vld [vmem:[%s1 + $0x228] sm:$0xf]
  %v185 = vld [vmem:[%s1 + $0x22c] sm:$0xf]
  %v186 = vld [vmem:[%s1 + $0x230] sm:$0xf]
  %v187 = vld [vmem:[%s1 + $0x234] sm:$0xf]
  %v188 = vld [vmem:[%s1 + $0x238] sm:$0xf]
  %v189 = vld [vmem:[%s1 + $0x23c] sm:$0xf]
  %v190 = vld [vmem:[%s1 + $0x240] sm:$0xf]
  %v191 = vld [vmem:[%s1 + $0x244] sm:$0xf]
  %v192 = vld [vmem:[%s1 + $0x248] sm:$0xf]
  %v193 = vld [vmem:[%s1 + $0x24c] sm:$0xf]
  %v194 = vld [vmem:[%s1 + $0x250] sm:$0xf]
  %v195 = vld [vmem:[%s1 + $0x254] sm:$0xf]
  %v196 = vld [vmem:[%s1 + $0x258] sm:$0xf]
  %v197 = vld [vmem:[%s1 + $0x25c] sm:$0xf]
  %v198 = vld [vmem:[%s1 + $0x260] sm:$0xf]
  %v199 = vld [vmem:[%s1 + $0x264] sm:$0xf]
  %v200 = vld [vmem:[%s1 + $0x268] sm:$0xf]
  %v201 = vld [vmem:[%s1 + $0x26c] sm:$0xf]
  %v202 = vld [vmem:[%s1 + $0x270] sm:$0xf]
  %v203 = vld [vmem:[%s1 + $0x274] sm:$0xf]
  %v204 = vld [vmem:[%s1 + $0x278] sm:$0xf]
  %v205 = vld [vmem:[%s1 + $0x27c] sm:$0xf]
  %v206 = vld [vmem:[%s1 + $0x280] sm:$0xf]
  %v207 = vld [vmem:[%s1 + $0x284] sm:$0xf]
  %v208 = vld [vmem:[%s1 + $0x288] sm:$0xf]
  %v209 = vld [vmem:[%s1 + $0x28c] sm:$0xf]
  %v210 = vld [vmem:[%s1 + $0x290] sm:$0xf]
  %v211 = vld [vmem:[%s1 + $0x294] sm:$0xf]
  %v212 = vld [vmem:[%s1 + $0x298] sm:$0xf]
  %v213 = vld [vmem:[%s1 + $0x29c] sm:$0xf]
  %v214 = vld [vmem:[%s1 + $0x2a0] sm:$0xf]
  %v215 = vld [vmem:[%s1 + $0x2a4] sm:$0xf]
  %v216 = vld [vmem:[%s1 + $0x2a8] sm:$0xf]
  %v217 = vld [vmem:[%s1 + $0x2ac] sm:$0xf]
  %v218 = vld [vmem:[%s1 + $0x2b0] sm:$0xf]
  %v219 = vld [vmem:[%s1 + $0x2b4] sm:$0xf]
  %v220 = vld [vmem:[%s1 + $0x2b8] sm:$0xf]
  %v221 = vld [vmem:[%s1 + $0x2bc] sm:$0xf]
  %v222 = vld [vmem:[%s1 + $0x2c0] sm:$0xf]
  %v223 = vld [vmem:[%s1 + $0x2c4] sm:$0xf]
  %v224 = vld [vmem:[%s1 + $0x2c8] sm:$0xf]
  %v225 = vld [vmem:[%s1 + $0x2cc] sm:$0xf]
  %v226 = vld [vmem:[%s1 + $0x2d0] sm:$0xf]
  %v227 = vld [vmem:[%s1 + $0x2d4] sm:$0xf]
  %v228 = vld [vmem:[%s1 + $0x2d8] sm:$0xf]
  %v229 = vld [vmem:[%s1 + $0x2dc] sm:$0xf]
  %v230 = vld [vmem:[%s1 + $0x2e0] sm:$0xf]
  %v231 = vld [vmem:[%s1 + $0x2e4] sm:$0xf]
  %v232 = vld [vmem:[%s1 + $0x2e8] sm:$0xf]
  %v233 = vld [vmem:[%s1 + $0x2ec] sm:$0xf]
  %v234 = vld [vmem:[%s1 + $0x2f0] sm:$0xf]
  %v235 = vld [vmem:[%s1 + $0x2f4] sm:$0xf]
  %v236 = vld [vmem:[%s1 + $0x2f8] sm:$0xf]
  %v237 = vld [vmem:[%s1 + $0x2fc] sm:$0xf]
  %v238 = vld [vmem:[%s1 + $0x300] sm:$0xf]
  %v239 = vld [vmem:[%s1 + $0x304] sm:$0xf]
  %v240 = vld [vmem:[%s1 + $0x308] sm:$0xf]
  %v241 = vld [vmem:[%s1 + $0x30c] sm:$0xf]
  %v242 = vld [vmem:[%s1 + $0x310] sm:$0xf]
  %v243 = vld [vmem:[%s1 + $0x314] sm:$0xf]
  %v244 = vld [vmem:[%s1 + $0x318] sm:$0xf]
  %v245 = vld [vmem:[%s1 + $0x31c] sm:$0xf]
  %v246 = vld [vmem:[%s1 + $0x320] sm:$0xf]
  %v247 = vld [vmem:[%s1 + $0x324] sm:$0xf]
  %v248 = vld [vmem:[%s1 + $0x328] sm:$0xf]
  %v249 = vld [vmem:[%s1 + $0x32c] sm:$0xf]
  %v250 = vld [vmem:[%s1 + $0x330] sm:$0xf]
  %v251 = vld [vmem:[%s1 + $0x334] sm:$0xf]
  %v252 = vld [vmem:[%s1 + $0x338] sm:$0xf]
  %v253 = vld [vmem:[%s1 + $0x33c] sm:$0xf]
  %v254 = vld [vmem:[%s1 + $0x340] sm:$0xf]
  %v255 = vld [vmem:[%s1 + $0x344] sm:$0xf]
  %v256 = vld [vmem:[%s1 + $0x348] sm:$0xf]
  %v257 = vld [vmem:[%s1 + $0x34c] sm:$0xf]
  %v258 = vld [vmem:[%s1 + $0x350] sm:$0xf]
  %v259 = vld [vmem:[%s1 + $0x354] sm:$0xf]
  %v260 = vld [vmem:[%s1 + $0x358] sm:$0xf]
  %v261 = vld [vmem:[%s1 + $0x35c] sm:$0xf]
  %v262 = vld [vmem:[%s1 + $0x360] sm:$0xf]
  %v263 = vld [vmem:[%s1 + $0x364] sm:$0xf]
  %v264 = vld [vmem:[%s1 + $0x368] sm:$0xf]
  %v265 = vld [vmem:[%s1 + $0x36c] sm:$0xf]
  %v266 = vld [vmem:[%s1 + $0x370] sm:$0xf]
  %v267 = vld [vmem:[%s1 + $0x374] sm:$0xf]
  %v268 = vld [vmem:[%s1 + $0x378] sm:$0xf]
  %v269 = vld [vmem:[%s1 + $0x37c] sm:$0xf]
  %v270 = vld [vmem:[%s1 + $0x380] sm:$0xf]
  %v271 = vld [vmem:[%s1 + $0x384] sm:$0xf]
  %v272 = vld [vmem:[%s1 + $0x388] sm:$0xf]
  %v273 = vld [vmem:[%s1 + $0x38c] sm:$0xf]
  %v274 = vld [vmem:[%s1 + $0x390] sm:$0xf]
  %v275 = vld [vmem:[%s1 + $0x394] sm:$0xf]
  %v276 = vld [vmem:[%s1 + $0x398] sm:$0xf]
  %v277 = vld [vmem:[%s1 + $0x39c] sm:$0xf]
  %v278 = vld [vmem:[%s1 + $0x3a0] sm:$0xf]
  %v279 = vld [vmem:[%s1 + $0x3a4] sm:$0xf]
  %v280 = vld [vmem:[%s1 + $0x3a8] sm:$0xf]
  %v281 = vld [vmem:[%s1 + $0x3ac] sm:$0xf]
  %v282 = vld [vmem:[%s1 + $0x3b0] sm:$0xf]
  %v283 = vld [vmem:[%s1 + $0x3b4] sm:$0xf]
  %v284 = vld [vmem:[%s1 + $0x3b8] sm:$0xf]
  %v285 = vld [vmem:[%s1 + $0x3bc] sm:$0xf]
  %v286 = vld [vmem:[%s1 + $0x3c0] sm:$0xf]
  %v287 = vld [vmem:[%s1 + $0x3c4] sm:$0xf]
  %v288 = vld [vmem:[%s1 + $0x3c8] sm:$0xf]
  %v289 = vld [vmem:[%s1 + $0x3cc] sm:$0xf]
  %v290 = vld [vmem:[%s1 + $0x3d0] sm:$0xf]
  %v291 = vld [vmem:[%s1 + $0x3d4] sm:$0xf]
  %v292 = vld [vmem:[%s1 + $0x3d8] sm:$0xf]
  %v293 = vld [vmem:[%s1 + $0x3dc] sm:$0xf]
  %v294 = vld [vmem:[%s1 + $0x3e0] sm:$0xf]
  %v295 = vld [vmem:[%s1 + $0x3e4] sm:$0xf]
  %v296 = vld [vmem:[%s1 + $0x3e8] sm:$0xf]
  %v297 = vld [vmem:[%s1 + $0x3ec] sm:$0xf]
  %v298 = vld [vmem:[%s1 + $0x3f0] sm:$0xf]
  %v299 = vld [vmem:[%s1 + $0x3f4] sm:$0xf]
  %v300 = vld [vmem:[%s1 + $0x3f8] sm:$0xf]
  %v301 = vld [vmem:[%s1 + $0x3fc] sm:$0xf]
  %v334 = vunpack.c.l.b16 %v14
  %v335 = vunpack.c.h.b16 %v14
  %v336 = vunpack.c.l.b16 %v15
  %v337 = vunpack.c.h.b16 %v15
  %v338 = vunpack.c.l.b16 %v16
  %v339 = vunpack.c.h.b16 %v16
  %v340 = vunpack.c.l.b16 %v17
  %v341 = vunpack.c.h.b16 %v17
  %v342 = vunpack.c.l.b16 %v18
  %v343 = vunpack.c.h.b16 %v18
  %v344 = vunpack.c.l.b16 %v19
  %v345 = vunpack.c.h.b16 %v19
  %v346 = vunpack.c.l.b16 %v20
  %v347 = vunpack.c.h.b16 %v20
  %v348 = vunpack.c.l.b16 %v21
  %v349 = vunpack.c.h.b16 %v21
  %v350 = vunpack.c.l.b16 %v22
  %v351 = vunpack.c.h.b16 %v22
  %v352 = vunpack.c.l.b16 %v23
  %v353 = vunpack.c.h.b16 %v23
  %v354 = vunpack.c.l.b16 %v24
  %v355 = vunpack.c.h.b16 %v24
  %v356 = vunpack.c.l.b16 %v25
  %v357 = vunpack.c.h.b16 %v25
  %v358 = vunpack.c.l.b16 %v26
  %v359 = vunpack.c.h.b16 %v26
  %v360 = vunpack.c.l.b16 %v27
  %v361 = vunpack.c.h.b16 %v27
  %v362 = vunpack.c.l.b16 %v28
  %v363 = vunpack.c.h.b16 %v28
  %v364 = vunpack.c.l.b16 %v29
  %v365 = vunpack.c.h.b16 %v29
  %v366 = vunpack.c.l.b16 %v30
  %v367 = vunpack.c.h.b16 %v30
  %v368 = vunpack.c.l.b16 %v31
  %v369 = vunpack.c.h.b16 %v31
  %v370 = vunpack.c.l.b16 %v32
  %v371 = vunpack.c.h.b16 %v32
  %v372 = vunpack.c.l.b16 %v33
  %v373 = vunpack.c.h.b16 %v33
  %v374 = vunpack.c.l.b16 %v34
  %v375 = vunpack.c.h.b16 %v34
  %v376 = vunpack.c.l.b16 %v35
  %v377 = vunpack.c.h.b16 %v35
  %v378 = vunpack.c.l.b16 %v36
  %v379 = vunpack.c.h.b16 %v36
  %v380 = vunpack.c.l.b16 %v37
  %v381 = vunpack.c.h.b16 %v37
  %v382 = vunpack.c.l.b16 %v38
  %v383 = vunpack.c.h.b16 %v38
  %v384 = vunpack.c.l.b16 %v39
  %v385 = vunpack.c.h.b16 %v39
  %v386 = vunpack.c.l.b16 %v40
  %v387 = vunpack.c.h.b16 %v40
  %v388 = vunpack.c.l.b16 %v41
  %v389 = vunpack.c.h.b16 %v41
  %v390 = vunpack.c.l.b16 %v42
  %v391 = vunpack.c.h.b16 %v42
  %v392 = vunpack.c.l.b16 %v43
  %v393 = vunpack.c.h.b16 %v43
  %v394 = vunpack.c.l.b16 %v44
  %v395 = vunpack.c.h.b16 %v44
  %v396 = vunpack.c.l.b16 %v45
  %v397 = vunpack.c.h.b16 %v45
  %v398 = vpack.c.b16 %v350, %v334
  %v399 = vpack.c.b16 %v351, %v335
  %v400 = vpack.c.b16 %v352, %v336
  %v401 = vpack.c.b16 %v353, %v337
  %v402 = vpack.c.b16 %v354, %v338
  %v403 = vpack.c.b16 %v355, %v339
  %v404 = vpack.c.b16 %v356, %v340
  %v405 = vpack.c.b16 %v357, %v341
  %v406 = vpack.c.b16 %v358, %v342
  %v407 = vpack.c.b16 %v359, %v343
  %v408 = vpack.c.b16 %v360, %v344
  %v409 = vpack.c.b16 %v361, %v345
  %v410 = vpack.c.b16 %v362, %v346
  %v411 = vpack.c.b16 %v363, %v347
  %v412 = vpack.c.b16 %v364, %v348
  %v413 = vpack.c.b16 %v365, %v349
  %v414 = vpack.c.b16 %v382, %v366
  %v415 = vpack.c.b16 %v383, %v367
  %v416 = vpack.c.b16 %v384, %v368
  %v417 = vpack.c.b16 %v385, %v369
  %v418 = vpack.c.b16 %v386, %v370
  %v419 = vpack.c.b16 %v387, %v371
  %v420 = vpack.c.b16 %v388, %v372
  %v421 = vpack.c.b16 %v389, %v373
  %v422 = vpack.c.b16 %v390, %v374
  %v423 = vpack.c.b16 %v391, %v375
  %v424 = vpack.c.b16 %v392, %v376
  %v425 = vpack.c.b16 %v393, %v377
  %v426 = vpack.c.b16 %v394, %v378
  %v427 = vpack.c.b16 %v395, %v379
  %v428 = vpack.c.b16 %v396, %v380
  %v429 = vpack.c.b16 %v397, %v381
  %v718 = vunpack.c.l.b16 %v46
  %v719 = vunpack.c.l.b16 %v47
  %v720 = vunpack.c.l.b16 %v48
  %v721 = vunpack.c.l.b16 %v49
  %v722 = vunpack.c.l.b16 %v50
  %v723 = vunpack.c.l.b16 %v51
  %v724 = vunpack.c.l.b16 %v52
  %v725 = vunpack.c.l.b16 %v53
  %v726 = vunpack.c.l.b16 %v54
  %v727 = vunpack.c.l.b16 %v55
  %v728 = vunpack.c.l.b16 %v56
  %v729 = vunpack.c.l.b16 %v57
  %v730 = vunpack.c.l.b16 %v58
  %v731 = vunpack.c.l.b16 %v59
  %v732 = vunpack.c.l.b16 %v60
  %v733 = vunpack.c.l.b16 %v61
  %v734 = vunpack.c.l.b16 %v62
  %v735 = vunpack.c.l.b16 %v63
  %v736 = vunpack.c.l.b16 %v64
  %v737 = vunpack.c.l.b16 %v65
  %v738 = vunpack.c.l.b16 %v66
  %v739 = vunpack.c.l.b16 %v67
  %v740 = vunpack.c.l.b16 %v68
  %v741 = vunpack.c.l.b16 %v69
  %v742 = vunpack.c.l.b16 %v70
  %v743 = vunpack.c.l.b16 %v71
  %v744 = vunpack.c.l.b16 %v72
  %v745 = vunpack.c.l.b16 %v73
  %v746 = vunpack.c.l.b16 %v74
  %v747 = vunpack.c.l.b16 %v75
  %v748 = vunpack.c.l.b16 %v76
  %v749 = vunpack.c.l.b16 %v77
  %v750 = vunpack.c.l.b16 %v78
  %v751 = vunpack.c.l.b16 %v79
  %v752 = vunpack.c.l.b16 %v80
  %v753 = vunpack.c.l.b16 %v81
  %v754 = vunpack.c.l.b16 %v82
  %v755 = vunpack.c.l.b16 %v83
  %v756 = vunpack.c.l.b16 %v84
  %v757 = vunpack.c.l.b16 %v85
  %v758 = vunpack.c.l.b16 %v86
  %v759 = vunpack.c.l.b16 %v87
  %v760 = vunpack.c.l.b16 %v88
  %v761 = vunpack.c.l.b16 %v89
  %v762 = vunpack.c.l.b16 %v90
  %v763 = vunpack.c.l.b16 %v91
  %v764 = vunpack.c.l.b16 %v92
  %v765 = vunpack.c.l.b16 %v93
  %v766 = vunpack.c.l.b16 %v94
  %v767 = vunpack.c.l.b16 %v95
  %v768 = vunpack.c.l.b16 %v96
  %v769 = vunpack.c.l.b16 %v97
  %v770 = vunpack.c.l.b16 %v98
  %v771 = vunpack.c.l.b16 %v99
  %v772 = vunpack.c.l.b16 %v100
  %v773 = vunpack.c.l.b16 %v101
  %v774 = vunpack.c.l.b16 %v102
  %v775 = vunpack.c.l.b16 %v103
  %v776 = vunpack.c.l.b16 %v104
  %v777 = vunpack.c.l.b16 %v105
  %v778 = vunpack.c.l.b16 %v106
  %v779 = vunpack.c.l.b16 %v107
  %v780 = vunpack.c.l.b16 %v108
  %v781 = vunpack.c.l.b16 %v109
  %v782 = vunpack.c.l.b16 %v110
  %v783 = vunpack.c.l.b16 %v111
  %v784 = vunpack.c.l.b16 %v112
  %v785 = vunpack.c.l.b16 %v113
  %v786 = vunpack.c.l.b16 %v114
  %v787 = vunpack.c.l.b16 %v115
  %v788 = vunpack.c.l.b16 %v116
  %v789 = vunpack.c.l.b16 %v117
  %v790 = vunpack.c.l.b16 %v118
  %v791 = vunpack.c.l.b16 %v119
  %v792 = vunpack.c.l.b16 %v120
  %v793 = vunpack.c.l.b16 %v121
  %v794 = vunpack.c.l.b16 %v122
  %v795 = vunpack.c.l.b16 %v123
  %v796 = vunpack.c.l.b16 %v124
  %v797 = vunpack.c.l.b16 %v125
  %v798 = vunpack.c.l.b16 %v126
  %v799 = vunpack.c.l.b16 %v127
  %v800 = vunpack.c.l.b16 %v128
  %v801 = vunpack.c.l.b16 %v129
  %v802 = vunpack.c.l.b16 %v130
  %v803 = vunpack.c.l.b16 %v131
  %v804 = vunpack.c.l.b16 %v132
  %v805 = vunpack.c.l.b16 %v133
  %v806 = vunpack.c.l.b16 %v134
  %v807 = vunpack.c.l.b16 %v135
  %v808 = vunpack.c.l.b16 %v136
  %v809 = vunpack.c.l.b16 %v137
  %v810 = vunpack.c.l.b16 %v138
  %v811 = vunpack.c.l.b16 %v139
  %v812 = vunpack.c.l.b16 %v140
  %v813 = vunpack.c.l.b16 %v141
  %v814 = vunpack.c.l.b16 %v142
  %v815 = vunpack.c.l.b16 %v143
  %v816 = vunpack.c.l.b16 %v144
  %v817 = vunpack.c.l.b16 %v145
  %v818 = vunpack.c.l.b16 %v146
  %v819 = vunpack.c.l.b16 %v147
  %v820 = vunpack.c.l.b16 %v148
  %v821 = vunpack.c.l.b16 %v149
  %v822 = vunpack.c.l.b16 %v150
  %v823 = vunpack.c.l.b16 %v151
  %v824 = vunpack.c.l.b16 %v152
  %v825 = vunpack.c.l.b16 %v153
  %v826 = vunpack.c.l.b16 %v154
  %v827 = vunpack.c.l.b16 %v155
  %v828 = vunpack.c.l.b16 %v156
  %v829 = vunpack.c.l.b16 %v157
  %v830 = vunpack.c.l.b16 %v158
  %v831 = vunpack.c.l.b16 %v159
  %v832 = vunpack.c.l.b16 %v160
  %v833 = vunpack.c.l.b16 %v161
  %v834 = vunpack.c.l.b16 %v162
  %v835 = vunpack.c.l.b16 %v163
  %v836 = vunpack.c.l.b16 %v164
  %v837 = vunpack.c.l.b16 %v165
  %v838 = vunpack.c.l.b16 %v166
  %v839 = vunpack.c.l.b16 %v167
  %v840 = vunpack.c.l.b16 %v168
  %v841 = vunpack.c.l.b16 %v169
  %v842 = vunpack.c.l.b16 %v170
  %v843 = vunpack.c.l.b16 %v171
  %v844 = vunpack.c.l.b16 %v172
  %v845 = vunpack.c.l.b16 %v173
  %v846 = vunpack.c.l.b16 %v174
  %v847 = vunpack.c.l.b16 %v175
  %v848 = vunpack.c.l.b16 %v176
  %v849 = vunpack.c.l.b16 %v177
  %v850 = vunpack.c.l.b16 %v178
  %v851 = vunpack.c.l.b16 %v179
  %v852 = vunpack.c.l.b16 %v180
  %v853 = vunpack.c.l.b16 %v181
  %v854 = vunpack.c.l.b16 %v182
  %v855 = vunpack.c.l.b16 %v183
  %v856 = vunpack.c.l.b16 %v184
  %v857 = vunpack.c.l.b16 %v185
  %v858 = vunpack.c.l.b16 %v186
  %v859 = vunpack.c.l.b16 %v187
  %v860 = vunpack.c.l.b16 %v188
  %v861 = vunpack.c.l.b16 %v189
  %v862 = vunpack.c.l.b16 %v190
  %v863 = vunpack.c.l.b16 %v191
  %v864 = vunpack.c.l.b16 %v192
  %v865 = vunpack.c.l.b16 %v193
  %v866 = vunpack.c.l.b16 %v194
  %v867 = vunpack.c.l.b16 %v195
  %v868 = vunpack.c.l.b16 %v196
  %v869 = vunpack.c.l.b16 %v197
  %v870 = vunpack.c.l.b16 %v198
  %v871 = vunpack.c.l.b16 %v199
  %v872 = vunpack.c.l.b16 %v200
  %v873 = vunpack.c.l.b16 %v201
  %v874 = vunpack.c.l.b16 %v202
  %v875 = vunpack.c.l.b16 %v203
  %v876 = vunpack.c.l.b16 %v204
  %v877 = vunpack.c.l.b16 %v205
  %v878 = vunpack.c.l.b16 %v206
  %v879 = vunpack.c.l.b16 %v207
  %v880 = vunpack.c.l.b16 %v208
  %v881 = vunpack.c.l.b16 %v209
  %v882 = vunpack.c.l.b16 %v210
  %v883 = vunpack.c.l.b16 %v211
  %v884 = vunpack.c.l.b16 %v212
  %v885 = vunpack.c.l.b16 %v213
  %v886 = vunpack.c.l.b16 %v214
  %v887 = vunpack.c.l.b16 %v215
  %v888 = vunpack.c.l.b16 %v216
  %v889 = vunpack.c.l.b16 %v217
  %v890 = vunpack.c.l.b16 %v218
  %v891 = vunpack.c.l.b16 %v219
  %v892 = vunpack.c.l.b16 %v220
  %v893 = vunpack.c.l.b16 %v221
  %v894 = vunpack.c.l.b16 %v222
  %v895 = vunpack.c.l.b16 %v223
  %v896 = vunpack.c.l.b16 %v224
  %v897 = vunpack.c.l.b16 %v225
  %v898 = vunpack.c.l.b16 %v226
  %v899 = vunpack.c.l.b16 %v227
  %v900 = vunpack.c.l.b16 %v228
  %v901 = vunpack.c.l.b16 %v229
  %v902 = vunpack.c.l.b16 %v230
  %v903 = vunpack.c.l.b16 %v231
  %v904 = vunpack.c.l.b16 %v232
  %v905 = vunpack.c.l.b16 %v233
  %v906 = vunpack.c.l.b16 %v234
  %v907 = vunpack.c.l.b16 %v235
  %v908 = vunpack.c.l.b16 %v236
  %v909 = vunpack.c.l.b16 %v237
  %v910 = vunpack.c.l.b16 %v238
  %v911 = vunpack.c.l.b16 %v239
  %v912 = vunpack.c.l.b16 %v240
  %v913 = vunpack.c.l.b16 %v241
  %v914 = vunpack.c.l.b16 %v242
  %v915 = vunpack.c.l.b16 %v243
  %v916 = vunpack.c.l.b16 %v244
  %v917 = vunpack.c.l.b16 %v245
  %v918 = vunpack.c.l.b16 %v246
  %v919 = vunpack.c.l.b16 %v247
  %v920 = vunpack.c.l.b16 %v248
  %v921 = vunpack.c.l.b16 %v249
  %v922 = vunpack.c.l.b16 %v250
  %v923 = vunpack.c.l.b16 %v251
  %v924 = vunpack.c.l.b16 %v252
  %v925 = vunpack.c.l.b16 %v253
  %v926 = vunpack.c.l.b16 %v254
  %v927 = vunpack.c.l.b16 %v255
  %v928 = vunpack.c.l.b16 %v256
  %v929 = vunpack.c.l.b16 %v257
  %v930 = vunpack.c.l.b16 %v258
  %v931 = vunpack.c.l.b16 %v259
  %v932 = vunpack.c.l.b16 %v260
  %v933 = vunpack.c.l.b16 %v261
  %v934 = vunpack.c.l.b16 %v262
  %v935 = vunpack.c.l.b16 %v263
  %v936 = vunpack.c.l.b16 %v264
  %v937 = vunpack.c.l.b16 %v265
  %v938 = vunpack.c.l.b16 %v266
  %v939 = vunpack.c.l.b16 %v267
  %v940 = vunpack.c.l.b16 %v268
  %v941 = vunpack.c.l.b16 %v269
  %v942 = vunpack.c.l.b16 %v270
  %v943 = vunpack.c.l.b16 %v271
  %v944 = vunpack.c.l.b16 %v272
  %v945 = vunpack.c.l.b16 %v273
  %v946 = vunpack.c.l.b16 %v274
  %v947 = vunpack.c.l.b16 %v275
  %v948 = vunpack.c.l.b16 %v276
  %v949 = vunpack.c.l.b16 %v277
  %v950 = vunpack.c.l.b16 %v278
  %v951 = vunpack.c.l.b16 %v279
  %v952 = vunpack.c.l.b16 %v280
  %v953 = vunpack.c.l.b16 %v281
  %v954 = vunpack.c.l.b16 %v282
  %v955 = vunpack.c.l.b16 %v283
  %v956 = vunpack.c.l.b16 %v284
  %v957 = vunpack.c.l.b16 %v285
  %v958 = vunpack.c.l.b16 %v286
  %v959 = vunpack.c.l.b16 %v287
  %v960 = vunpack.c.l.b16 %v288
  %v961 = vunpack.c.l.b16 %v289
  %v962 = vunpack.c.l.b16 %v290
  %v963 = vunpack.c.l.b16 %v291
  %v964 = vunpack.c.l.b16 %v292
  %v965 = vunpack.c.l.b16 %v293
  %v966 = vunpack.c.l.b16 %v294
  %v967 = vunpack.c.l.b16 %v295
  %v968 = vunpack.c.l.b16 %v296
  %v969 = vunpack.c.l.b16 %v297
  %v970 = vunpack.c.l.b16 %v298
  %v971 = vunpack.c.l.b16 %v299
  %v972 = vunpack.c.l.b16 %v300
  %v973 = vunpack.c.l.b16 %v301
  %v974 = vpack.c.b16 %v719, %v718
  %v975 = vpack.c.b16 %v721, %v720
  %v976 = vpack.c.b16 %v723, %v722
  %v977 = vpack.c.b16 %v725, %v724
  %v978 = vpack.c.b16 %v727, %v726
  %v979 = vpack.c.b16 %v729, %v728
  %v980 = vpack.c.b16 %v731, %v730
  %v981 = vpack.c.b16 %v733, %v732
  %v982 = vpack.c.b16 %v735, %v734
  %v983 = vpack.c.b16 %v737, %v736
  %v984 = vpack.c.b16 %v739, %v738
  %v985 = vpack.c.b16 %v741, %v740
  %v986 = vpack.c.b16 %v743, %v742
  %v987 = vpack.c.b16 %v745, %v744
  %v988 = vpack.c.b16 %v747, %v746
  %v989 = vpack.c.b16 %v749, %v748
  %v990 = vpack.c.b16 %v751, %v750
  %v991 = vpack.c.b16 %v753, %v752
  %v992 = vpack.c.b16 %v755, %v754
  %v993 = vpack.c.b16 %v757, %v756
  %v994 = vpack.c.b16 %v759, %v758
  %v995 = vpack.c.b16 %v761, %v760
  %v996 = vpack.c.b16 %v763, %v762
  %v997 = vpack.c.b16 %v765, %v764
  %v998 = vpack.c.b16 %v767, %v766
  %v999 = vpack.c.b16 %v769, %v768
  %v1000 = vpack.c.b16 %v771, %v770
  %v1001 = vpack.c.b16 %v773, %v772
  %v1002 = vpack.c.b16 %v775, %v774
  %v1003 = vpack.c.b16 %v777, %v776
  %v1004 = vpack.c.b16 %v779, %v778
  %v1005 = vpack.c.b16 %v781, %v780
  %v1006 = vpack.c.b16 %v783, %v782
  %v1007 = vpack.c.b16 %v785, %v784
  %v1008 = vpack.c.b16 %v787, %v786
  %v1009 = vpack.c.b16 %v789, %v788
  %v1010 = vpack.c.b16 %v791, %v790
  %v1011 = vpack.c.b16 %v793, %v792
  %v1012 = vpack.c.b16 %v795, %v794
  %v1013 = vpack.c.b16 %v797, %v796
  %v1014 = vpack.c.b16 %v799, %v798
  %v1015 = vpack.c.b16 %v801, %v800
  %v1016 = vpack.c.b16 %v803, %v802
  %v1017 = vpack.c.b16 %v805, %v804
  %v1018 = vpack.c.b16 %v807, %v806
  %v1019 = vpack.c.b16 %v809, %v808
  %v1020 = vpack.c.b16 %v811, %v810
  %v1021 = vpack.c.b16 %v813, %v812
  %v1022 = vpack.c.b16 %v815, %v814
  %v1023 = vpack.c.b16 %v817, %v816
  %v1024 = vpack.c.b16 %v819, %v818
  %v1025 = vpack.c.b16 %v821, %v820
  %v1026 = vpack.c.b16 %v823, %v822
  %v1027 = vpack.c.b16 %v825, %v824
  %v1028 = vpack.c.b16 %v827, %v826
  %v1029 = vpack.c.b16 %v829, %v828
  %v1030 = vpack.c.b16 %v831, %v830
  %v1031 = vpack.c.b16 %v833, %v832
  %v1032 = vpack.c.b16 %v835, %v834
  %v1033 = vpack.c.b16 %v837, %v836
  %v1034 = vpack.c.b16 %v839, %v838
  %v1035 = vpack.c.b16 %v841, %v840
  %v1036 = vpack.c.b16 %v843, %v842
  %v1037 = vpack.c.b16 %v845, %v844
  %v1038 = vpack.c.b16 %v847, %v846
  %v1039 = vpack.c.b16 %v849, %v848
  %v1040 = vpack.c.b16 %v851, %v850
  %v1041 = vpack.c.b16 %v853, %v852
  %v1042 = vpack.c.b16 %v855, %v854
  %v1043 = vpack.c.b16 %v857, %v856
  %v1044 = vpack.c.b16 %v859, %v858
  %v1045 = vpack.c.b16 %v861, %v860
  %v1046 = vpack.c.b16 %v863, %v862
  %v1047 = vpack.c.b16 %v865, %v864
  %v1048 = vpack.c.b16 %v867, %v866
  %v1049 = vpack.c.b16 %v869, %v868
  %v1050 = vpack.c.b16 %v871, %v870
  %v1051 = vpack.c.b16 %v873, %v872
  %v1052 = vpack.c.b16 %v875, %v874
  %v1053 = vpack.c.b16 %v877, %v876
  %v1054 = vpack.c.b16 %v879, %v878
  %v1055 = vpack.c.b16 %v881, %v880
  %v1056 = vpack.c.b16 %v883, %v882
  %v1057 = vpack.c.b16 %v885, %v884
  %v1058 = vpack.c.b16 %v887, %v886
  %v1059 = vpack.c.b16 %v889, %v888
  %v1060 = vpack.c.b16 %v891, %v890
  %v1061 = vpack.c.b16 %v893, %v892
  %v1062 = vpack.c.b16 %v895, %v894
  %v1063 = vpack.c.b16 %v897, %v896
  %v1064 = vpack.c.b16 %v899, %v898
  %v1065 = vpack.c.b16 %v901, %v900
  %v1066 = vpack.c.b16 %v903, %v902
  %v1067 = vpack.c.b16 %v905, %v904
  %v1068 = vpack.c.b16 %v907, %v906
  %v1069 = vpack.c.b16 %v909, %v908
  %v1070 = vpack.c.b16 %v911, %v910
  %v1071 = vpack.c.b16 %v913, %v912
  %v1072 = vpack.c.b16 %v915, %v914
  %v1073 = vpack.c.b16 %v917, %v916
  %v1074 = vpack.c.b16 %v919, %v918
  %v1075 = vpack.c.b16 %v921, %v920
  %v1076 = vpack.c.b16 %v923, %v922
  %v1077 = vpack.c.b16 %v925, %v924
  %v1078 = vpack.c.b16 %v927, %v926
  %v1079 = vpack.c.b16 %v929, %v928
  %v1080 = vpack.c.b16 %v931, %v930
  %v1081 = vpack.c.b16 %v933, %v932
  %v1082 = vpack.c.b16 %v935, %v934
  %v1083 = vpack.c.b16 %v937, %v936
  %v1084 = vpack.c.b16 %v939, %v938
  %v1085 = vpack.c.b16 %v941, %v940
  %v1086 = vpack.c.b16 %v943, %v942
  %v1087 = vpack.c.b16 %v945, %v944
  %v1088 = vpack.c.b16 %v947, %v946
  %v1089 = vpack.c.b16 %v949, %v948
  %v1090 = vpack.c.b16 %v951, %v950
  %v1091 = vpack.c.b16 %v953, %v952
  %v1092 = vpack.c.b16 %v955, %v954
  %v1093 = vpack.c.b16 %v957, %v956
  %v1094 = vpack.c.b16 %v959, %v958
  %v1095 = vpack.c.b16 %v961, %v960
  %v1096 = vpack.c.b16 %v963, %v962
  %v1097 = vpack.c.b16 %v965, %v964
  %v1098 = vpack.c.b16 %v967, %v966
  %v1099 = vpack.c.b16 %v969, %v968
  %v1100 = vpack.c.b16 %v971, %v970
  %v1101 = vpack.c.b16 %v973, %v972
  %1230 = vmatprep.subr.bf16.mxu0 0
  %1231 = vmatpush1.bf16.msra.mxu0 %v981
  %1232 = vmatprep.subr.bf16.mxu0 0
  %1233 = vmatpush1.bf16.msra.mxu0 %v980
  %1234 = vmatprep.subr.bf16.mxu0 0
  %1235 = vmatpush1.bf16.msra.mxu0 %v979
  %1236 = vmatprep.subr.bf16.mxu0 0
  %1237 = vmatpush1.bf16.msra.mxu0 %v978
  %1238 = vmatprep.subr.bf16.mxu0 0
  %1239 = vmatpush1.bf16.msra.mxu0 %v977
  %1240 = vmatprep.subr.bf16.mxu0 0
  %1241 = vmatpush1.bf16.msra.mxu0 %v976
  %1242 = vmatprep.subr.bf16.mxu0 0
  %1243 = vmatpush1.bf16.msra.mxu0 %v975
  %1244 = vmatprep.subr.bf16.mxu0 0
  %1245 = vmatpush1.bf16.msra.mxu0 %v974
  %1246 = vmatprep.subr.bf16.mxu0 0
  %1247 = vmatpush2.bf16.msra.mxu0 %v989
  %1248 = vmatprep.subr.bf16.mxu0 0
  %1249 = vmatpush2.bf16.msra.mxu0 %v988
  %1250 = vmatprep.subr.bf16.mxu0 0
  %1251 = vmatpush2.bf16.msra.mxu0 %v987
  %1252 = vmatprep.subr.bf16.mxu0 0
  %1253 = vmatpush2.bf16.msra.mxu0 %v986
  %1254 = vmatprep.subr.bf16.mxu0 0
  %1255 = vmatpush2.bf16.msra.mxu0 %v985
  %1256 = vmatprep.subr.bf16.mxu0 0
  %1257 = vmatpush2.bf16.msra.mxu0 %v984
  %1258 = vmatprep.subr.bf16.mxu0 0
  %1259 = vmatpush2.bf16.msra.mxu0 %v983
  %1260 = vmatprep.subr.bf16.mxu0 0
  %1261 = vmatpush2.bf16.msra.mxu0 %v982
  %1262 = vmatprep.mubr.bf16.mxu0 %v399
  %1263 = vmatmul.mubr.bf16.gmra.mxu0 %v398
  %v1264 = vpop.f32.mrf.mxu0
  %v1265 = vadd.f32 0.0, %v1264
  %v1266 = vpop.f32.mrf.mxu0
  %v1267 = vpop.f32.mrf.mxu0
  %v1268 = vadd.f32 0.0, %v1267
  %v1269 = vpop.f32.mrf.mxu0
  %1270 = vmatprep.mubr.bf16.mxu0 %v415
  %1271 = vmatmul.mubr.bf16.gmra.mxu0 %v414
  %v1272 = vpop.f32.mrf.mxu0
  %v1273 = vadd.f32 0.0, %v1272
  %v1274 = vpop.f32.mrf.mxu0
  %v1275 = vpop.f32.mrf.mxu0
  %v1276 = vadd.f32 0.0, %v1275
  %v1277 = vpop.f32.mrf.mxu0
  %1278 = vdwg.mxu0
  %1279 = vmatprep.subr.bf16.mxu0 0
  %1280 = vmatpush1.bf16.msra.mxu0 %v997
  %1281 = vmatprep.subr.bf16.mxu0 0
  %1282 = vmatpush1.bf16.msra.mxu0 %v996
  %1283 = vmatprep.subr.bf16.mxu0 0
  %1284 = vmatpush1.bf16.msra.mxu0 %v995
  %1285 = vmatprep.subr.bf16.mxu0 0
  %1286 = vmatpush1.bf16.msra.mxu0 %v994
  %1287 = vmatprep.subr.bf16.mxu0 0
  %1288 = vmatpush1.bf16.msra.mxu0 %v993
  %1289 = vmatprep.subr.bf16.mxu0 0
  %1290 = vmatpush1.bf16.msra.mxu0 %v992
  %1291 = vmatprep.subr.bf16.mxu0 0
  %1292 = vmatpush1.bf16.msra.mxu0 %v991
  %1293 = vmatprep.subr.bf16.mxu0 0
  %1294 = vmatpush1.bf16.msra.mxu0 %v990
  %1295 = vmatprep.subr.bf16.mxu0 0
  %1296 = vmatpush2.bf16.msra.mxu0 %v1005
  %1297 = vmatprep.subr.bf16.mxu0 0
  %1298 = vmatpush2.bf16.msra.mxu0 %v1004
  %1299 = vmatprep.subr.bf16.mxu0 0
  %1300 = vmatpush2.bf16.msra.mxu0 %v1003
  %1301 = vmatprep.subr.bf16.mxu0 0
  %1302 = vmatpush2.bf16.msra.mxu0 %v1002
  %1303 = vmatprep.subr.bf16.mxu0 0
  %1304 = vmatpush2.bf16.msra.mxu0 %v1001
  %1305 = vmatprep.subr.bf16.mxu0 0
  %1306 = vmatpush2.bf16.msra.mxu0 %v1000
  %1307 = vmatprep.subr.bf16.mxu0 0
  %1308 = vmatpush2.bf16.msra.mxu0 %v999
  %1309 = vmatprep.subr.bf16.mxu0 0
  %1310 = vmatpush2.bf16.msra.mxu0 %v998
  %1311 = vmatprep.mubr.bf16.mxu0 %v401
  %1312 = vmatmul.mubr.bf16.gmra.mxu0 %v400
  %v1313 = vpop.f32.mrf.mxu0
  %v1314 = vadd.f32 %v1265, %v1313
  %v1315 = vpop.f32.mrf.mxu0
  %v1316 = vpop.f32.mrf.mxu0
  %v1317 = vadd.f32 %v1268, %v1316
  %v1318 = vpop.f32.mrf.mxu0
  %1319 = vmatprep.mubr.bf16.mxu0 %v417
  %1320 = vmatmul.mubr.bf16.gmra.mxu0 %v416
  %v1321 = vpop.f32.mrf.mxu0
  %v1322 = vadd.f32 %v1273, %v1321
  %v1323 = vpop.f32.mrf.mxu0
  %v1324 = vpop.f32.mrf.mxu0
  %v1325 = vadd.f32 %v1276, %v1324
  %v1326 = vpop.f32.mrf.mxu0
  %1327 = vdwg.mxu0
  %1328 = vmatprep.subr.bf16.mxu0 0
  %1329 = vmatpush1.bf16.msra.mxu0 %v1013
  %1330 = vmatprep.subr.bf16.mxu0 0
  %1331 = vmatpush1.bf16.msra.mxu0 %v1012
  %1332 = vmatprep.subr.bf16.mxu0 0
  %1333 = vmatpush1.bf16.msra.mxu0 %v1011
  %1334 = vmatprep.subr.bf16.mxu0 0
  %1335 = vmatpush1.bf16.msra.mxu0 %v1010
  %1336 = vmatprep.subr.bf16.mxu0 0
  %1337 = vmatpush1.bf16.msra.mxu0 %v1009
  %1338 = vmatprep.subr.bf16.mxu0 0
  %1339 = vmatpush1.bf16.msra.mxu0 %v1008
  %1340 = vmatprep.subr.bf16.mxu0 0
  %1341 = vmatpush1.bf16.msra.mxu0 %v1007
  %1342 = vmatprep.subr.bf16.mxu0 0
  %1343 = vmatpush1.bf16.msra.mxu0 %v1006
  %1344 = vmatprep.subr.bf16.mxu0 0
  %1345 = vmatpush2.bf16.msra.mxu0 %v1021
  %1346 = vmatprep.subr.bf16.mxu0 0
  %1347 = vmatpush2.bf16.msra.mxu0 %v1020
  %1348 = vmatprep.subr.bf16.mxu0 0
  %1349 = vmatpush2.bf16.msra.mxu0 %v1019
  %1350 = vmatprep.subr.bf16.mxu0 0
  %1351 = vmatpush2.bf16.msra.mxu0 %v1018
  %1352 = vmatprep.subr.bf16.mxu0 0
  %1353 = vmatpush2.bf16.msra.mxu0 %v1017
  %1354 = vmatprep.subr.bf16.mxu0 0
  %1355 = vmatpush2.bf16.msra.mxu0 %v1016
  %1356 = vmatprep.subr.bf16.mxu0 0
  %1357 = vmatpush2.bf16.msra.mxu0 %v1015
  %1358 = vmatprep.subr.bf16.mxu0 0
  %1359 = vmatpush2.bf16.msra.mxu0 %v1014
  %1360 = vmatprep.mubr.bf16.mxu0 %v403
  %1361 = vmatmul.mubr.bf16.gmra.mxu0 %v402
  %v1362 = vpop.f32.mrf.mxu0
  %v1363 = vadd.f32 %v1314, %v1362
  %v1364 = vpop.f32.mrf.mxu0
  %v1365 = vpop.f32.mrf.mxu0
  %v1366 = vadd.f32 %v1317, %v1365
  %v1367 = vpop.f32.mrf.mxu0
  %1368 = vmatprep.mubr.bf16.mxu0 %v419
  %1369 = vmatmul.mubr.bf16.gmra.mxu0 %v418
  %v1370 = vpop.f32.mrf.mxu0
  %v1371 = vadd.f32 %v1322, %v1370
  %v1372 = vpop.f32.mrf.mxu0
  %v1373 = vpop.f32.mrf.mxu0
  %v1374 = vadd.f32 %v1325, %v1373
  %v1375 = vpop.f32.mrf.mxu0
  %1376 = vdwg.mxu0
  %1377 = vmatprep.subr.bf16.mxu0 0
  %1378 = vmatpush1.bf16.msra.mxu0 %v1029
  %1379 = vmatprep.subr.bf16.mxu0 0
  %1380 = vmatpush1.bf16.msra.mxu0 %v1028
  %1381 = vmatprep.subr.bf16.mxu0 0
  %1382 = vmatpush1.bf16.msra.mxu0 %v1027
  %1383 = vmatprep.subr.bf16.mxu0 0
  %1384 = vmatpush1.bf16.msra.mxu0 %v1026
  %1385 = vmatprep.subr.bf16.mxu0 0
  %1386 = vmatpush1.bf16.msra.mxu0 %v1025
  %1387 = vmatprep.subr.bf16.mxu0 0
  %1388 = vmatpush1.bf16.msra.mxu0 %v1024
  %1389 = vmatprep.subr.bf16.mxu0 0
  %1390 = vmatpush1.bf16.msra.mxu0 %v1023
  %1391 = vmatprep.subr.bf16.mxu0 0
  %1392 = vmatpush1.bf16.msra.mxu0 %v1022
  %1393 = vmatprep.subr.bf16.mxu0 0
  %1394 = vmatpush2.bf16.msra.mxu0 %v1037
  %1395 = vmatprep.subr.bf16.mxu0 0
  %1396 = vmatpush2.bf16.msra.mxu0 %v1036
  %1397 = vmatprep.subr.bf16.mxu0 0
  %1398 = vmatpush2.bf16.msra.mxu0 %v1035
  %1399 = vmatprep.subr.bf16.mxu0 0
  %1400 = vmatpush2.bf16.msra.mxu0 %v1034
  %1401 = vmatprep.subr.bf16.mxu0 0
  %1402 = vmatpush2.bf16.msra.mxu0 %v1033
  %1403 = vmatprep.subr.bf16.mxu0 0
  %1404 = vmatpush2.bf16.msra.mxu0 %v1032
  %1405 = vmatprep.subr.bf16.mxu0 0
  %1406 = vmatpush2.bf16.msra.mxu0 %v1031
  %1407 = vmatprep.subr.bf16.mxu0 0
  %1408 = vmatpush2.bf16.msra.mxu0 %v1030
  %1409 = vmatprep.mubr.bf16.mxu0 %v405
  %1410 = vmatmul.mubr.bf16.gmra.mxu0 %v404
  %v1411 = vpop.f32.mrf.mxu0
  %v1412 = vadd.f32 %v1363, %v1411
  %v1413 = vpop.f32.mrf.mxu0
  %v1414 = vpop.f32.mrf.mxu0
  %v1415 = vadd.f32 %v1366, %v1414
  %v1416 = vpop.f32.mrf.mxu0
  %1417 = vmatprep.mubr.bf16.mxu0 %v421
  %1418 = vmatmul.mubr.bf16.gmra.mxu0 %v420
  %v1419 = vpop.f32.mrf.mxu0
  %v1420 = vadd.f32 %v1371, %v1419
  %v1421 = vpop.f32.mrf.mxu0
  %v1422 = vpop.f32.mrf.mxu0
  %v1423 = vadd.f32 %v1374, %v1422
  %v1424 = vpop.f32.mrf.mxu0
  %1425 = vdwg.mxu0
  %1426 = vmatprep.subr.bf16.mxu0 0
  %1427 = vmatpush1.bf16.msra.mxu0 %v1045
  %1428 = vmatprep.subr.bf16.mxu0 0
  %1429 = vmatpush1.bf16.msra.mxu0 %v1044
  %1430 = vmatprep.subr.bf16.mxu0 0
  %1431 = vmatpush1.bf16.msra.mxu0 %v1043
  %1432 = vmatprep.subr.bf16.mxu0 0
  %1433 = vmatpush1.bf16.msra.mxu0 %v1042
  %1434 = vmatprep.subr.bf16.mxu0 0
  %1435 = vmatpush1.bf16.msra.mxu0 %v1041
  %1436 = vmatprep.subr.bf16.mxu0 0
  %1437 = vmatpush1.bf16.msra.mxu0 %v1040
  %1438 = vmatprep.subr.bf16.mxu0 0
  %1439 = vmatpush1.bf16.msra.mxu0 %v1039
  %1440 = vmatprep.subr.bf16.mxu0 0
  %1441 = vmatpush1.bf16.msra.mxu0 %v1038
  %1442 = vmatprep.subr.bf16.mxu0 0
  %1443 = vmatpush2.bf16.msra.mxu0 %v1053
  %1444 = vmatprep.subr.bf16.mxu0 0
  %1445 = vmatpush2.bf16.msra.mxu0 %v1052
  %1446 = vmatprep.subr.bf16.mxu0 0
  %1447 = vmatpush2.bf16.msra.mxu0 %v1051
  %1448 = vmatprep.subr.bf16.mxu0 0
  %1449 = vmatpush2.bf16.msra.mxu0 %v1050
  %1450 = vmatprep.subr.bf16.mxu0 0
  %1451 = vmatpush2.bf16.msra.mxu0 %v1049
  %1452 = vmatprep.subr.bf16.mxu0 0
  %1453 = vmatpush2.bf16.msra.mxu0 %v1048
  %1454 = vmatprep.subr.bf16.mxu0 0
  %1455 = vmatpush2.bf16.msra.mxu0 %v1047
  %1456 = vmatprep.subr.bf16.mxu0 0
  %1457 = vmatpush2.bf16.msra.mxu0 %v1046
  %1458 = vmatprep.mubr.bf16.mxu0 %v407
  %1459 = vmatmul.mubr.bf16.gmra.mxu0 %v406
  %v1460 = vpop.f32.mrf.mxu0
  %v1461 = vadd.f32 %v1412, %v1460
  %v1462 = vpop.f32.mrf.mxu0
  %v1463 = vpop.f32.mrf.mxu0
  %v1464 = vadd.f32 %v1415, %v1463
  %v1465 = vpop.f32.mrf.mxu0
  %1466 = vmatprep.mubr.bf16.mxu0 %v423
  %1467 = vmatmul.mubr.bf16.gmra.mxu0 %v422
  %v1468 = vpop.f32.mrf.mxu0
  %v1469 = vadd.f32 %v1420, %v1468
  %v1470 = vpop.f32.mrf.mxu0
  %v1471 = vpop.f32.mrf.mxu0
  %v1472 = vadd.f32 %v1423, %v1471
  %v1473 = vpop.f32.mrf.mxu0
  %1474 = vdwg.mxu0
  %1475 = vmatprep.subr.bf16.mxu0 0
  %1476 = vmatpush1.bf16.msra.mxu0 %v1061
  %1477 = vmatprep.subr.bf16.mxu0 0
  %1478 = vmatpush1.bf16.msra.mxu0 %v1060
  %1479 = vmatprep.subr.bf16.mxu0 0
  %1480 = vmatpush1.bf16.msra.mxu0 %v1059
  %1481 = vmatprep.subr.bf16.mxu0 0
  %1482 = vmatpush1.bf16.msra.mxu0 %v1058
  %1483 = vmatprep.subr.bf16.mxu0 0
  %1484 = vmatpush1.bf16.msra.mxu0 %v1057
  %1485 = vmatprep.subr.bf16.mxu0 0
  %1486 = vmatpush1.bf16.msra.mxu0 %v1056
  %1487 = vmatprep.subr.bf16.mxu0 0
  %1488 = vmatpush1.bf16.msra.mxu0 %v1055
  %1489 = vmatprep.subr.bf16.mxu0 0
  %1490 = vmatpush1.bf16.msra.mxu0 %v1054
  %1491 = vmatprep.subr.bf16.mxu0 0
  %1492 = vmatpush2.bf16.msra.mxu0 %v1069
  %1493 = vmatprep.subr.bf16.mxu0 0
  %1494 = vmatpush2.bf16.msra.mxu0 %v1068
  %1495 = vmatprep.subr.bf16.mxu0 0
  %1496 = vmatpush2.bf16.msra.mxu0 %v1067
  %1497 = vmatprep.subr.bf16.mxu0 0
  %1498 = vmatpush2.bf16.msra.mxu0 %v1066
  %1499 = vmatprep.subr.bf16.mxu0 0
  %1500 = vmatpush2.bf16.msra.mxu0 %v1065
  %1501 = vmatprep.subr.bf16.mxu0 0
  %1502 = vmatpush2.bf16.msra.mxu0 %v1064
  %1503 = vmatprep.subr.bf16.mxu0 0
  %1504 = vmatpush2.bf16.msra.mxu0 %v1063
  %1505 = vmatprep.subr.bf16.mxu0 0
  %1506 = vmatpush2.bf16.msra.mxu0 %v1062
  %1507 = vmatprep.mubr.bf16.mxu0 %v409
  %1508 = vmatmul.mubr.bf16.gmra.mxu0 %v408
  %v1509 = vpop.f32.mrf.mxu0
  %v1510 = vadd.f32 %v1461, %v1509
  %v1511 = vpop.f32.mrf.mxu0
  %v1512 = vpop.f32.mrf.mxu0
  %v1513 = vadd.f32 %v1464, %v1512
  %v1514 = vpop.f32.mrf.mxu0
  %1515 = vmatprep.mubr.bf16.mxu0 %v425
  %1516 = vmatmul.mubr.bf16.gmra.mxu0 %v424
  %v1517 = vpop.f32.mrf.mxu0
  %v1518 = vadd.f32 %v1469, %v1517
  %v1519 = vpop.f32.mrf.mxu0
  %v1520 = vpop.f32.mrf.mxu0
  %v1521 = vadd.f32 %v1472, %v1520
  %v1522 = vpop.f32.mrf.mxu0
  %1523 = vdwg.mxu0
  %1524 = vmatprep.subr.bf16.mxu0 0
  %1525 = vmatpush1.bf16.msra.mxu0 %v1077
  %1526 = vmatprep.subr.bf16.mxu0 0
  %1527 = vmatpush1.bf16.msra.mxu0 %v1076
  %1528 = vmatprep.subr.bf16.mxu0 0
  %1529 = vmatpush1.bf16.msra.mxu0 %v1075
  %1530 = vmatprep.subr.bf16.mxu0 0
  %1531 = vmatpush1.bf16.msra.mxu0 %v1074
  %1532 = vmatprep.subr.bf16.mxu0 0
  %1533 = vmatpush1.bf16.msra.mxu0 %v1073
  %1534 = vmatprep.subr.bf16.mxu0 0
  %1535 = vmatpush1.bf16.msra.mxu0 %v1072
  %1536 = vmatprep.subr.bf16.mxu0 0
  %1537 = vmatpush1.bf16.msra.mxu0 %v1071
  %1538 = vmatprep.subr.bf16.mxu0 0
  %1539 = vmatpush1.bf16.msra.mxu0 %v1070
  %1540 = vmatprep.subr.bf16.mxu0 0
  %1541 = vmatpush2.bf16.msra.mxu0 %v1085
  %1542 = vmatprep.subr.bf16.mxu0 0
  %1543 = vmatpush2.bf16.msra.mxu0 %v1084
  %1544 = vmatprep.subr.bf16.mxu0 0
  %1545 = vmatpush2.bf16.msra.mxu0 %v1083
  %1546 = vmatprep.subr.bf16.mxu0 0
  %1547 = vmatpush2.bf16.msra.mxu0 %v1082
  %1548 = vmatprep.subr.bf16.mxu0 0
  %1549 = vmatpush2.bf16.msra.mxu0 %v1081
  %1550 = vmatprep.subr.bf16.mxu0 0
  %1551 = vmatpush2.bf16.msra.mxu0 %v1080
  %1552 = vmatprep.subr.bf16.mxu0 0
  %1553 = vmatpush2.bf16.msra.mxu0 %v1079
  %1554 = vmatprep.subr.bf16.mxu0 0
  %1555 = vmatpush2.bf16.msra.mxu0 %v1078
  %1556 = vmatprep.mubr.bf16.mxu0 %v411
  %1557 = vmatmul.mubr.bf16.gmra.mxu0 %v410
  %v1558 = vpop.f32.mrf.mxu0
  %v1559 = vadd.f32 %v1510, %v1558
  %v1560 = vpop.f32.mrf.mxu0
  %v1561 = vpop.f32.mrf.mxu0
  %v1562 = vadd.f32 %v1513, %v1561
  %v1563 = vpop.f32.mrf.mxu0
  %1564 = vmatprep.mubr.bf16.mxu0 %v427
  %1565 = vmatmul.mubr.bf16.gmra.mxu0 %v426
  %v1566 = vpop.f32.mrf.mxu0
  %v1567 = vadd.f32 %v1518, %v1566
  %v1568 = vpop.f32.mrf.mxu0
  %v1569 = vpop.f32.mrf.mxu0
  %v1570 = vadd.f32 %v1521, %v1569
  %v1571 = vpop.f32.mrf.mxu0
  %1572 = vdwg.mxu0
  %1573 = vmatprep.subr.bf16.mxu0 0
  %1574 = vmatpush1.bf16.msra.mxu0 %v1093
  %1575 = vmatprep.subr.bf16.mxu0 0
  %1576 = vmatpush1.bf16.msra.mxu0 %v1092
  %1577 = vmatprep.subr.bf16.mxu0 0
  %1578 = vmatpush1.bf16.msra.mxu0 %v1091
  %1579 = vmatprep.subr.bf16.mxu0 0
  %1580 = vmatpush1.bf16.msra.mxu0 %v1090
  %1581 = vmatprep.subr.bf16.mxu0 0
  %1582 = vmatpush1.bf16.msra.mxu0 %v1089
  %1583 = vmatprep.subr.bf16.mxu0 0
  %1584 = vmatpush1.bf16.msra.mxu0 %v1088
  %1585 = vmatprep.subr.bf16.mxu0 0
  %1586 = vmatpush1.bf16.msra.mxu0 %v1087
  %1587 = vmatprep.subr.bf16.mxu0 0
  %1588 = vmatpush1.bf16.msra.mxu0 %v1086
  %1589 = vmatprep.subr.bf16.mxu0 0
  %1590 = vmatpush2.bf16.msra.mxu0 %v1101
  %1591 = vmatprep.subr.bf16.mxu0 0
  %1592 = vmatpush2.bf16.msra.mxu0 %v1100
  %1593 = vmatprep.subr.bf16.mxu0 0
  %1594 = vmatpush2.bf16.msra.mxu0 %v1099
  %1595 = vmatprep.subr.bf16.mxu0 0
  %1596 = vmatpush2.bf16.msra.mxu0 %v1098
  %1597 = vmatprep.subr.bf16.mxu0 0
  %1598 = vmatpush2.bf16.msra.mxu0 %v1097
  %1599 = vmatprep.subr.bf16.mxu0 0
  %1600 = vmatpush2.bf16.msra.mxu0 %v1096
  %1601 = vmatprep.subr.bf16.mxu0 0
  %1602 = vmatpush2.bf16.msra.mxu0 %v1095
  %1603 = vmatprep.subr.bf16.mxu0 0
  %1604 = vmatpush2.bf16.msra.mxu0 %v1094
  %1605 = vmatprep.mubr.bf16.mxu0 %v413
  %1606 = vmatmul.mubr.bf16.gmra.mxu0 %v412
  %v1607 = vpop.f32.mrf.mxu0
  %v1608 = vadd.f32 %v1559, %v1607
  %v1609 = vpop.f32.mrf.mxu0
  %v1610 = vpop.f32.mrf.mxu0
  %v1611 = vadd.f32 %v1562, %v1610
  %v1612 = vpop.f32.mrf.mxu0
  %1613 = vmatprep.mubr.bf16.mxu0 %v429
  %1614 = vmatmul.mubr.bf16.gmra.mxu0 %v428
  %v1615 = vpop.f32.mrf.mxu0
  %v1616 = vadd.f32 %v1567, %v1615
  %v1617 = vpop.f32.mrf.mxu0
  %v1618 = vpop.f32.mrf.mxu0
  %v1619 = vadd.f32 %v1570, %v1618
  %v1620 = vpop.f32.mrf.mxu0
  %1621 = vdwg.mxu0
  %1622 = vst [vmem:[%s2] sm:$0xff] %v1608
  %1623 = vst [vmem:[%s2 + $0x8] sm:$0xff] %v1611
  %1624 = vst [vmem:[%s2 + $0x10] sm:$0xff] %v1616
  %1625 = vst [vmem:[%s2 + $0x18] sm:$0xff] %v1619
  %v1626 = vadd.f32 %v1608, %v1611
  %v1627 = vadd.f32 %v1626, %v1616
  %v1628 = vadd.f32 %v1627, %v1619
  %v1629 = vrot.slane %v1628, 4
  %v1630 = vadd.f32 %v1628, %v1629
  %v1631 = vrot.slane %v1630, 2
  %v1632 = vadd.f32 %v1630, %v1631
  %v1633 = vrot.slane %v1632, 1
  %v1634 = vadd.f32 %v1632, %v1633
  %v1635 = vmul.f32 %v1608, %v1608
  %v1636 = vmul.f32 %v1611, %v1611
  %v1637 = vmul.f32 %v1616, %v1616
  %v1638 = vmul.f32 %v1619, %v1619
  %v1639 = vadd.f32 %v1635, %v1636
  %v1640 = vadd.f32 %v1639, %v1637
  %v1641 = vadd.f32 %v1640, %v1638
  %v1642 = vrot.slane %v1641, 4
  %v1643 = vadd.f32 %v1641, %v1642
  %v1644 = vrot.slane %v1643, 2
  %v1645 = vadd.f32 %v1643, %v1644
  %v1646 = vrot.slane %v1645, 1
  %v1647 = vadd.f32 %v1645, %v1646
  %vm1648 = vcmask 1040384
  %v1649 = vsel %vm1648, %v1634, %v1647
  %1650 = vst [vmem:[%s3] sm:$0x3] %v1649
  // Predicated region
  $region10: #{discriminator_forward.13} parent=0 // pred_check
    _
  $region11: #{discriminator_forward.13} parent=0 // pred_check_branch
    %1652 = sbr.rel (0) target = $region13
  $region12: #{discriminator_forward.13} parent=0 // pred_region
    _
  $region13: #{discriminator_forward.13} parent=0 // pred_fallthru
    _
  // Predicated region
  $region14: #{discriminator_forward.13} parent=0 // pred_check
    _
  $region15: #{discriminator_forward.13} parent=0 // pred_check_branch
    %1654 = sbr.rel (0) target = $region17
  $region16: #{discriminator_forward.13} parent=0 // pred_region
    _
  $region17: #{discriminator_forward.13} parent=0 // pred_fallthru
    _
  // Predicated region
  $region18: #{discriminator_forward.13} parent=0 // pred_check
    _
  $region19: #{discriminator_forward.13} parent=0 // pred_check_branch
    %1656 = sbr.rel (0) target = $region21
  $region20: #{discriminator_forward.13} parent=0 // pred_region
    _
  $region21: #{discriminator_forward.13} parent=0 // pred_fallthru
    _
  // Predicated region
  $region22: #{discriminator_forward.13} parent=0 // pred_check
    _
  $region23: #{discriminator_forward.13} parent=0 // pred_check_branch
    %1658 = sbr.rel (0) target = $region25
  $region24: #{discriminator_forward.13} parent=0 // pred_region
    _
  $region25: #{discriminator_forward.13} parent=0 // pred_fallthru
    _

// kernel: discriminator_forward.15
$region0: #{discriminator_forward.15}
  #allocation0 [shape = 'u32[]', space=smem, size = 0x4, offset = 0x4, fixed_abs, tag = 'smem constant byte address 0x4 - core index']
  #allocation1 [shape = 'u32[144,128]{1,0:T(1,128)}', space=vmem, size = 0x12000, scoped, tag = 'internal scratch']
  %s0 = inlined_call_operand.vmem [shape: bf16[8,2048], index: 0, kind: input, shape index: {}]
  %s1 = inlined_call_operand.vmem [shape: bf16[2048,128], index: 1, kind: input, shape index: {}]
  %s2 = inlined_call_operand.vmem [shape: f32[8,128], index: 2, kind: output, shape index: {}]
  %s3 = sld [smem:[#allocation0]]
  $region18: #{discriminator_forward.15} parent=0
    _
  %s5 = ssub.s32 1, %s3
  %s6 = scalar_select 0, %s5, %s3
  // Predicated region
  $region2: #{discriminator_forward.15} parent=0 // pred_check
    _
  $region3: #{discriminator_forward.15} parent=0 // pred_check_branch
    %8 = sbr.rel (0) target = $region5
  $region4: #{discriminator_forward.15} parent=0 // pred_region
    _
  $region5: #{discriminator_forward.15} parent=0 // pred_fallthru
    _
  // Predicated region
  $region6: #{discriminator_forward.15} parent=0 // pred_check
    _
  $region7: #{discriminator_forward.15} parent=0 // pred_check_branch
    %10 = sbr.rel (0) target = $region9
  $region8: #{discriminator_forward.15} parent=0 // pred_region
    _
  $region9: #{discriminator_forward.15} parent=0 // pred_fallthru
    _
  %v12 = vld [vmem:[%s0] sm:$0xff]
  %v13 = vld [vmem:[%s0 + $0x8] sm:$0xff]
  %v14 = vld [vmem:[%s0 + $0x10] sm:$0xff]
  %v15 = vld [vmem:[%s0 + $0x18] sm:$0xff]
  %v16 = vld [vmem:[%s0 + $0x20] sm:$0xff]
  %v17 = vld [vmem:[%s0 + $0x28] sm:$0xff]
  %v18 = vld [vmem:[%s0 + $0x30] sm:$0xff]
  %v19 = vld [vmem:[%s0 + $0x38] sm:$0xff]
  %v20 = vld [vmem:[%s1] sm:$0xf]
  %v21 = vld [vmem:[%s1 + $0x4] sm:$0xf]
  %v22 = vld [vmem:[%s1 + $0x8] sm:$0xf]
  %v23 = vld [vmem:[%s1 + $0xc] sm:$0xf]
  %v24 = vld [vmem:[%s1 + $0x10] sm:$0xf]
  %v25 = vld [vmem:[%s1 + $0x14] sm:$0xf]
  %v26 = vld [vmem:[%s1 + $0x18] sm:$0xf]
  %v27 = vld [vmem:[%s1 + $0x1c] sm:$0xf]
  %v28 = vld [vmem:[%s1 + $0x20] sm:$0xf]
  %v29 = vld [vmem:[%s1 + $0x24] sm:$0xf]
  %v30 = vld [vmem:[%s1 + $0x28] sm:$0xf]
  %v31 = vld [vmem:[%s1 + $0x2c] sm:$0xf]
  %v32 = vld [vmem:[%s1 + $0x30] sm:$0xf]
  %v33 = vld [vmem:[%s1 + $0x34] sm:$0xf]
  %v34 = vld [vmem:[%s1 + $0x38] sm:$0xf]
  %v35 = vld [vmem:[%s1 + $0x3c] sm:$0xf]
  %v36 = vld [vmem:[%s1 + $0x40] sm:$0xf]
  %v37 = vld [vmem:[%s1 + $0x44] sm:$0xf]
  %v38 = vld [vmem:[%s1 + $0x48] sm:$0xf]
  %v39 = vld [vmem:[%s1 + $0x4c] sm:$0xf]
  %v40 = vld [vmem:[%s1 + $0x50] sm:$0xf]
  %v41 = vld [vmem:[%s1 + $0x54] sm:$0xf]
  %v42 = vld [vmem:[%s1 + $0x58] sm:$0xf]
  %v43 = vld [vmem:[%s1 + $0x5c] sm:$0xf]
  %v44 = vld [vmem:[%s1 + $0x60] sm:$0xf]
  %v45 = vld [vmem:[%s1 + $0x64] sm:$0xf]
  %v46 = vld [vmem:[%s1 + $0x68] sm:$0xf]
  %v47 = vld [vmem:[%s1 + $0x6c] sm:$0xf]
  %v48 = vld [vmem:[%s1 + $0x70] sm:$0xf]
  %v49 = vld [vmem:[%s1 + $0x74] sm:$0xf]
  %v50 = vld [vmem:[%s1 + $0x78] sm:$0xf]
  %v51 = vld [vmem:[%s1 + $0x7c] sm:$0xf]
  %v52 = vld [vmem:[%s1 + $0x80] sm:$0xf]
  %v53 = vld [vmem:[%s1 + $0x84] sm:$0xf]
  %v54 = vld [vmem:[%s1 + $0x88] sm:$0xf]
  %v55 = vld [vmem:[%s1 + $0x8c] sm:$0xf]
  %v56 = vld [vmem:[%s1 + $0x90] sm:$0xf]
  %v57 = vld [vmem:[%s1 + $0x94] sm:$0xf]
  %v58 = vld [vmem:[%s1 + $0x98] sm:$0xf]
  %v59 = vld [vmem:[%s1 + $0x9c] sm:$0xf]
  %v60 = vld [vmem:[%s1 + $0xa0] sm:$0xf]
  %v61 = vld [vmem:[%s1 + $0xa4] sm:$0xf]
  %v62 = vld [vmem:[%s1 + $0xa8] sm:$0xf]
  %v63 = vld [vmem:[%s1 + $0xac] sm:$0xf]
  %v64 = vld [vmem:[%s1 + $0xb0] sm:$0xf]
  %v65 = vld [vmem:[%s1 + $0xb4] sm:$0xf]
  %v66 = vld [vmem:[%s1 + $0xb8] sm:$0xf]
  %v67 = vld [vmem:[%s1 + $0xbc] sm:$0xf]
  %v68 = vld [vmem:[%s1 + $0xc0] sm:$0xf]
  %v69 = vld [vmem:[%s1 + $0xc4] sm:$0xf]
  %v70 = vld [vmem:[%s1 + $0xc8] sm:$0xf]
  %v71 = vld [vmem:[%s1 + $0xcc] sm:$0xf]
  %v72 = vld [vmem:[%s1 + $0xd0] sm:$0xf]
  %v73 = vld [vmem:[%s1 + $0xd4] sm:$0xf]
  %v74 = vld [vmem:[%s1 + $0xd8] sm:$0xf]
  %v75 = vld [vmem:[%s1 + $0xdc] sm:$0xf]
  %v76 = vld [vmem:[%s1 + $0xe0] sm:$0xf]
  %v77 = vld [vmem:[%s1 + $0xe4] sm:$0xf]
  %v78 = vld [vmem:[%s1 + $0xe8] sm:$0xf]
  %v79 = vld [vmem:[%s1 + $0xec] sm:$0xf]
  %v80 = vld [vmem:[%s1 + $0xf0] sm:$0xf]
  %v81 = vld [vmem:[%s1 + $0xf4] sm:$0xf]
  %v82 = vld [vmem:[%s1 + $0xf8] sm:$0xf]
  %v83 = vld [vmem:[%s1 + $0xfc] sm:$0xf]
  %v84 = vld [vmem:[%s1 + $0x100] sm:$0xf]
  %v85 = vld [vmem:[%s1 + $0x104] sm:$0xf]
  %v86 = vld [vmem:[%s1 + $0x108] sm:$0xf]
  %v87 = vld [vmem:[%s1 + $0x10c] sm:$0xf]
  %v88 = vld [vmem:[%s1 + $0x110] sm:$0xf]
  %v89 = vld [vmem:[%s1 + $0x114] sm:$0xf]
  %v90 = vld [vmem:[%s1 + $0x118] sm:$0xf]
  %v91 = vld [vmem:[%s1 + $0x11c] sm:$0xf]
  %v92 = vld [vmem:[%s1 + $0x120] sm:$0xf]
  %v93 = vld [vmem:[%s1 + $0x124] sm:$0xf]
  %v94 = vld [vmem:[%s1 + $0x128] sm:$0xf]
  %v95 = vld [vmem:[%s1 + $0x12c] sm:$0xf]
  %v96 = vld [vmem:[%s1 + $0x130] sm:$0xf]
  %v97 = vld [vmem:[%s1 + $0x134] sm:$0xf]
  %v98 = vld [vmem:[%s1 + $0x138] sm:$0xf]
  %v99 = vld [vmem:[%s1 + $0x13c] sm:$0xf]
  %v100 = vld [vmem:[%s1 + $0x140] sm:$0xf]
  %v101 = vld [vmem:[%s1 + $0x144] sm:$0xf]
  %v102 = vld [vmem:[%s1 + $0x148] sm:$0xf]
  %v103 = vld [vmem:[%s1 + $0x14c] sm:$0xf]
  %v104 = vld [vmem:[%s1 + $0x150] sm:$0xf]
  %v105 = vld [vmem:[%s1 + $0x154] sm:$0xf]
  %v106 = vld [vmem:[%s1 + $0x158] sm:$0xf]
  %v107 = vld [vmem:[%s1 + $0x15c] sm:$0xf]
  %v108 = vld [vmem:[%s1 + $0x160] sm:$0xf]
  %v109 = vld [vmem:[%s1 + $0x164] sm:$0xf]
  %v110 = vld [vmem:[%s1 + $0x168] sm:$0xf]
  %v111 = vld [vmem:[%s1 + $0x16c] sm:$0xf]
  %v112 = vld [vmem:[%s1 + $0x170] sm:$0xf]
  %v113 = vld [vmem:[%s1 + $0x174] sm:$0xf]
  %v114 = vld [vmem:[%s1 + $0x178] sm:$0xf]
  %v115 = vld [vmem:[%s1 + $0x17c] sm:$0xf]
  %v116 = vld [vmem:[%s1 + $0x180] sm:$0xf]
  %v117 = vld [vmem:[%s1 + $0x184] sm:$0xf]
  %v118 = vld [vmem:[%s1 + $0x188] sm:$0xf]
  %v119 = vld [vmem:[%s1 + $0x18c] sm:$0xf]
  %v120 = vld [vmem:[%s1 + $0x190] sm:$0xf]
  %v121 = vld [vmem:[%s1 + $0x194] sm:$0xf]
  %v122 = vld [vmem:[%s1 + $0x198] sm:$0xf]
  %v123 = vld [vmem:[%s1 + $0x19c] sm:$0xf]
  %v124 = vld [vmem:[%s1 + $0x1a0] sm:$0xf]
  %v125 = vld [vmem:[%s1 + $0x1a4] sm:$0xf]
  %v126 = vld [vmem:[%s1 + $0x1a8] sm:$0xf]
  %v127 = vld [vmem:[%s1 + $0x1ac] sm:$0xf]
  %v128 = vld [vmem:[%s1 + $0x1b0] sm:$0xf]
  %v129 = vld [vmem:[%s1 + $0x1b4] sm:$0xf]
  %v130 = vld [vmem:[%s1 + $0x1b8] sm:$0xf]
  %v131 = vld [vmem:[%s1 + $0x1bc] sm:$0xf]
  %v132 = vld [vmem:[%s1 + $0x1c0] sm:$0xf]
  %v133 = vld [vmem:[%s1 + $0x1c4] sm:$0xf]
  %v134 = vld [vmem:[%s1 + $0x1c8] sm:$0xf]
  %v135 = vld [vmem:[%s1 + $0x1cc] sm:$0xf]
  %v136 = vld [vmem:[%s1 + $0x1d0] sm:$0xf]
  %v137 = vld [vmem:[%s1 + $0x1d4] sm:$0xf]
  %v138 = vld [vmem:[%s1 + $0x1d8] sm:$0xf]
  %v139 = vld [vmem:[%s1 + $0x1dc] sm:$0xf]
  %v140 = vld [vmem:[%s1 + $0x1e0] sm:$0xf]
  %v141 = vld [vmem:[%s1 + $0x1e4] sm:$0xf]
  %v142 = vld [vmem:[%s1 + $0x1e8] sm:$0xf]
  %v143 = vld [vmem:[%s1 + $0x1ec] sm:$0xf]
  %v144 = vld [vmem:[%s1 + $0x1f0] sm:$0xf]
  %v145 = vld [vmem:[%s1 + $0x1f4] sm:$0xf]
  %v146 = vld [vmem:[%s1 + $0x1f8] sm:$0xf]
  %v147 = vld [vmem:[%s1 + $0x1fc] sm:$0xf]
  %v148 = vld [vmem:[%s1 + $0x200] sm:$0xf]
  %v149 = vld [vmem:[%s1 + $0x204] sm:$0xf]
  %v150 = vld [vmem:[%s1 + $0x208] sm:$0xf]
  %v151 = vld [vmem:[%s1 + $0x20c] sm:$0xf]
  %v152 = vld [vmem:[%s1 + $0x210] sm:$0xf]
  %v153 = vld [vmem:[%s1 + $0x214] sm:$0xf]
  %v154 = vld [vmem:[%s1 + $0x218] sm:$0xf]
  %v155 = vld [vmem:[%s1 + $0x21c] sm:$0xf]
  %v156 = vld [vmem:[%s1 + $0x220] sm:$0xf]
  %v157 = vld [vmem:[%s1 + $0x224] sm:$0xf]
  %v158 = vld [vmem:[%s1 + $0x228] sm:$0xf]
  %v159 = vld [vmem:[%s1 + $0x22c] sm:$0xf]
  %v160 = vld [vmem:[%s1 + $0x230] sm:$0xf]
  %v161 = vld [vmem:[%s1 + $0x234] sm:$0xf]
  %v162 = vld [vmem:[%s1 + $0x238] sm:$0xf]
  %v163 = vld [vmem:[%s1 + $0x23c] sm:$0xf]
  %v164 = vld [vmem:[%s1 + $0x240] sm:$0xf]
  %v165 = vld [vmem:[%s1 + $0x244] sm:$0xf]
  %v166 = vld [vmem:[%s1 + $0x248] sm:$0xf]
  %v167 = vld [vmem:[%s1 + $0x24c] sm:$0xf]
  %v168 = vld [vmem:[%s1 + $0x250] sm:$0xf]
  %v169 = vld [vmem:[%s1 + $0x254] sm:$0xf]
  %v170 = vld [vmem:[%s1 + $0x258] sm:$0xf]
  %v171 = vld [vmem:[%s1 + $0x25c] sm:$0xf]
  %v172 = vld [vmem:[%s1 + $0x260] sm:$0xf]
  %v173 = vld [vmem:[%s1 + $0x264] sm:$0xf]
  %v174 = vld [vmem:[%s1 + $0x268] sm:$0xf]
  %v175 = vld [vmem:[%s1 + $0x26c] sm:$0xf]
  %v176 = vld [vmem:[%s1 + $0x270] sm:$0xf]
  %v177 = vld [vmem:[%s1 + $0x274] sm:$0xf]
  %v178 = vld [vmem:[%s1 + $0x278] sm:$0xf]
  %v179 = vld [vmem:[%s1 + $0x27c] sm:$0xf]
  %v180 = vld [vmem:[%s1 + $0x280] sm:$0xf]
  %v181 = vld [vmem:[%s1 + $0x284] sm:$0xf]
  %v182 = vld [vmem:[%s1 + $0x288] sm:$0xf]
  %v183 = vld [vmem:[%s1 + $0x28c] sm:$0xf]
  %v184 = vld [vmem:[%s1 + $0x290] sm:$0xf]
  %v185 = vld [vmem:[%s1 + $0x294] sm:$0xf]
  %v186 = vld [vmem:[%s1 + $0x298] sm:$0xf]
  %v187 = vld [vmem:[%s1 + $0x29c] sm:$0xf]
  %v188 = vld [vmem:[%s1 + $0x2a0] sm:$0xf]
  %v189 = vld [vmem:[%s1 + $0x2a4] sm:$0xf]
  %v190 = vld [vmem:[%s1 + $0x2a8] sm:$0xf]
  %v191 = vld [vmem:[%s1 + $0x2ac] sm:$0xf]
  %v192 = vld [vmem:[%s1 + $0x2b0] sm:$0xf]
  %v193 = vld [vmem:[%s1 + $0x2b4] sm:$0xf]
  %v194 = vld [vmem:[%s1 + $0x2b8] sm:$0xf]
  %v195 = vld [vmem:[%s1 + $0x2bc] sm:$0xf]
  %v196 = vld [vmem:[%s1 + $0x2c0] sm:$0xf]
  %v197 = vld [vmem:[%s1 + $0x2c4] sm:$0xf]
  %v198 = vld [vmem:[%s1 + $0x2c8] sm:$0xf]
  %v199 = vld [vmem:[%s1 + $0x2cc] sm:$0xf]
  %v200 = vld [vmem:[%s1 + $0x2d0] sm:$0xf]
  %v201 = vld [vmem:[%s1 + $0x2d4] sm:$0xf]
  %v202 = vld [vmem:[%s1 + $0x2d8] sm:$0xf]
  %v203 = vld [vmem:[%s1 + $0x2dc] sm:$0xf]
  %v204 = vld [vmem:[%s1 + $0x2e0] sm:$0xf]
  %v205 = vld [vmem:[%s1 + $0x2e4] sm:$0xf]
  %v206 = vld [vmem:[%s1 + $0x2e8] sm:$0xf]
  %v207 = vld [vmem:[%s1 + $0x2ec] sm:$0xf]
  %v208 = vld [vmem:[%s1 + $0x2f0] sm:$0xf]
  %v209 = vld [vmem:[%s1 + $0x2f4] sm:$0xf]
  %v210 = vld [vmem:[%s1 + $0x2f8] sm:$0xf]
  %v211 = vld [vmem:[%s1 + $0x2fc] sm:$0xf]
  %v212 = vld [vmem:[%s1 + $0x300] sm:$0xf]
  %v213 = vld [vmem:[%s1 + $0x304] sm:$0xf]
  %v214 = vld [vmem:[%s1 + $0x308] sm:$0xf]
  %v215 = vld [vmem:[%s1 + $0x30c] sm:$0xf]
  %v216 = vld [vmem:[%s1 + $0x310] sm:$0xf]
  %v217 = vld [vmem:[%s1 + $0x314] sm:$0xf]
  %v218 = vld [vmem:[%s1 + $0x318] sm:$0xf]
  %v219 = vld [vmem:[%s1 + $0x31c] sm:$0xf]
  %v220 = vld [vmem:[%s1 + $0x320] sm:$0xf]
  %v221 = vld [vmem:[%s1 + $0x324] sm:$0xf]
  %v222 = vld [vmem:[%s1 + $0x328] sm:$0xf]
  %v223 = vld [vmem:[%s1 + $0x32c] sm:$0xf]
  %v224 = vld [vmem:[%s1 + $0x330] sm:$0xf]
  %v225 = vld [vmem:[%s1 + $0x334] sm:$0xf]
  %v226 = vld [vmem:[%s1 + $0x338] sm:$0xf]
  %v227 = vld [vmem:[%s1 + $0x33c] sm:$0xf]
  %v228 = vld [vmem:[%s1 + $0x340] sm:$0xf]
  %v229 = vld [vmem:[%s1 + $0x344] sm:$0xf]
  %v230 = vld [vmem:[%s1 + $0x348] sm:$0xf]
  %v231 = vld [vmem:[%s1 + $0x34c] sm:$0xf]
  %v232 = vld [vmem:[%s1 + $0x350] sm:$0xf]
  %v233 = vld [vmem:[%s1 + $0x354] sm:$0xf]
  %v234 = vld [vmem:[%s1 + $0x358] sm:$0xf]
  %v235 = vld [vmem:[%s1 + $0x35c] sm:$0xf]
  %v236 = vld [vmem:[%s1 + $0x360] sm:$0xf]
  %v237 = vld [vmem:[%s1 + $0x364] sm:$0xf]
  %v238 = vld [vmem:[%s1 + $0x368] sm:$0xf]
  %v239 = vld [vmem:[%s1 + $0x36c] sm:$0xf]
  %v240 = vld [vmem:[%s1 + $0x370] sm:$0xf]
  %v241 = vld [vmem:[%s1 + $0x374] sm:$0xf]
  %v242 = vld [vmem:[%s1 + $0x378] sm:$0xf]
  %v243 = vld [vmem:[%s1 + $0x37c] sm:$0xf]
  %v244 = vld [vmem:[%s1 + $0x380] sm:$0xf]
  %v245 = vld [vmem:[%s1 + $0x384] sm:$0xf]
  %v246 = vld [vmem:[%s1 + $0x388] sm:$0xf]
  %v247 = vld [vmem:[%s1 + $0x38c] sm:$0xf]
  %v248 = vld [vmem:[%s1 + $0x390] sm:$0xf]
  %v249 = vld [vmem:[%s1 + $0x394] sm:$0xf]
  %v250 = vld [vmem:[%s1 + $0x398] sm:$0xf]
  %v251 = vld [vmem:[%s1 + $0x39c] sm:$0xf]
  %v252 = vld [vmem:[%s1 + $0x3a0] sm:$0xf]
  %v253 = vld [vmem:[%s1 + $0x3a4] sm:$0xf]
  %v254 = vld [vmem:[%s1 + $0x3a8] sm:$0xf]
  %v255 = vld [vmem:[%s1 + $0x3ac] sm:$0xf]
  %v256 = vld [vmem:[%s1 + $0x3b0] sm:$0xf]
  %v257 = vld [vmem:[%s1 + $0x3b4] sm:$0xf]
  %v258 = vld [vmem:[%s1 + $0x3b8] sm:$0xf]
  %v259 = vld [vmem:[%s1 + $0x3bc] sm:$0xf]
  %v260 = vld [vmem:[%s1 + $0x3c0] sm:$0xf]
  %v261 = vld [vmem:[%s1 + $0x3c4] sm:$0xf]
  %v262 = vld [vmem:[%s1 + $0x3c8] sm:$0xf]
  %v263 = vld [vmem:[%s1 + $0x3cc] sm:$0xf]
  %v264 = vld [vmem:[%s1 + $0x3d0] sm:$0xf]
  %v265 = vld [vmem:[%s1 + $0x3d4] sm:$0xf]
  %v266 = vld [vmem:[%s1 + $0x3d8] sm:$0xf]
  %v267 = vld [vmem:[%s1 + $0x3dc] sm:$0xf]
  %v268 = vld [vmem:[%s1 + $0x3e0] sm:$0xf]
  %v269 = vld [vmem:[%s1 + $0x3e4] sm:$0xf]
  %v270 = vld [vmem:[%s1 + $0x3e8] sm:$0xf]
  %v271 = vld [vmem:[%s1 + $0x3ec] sm:$0xf]
  %v272 = vld [vmem:[%s1 + $0x3f0] sm:$0xf]
  %v273 = vld [vmem:[%s1 + $0x3f4] sm:$0xf]
  %v274 = vld [vmem:[%s1 + $0x3f8] sm:$0xf]
  %v275 = vld [vmem:[%s1 + $0x3fc] sm:$0xf]
  %v284 = vunpack.c.l.b16 %v12
  %v285 = vunpack.c.h.b16 %v12
  %v286 = vunpack.c.l.b16 %v13
  %v287 = vunpack.c.h.b16 %v13
  %v288 = vunpack.c.l.b16 %v14
  %v289 = vunpack.c.h.b16 %v14
  %v290 = vunpack.c.l.b16 %v15
  %v291 = vunpack.c.h.b16 %v15
  %v292 = vunpack.c.l.b16 %v16
  %v293 = vunpack.c.h.b16 %v16
  %v294 = vunpack.c.l.b16 %v17
  %v295 = vunpack.c.h.b16 %v17
  %v296 = vunpack.c.l.b16 %v18
  %v297 = vunpack.c.h.b16 %v18
  %v298 = vunpack.c.l.b16 %v19
  %v299 = vunpack.c.h.b16 %v19
  %v300 = vpack.c.b16 %v284, %v284
  %v301 = vpack.c.b16 %v285, %v285
  %v302 = vpack.c.b16 %v286, %v286
  %v303 = vpack.c.b16 %v287, %v287
  %v304 = vpack.c.b16 %v288, %v288
  %v305 = vpack.c.b16 %v289, %v289
  %v306 = vpack.c.b16 %v290, %v290
  %v307 = vpack.c.b16 %v291, %v291
  %v308 = vpack.c.b16 %v292, %v292
  %v309 = vpack.c.b16 %v293, %v293
  %v310 = vpack.c.b16 %v294, %v294
  %v311 = vpack.c.b16 %v295, %v295
  %v312 = vpack.c.b16 %v296, %v296
  %v313 = vpack.c.b16 %v297, %v297
  %v314 = vpack.c.b16 %v298, %v298
  %v315 = vpack.c.b16 %v299, %v299
  %v588 = vunpack.c.l.b16 %v20
  %v589 = vunpack.c.l.b16 %v21
  %v590 = vunpack.c.l.b16 %v22
  %v591 = vunpack.c.l.b16 %v23
  %v592 = vunpack.c.l.b16 %v24
  %v593 = vunpack.c.l.b16 %v25
  %v594 = vunpack.c.l.b16 %v26
  %v595 = vunpack.c.l.b16 %v27
  %v596 = vunpack.c.l.b16 %v28
  %v597 = vunpack.c.l.b16 %v29
  %v598 = vunpack.c.l.b16 %v30
  %v599 = vunpack.c.l.b16 %v31
  %v600 = vunpack.c.l.b16 %v32
  %v601 = vunpack.c.l.b16 %v33
  %v602 = vunpack.c.l.b16 %v34
  %v603 = vunpack.c.l.b16 %v35
  %v604 = vunpack.c.l.b16 %v36
  %v605 = vunpack.c.l.b16 %v37
  %v606 = vunpack.c.l.b16 %v38
  %v607 = vunpack.c.l.b16 %v39
  %v608 = vunpack.c.l.b16 %v40
  %v609 = vunpack.c.l.b16 %v41
  %v610 = vunpack.c.l.b16 %v42
  %v611 = vunpack.c.l.b16 %v43
  %v612 = vunpack.c.l.b16 %v44
  %v613 = vunpack.c.l.b16 %v45
  %v614 = vunpack.c.l.b16 %v46
  %v615 = vunpack.c.l.b16 %v47
  %v616 = vunpack.c.l.b16 %v48
  %v617 = vunpack.c.l.b16 %v49
  %v618 = vunpack.c.l.b16 %v50
  %v619 = vunpack.c.l.b16 %v51
  %v620 = vunpack.c.l.b16 %v52
  %v621 = vunpack.c.l.b16 %v53
  %v622 = vunpack.c.l.b16 %v54
  %v623 = vunpack.c.l.b16 %v55
  %v624 = vunpack.c.l.b16 %v56
  %v625 = vunpack.c.l.b16 %v57
  %v626 = vunpack.c.l.b16 %v58
  %v627 = vunpack.c.l.b16 %v59
  %v628 = vunpack.c.l.b16 %v60
  %v629 = vunpack.c.l.b16 %v61
  %v630 = vunpack.c.l.b16 %v62
  %v631 = vunpack.c.l.b16 %v63
  %v632 = vunpack.c.l.b16 %v64
  %v633 = vunpack.c.l.b16 %v65
  %v634 = vunpack.c.l.b16 %v66
  %v635 = vunpack.c.l.b16 %v67
  %v636 = vunpack.c.l.b16 %v68
  %v637 = vunpack.c.l.b16 %v69
  %v638 = vunpack.c.l.b16 %v70
  %v639 = vunpack.c.l.b16 %v71
  %v640 = vunpack.c.l.b16 %v72
  %v641 = vunpack.c.l.b16 %v73
  %v642 = vunpack.c.l.b16 %v74
  %v643 = vunpack.c.l.b16 %v75
  %v644 = vunpack.c.l.b16 %v76
  %v645 = vunpack.c.l.b16 %v77
  %v646 = vunpack.c.l.b16 %v78
  %v647 = vunpack.c.l.b16 %v79
  %v648 = vunpack.c.l.b16 %v80
  %v649 = vunpack.c.l.b16 %v81
  %v650 = vunpack.c.l.b16 %v82
  %v651 = vunpack.c.l.b16 %v83
  %v652 = vunpack.c.l.b16 %v84
  %v653 = vunpack.c.l.b16 %v85
  %v654 = vunpack.c.l.b16 %v86
  %v655 = vunpack.c.l.b16 %v87
  %v656 = vunpack.c.l.b16 %v88
  %v657 = vunpack.c.l.b16 %v89
  %v658 = vunpack.c.l.b16 %v90
  %v659 = vunpack.c.l.b16 %v91
  %v660 = vunpack.c.l.b16 %v92
  %v661 = vunpack.c.l.b16 %v93
  %v662 = vunpack.c.l.b16 %v94
  %v663 = vunpack.c.l.b16 %v95
  %v664 = vunpack.c.l.b16 %v96
  %v665 = vunpack.c.l.b16 %v97
  %v666 = vunpack.c.l.b16 %v98
  %v667 = vunpack.c.l.b16 %v99
  %v668 = vunpack.c.l.b16 %v100
  %v669 = vunpack.c.l.b16 %v101
  %v670 = vunpack.c.l.b16 %v102
  %v671 = vunpack.c.l.b16 %v103
  %v672 = vunpack.c.l.b16 %v104
  %v673 = vunpack.c.l.b16 %v105
  %v674 = vunpack.c.l.b16 %v106
  %v675 = vunpack.c.l.b16 %v107
  %v676 = vunpack.c.l.b16 %v108
  %v677 = vunpack.c.l.b16 %v109
  %v678 = vunpack.c.l.b16 %v110
  %v679 = vunpack.c.l.b16 %v111
  %v680 = vunpack.c.l.b16 %v112
  %v681 = vunpack.c.l.b16 %v113
  %v682 = vunpack.c.l.b16 %v114
  %v683 = vunpack.c.l.b16 %v115
  %v684 = vunpack.c.l.b16 %v116
  %v685 = vunpack.c.l.b16 %v117
  %v686 = vunpack.c.l.b16 %v118
  %v687 = vunpack.c.l.b16 %v119
  %v688 = vunpack.c.l.b16 %v120
  %v689 = vunpack.c.l.b16 %v121
  %v690 = vunpack.c.l.b16 %v122
  %v691 = vunpack.c.l.b16 %v123
  %v692 = vunpack.c.l.b16 %v124
  %v693 = vunpack.c.l.b16 %v125
  %v694 = vunpack.c.l.b16 %v126
  %v695 = vunpack.c.l.b16 %v127
  %v696 = vunpack.c.l.b16 %v128
  %v697 = vunpack.c.l.b16 %v129
  %v698 = vunpack.c.l.b16 %v130
  %v699 = vunpack.c.l.b16 %v131
  %v700 = vunpack.c.l.b16 %v132
  %v701 = vunpack.c.l.b16 %v133
  %v702 = vunpack.c.l.b16 %v134
  %v703 = vunpack.c.l.b16 %v135
  %v704 = vunpack.c.l.b16 %v136
  %v705 = vunpack.c.l.b16 %v137
  %v706 = vunpack.c.l.b16 %v138
  %v707 = vunpack.c.l.b16 %v139
  %v708 = vunpack.c.l.b16 %v140
  %v709 = vunpack.c.l.b16 %v141
  %v710 = vunpack.c.l.b16 %v142
  %v711 = vunpack.c.l.b16 %v143
  %v712 = vunpack.c.l.b16 %v144
  %v713 = vunpack.c.l.b16 %v145
  %v714 = vunpack.c.l.b16 %v146
  %v715 = vunpack.c.l.b16 %v147
  %v716 = vunpack.c.l.b16 %v148
  %v717 = vunpack.c.l.b16 %v149
  %v718 = vunpack.c.l.b16 %v150
  %v719 = vunpack.c.l.b16 %v151
  %v720 = vunpack.c.l.b16 %v152
  %v721 = vunpack.c.l.b16 %v153
  %v722 = vunpack.c.l.b16 %v154
  %v723 = vunpack.c.l.b16 %v155
  %v724 = vunpack.c.l.b16 %v156
  %v725 = vunpack.c.l.b16 %v157
  %v726 = vunpack.c.l.b16 %v158
  %v727 = vunpack.c.l.b16 %v159
  %v728 = vunpack.c.l.b16 %v160
  %v729 = vunpack.c.l.b16 %v161
  %v730 = vunpack.c.l.b16 %v162
  %v731 = vunpack.c.l.b16 %v163
  %v732 = vunpack.c.l.b16 %v164
  %v733 = vunpack.c.l.b16 %v165
  %v734 = vunpack.c.l.b16 %v166
  %v735 = vunpack.c.l.b16 %v167
  %v736 = vunpack.c.l.b16 %v168
  %v737 = vunpack.c.l.b16 %v169
  %v738 = vunpack.c.l.b16 %v170
  %v739 = vunpack.c.l.b16 %v171
  %v740 = vunpack.c.l.b16 %v172
  %v741 = vunpack.c.l.b16 %v173
  %v742 = vunpack.c.l.b16 %v174
  %v743 = vunpack.c.l.b16 %v175
  %v744 = vunpack.c.l.b16 %v176
  %v745 = vunpack.c.l.b16 %v177
  %v746 = vunpack.c.l.b16 %v178
  %v747 = vunpack.c.l.b16 %v179
  %v748 = vunpack.c.l.b16 %v180
  %v749 = vunpack.c.l.b16 %v181
  %v750 = vunpack.c.l.b16 %v182
  %v751 = vunpack.c.l.b16 %v183
  %v752 = vunpack.c.l.b16 %v184
  %v753 = vunpack.c.l.b16 %v185
  %v754 = vunpack.c.l.b16 %v186
  %v755 = vunpack.c.l.b16 %v187
  %v756 = vunpack.c.l.b16 %v188
  %v757 = vunpack.c.l.b16 %v189
  %v758 = vunpack.c.l.b16 %v190
  %v759 = vunpack.c.l.b16 %v191
  %v760 = vunpack.c.l.b16 %v192
  %v761 = vunpack.c.l.b16 %v193
  %v762 = vunpack.c.l.b16 %v194
  %v763 = vunpack.c.l.b16 %v195
  %v764 = vunpack.c.l.b16 %v196
  %v765 = vunpack.c.l.b16 %v197
  %v766 = vunpack.c.l.b16 %v198
  %v767 = vunpack.c.l.b16 %v199
  %v768 = vunpack.c.l.b16 %v200
  %v769 = vunpack.c.l.b16 %v201
  %v770 = vunpack.c.l.b16 %v202
  %v771 = vunpack.c.l.b16 %v203
  %v772 = vunpack.c.l.b16 %v204
  %v773 = vunpack.c.l.b16 %v205
  %v774 = vunpack.c.l.b16 %v206
  %v775 = vunpack.c.l.b16 %v207
  %v776 = vunpack.c.l.b16 %v208
  %v777 = vunpack.c.l.b16 %v209
  %v778 = vunpack.c.l.b16 %v210
  %v779 = vunpack.c.l.b16 %v211
  %v780 = vunpack.c.l.b16 %v212
  %v781 = vunpack.c.l.b16 %v213
  %v782 = vunpack.c.l.b16 %v214
  %v783 = vunpack.c.l.b16 %v215
  %v784 = vunpack.c.l.b16 %v216
  %v785 = vunpack.c.l.b16 %v217
  %v786 = vunpack.c.l.b16 %v218
  %v787 = vunpack.c.l.b16 %v219
  %v788 = vunpack.c.l.b16 %v220
  %v789 = vunpack.c.l.b16 %v221
  %v790 = vunpack.c.l.b16 %v222
  %v791 = vunpack.c.l.b16 %v223
  %v792 = vunpack.c.l.b16 %v224
  %v793 = vunpack.c.l.b16 %v225
  %v794 = vunpack.c.l.b16 %v226
  %v795 = vunpack.c.l.b16 %v227
  %v796 = vunpack.c.l.b16 %v228
  %v797 = vunpack.c.l.b16 %v229
  %v798 = vunpack.c.l.b16 %v230
  %v799 = vunpack.c.l.b16 %v231
  %v800 = vunpack.c.l.b16 %v232
  %v801 = vunpack.c.l.b16 %v233
  %v802 = vunpack.c.l.b16 %v234
  %v803 = vunpack.c.l.b16 %v235
  %v804 = vunpack.c.l.b16 %v236
  %v805 = vunpack.c.l.b16 %v237
  %v806 = vunpack.c.l.b16 %v238
  %v807 = vunpack.c.l.b16 %v239
  %v808 = vunpack.c.l.b16 %v240
  %v809 = vunpack.c.l.b16 %v241
  %v810 = vunpack.c.l.b16 %v242
  %v811 = vunpack.c.l.b16 %v243
  %v812 = vunpack.c.l.b16 %v244
  %v813 = vunpack.c.l.b16 %v245
  %v814 = vunpack.c.l.b16 %v246
  %v815 = vunpack.c.l.b16 %v247
  %v816 = vunpack.c.l.b16 %v248
  %v817 = vunpack.c.l.b16 %v249
  %v818 = vunpack.c.l.b16 %v250
  %v819 = vunpack.c.l.b16 %v251
  %v820 = vunpack.c.l.b16 %v252
  %v821 = vunpack.c.l.b16 %v253
  %v822 = vunpack.c.l.b16 %v254
  %v823 = vunpack.c.l.b16 %v255
  %v824 = vunpack.c.l.b16 %v256
  %v825 = vunpack.c.l.b16 %v257
  %v826 = vunpack.c.l.b16 %v258
  %v827 = vunpack.c.l.b16 %v259
  %v828 = vunpack.c.l.b16 %v260
  %v829 = vunpack.c.l.b16 %v261
  %v830 = vunpack.c.l.b16 %v262
  %v831 = vunpack.c.l.b16 %v263
  %v832 = vunpack.c.l.b16 %v264
  %v833 = vunpack.c.l.b16 %v265
  %v834 = vunpack.c.l.b16 %v266
  %v835 = vunpack.c.l.b16 %v267
  %v836 = vunpack.c.l.b16 %v268
  %v837 = vunpack.c.l.b16 %v269
  %v838 = vunpack.c.l.b16 %v270
  %v839 = vunpack.c.l.b16 %v271
  %v840 = vunpack.c.l.b16 %v272
  %v841 = vunpack.c.l.b16 %v273
  %v842 = vunpack.c.l.b16 %v274
  %v843 = vunpack.c.l.b16 %v275
  %v844 = vpack.c.b16 %v589, %v588
  %v845 = vpack.c.b16 %v591, %v590
  %v846 = vpack.c.b16 %v593, %v592
  %v847 = vpack.c.b16 %v595, %v594
  %v848 = vpack.c.b16 %v597, %v596
  %v849 = vpack.c.b16 %v599, %v598
  %v850 = vpack.c.b16 %v601, %v600
  %v851 = vpack.c.b16 %v603, %v602
  %v852 = vpack.c.b16 %v605, %v604
  %v853 = vpack.c.b16 %v607, %v606
  %v854 = vpack.c.b16 %v609, %v608
  %v855 = vpack.c.b16 %v611, %v610
  %v856 = vpack.c.b16 %v613, %v612
  %v857 = vpack.c.b16 %v615, %v614
  %v858 = vpack.c.b16 %v617, %v616
  %v859 = vpack.c.b16 %v619, %v618
  %v860 = vpack.c.b16 %v621, %v620
  %v861 = vpack.c.b16 %v623, %v622
  %v862 = vpack.c.b16 %v625, %v624
  %v863 = vpack.c.b16 %v627, %v626
  %v864 = vpack.c.b16 %v629, %v628
  %v865 = vpack.c.b16 %v631, %v630
  %v866 = vpack.c.b16 %v633, %v632
  %v867 = vpack.c.b16 %v635, %v634
  %v868 = vpack.c.b16 %v637, %v636
  %v869 = vpack.c.b16 %v639, %v638
  %v870 = vpack.c.b16 %v641, %v640
  %v871 = vpack.c.b16 %v643, %v642
  %v872 = vpack.c.b16 %v645, %v644
  %v873 = vpack.c.b16 %v647, %v646
  %v874 = vpack.c.b16 %v649, %v648
  %v875 = vpack.c.b16 %v651, %v650
  %v876 = vpack.c.b16 %v653, %v652
  %v877 = vpack.c.b16 %v655, %v654
  %v878 = vpack.c.b16 %v657, %v656
  %v879 = vpack.c.b16 %v659, %v658
  %v880 = vpack.c.b16 %v661, %v660
  %v881 = vpack.c.b16 %v663, %v662
  %v882 = vpack.c.b16 %v665, %v664
  %v883 = vpack.c.b16 %v667, %v666
  %v884 = vpack.c.b16 %v669, %v668
  %v885 = vpack.c.b16 %v671, %v670
  %v886 = vpack.c.b16 %v673, %v672
  %v887 = vpack.c.b16 %v675, %v674
  %v888 = vpack.c.b16 %v677, %v676
  %v889 = vpack.c.b16 %v679, %v678
  %v890 = vpack.c.b16 %v681, %v680
  %v891 = vpack.c.b16 %v683, %v682
  %v892 = vpack.c.b16 %v685, %v684
  %v893 = vpack.c.b16 %v687, %v686
  %v894 = vpack.c.b16 %v689, %v688
  %v895 = vpack.c.b16 %v691, %v690
  %v896 = vpack.c.b16 %v693, %v692
  %v897 = vpack.c.b16 %v695, %v694
  %v898 = vpack.c.b16 %v697, %v696
  %v899 = vpack.c.b16 %v699, %v698
  %v900 = vpack.c.b16 %v701, %v700
  %v901 = vpack.c.b16 %v703, %v702
  %v902 = vpack.c.b16 %v705, %v704
  %v903 = vpack.c.b16 %v707, %v706
  %v904 = vpack.c.b16 %v709, %v708
  %v905 = vpack.c.b16 %v711, %v710
  %v906 = vpack.c.b16 %v713, %v712
  %v907 = vpack.c.b16 %v715, %v714
  %v908 = vpack.c.b16 %v717, %v716
  %v909 = vpack.c.b16 %v719, %v718
  %v910 = vpack.c.b16 %v721, %v720
  %v911 = vpack.c.b16 %v723, %v722
  %v912 = vpack.c.b16 %v725, %v724
  %v913 = vpack.c.b16 %v727, %v726
  %v914 = vpack.c.b16 %v729, %v728
  %v915 = vpack.c.b16 %v731, %v730
  %v916 = vpack.c.b16 %v733, %v732
  %v917 = vpack.c.b16 %v735, %v734
  %v918 = vpack.c.b16 %v737, %v736
  %v919 = vpack.c.b16 %v739, %v738
  %v920 = vpack.c.b16 %v741, %v740
  %v921 = vpack.c.b16 %v743, %v742
  %v922 = vpack.c.b16 %v745, %v744
  %v923 = vpack.c.b16 %v747, %v746
  %v924 = vpack.c.b16 %v749, %v748
  %v925 = vpack.c.b16 %v751, %v750
  %v926 = vpack.c.b16 %v753, %v752
  %v927 = vpack.c.b16 %v755, %v754
  %v928 = vpack.c.b16 %v757, %v756
  %v929 = vpack.c.b16 %v759, %v758
  %v930 = vpack.c.b16 %v761, %v760
  %v931 = vpack.c.b16 %v763, %v762
  %v932 = vpack.c.b16 %v765, %v764
  %v933 = vpack.c.b16 %v767, %v766
  %v934 = vpack.c.b16 %v769, %v768
  %v935 = vpack.c.b16 %v771, %v770
  %v936 = vpack.c.b16 %v773, %v772
  %v937 = vpack.c.b16 %v775, %v774
  %v938 = vpack.c.b16 %v777, %v776
  %v939 = vpack.c.b16 %v779, %v778
  %v940 = vpack.c.b16 %v781, %v780
  %v941 = vpack.c.b16 %v783, %v782
  %v942 = vpack.c.b16 %v785, %v784
  %v943 = vpack.c.b16 %v787, %v786
  %v944 = vpack.c.b16 %v789, %v788
  %v945 = vpack.c.b16 %v791, %v790
  %v946 = vpack.c.b16 %v793, %v792
  %v947 = vpack.c.b16 %v795, %v794
  %v948 = vpack.c.b16 %v797, %v796
  %v949 = vpack.c.b16 %v799, %v798
  %v950 = vpack.c.b16 %v801, %v800
  %v951 = vpack.c.b16 %v803, %v802
  %v952 = vpack.c.b16 %v805, %v804
  %v953 = vpack.c.b16 %v807, %v806
  %v954 = vpack.c.b16 %v809, %v808
  %v955 = vpack.c.b16 %v811, %v810
  %v956 = vpack.c.b16 %v813, %v812
  %v957 = vpack.c.b16 %v815, %v814
  %v958 = vpack.c.b16 %v817, %v816
  %v959 = vpack.c.b16 %v819, %v818
  %v960 = vpack.c.b16 %v821, %v820
  %v961 = vpack.c.b16 %v823, %v822
  %v962 = vpack.c.b16 %v825, %v824
  %v963 = vpack.c.b16 %v827, %v826
  %v964 = vpack.c.b16 %v829, %v828
  %v965 = vpack.c.b16 %v831, %v830
  %v966 = vpack.c.b16 %v833, %v832
  %v967 = vpack.c.b16 %v835, %v834
  %v968 = vpack.c.b16 %v837, %v836
  %v969 = vpack.c.b16 %v839, %v838
  %v970 = vpack.c.b16 %v841, %v840
  %v971 = vpack.c.b16 %v843, %v842
  %1100 = vmatprep.subr.bf16.mxu0 0
  %1101 = vmatpush1.bf16.msra.mxu0 %v851
  %1102 = vmatprep.subr.bf16.mxu0 0
  %1103 = vmatpush1.bf16.msra.mxu0 %v850
  %1104 = vmatprep.subr.bf16.mxu0 0
  %1105 = vmatpush1.bf16.msra.mxu0 %v849
  %1106 = vmatprep.subr.bf16.mxu0 0
  %1107 = vmatpush1.bf16.msra.mxu0 %v848
  %1108 = vmatprep.subr.bf16.mxu0 0
  %1109 = vmatpush1.bf16.msra.mxu0 %v847
  %1110 = vmatprep.subr.bf16.mxu0 0
  %1111 = vmatpush1.bf16.msra.mxu0 %v846
  %1112 = vmatprep.subr.bf16.mxu0 0
  %1113 = vmatpush1.bf16.msra.mxu0 %v845
  %1114 = vmatprep.subr.bf16.mxu0 0
  %1115 = vmatpush1.bf16.msra.mxu0 %v844
  %1116 = vmatprep.subr.bf16.mxu0 0
  %1117 = vmatpush2.bf16.msra.mxu0 %v859
  %1118 = vmatprep.subr.bf16.mxu0 0
  %1119 = vmatpush2.bf16.msra.mxu0 %v858
  %1120 = vmatprep.subr.bf16.mxu0 0
  %1121 = vmatpush2.bf16.msra.mxu0 %v857
  %1122 = vmatprep.subr.bf16.mxu0 0
  %1123 = vmatpush2.bf16.msra.mxu0 %v856
  %1124 = vmatprep.subr.bf16.mxu0 0
  %1125 = vmatpush2.bf16.msra.mxu0 %v855
  %1126 = vmatprep.subr.bf16.mxu0 0
  %1127 = vmatpush2.bf16.msra.mxu0 %v854
  %1128 = vmatprep.subr.bf16.mxu0 0
  %1129 = vmatpush2.bf16.msra.mxu0 %v853
  %1130 = vmatprep.subr.bf16.mxu0 0
  %1131 = vmatpush2.bf16.msra.mxu0 %v852
  %1132 = vmatprep.mubr.bf16.mxu0 %v301
  %1133 = vmatmul.mubr.bf16.gmra.mxu0 %v300
  %v1134 = vpop.f32.mrf.mxu0
  %v1135 = vadd.f32 0.0, %v1134
  %v1136 = vpop.f32.mrf.mxu0
  %v1137 = vpop.f32.mrf.mxu0
  %v1138 = vpop.f32.mrf.mxu0
  %1139 = vdwg.mxu0
  %1140 = vmatprep.subr.bf16.mxu0 0
  %1141 = vmatpush1.bf16.msra.mxu0 %v867
  %1142 = vmatprep.subr.bf16.mxu0 0
  %1143 = vmatpush1.bf16.msra.mxu0 %v866
  %1144 = vmatprep.subr.bf16.mxu0 0
  %1145 = vmatpush1.bf16.msra.mxu0 %v865
  %1146 = vmatprep.subr.bf16.mxu0 0
  %1147 = vmatpush1.bf16.msra.mxu0 %v864
  %1148 = vmatprep.subr.bf16.mxu0 0
  %1149 = vmatpush1.bf16.msra.mxu0 %v863
  %1150 = vmatprep.subr.bf16.mxu0 0
  %1151 = vmatpush1.bf16.msra.mxu0 %v862
  %1152 = vmatprep.subr.bf16.mxu0 0
  %1153 = vmatpush1.bf16.msra.mxu0 %v861
  %1154 = vmatprep.subr.bf16.mxu0 0
  %1155 = vmatpush1.bf16.msra.mxu0 %v860
  %1156 = vmatprep.subr.bf16.mxu0 0
  %1157 = vmatpush2.bf16.msra.mxu0 %v875
  %1158 = vmatprep.subr.bf16.mxu0 0
  %1159 = vmatpush2.bf16.msra.mxu0 %v874
  %1160 = vmatprep.subr.bf16.mxu0 0
  %1161 = vmatpush2.bf16.msra.mxu0 %v873
  %1162 = vmatprep.subr.bf16.mxu0 0
  %1163 = vmatpush2.bf16.msra.mxu0 %v872
  %1164 = vmatprep.subr.bf16.mxu0 0
  %1165 = vmatpush2.bf16.msra.mxu0 %v871
  %1166 = vmatprep.subr.bf16.mxu0 0
  %1167 = vmatpush2.bf16.msra.mxu0 %v870
  %1168 = vmatprep.subr.bf16.mxu0 0
  %1169 = vmatpush2.bf16.msra.mxu0 %v869
  %1170 = vmatprep.subr.bf16.mxu0 0
  %1171 = vmatpush2.bf16.msra.mxu0 %v868
  %1172 = vmatprep.mubr.bf16.mxu0 %v303
  %1173 = vmatmul.mubr.bf16.gmra.mxu0 %v302
  %v1174 = vpop.f32.mrf.mxu0
  %v1175 = vadd.f32 %v1135, %v1174
  %v1176 = vpop.f32.mrf.mxu0
  %v1177 = vpop.f32.mrf.mxu0
  %v1178 = vpop.f32.mrf.mxu0
  %1179 = vdwg.mxu0
  %1180 = vmatprep.subr.bf16.mxu0 0
  %1181 = vmatpush1.bf16.msra.mxu0 %v883
  %1182 = vmatprep.subr.bf16.mxu0 0
  %1183 = vmatpush1.bf16.msra.mxu0 %v882
  %1184 = vmatprep.subr.bf16.mxu0 0
  %1185 = vmatpush1.bf16.msra.mxu0 %v881
  %1186 = vmatprep.subr.bf16.mxu0 0
  %1187 = vmatpush1.bf16.msra.mxu0 %v880
  %1188 = vmatprep.subr.bf16.mxu0 0
  %1189 = vmatpush1.bf16.msra.mxu0 %v879
  %1190 = vmatprep.subr.bf16.mxu0 0
  %1191 = vmatpush1.bf16.msra.mxu0 %v878
  %1192 = vmatprep.subr.bf16.mxu0 0
  %1193 = vmatpush1.bf16.msra.mxu0 %v877
  %1194 = vmatprep.subr.bf16.mxu0 0
  %1195 = vmatpush1.bf16.msra.mxu0 %v876
  %1196 = vmatprep.subr.bf16.mxu0 0
  %1197 = vmatpush2.bf16.msra.mxu0 %v891
  %1198 = vmatprep.subr.bf16.mxu0 0
  %1199 = vmatpush2.bf16.msra.mxu0 %v890
  %1200 = vmatprep.subr.bf16.mxu0 0
  %1201 = vmatpush2.bf16.msra.mxu0 %v889
  %1202 = vmatprep.subr.bf16.mxu0 0
  %1203 = vmatpush2.bf16.msra.mxu0 %v888
  %1204 = vmatprep.subr.bf16.mxu0 0
  %1205 = vmatpush2.bf16.msra.mxu0 %v887
  %1206 = vmatprep.subr.bf16.mxu0 0
  %1207 = vmatpush2.bf16.msra.mxu0 %v886
  %1208 = vmatprep.subr.bf16.mxu0 0
  %1209 = vmatpush2.bf16.msra.mxu0 %v885
  %1210 = vmatprep.subr.bf16.mxu0 0
  %1211 = vmatpush2.bf16.msra.mxu0 %v884
  %1212 = vmatprep.mubr.bf16.mxu0 %v305
  %1213 = vmatmul.mubr.bf16.gmra.mxu0 %v304
  %v1214 = vpop.f32.mrf.mxu0
  %v1215 = vadd.f32 %v1175, %v1214
  %v1216 = vpop.f32.mrf.mxu0
  %v1217 = vpop.f32.mrf.mxu0
  %v1218 = vpop.f32.mrf.mxu0
  %1219 = vdwg.mxu0
  %1220 = vmatprep.subr.bf16.mxu0 0
  %1221 = vmatpush1.bf16.msra.mxu0 %v899
  %1222 = vmatprep.subr.bf16.mxu0 0
  %1223 = vmatpush1.bf16.msra.mxu0 %v898
  %1224 = vmatprep.subr.bf16.mxu0 0
  %1225 = vmatpush1.bf16.msra.mxu0 %v897
  %1226 = vmatprep.subr.bf16.mxu0 0
  %1227 = vmatpush1.bf16.msra.mxu0 %v896
  %1228 = vmatprep.subr.bf16.mxu0 0
  %1229 = vmatpush1.bf16.msra.mxu0 %v895
  %1230 = vmatprep.subr.bf16.mxu0 0
  %1231 = vmatpush1.bf16.msra.mxu0 %v894
  %1232 = vmatprep.subr.bf16.mxu0 0
  %1233 = vmatpush1.bf16.msra.mxu0 %v893
  %1234 = vmatprep.subr.bf16.mxu0 0
  %1235 = vmatpush1.bf16.msra.mxu0 %v892
  %1236 = vmatprep.subr.bf16.mxu0 0
  %1237 = vmatpush2.bf16.msra.mxu0 %v907
  %1238 = vmatprep.subr.bf16.mxu0 0
  %1239 = vmatpush2.bf16.msra.mxu0 %v906
  %1240 = vmatprep.subr.bf16.mxu0 0
  %1241 = vmatpush2.bf16.msra.mxu0 %v905
  %1242 = vmatprep.subr.bf16.mxu0 0
  %1243 = vmatpush2.bf16.msra.mxu0 %v904
  %1244 = vmatprep.subr.bf16.mxu0 0
  %1245 = vmatpush2.bf16.msra.mxu0 %v903
  %1246 = vmatprep.subr.bf16.mxu0 0
  %1247 = vmatpush2.bf16.msra.mxu0 %v902
  %1248 = vmatprep.subr.bf16.mxu0 0
  %1249 = vmatpush2.bf16.msra.mxu0 %v901
  %1250 = vmatprep.subr.bf16.mxu0 0
  %1251 = vmatpush2.bf16.msra.mxu0 %v900
  %1252 = vmatprep.mubr.bf16.mxu0 %v307
  %1253 = vmatmul.mubr.bf16.gmra.mxu0 %v306
  %v1254 = vpop.f32.mrf.mxu0
  %v1255 = vadd.f32 %v1215, %v1254
  %v1256 = vpop.f32.mrf.mxu0
  %v1257 = vpop.f32.mrf.mxu0
  %v1258 = vpop.f32.mrf.mxu0
  %1259 = vdwg.mxu0
  %1260 = vmatprep.subr.bf16.mxu0 0
  %1261 = vmatpush1.bf16.msra.mxu0 %v915
  %1262 = vmatprep.subr.bf16.mxu0 0
  %1263 = vmatpush1.bf16.msra.mxu0 %v914
  %1264 = vmatprep.subr.bf16.mxu0 0
  %1265 = vmatpush1.bf16.msra.mxu0 %v913
  %1266 = vmatprep.subr.bf16.mxu0 0
  %1267 = vmatpush1.bf16.msra.mxu0 %v912
  %1268 = vmatprep.subr.bf16.mxu0 0
  %1269 = vmatpush1.bf16.msra.mxu0 %v911
  %1270 = vmatprep.subr.bf16.mxu0 0
  %1271 = vmatpush1.bf16.msra.mxu0 %v910
  %1272 = vmatprep.subr.bf16.mxu0 0
  %1273 = vmatpush1.bf16.msra.mxu0 %v909
  %1274 = vmatprep.subr.bf16.mxu0 0
  %1275 = vmatpush1.bf16.msra.mxu0 %v908
  %1276 = vmatprep.subr.bf16.mxu0 0
  %1277 = vmatpush2.bf16.msra.mxu0 %v923
  %1278 = vmatprep.subr.bf16.mxu0 0
  %1279 = vmatpush2.bf16.msra.mxu0 %v922
  %1280 = vmatprep.subr.bf16.mxu0 0
  %1281 = vmatpush2.bf16.msra.mxu0 %v921
  %1282 = vmatprep.subr.bf16.mxu0 0
  %1283 = vmatpush2.bf16.msra.mxu0 %v920
  %1284 = vmatprep.subr.bf16.mxu0 0
  %1285 = vmatpush2.bf16.msra.mxu0 %v919
  %1286 = vmatprep.subr.bf16.mxu0 0
  %1287 = vmatpush2.bf16.msra.mxu0 %v918
  %1288 = vmatprep.subr.bf16.mxu0 0
  %1289 = vmatpush2.bf16.msra.mxu0 %v917
  %1290 = vmatprep.subr.bf16.mxu0 0
  %1291 = vmatpush2.bf16.msra.mxu0 %v916
  %1292 = vmatprep.mubr.bf16.mxu0 %v309
  %1293 = vmatmul.mubr.bf16.gmra.mxu0 %v308
  %v1294 = vpop.f32.mrf.mxu0
  %v1295 = vadd.f32 %v1255, %v1294
  %v1296 = vpop.f32.mrf.mxu0
  %v1297 = vpop.f32.mrf.mxu0
  %v1298 = vpop.f32.mrf.mxu0
  %1299 = vdwg.mxu0
  %1300 = vmatprep.subr.bf16.mxu0 0
  %1301 = vmatpush1.bf16.msra.mxu0 %v931
  %1302 = vmatprep.subr.bf16.mxu0 0
  %1303 = vmatpush1.bf16.msra.mxu0 %v930
  %1304 = vmatprep.subr.bf16.mxu0 0
  %1305 = vmatpush1.bf16.msra.mxu0 %v929
  %1306 = vmatprep.subr.bf16.mxu0 0
  %1307 = vmatpush1.bf16.msra.mxu0 %v928
  %1308 = vmatprep.subr.bf16.mxu0 0
  %1309 = vmatpush1.bf16.msra.mxu0 %v927
  %1310 = vmatprep.subr.bf16.mxu0 0
  %1311 = vmatpush1.bf16.msra.mxu0 %v926
  %1312 = vmatprep.subr.bf16.mxu0 0
  %1313 = vmatpush1.bf16.msra.mxu0 %v925
  %1314 = vmatprep.subr.bf16.mxu0 0
  %1315 = vmatpush1.bf16.msra.mxu0 %v924
  %1316 = vmatprep.subr.bf16.mxu0 0
  %1317 = vmatpush2.bf16.msra.mxu0 %v939
  %1318 = vmatprep.subr.bf16.mxu0 0
  %1319 = vmatpush2.bf16.msra.mxu0 %v938
  %1320 = vmatprep.subr.bf16.mxu0 0
  %1321 = vmatpush2.bf16.msra.mxu0 %v937
  %1322 = vmatprep.subr.bf16.mxu0 0
  %1323 = vmatpush2.bf16.msra.mxu0 %v936
  %1324 = vmatprep.subr.bf16.mxu0 0
  %1325 = vmatpush2.bf16.msra.mxu0 %v935
  %1326 = vmatprep.subr.bf16.mxu0 0
  %1327 = vmatpush2.bf16.msra.mxu0 %v934
  %1328 = vmatprep.subr.bf16.mxu0 0
  %1329 = vmatpush2.bf16.msra.mxu0 %v933
  %1330 = vmatprep.subr.bf16.mxu0 0
  %1331 = vmatpush2.bf16.msra.mxu0 %v932
  %1332 = vmatprep.mubr.bf16.mxu0 %v311
  %1333 = vmatmul.mubr.bf16.gmra.mxu0 %v310
  %v1334 = vpop.f32.mrf.mxu0
  %v1335 = vadd.f32 %v1295, %v1334
  %v1336 = vpop.f32.mrf.mxu0
  %v1337 = vpop.f32.mrf.mxu0
  %v1338 = vpop.f32.mrf.mxu0
  %1339 = vdwg.mxu0
  %1340 = vmatprep.subr.bf16.mxu0 0
  %1341 = vmatpush1.bf16.msra.mxu0 %v947
  %1342 = vmatprep.subr.bf16.mxu0 0
  %1343 = vmatpush1.bf16.msra.mxu0 %v946
  %1344 = vmatprep.subr.bf16.mxu0 0
  %1345 = vmatpush1.bf16.msra.mxu0 %v945
  %1346 = vmatprep.subr.bf16.mxu0 0
  %1347 = vmatpush1.bf16.msra.mxu0 %v944
  %1348 = vmatprep.subr.bf16.mxu0 0
  %1349 = vmatpush1.bf16.msra.mxu0 %v943
  %1350 = vmatprep.subr.bf16.mxu0 0
  %1351 = vmatpush1.bf16.msra.mxu0 %v942
  %1352 = vmatprep.subr.bf16.mxu0 0
  %1353 = vmatpush1.bf16.msra.mxu0 %v941
  %1354 = vmatprep.subr.bf16.mxu0 0
  %1355 = vmatpush1.bf16.msra.mxu0 %v940
  %1356 = vmatprep.subr.bf16.mxu0 0
  %1357 = vmatpush2.bf16.msra.mxu0 %v955
  %1358 = vmatprep.subr.bf16.mxu0 0
  %1359 = vmatpush2.bf16.msra.mxu0 %v954
  %1360 = vmatprep.subr.bf16.mxu0 0
  %1361 = vmatpush2.bf16.msra.mxu0 %v953
  %1362 = vmatprep.subr.bf16.mxu0 0
  %1363 = vmatpush2.bf16.msra.mxu0 %v952
  %1364 = vmatprep.subr.bf16.mxu0 0
  %1365 = vmatpush2.bf16.msra.mxu0 %v951
  %1366 = vmatprep.subr.bf16.mxu0 0
  %1367 = vmatpush2.bf16.msra.mxu0 %v950
  %1368 = vmatprep.subr.bf16.mxu0 0
  %1369 = vmatpush2.bf16.msra.mxu0 %v949
  %1370 = vmatprep.subr.bf16.mxu0 0
  %1371 = vmatpush2.bf16.msra.mxu0 %v948
  %1372 = vmatprep.mubr.bf16.mxu0 %v313
  %1373 = vmatmul.mubr.bf16.gmra.mxu0 %v312
  %v1374 = vpop.f32.mrf.mxu0
  %v1375 = vadd.f32 %v1335, %v1374
  %v1376 = vpop.f32.mrf.mxu0
  %v1377 = vpop.f32.mrf.mxu0
  %v1378 = vpop.f32.mrf.mxu0
  %1379 = vdwg.mxu0
  %1380 = vmatprep.subr.bf16.mxu0 0
  %1381 = vmatpush1.bf16.msra.mxu0 %v963
  %1382 = vmatprep.subr.bf16.mxu0 0
  %1383 = vmatpush1.bf16.msra.mxu0 %v962
  %1384 = vmatprep.subr.bf16.mxu0 0
  %1385 = vmatpush1.bf16.msra.mxu0 %v961
  %1386 = vmatprep.subr.bf16.mxu0 0
  %1387 = vmatpush1.bf16.msra.mxu0 %v960
  %1388 = vmatprep.subr.bf16.mxu0 0
  %1389 = vmatpush1.bf16.msra.mxu0 %v959
  %1390 = vmatprep.subr.bf16.mxu0 0
  %1391 = vmatpush1.bf16.msra.mxu0 %v958
  %1392 = vmatprep.subr.bf16.mxu0 0
  %1393 = vmatpush1.bf16.msra.mxu0 %v957
  %1394 = vmatprep.subr.bf16.mxu0 0
  %1395 = vmatpush1.bf16.msra.mxu0 %v956
  %1396 = vmatprep.subr.bf16.mxu0 0
  %1397 = vmatpush2.bf16.msra.mxu0 %v971
  %1398 = vmatprep.subr.bf16.mxu0 0
  %1399 = vmatpush2.bf16.msra.mxu0 %v970
  %1400 = vmatprep.subr.bf16.mxu0 0
  %1401 = vmatpush2.bf16.msra.mxu0 %v969
  %1402 = vmatprep.subr.bf16.mxu0 0
  %1403 = vmatpush2.bf16.msra.mxu0 %v968
  %1404 = vmatprep.subr.bf16.mxu0 0
  %1405 = vmatpush2.bf16.msra.mxu0 %v967
  %1406 = vmatprep.subr.bf16.mxu0 0
  %1407 = vmatpush2.bf16.msra.mxu0 %v966
  %1408 = vmatprep.subr.bf16.mxu0 0
  %1409 = vmatpush2.bf16.msra.mxu0 %v965
  %1410 = vmatprep.subr.bf16.mxu0 0
  %1411 = vmatpush2.bf16.msra.mxu0 %v964
  %1412 = vmatprep.mubr.bf16.mxu0 %v315
  %1413 = vmatmul.mubr.bf16.gmra.mxu0 %v314
  %v1414 = vpop.f32.mrf.mxu0
  %v1415 = vadd.f32 %v1375, %v1414
  %v1416 = vpop.f32.mrf.mxu0
  %v1417 = vpop.f32.mrf.mxu0
  %v1418 = vpop.f32.mrf.mxu0
  %1419 = vdwg.mxu0
  %v1420 = vxor.u32 %v1415, 2147483648
  %v1421 = vmul.f32 %v1420, 1.442695
  %v1422 = vpow.pop %v1421
  %v1423 = vadd.f32 %v1422, 1.0
  %v1424 = vrcp.pop %v1423
  %v1425 = vmul.f32 1.0, %v1424
  %1426 = vst [vmem:[%s2] sm:$0xff] %v1425
  // Predicated region
  $region10: #{discriminator_forward.15} parent=0 // pred_check
    _
  $region11: #{discriminator_forward.15} parent=0 // pred_check_branch
    %1428 = sbr.rel (0) target = $region13
  $region12: #{discriminator_forward.15} parent=0 // pred_region
    _
  $region13: #{discriminator_forward.15} parent=0 // pred_fallthru
    _
  // Predicated region
  $region14: #{discriminator_forward.15} parent=0 // pred_check
    _
  $region15: #{discriminator_forward.15} parent=0 // pred_check_branch
    %1430 = sbr.rel (0) target = $region17
  $region16: #{discriminator_forward.15} parent=0 // pred_region
    _
  $region17: #{discriminator_forward.15} parent=0 // pred_fallthru
    _

</llo_original>
